<compile_context>
chip_gen: v7x
topology: tpu7x:2x2x1
jax: 0.10.0
libtpu: 0.0.40
codegen_flags: <defaults>
</compile_context>

<pallas_src>
import functools

import jax
import jax.numpy as jnp
import numpy as np
from jax import lax
from jax.experimental import pallas as pl
from jax.experimental.pallas import tpu as pltpu

# indices into the stacked LSTM weight tensors (all six LSTMs share (H, 4H))
FOR1, FOR2, FORD, BACK1, BACK2, BACKD = range(6)


def _full_spec(shape):
    n = len(shape)
    return pl.BlockSpec(shape, lambda i, _n=n: (0,) * _n)


# ----------------------------------------------------------------------------
# fused ELMO_Max kernel
# ----------------------------------------------------------------------------
def elmo_max_kernel(x_ref, wih_ref, whh_ref, b_ref, outWT_ref, outb_ref,
                    out_ref, ae_ref, *, few, batch):
    """Fused ELMO_Max forward. x_ref is time-major (few, Bp, H) with Bp a
    sublane multiple; `batch` is the real (unpadded) batch size."""
    Bp = x_ref.shape[1]
    H = x_ref.shape[2]          # = 2 * embed_size
    F32 = jnp.float32

    # mask of valid (non-padded) batch rows for the AE loss reductions
    row_mask = (lax.broadcasted_iota(jnp.int32, (Bp, 1), 0) < batch).astype(F32)

    def gate_split(g):
        # PyTorch gate order i, f, g, o.  H is a multiple of 128, so each
        # slice is a whole-vreg (128-lane aligned) select.
        return (jax.nn.sigmoid(g[:, 0 * H:1 * H]),
                jax.nn.sigmoid(g[:, 1 * H:2 * H]),
                jnp.tanh(g[:, 2 * H:3 * H]),
                jax.nn.sigmoid(g[:, 3 * H:4 * H]))

    def lstm_layer(x_cat, idx):
        """Single-layer LSTM over a time-major (few*Bp, H) input; zero init
        state (PyTorch default).  Input projection + bias hoisted out of the
        loop; only the recurrent matmul stays on the serial path."""
        gx = (jnp.dot(x_cat, wih_ref[idx], preferred_element_type=F32)
              + b_ref[idx])                                    # bias folded once
        whh_t = whh_ref[idx]                                   # (H, 4H)
        h = jnp.zeros((Bp, H), F32)
        c = jnp.zeros((Bp, H), F32)
        outs = []
        # TODO(synk): if `few` grows beyond ~8, switch this static unroll to a
        # lax.fori_loop writing to a (few,Bp,H) VMEM scratch to bound live vregs.
        for t in range(few):
            gates = (gx[t * Bp:(t + 1) * Bp, :]
                     + jnp.dot(h, whh_t, preferred_element_type=F32))
            i, f, g, o = gate_split(gates)
            c = f * c + i * g
            h = o * jnp.tanh(c)
            outs.append(h)
        return outs, h, c

    def lstm_decode_forward(h0, c0, idx):
        """Forward autoregressive rollout.  Invariant: the input x equals the
        hidden state h on every step (x0 = enc2_for[-1] == hf and the reference
        updates them together), so gates = h @ (wih + whh) + bias -> one matmul
        per step."""
        w_comb = wih_ref[idx] + whh_ref[idx]                   # (H, 4H), once
        bias_b = jnp.broadcast_to(b_ref[idx], (Bp, 4 * H))     # hoisted broadcast
        h, c = h0, c0
        outs = []
        for _ in range(few):
            gates = jnp.dot(h, w_comb, preferred_element_type=F32) + bias_b
            i, f, g, o = gate_split(gates)
            c = f * c + i * g
            h = o * jnp.tanh(c)
            outs.append(h)
        return outs

    def lstm_decode_back(x0, h0, c0, idx):
        """Back autoregressive rollout.  The reference never updates (h, c)
        (bug preserved), so the recurrent term h0 @ whh + bias is
        loop-invariant and hoisted; only x @ wih is computed per step."""
        wih_t = wih_ref[idx]
        rec = (jnp.dot(h0, whh_ref[idx], preferred_element_type=F32)
               + b_ref[idx])                                   # (Bp, 4H), once
        x = x0
        outs = []
        for _ in range(few):
            gates = jnp.dot(x, wih_t, preferred_element_type=F32) + rec
            i, f, g, o = gate_split(gates)
            c_new = f * c0 + i * g
            h_new = o * jnp.tanh(c_new)
            outs.append(h_new)
            x = h_new
        return outs

    def sse(a_list, b_list):
        """Sum of squared differences over all timesteps / valid rows -> (1,1)."""
        acc = jnp.zeros((Bp, 1), F32)
        for a, b in zip(a_list, b_list):
            d = a - b
            acc = acc + jnp.sum(d * d, axis=1, keepdims=True)  # (Bp, 1)
        return jnp.sum(acc * row_mask, axis=0, keepdims=True)  # (1, 1)

    # ---- inputs (time-major) ------------------------------------------------
    x_all = x_ref[...]                                         # (few, Bp, H)
    xs = [x_all[t] for t in range(few)]                        # full (8,128) slabs
    x_cat_for = x_all.reshape(few * Bp, H)                     # contiguous view

    # ---- forward stream -----------------------------------------------------
    enc1_for, _, _ = lstm_layer(x_cat_for, FOR1)
    enc1_for = [e + x for e, x in zip(enc1_for, xs)]           # residual add
    enc2_for, hf, cf = lstm_layer(jnp.concatenate(enc1_for, axis=0), FOR2)
    dec_for = lstm_decode_forward(hf, cf, FORD)                # x0 == hf
    sse_for = sse(xs, dec_for)                                 # MSE vs inputs

    # ---- backward stream (time-reversed inputs) -----------------------------
    xs_b = xs[::-1]                                            # reverse()
    enc1_back, _, _ = lstm_layer(jnp.concatenate(xs_b, axis=0), BACK1)
    enc1_back = [e + x for e, x in zip(enc1_back, xs_b)]       # residual add
    enc2_back, hb, cb = lstm_layer(jnp.concatenate(enc1_back, axis=0), BACK2)
    dec_back = lstm_decode_back(enc2_back[-1], hb, cb, BACKD)  # frozen state
    sse_back = sse(xs_b, dec_back)                             # MSE vs reversed

    # ---- combine: inputs + for2 + reversed(back2), max over `few`, Linear ---
    enc2_back_rev = enc2_back[::-1]
    pooled = xs[0] + enc2_for[0] + enc2_back_rev[0]
    for t in range(1, few):
        pooled = jnp.maximum(pooled, xs[t] + enc2_for[t] + enc2_back_rev[t])

    out_ref[...] = (jnp.dot(pooled, outWT_ref[...], preferred_element_type=F32)
                    + outb_ref[...])                           # (Bp, out_size)
    # ae_for + ae_back, each normalized by the real batch * few * H
    ae_ref[...] = (sse_for + sse_back) * (1.0 / (batch * few * H))


def elmo_max_forward(params, inputs):
    """inputs: (B, few, 2, E) (or anything reshapeable to (B, few, 2E))."""
    B, few = inputs.shape[0], inputs.shape[1]
    x = inputs.reshape(B, few, -1).astype(jnp.float32)         # (B, few, 2E)
    H = x.shape[-1]
    O = params['outb'].shape[-1]

    # layout plumbing in the wrapper is free: time-major + pad batch to a
    # sublane multiple so every (Bp, H) tile in the kernel is a full vreg slab.
    SUB = 8
    Bp = ((B + SUB - 1) // SUB) * SUB
    x_tm = jnp.transpose(x, (1, 0, 2))                         # (few, B, H)
    if Bp != B:
        x_tm = jnp.pad(x_tm, ((0, 0), (0, Bp - B), (0, 0)))

    kernel = functools.partial(elmo_max_kernel, few=few, batch=B)
    out, ae = pl.pallas_call(
        kernel,
        out_shape=(jax.ShapeDtypeStruct((Bp, O), jnp.float32),
                   jax.ShapeDtypeStruct((1, 1), jnp.float32)),
        grid=(1,),
        in_specs=[_full_spec(x_tm.shape),
                  _full_spec(params['wih'].shape),
                  _full_spec(params['whh'].shape),
                  _full_spec(params['b'].shape),
                  _full_spec(params['outWT'].shape),
                  _full_spec(params['outb'].shape)],
        out_specs=(_full_spec((Bp, O)), _full_spec((1, 1))),
        compiler_params=pltpu.CompilerParams(
            dimension_semantics=("arbitrary",)),
    )(x_tm, params['wih'], params['whh'], params['b'],
      params['outWT'], params['outb'])
    return out[:B].reshape(B, 1, 1, O), ae[0, 0]


# ----------------------------------------------------------------------------
# deterministic synthetic parameters, already in MXU-friendly orientation
# ----------------------------------------------------------------------------
def init_params(key, *, embed_size, out_size):
    H = 2 * embed_size
    k = jax.random.split(key, 5)
    s = 0.1
    return dict(
        # stacked per-LSTM weights [for1, for2, for_dec, back1, back2, back_dec]
        wih=(s * jax.random.normal(k[0], (6, H, 4 * H))).astype(jnp.float32),   # w_ih.T
        whh=(s * jax.random.normal(k[1], (6, H, 4 * H))).astype(jnp.float32),   # w_hh.T
        b=(s * jax.random.normal(k[2], (6, 1, 4 * H))).astype(jnp.float32),     # b_ih + b_hh
        outWT=(s * jax.random.normal(k[3], (H, out_size))).astype(jnp.float32), # out.weight.T
        outb=(s * jax.random.normal(k[4], (1, out_size))).astype(jnp.float32),  # out.bias
    )


# ----------------------------------------------------------------------------
# pure-JAX reference (mirrors the PyTorch forward exactly) for validation
# ----------------------------------------------------------------------------
def elmo_max_ref(params, inputs):
    B, few = inputs.shape[0], inputs.shape[1]
    x = inputs.reshape(B, few, -1).astype(jnp.float32)
    H = x.shape[-1]
    hdot = functools.partial(jnp.dot, precision=jax.lax.Precision.HIGHEST)

    def split(g):
        return (jax.nn.sigmoid(g[:, :H]), jax.nn.sigmoid(g[:, H:2 * H]),
                jnp.tanh(g[:, 2 * H:3 * H]), jax.nn.sigmoid(g[:, 3 * H:]))

    def lstm_seq(xseq, idx):
        wih, whh, bias = params['wih'][idx], params['whh'][idx], params['b'][idx]
        h = jnp.zeros((B, H)); c = jnp.zeros((B, H)); outs = []
        for t in range(xseq.shape[1]):
            g = hdot(xseq[:, t, :], wih) + hdot(h, whh) + bias
            i, f, gg, o = split(g)
            c = f * c + i * gg
            h = o * jnp.tanh(c)
            outs.append(h)
        return jnp.stack(outs, axis=1), h, c

    def lstm_dec(x0, h0, c0, idx, steps, update_state):
        wih, whh, bias = params['wih'][idx], params['whh'][idx], params['b'][idx]
        x, h, c = x0, h0, c0; outs = []
        for _ in range(steps):
            g = hdot(x, wih) + hdot(h, whh) + bias
            i, f, gg, o = split(g)
            c_new = f * c + i * gg
            h_new = o * jnp.tanh(c_new)
            outs.append(h_new)
            x = h_new
            if update_state:
                h, c = h_new, c_new
        return jnp.stack(outs, axis=1)

    enc1, _, _ = lstm_seq(x, FOR1)
    enc1 = enc1 + x
    enc2_for, hf, cf = lstm_seq(enc1, FOR2)
    dec_for = lstm_dec(enc2_for[:, -1, :], hf, cf, FORD, few, True)
    ae_for = jnp.mean((x - dec_for) ** 2)

    xb = jnp.flip(x, axis=1)
    enc1b, _, _ = lstm_seq(xb, BACK1)
    enc1b = enc1b + xb
    enc2_back, hb, cb = lstm_seq(enc1b, BACK2)
    dec_back = lstm_dec(enc2_back[:, -1, :], hb, cb, BACKD, few, False)
    ae_back = jnp.mean((xb - dec_back) ** 2)

    enc = x + enc2_for + jnp.flip(enc2_back, axis=1)
    pooled = jnp.max(enc, axis=1)
    out = hdot(pooled, params['outWT']) + params['outb']
    return out.reshape(B, 1, 1, -1), ae_for + ae_back


# ----------------------------------------------------------------------------
if __name__ == "__main__":
    # small but lane-friendly shapes: H = 2*embed_size = 128, out_size = 128
    B, few, embed_size, out_size = 2, 4, 64, 128

    key = jax.random.PRNGKey(0)
    kp, kx = jax.random.split(key)
    params = init_params(kp, embed_size=embed_size, out_size=out_size)
    inputs = jax.random.normal(kx, (B, few, 2, embed_size), dtype=jnp.float32)

    fwd = jax.jit(elmo_max_forward)
    out, ae_loss = fwd(params, inputs)
    jax.block_until_ready((out, ae_loss))

    assert out.shape == (B, 1, 1, out_size)
    assert ae_loss.shape == ()

    out_r, ae_r = elmo_max_ref(params, inputs)
    np.testing.assert_allclose(np.asarray(out), np.asarray(out_r), rtol=2e-3, atol=2e-3)
    np.testing.assert_allclose(float(ae_loss), float(ae_r), rtol=2e-3, atol=2e-3)

    print("KERNEL_OK")
</pallas_src>

<mosaic_0001>
module attributes {stable_mosaic.version = 11 : i64} {
  func.func @elmo_max_kernel(%arg0: i32, %arg1: memref<4x8x128xf32, #tpu.memory_space<vmem>>, %arg2: memref<6x128x512xf32, #tpu.memory_space<vmem>>, %arg3: memref<6x128x512xf32, #tpu.memory_space<vmem>>, %arg4: memref<6x1x512xf32, #tpu.memory_space<vmem>>, %arg5: memref<128x128xf32, #tpu.memory_space<vmem>>, %arg6: memref<1x128xf32, #tpu.memory_space<vmem>>, %arg7: memref<8x128xf32, #tpu.memory_space<vmem>>, %arg8: memref<1x1xf32, #tpu.memory_space<vmem>>) attributes {dimension_semantics = [#tpu.dimension_semantics<arbitrary>], iteration_bounds = array<i64: 1>, scalar_prefetch = 0 : i64, scratch_operands = 0 : i64, tpu.core_type = #tpu.core_type<tc>, window_params = [{pipeline_mode = #tpu.pipeline_mode<synchronous>, transform_indices = @transform_0, window_bounds = array<i64: 4, 8, 128>}, {pipeline_mode = #tpu.pipeline_mode<synchronous>, transform_indices = @transform_1, window_bounds = array<i64: 6, 128, 512>}, {pipeline_mode = #tpu.pipeline_mode<synchronous>, transform_indices = @transform_2, window_bounds = array<i64: 6, 128, 512>}, {pipeline_mode = #tpu.pipeline_mode<synchronous>, transform_indices = @transform_3, window_bounds = array<i64: 6, 1, 512>}, {pipeline_mode = #tpu.pipeline_mode<synchronous>, transform_indices = @transform_4, window_bounds = array<i64: 128, 128>}, {pipeline_mode = #tpu.pipeline_mode<synchronous>, transform_indices = @transform_5, window_bounds = array<i64: 1, 128>}, {pipeline_mode = #tpu.pipeline_mode<synchronous>, transform_indices = @transform_6, window_bounds = array<i64: 8, 128>}, {pipeline_mode = #tpu.pipeline_mode<synchronous>, transform_indices = @transform_7, window_bounds = array<i64: 1, 1>}]} {
    %0 = tpu.iota {dimensions = array<i32: 0>} : vector<8x1xi32>
    %c2_i32 = arith.constant 2 : i32
    %1 = vector.broadcast %c2_i32 : i32 to vector<8x1xi32>
    %2 = arith.cmpi slt, %0, %1 : vector<8x1xi32>
    %3 = arith.extui %2 : vector<8x1xi1> to vector<8x1xi32>
    %4 = arith.sitofp %3 : vector<8x1xi32> to vector<8x1xf32>
    %c0 = arith.constant 0 : index
    %c0_0 = arith.constant 0 : index
    %c0_1 = arith.constant 0 : index
    %5 = vector.load %arg1[%c0, %c0_0, %c0_1] : memref<4x8x128xf32, #tpu.memory_space<vmem>>, vector<4x8x128xf32>
    %6 = vector.extract_strided_slice %5 {offsets = [0, 0, 0], sizes = [1, 8, 128], strides = [1, 1, 1]} : vector<4x8x128xf32> to vector<1x8x128xf32>
    %7 = vector.shape_cast %6 : vector<1x8x128xf32> to vector<8x128xf32>
    %8 = vector.extract_strided_slice %5 {offsets = [1, 0, 0], sizes = [1, 8, 128], strides = [1, 1, 1]} : vector<4x8x128xf32> to vector<1x8x128xf32>
    %9 = vector.shape_cast %8 : vector<1x8x128xf32> to vector<8x128xf32>
    %10 = vector.extract_strided_slice %5 {offsets = [2, 0, 0], sizes = [1, 8, 128], strides = [1, 1, 1]} : vector<4x8x128xf32> to vector<1x8x128xf32>
    %11 = vector.shape_cast %10 : vector<1x8x128xf32> to vector<8x128xf32>
    %12 = vector.extract_strided_slice %5 {offsets = [3, 0, 0], sizes = [1, 8, 128], strides = [1, 1, 1]} : vector<4x8x128xf32> to vector<1x8x128xf32>
    %13 = vector.shape_cast %12 : vector<1x8x128xf32> to vector<8x128xf32>
    %14 = vector.shape_cast %5 : vector<4x8x128xf32> to vector<32x128xf32>
    %c0_2 = arith.constant 0 : index
    %c0_3 = arith.constant 0 : index
    %c0_4 = arith.constant 0 : index
    %15 = vector.load %arg2[%c0_2, %c0_3, %c0_4] : memref<6x128x512xf32, #tpu.memory_space<vmem>>, vector<1x128x512xf32>
    %16 = vector.shape_cast %15 : vector<1x128x512xf32> to vector<128x512xf32>
    %cst = arith.constant dense<0.000000e+00> : vector<32x512xf32>
    %17 = tpu.matmul %14, %16, %cst {dimension_numbers = #tpu.dot_dimension_numbers<[1], [0], [0], [1], [0, 0, 1, 1], [], []>} : vector<32x128xf32>, vector<128x512xf32>, vector<32x512xf32> -> vector<32x512xf32>
    %c0_5 = arith.constant 0 : index
    %c0_6 = arith.constant 0 : index
    %c0_7 = arith.constant 0 : index
    %18 = vector.load %arg4[%c0_5, %c0_6, %c0_7] : memref<6x1x512xf32, #tpu.memory_space<vmem>>, vector<1x1x512xf32>
    %19 = vector.shape_cast %18 : vector<1x1x512xf32> to vector<1x512xf32>
    %20 = vector.broadcast %19 : vector<1x512xf32> to vector<32x512xf32>
    %21 = arith.addf %17, %20 : vector<32x512xf32>
    %c0_8 = arith.constant 0 : index
    %c0_9 = arith.constant 0 : index
    %c0_10 = arith.constant 0 : index
    %22 = vector.load %arg3[%c0_8, %c0_9, %c0_10] : memref<6x128x512xf32, #tpu.memory_space<vmem>>, vector<1x128x512xf32>
    %23 = vector.shape_cast %22 : vector<1x128x512xf32> to vector<128x512xf32>
    %cst_11 = arith.constant 0.000000e+00 : f32
    %24 = vector.broadcast %cst_11 : f32 to vector<8x128xf32>
    %cst_12 = arith.constant 0.000000e+00 : f32
    %25 = vector.broadcast %cst_12 : f32 to vector<8x128xf32>
    %26 = vector.extract_strided_slice %21 {offsets = [0, 0], sizes = [8, 512], strides = [1, 1]} : vector<32x512xf32> to vector<8x512xf32>
    %cst_13 = arith.constant dense<0.000000e+00> : vector<8x512xf32>
    %27 = tpu.matmul %24, %23, %cst_13 {dimension_numbers = #tpu.dot_dimension_numbers<[1], [0], [0], [1], [0, 0, 1, 1], [], []>} : vector<8x128xf32>, vector<128x512xf32>, vector<8x512xf32> -> vector<8x512xf32>
    %28 = arith.addf %26, %27 : vector<8x512xf32>
    %29 = vector.extract_strided_slice %28 {offsets = [0, 0], sizes = [8, 128], strides = [1, 1]} : vector<8x512xf32> to vector<8x128xf32>
    %30 = arith.negf %29 : vector<8x128xf32>
    %31 = math.exp %30 : vector<8x128xf32>
    %cst_14 = arith.constant 1.000000e+00 : f32
    %32 = vector.broadcast %cst_14 : f32 to vector<8x128xf32>
    %33 = arith.addf %32, %31 : vector<8x128xf32>
    %34 = arith.divf %32, %33 : vector<8x128xf32>
    %35 = vector.extract_strided_slice %28 {offsets = [0, 128], sizes = [8, 128], strides = [1, 1]} : vector<8x512xf32> to vector<8x128xf32>
    %36 = arith.negf %35 : vector<8x128xf32>
    %37 = math.exp %36 : vector<8x128xf32>
    %cst_15 = arith.constant 1.000000e+00 : f32
    %38 = vector.broadcast %cst_15 : f32 to vector<8x128xf32>
    %39 = arith.addf %38, %37 : vector<8x128xf32>
    %40 = arith.divf %38, %39 : vector<8x128xf32>
    %41 = vector.extract_strided_slice %28 {offsets = [0, 256], sizes = [8, 128], strides = [1, 1]} : vector<8x512xf32> to vector<8x128xf32>
    %42 = math.tanh %41 : vector<8x128xf32>
    %43 = vector.extract_strided_slice %28 {offsets = [0, 384], sizes = [8, 128], strides = [1, 1]} : vector<8x512xf32> to vector<8x128xf32>
    %44 = arith.negf %43 : vector<8x128xf32>
    %45 = math.exp %44 : vector<8x128xf32>
    %cst_16 = arith.constant 1.000000e+00 : f32
    %46 = vector.broadcast %cst_16 : f32 to vector<8x128xf32>
    %47 = arith.addf %46, %45 : vector<8x128xf32>
    %48 = arith.divf %46, %47 : vector<8x128xf32>
    %49 = arith.mulf %40, %25 : vector<8x128xf32>
    %50 = arith.mulf %34, %42 : vector<8x128xf32>
    %51 = arith.addf %49, %50 : vector<8x128xf32>
    %52 = math.tanh %51 : vector<8x128xf32>
    %53 = arith.mulf %48, %52 : vector<8x128xf32>
    %54 = vector.extract_strided_slice %21 {offsets = [8, 0], sizes = [8, 512], strides = [1, 1]} : vector<32x512xf32> to vector<8x512xf32>
    %cst_17 = arith.constant dense<0.000000e+00> : vector<8x512xf32>
    %55 = tpu.matmul %53, %23, %cst_17 {dimension_numbers = #tpu.dot_dimension_numbers<[1], [0], [0], [1], [0, 0, 1, 1], [], []>} : vector<8x128xf32>, vector<128x512xf32>, vector<8x512xf32> -> vector<8x512xf32>
    %56 = arith.addf %54, %55 : vector<8x512xf32>
    %57 = vector.extract_strided_slice %56 {offsets = [0, 0], sizes = [8, 128], strides = [1, 1]} : vector<8x512xf32> to vector<8x128xf32>
    %58 = arith.negf %57 : vector<8x128xf32>
    %59 = math.exp %58 : vector<8x128xf32>
    %cst_18 = arith.constant 1.000000e+00 : f32
    %60 = vector.broadcast %cst_18 : f32 to vector<8x128xf32>
    %61 = arith.addf %60, %59 : vector<8x128xf32>
    %62 = arith.divf %60, %61 : vector<8x128xf32>
    %63 = vector.extract_strided_slice %56 {offsets = [0, 128], sizes = [8, 128], strides = [1, 1]} : vector<8x512xf32> to vector<8x128xf32>
    %64 = arith.negf %63 : vector<8x128xf32>
    %65 = math.exp %64 : vector<8x128xf32>
    %cst_19 = arith.constant 1.000000e+00 : f32
    %66 = vector.broadcast %cst_19 : f32 to vector<8x128xf32>
    %67 = arith.addf %66, %65 : vector<8x128xf32>
    %68 = arith.divf %66, %67 : vector<8x128xf32>
    %69 = vector.extract_strided_slice %56 {offsets = [0, 256], sizes = [8, 128], strides = [1, 1]} : vector<8x512xf32> to vector<8x128xf32>
    %70 = math.tanh %69 : vector<8x128xf32>
    %71 = vector.extract_strided_slice %56 {offsets = [0, 384], sizes = [8, 128], strides = [1, 1]} : vector<8x512xf32> to vector<8x128xf32>
    %72 = arith.negf %71 : vector<8x128xf32>
    %73 = math.exp %72 : vector<8x128xf32>
    %cst_20 = arith.constant 1.000000e+00 : f32
    %74 = vector.broadcast %cst_20 : f32 to vector<8x128xf32>
    %75 = arith.addf %74, %73 : vector<8x128xf32>
    %76 = arith.divf %74, %75 : vector<8x128xf32>
    %77 = arith.mulf %68, %51 : vector<8x128xf32>
    %78 = arith.mulf %62, %70 : vector<8x128xf32>
    %79 = arith.addf %77, %78 : vector<8x128xf32>
    %80 = math.tanh %79 : vector<8x128xf32>
    %81 = arith.mulf %76, %80 : vector<8x128xf32>
    %82 = vector.extract_strided_slice %21 {offsets = [16, 0], sizes = [8, 512], strides = [1, 1]} : vector<32x512xf32> to vector<8x512xf32>
    %cst_21 = arith.constant dense<0.000000e+00> : vector<8x512xf32>
    %83 = tpu.matmul %81, %23, %cst_21 {dimension_numbers = #tpu.dot_dimension_numbers<[1], [0], [0], [1], [0, 0, 1, 1], [], []>} : vector<8x128xf32>, vector<128x512xf32>, vector<8x512xf32> -> vector<8x512xf32>
    %84 = arith.addf %82, %83 : vector<8x512xf32>
    %85 = vector.extract_strided_slice %84 {offsets = [0, 0], sizes = [8, 128], strides = [1, 1]} : vector<8x512xf32> to vector<8x128xf32>
    %86 = arith.negf %85 : vector<8x128xf32>
    %87 = math.exp %86 : vector<8x128xf32>
    %cst_22 = arith.constant 1.000000e+00 : f32
    %88 = vector.broadcast %cst_22 : f32 to vector<8x128xf32>
    %89 = arith.addf %88, %87 : vector<8x128xf32>
    %90 = arith.divf %88, %89 : vector<8x128xf32>
    %91 = vector.extract_strided_slice %84 {offsets = [0, 128], sizes = [8, 128], strides = [1, 1]} : vector<8x512xf32> to vector<8x128xf32>
    %92 = arith.negf %91 : vector<8x128xf32>
    %93 = math.exp %92 : vector<8x128xf32>
    %cst_23 = arith.constant 1.000000e+00 : f32
    %94 = vector.broadcast %cst_23 : f32 to vector<8x128xf32>
    %95 = arith.addf %94, %93 : vector<8x128xf32>
    %96 = arith.divf %94, %95 : vector<8x128xf32>
    %97 = vector.extract_strided_slice %84 {offsets = [0, 256], sizes = [8, 128], strides = [1, 1]} : vector<8x512xf32> to vector<8x128xf32>
    %98 = math.tanh %97 : vector<8x128xf32>
    %99 = vector.extract_strided_slice %84 {offsets = [0, 384], sizes = [8, 128], strides = [1, 1]} : vector<8x512xf32> to vector<8x128xf32>
    %100 = arith.negf %99 : vector<8x128xf32>
    %101 = math.exp %100 : vector<8x128xf32>
    %cst_24 = arith.constant 1.000000e+00 : f32
    %102 = vector.broadcast %cst_24 : f32 to vector<8x128xf32>
    %103 = arith.addf %102, %101 : vector<8x128xf32>
    %104 = arith.divf %102, %103 : vector<8x128xf32>
    %105 = arith.mulf %96, %79 : vector<8x128xf32>
    %106 = arith.mulf %90, %98 : vector<8x128xf32>
    %107 = arith.addf %105, %106 : vector<8x128xf32>
    %108 = math.tanh %107 : vector<8x128xf32>
    %109 = arith.mulf %104, %108 : vector<8x128xf32>
    %110 = vector.extract_strided_slice %21 {offsets = [24, 0], sizes = [8, 512], strides = [1, 1]} : vector<32x512xf32> to vector<8x512xf32>
    %cst_25 = arith.constant dense<0.000000e+00> : vector<8x512xf32>
    %111 = tpu.matmul %109, %23, %cst_25 {dimension_numbers = #tpu.dot_dimension_numbers<[1], [0], [0], [1], [0, 0, 1, 1], [], []>} : vector<8x128xf32>, vector<128x512xf32>, vector<8x512xf32> -> vector<8x512xf32>
    %112 = arith.addf %110, %111 : vector<8x512xf32>
    %113 = vector.extract_strided_slice %112 {offsets = [0, 0], sizes = [8, 128], strides = [1, 1]} : vector<8x512xf32> to vector<8x128xf32>
    %114 = arith.negf %113 : vector<8x128xf32>
    %115 = math.exp %114 : vector<8x128xf32>
    %cst_26 = arith.constant 1.000000e+00 : f32
    %116 = vector.broadcast %cst_26 : f32 to vector<8x128xf32>
    %117 = arith.addf %116, %115 : vector<8x128xf32>
    %118 = arith.divf %116, %117 : vector<8x128xf32>
    %119 = vector.extract_strided_slice %112 {offsets = [0, 128], sizes = [8, 128], strides = [1, 1]} : vector<8x512xf32> to vector<8x128xf32>
    %120 = arith.negf %119 : vector<8x128xf32>
    %121 = math.exp %120 : vector<8x128xf32>
    %cst_27 = arith.constant 1.000000e+00 : f32
    %122 = vector.broadcast %cst_27 : f32 to vector<8x128xf32>
    %123 = arith.addf %122, %121 : vector<8x128xf32>
    %124 = arith.divf %122, %123 : vector<8x128xf32>
    %125 = vector.extract_strided_slice %112 {offsets = [0, 256], sizes = [8, 128], strides = [1, 1]} : vector<8x512xf32> to vector<8x128xf32>
    %126 = math.tanh %125 : vector<8x128xf32>
    %127 = vector.extract_strided_slice %112 {offsets = [0, 384], sizes = [8, 128], strides = [1, 1]} : vector<8x512xf32> to vector<8x128xf32>
    %128 = arith.negf %127 : vector<8x128xf32>
    %129 = math.exp %128 : vector<8x128xf32>
    %cst_28 = arith.constant 1.000000e+00 : f32
    %130 = vector.broadcast %cst_28 : f32 to vector<8x128xf32>
    %131 = arith.addf %130, %129 : vector<8x128xf32>
    %132 = arith.divf %130, %131 : vector<8x128xf32>
    %133 = arith.mulf %124, %107 : vector<8x128xf32>
    %134 = arith.mulf %118, %126 : vector<8x128xf32>
    %135 = arith.addf %133, %134 : vector<8x128xf32>
    %136 = math.tanh %135 : vector<8x128xf32>
    %137 = arith.mulf %132, %136 : vector<8x128xf32>
    %138 = arith.addf %53, %7 : vector<8x128xf32>
    %139 = arith.addf %81, %9 : vector<8x128xf32>
    %140 = arith.addf %109, %11 : vector<8x128xf32>
    %141 = arith.addf %137, %13 : vector<8x128xf32>
    %142 = tpu.concatenate %138, %139, %140, %141 in 0 : vector<8x128xf32>, vector<8x128xf32>, vector<8x128xf32>, vector<8x128xf32> -> vector<32x128xf32>
    %c1 = arith.constant 1 : index
    %c0_29 = arith.constant 0 : index
    %c0_30 = arith.constant 0 : index
    %143 = vector.load %arg2[%c1, %c0_29, %c0_30] : memref<6x128x512xf32, #tpu.memory_space<vmem>>, vector<1x128x512xf32>
    %144 = vector.shape_cast %143 : vector<1x128x512xf32> to vector<128x512xf32>
    %cst_31 = arith.constant dense<0.000000e+00> : vector<32x512xf32>
    %145 = tpu.matmul %142, %144, %cst_31 {dimension_numbers = #tpu.dot_dimension_numbers<[1], [0], [0], [1], [0, 0, 1, 1], [], []>} : vector<32x128xf32>, vector<128x512xf32>, vector<32x512xf32> -> vector<32x512xf32>
    %c1_32 = arith.constant 1 : index
    %c0_33 = arith.constant 0 : index
    %c0_34 = arith.constant 0 : index
    %146 = vector.load %arg4[%c1_32, %c0_33, %c0_34] : memref<6x1x512xf32, #tpu.memory_space<vmem>>, vector<1x1x512xf32>
    %147 = vector.shape_cast %146 : vector<1x1x512xf32> to vector<1x512xf32>
    %148 = vector.broadcast %147 : vector<1x512xf32> to vector<32x512xf32>
    %149 = arith.addf %145, %148 : vector<32x512xf32>
    %c1_35 = arith.constant 1 : index
    %c0_36 = arith.constant 0 : index
    %c0_37 = arith.constant 0 : index
    %150 = vector.load %arg3[%c1_35, %c0_36, %c0_37] : memref<6x128x512xf32, #tpu.memory_space<vmem>>, vector<1x128x512xf32>
    %151 = vector.shape_cast %150 : vector<1x128x512xf32> to vector<128x512xf32>
    %cst_38 = arith.constant 0.000000e+00 : f32
    %152 = vector.broadcast %cst_38 : f32 to vector<8x128xf32>
    %cst_39 = arith.constant 0.000000e+00 : f32
    %153 = vector.broadcast %cst_39 : f32 to vector<8x128xf32>
    %154 = vector.extract_strided_slice %149 {offsets = [0, 0], sizes = [8, 512], strides = [1, 1]} : vector<32x512xf32> to vector<8x512xf32>
    %cst_40 = arith.constant dense<0.000000e+00> : vector<8x512xf32>
    %155 = tpu.matmul %152, %151, %cst_40 {dimension_numbers = #tpu.dot_dimension_numbers<[1], [0], [0], [1], [0, 0, 1, 1], [], []>} : vector<8x128xf32>, vector<128x512xf32>, vector<8x512xf32> -> vector<8x512xf32>
    %156 = arith.addf %154, %155 : vector<8x512xf32>
    %157 = vector.extract_strided_slice %156 {offsets = [0, 0], sizes = [8, 128], strides = [1, 1]} : vector<8x512xf32> to vector<8x128xf32>
    %158 = arith.negf %157 : vector<8x128xf32>
    %159 = math.exp %158 : vector<8x128xf32>
    %cst_41 = arith.constant 1.000000e+00 : f32
    %160 = vector.broadcast %cst_41 : f32 to vector<8x128xf32>
    %161 = arith.addf %160, %159 : vector<8x128xf32>
    %162 = arith.divf %160, %161 : vector<8x128xf32>
    %163 = vector.extract_strided_slice %156 {offsets = [0, 128], sizes = [8, 128], strides = [1, 1]} : vector<8x512xf32> to vector<8x128xf32>
    %164 = arith.negf %163 : vector<8x128xf32>
    %165 = math.exp %164 : vector<8x128xf32>
    %cst_42 = arith.constant 1.000000e+00 : f32
    %166 = vector.broadcast %cst_42 : f32 to vector<8x128xf32>
    %167 = arith.addf %166, %165 : vector<8x128xf32>
    %168 = arith.divf %166, %167 : vector<8x128xf32>
    %169 = vector.extract_strided_slice %156 {offsets = [0, 256], sizes = [8, 128], strides = [1, 1]} : vector<8x512xf32> to vector<8x128xf32>
    %170 = math.tanh %169 : vector<8x128xf32>
    %171 = vector.extract_strided_slice %156 {offsets = [0, 384], sizes = [8, 128], strides = [1, 1]} : vector<8x512xf32> to vector<8x128xf32>
    %172 = arith.negf %171 : vector<8x128xf32>
    %173 = math.exp %172 : vector<8x128xf32>
    %cst_43 = arith.constant 1.000000e+00 : f32
    %174 = vector.broadcast %cst_43 : f32 to vector<8x128xf32>
    %175 = arith.addf %174, %173 : vector<8x128xf32>
    %176 = arith.divf %174, %175 : vector<8x128xf32>
    %177 = arith.mulf %168, %153 : vector<8x128xf32>
    %178 = arith.mulf %162, %170 : vector<8x128xf32>
    %179 = arith.addf %177, %178 : vector<8x128xf32>
    %180 = math.tanh %179 : vector<8x128xf32>
    %181 = arith.mulf %176, %180 : vector<8x128xf32>
    %182 = vector.extract_strided_slice %149 {offsets = [8, 0], sizes = [8, 512], strides = [1, 1]} : vector<32x512xf32> to vector<8x512xf32>
    %cst_44 = arith.constant dense<0.000000e+00> : vector<8x512xf32>
    %183 = tpu.matmul %181, %151, %cst_44 {dimension_numbers = #tpu.dot_dimension_numbers<[1], [0], [0], [1], [0, 0, 1, 1], [], []>} : vector<8x128xf32>, vector<128x512xf32>, vector<8x512xf32> -> vector<8x512xf32>
    %184 = arith.addf %182, %183 : vector<8x512xf32>
    %185 = vector.extract_strided_slice %184 {offsets = [0, 0], sizes = [8, 128], strides = [1, 1]} : vector<8x512xf32> to vector<8x128xf32>
    %186 = arith.negf %185 : vector<8x128xf32>
    %187 = math.exp %186 : vector<8x128xf32>
    %cst_45 = arith.constant 1.000000e+00 : f32
    %188 = vector.broadcast %cst_45 : f32 to vector<8x128xf32>
    %189 = arith.addf %188, %187 : vector<8x128xf32>
    %190 = arith.divf %188, %189 : vector<8x128xf32>
    %191 = vector.extract_strided_slice %184 {offsets = [0, 128], sizes = [8, 128], strides = [1, 1]} : vector<8x512xf32> to vector<8x128xf32>
    %192 = arith.negf %191 : vector<8x128xf32>
    %193 = math.exp %192 : vector<8x128xf32>
    %cst_46 = arith.constant 1.000000e+00 : f32
    %194 = vector.broadcast %cst_46 : f32 to vector<8x128xf32>
    %195 = arith.addf %194, %193 : vector<8x128xf32>
    %196 = arith.divf %194, %195 : vector<8x128xf32>
    %197 = vector.extract_strided_slice %184 {offsets = [0, 256], sizes = [8, 128], strides = [1, 1]} : vector<8x512xf32> to vector<8x128xf32>
    %198 = math.tanh %197 : vector<8x128xf32>
    %199 = vector.extract_strided_slice %184 {offsets = [0, 384], sizes = [8, 128], strides = [1, 1]} : vector<8x512xf32> to vector<8x128xf32>
    %200 = arith.negf %199 : vector<8x128xf32>
    %201 = math.exp %200 : vector<8x128xf32>
    %cst_47 = arith.constant 1.000000e+00 : f32
    %202 = vector.broadcast %cst_47 : f32 to vector<8x128xf32>
    %203 = arith.addf %202, %201 : vector<8x128xf32>
    %204 = arith.divf %202, %203 : vector<8x128xf32>
    %205 = arith.mulf %196, %179 : vector<8x128xf32>
    %206 = arith.mulf %190, %198 : vector<8x128xf32>
    %207 = arith.addf %205, %206 : vector<8x128xf32>
    %208 = math.tanh %207 : vector<8x128xf32>
    %209 = arith.mulf %204, %208 : vector<8x128xf32>
    %210 = vector.extract_strided_slice %149 {offsets = [16, 0], sizes = [8, 512], strides = [1, 1]} : vector<32x512xf32> to vector<8x512xf32>
    %cst_48 = arith.constant dense<0.000000e+00> : vector<8x512xf32>
    %211 = tpu.matmul %209, %151, %cst_48 {dimension_numbers = #tpu.dot_dimension_numbers<[1], [0], [0], [1], [0, 0, 1, 1], [], []>} : vector<8x128xf32>, vector<128x512xf32>, vector<8x512xf32> -> vector<8x512xf32>
    %212 = arith.addf %210, %211 : vector<8x512xf32>
    %213 = vector.extract_strided_slice %212 {offsets = [0, 0], sizes = [8, 128], strides = [1, 1]} : vector<8x512xf32> to vector<8x128xf32>
    %214 = arith.negf %213 : vector<8x128xf32>
    %215 = math.exp %214 : vector<8x128xf32>
    %cst_49 = arith.constant 1.000000e+00 : f32
    %216 = vector.broadcast %cst_49 : f32 to vector<8x128xf32>
    %217 = arith.addf %216, %215 : vector<8x128xf32>
    %218 = arith.divf %216, %217 : vector<8x128xf32>
    %219 = vector.extract_strided_slice %212 {offsets = [0, 128], sizes = [8, 128], strides = [1, 1]} : vector<8x512xf32> to vector<8x128xf32>
    %220 = arith.negf %219 : vector<8x128xf32>
    %221 = math.exp %220 : vector<8x128xf32>
    %cst_50 = arith.constant 1.000000e+00 : f32
    %222 = vector.broadcast %cst_50 : f32 to vector<8x128xf32>
    %223 = arith.addf %222, %221 : vector<8x128xf32>
    %224 = arith.divf %222, %223 : vector<8x128xf32>
    %225 = vector.extract_strided_slice %212 {offsets = [0, 256], sizes = [8, 128], strides = [1, 1]} : vector<8x512xf32> to vector<8x128xf32>
    %226 = math.tanh %225 : vector<8x128xf32>
    %227 = vector.extract_strided_slice %212 {offsets = [0, 384], sizes = [8, 128], strides = [1, 1]} : vector<8x512xf32> to vector<8x128xf32>
    %228 = arith.negf %227 : vector<8x128xf32>
    %229 = math.exp %228 : vector<8x128xf32>
    %cst_51 = arith.constant 1.000000e+00 : f32
    %230 = vector.broadcast %cst_51 : f32 to vector<8x128xf32>
    %231 = arith.addf %230, %229 : vector<8x128xf32>
    %232 = arith.divf %230, %231 : vector<8x128xf32>
    %233 = arith.mulf %224, %207 : vector<8x128xf32>
    %234 = arith.mulf %218, %226 : vector<8x128xf32>
    %235 = arith.addf %233, %234 : vector<8x128xf32>
    %236 = math.tanh %235 : vector<8x128xf32>
    %237 = arith.mulf %232, %236 : vector<8x128xf32>
    %238 = vector.extract_strided_slice %149 {offsets = [24, 0], sizes = [8, 512], strides = [1, 1]} : vector<32x512xf32> to vector<8x512xf32>
    %cst_52 = arith.constant dense<0.000000e+00> : vector<8x512xf32>
    %239 = tpu.matmul %237, %151, %cst_52 {dimension_numbers = #tpu.dot_dimension_numbers<[1], [0], [0], [1], [0, 0, 1, 1], [], []>} : vector<8x128xf32>, vector<128x512xf32>, vector<8x512xf32> -> vector<8x512xf32>
    %240 = arith.addf %238, %239 : vector<8x512xf32>
    %241 = vector.extract_strided_slice %240 {offsets = [0, 0], sizes = [8, 128], strides = [1, 1]} : vector<8x512xf32> to vector<8x128xf32>
    %242 = arith.negf %241 : vector<8x128xf32>
    %243 = math.exp %242 : vector<8x128xf32>
    %cst_53 = arith.constant 1.000000e+00 : f32
    %244 = vector.broadcast %cst_53 : f32 to vector<8x128xf32>
    %245 = arith.addf %244, %243 : vector<8x128xf32>
    %246 = arith.divf %244, %245 : vector<8x128xf32>
    %247 = vector.extract_strided_slice %240 {offsets = [0, 128], sizes = [8, 128], strides = [1, 1]} : vector<8x512xf32> to vector<8x128xf32>
    %248 = arith.negf %247 : vector<8x128xf32>
    %249 = math.exp %248 : vector<8x128xf32>
    %cst_54 = arith.constant 1.000000e+00 : f32
    %250 = vector.broadcast %cst_54 : f32 to vector<8x128xf32>
    %251 = arith.addf %250, %249 : vector<8x128xf32>
    %252 = arith.divf %250, %251 : vector<8x128xf32>
    %253 = vector.extract_strided_slice %240 {offsets = [0, 256], sizes = [8, 128], strides = [1, 1]} : vector<8x512xf32> to vector<8x128xf32>
    %254 = math.tanh %253 : vector<8x128xf32>
    %255 = vector.extract_strided_slice %240 {offsets = [0, 384], sizes = [8, 128], strides = [1, 1]} : vector<8x512xf32> to vector<8x128xf32>
    %256 = arith.negf %255 : vector<8x128xf32>
    %257 = math.exp %256 : vector<8x128xf32>
    %cst_55 = arith.constant 1.000000e+00 : f32
    %258 = vector.broadcast %cst_55 : f32 to vector<8x128xf32>
    %259 = arith.addf %258, %257 : vector<8x128xf32>
    %260 = arith.divf %258, %259 : vector<8x128xf32>
    %261 = arith.mulf %252, %235 : vector<8x128xf32>
    %262 = arith.mulf %246, %254 : vector<8x128xf32>
    %263 = arith.addf %261, %262 : vector<8x128xf32>
    %264 = math.tanh %263 : vector<8x128xf32>
    %265 = arith.mulf %260, %264 : vector<8x128xf32>
    %c2 = arith.constant 2 : index
    %c0_56 = arith.constant 0 : index
    %c0_57 = arith.constant 0 : index
    %266 = vector.load %arg2[%c2, %c0_56, %c0_57] : memref<6x128x512xf32, #tpu.memory_space<vmem>>, vector<1x128x512xf32>
    %267 = vector.shape_cast %266 : vector<1x128x512xf32> to vector<128x512xf32>
    %c2_58 = arith.constant 2 : index
    %c0_59 = arith.constant 0 : index
    %c0_60 = arith.constant 0 : index
    %268 = vector.load %arg3[%c2_58, %c0_59, %c0_60] : memref<6x128x512xf32, #tpu.memory_space<vmem>>, vector<1x128x512xf32>
    %269 = vector.shape_cast %268 : vector<1x128x512xf32> to vector<128x512xf32>
    %270 = arith.addf %267, %269 : vector<128x512xf32>
    %c2_61 = arith.constant 2 : index
    %c0_62 = arith.constant 0 : index
    %c0_63 = arith.constant 0 : index
    %271 = vector.load %arg4[%c2_61, %c0_62, %c0_63] : memref<6x1x512xf32, #tpu.memory_space<vmem>>, vector<1x1x512xf32>
    %272 = vector.shape_cast %271 : vector<1x1x512xf32> to vector<1x512xf32>
    %273 = vector.shape_cast %272 : vector<1x512xf32> to vector<1x512xf32>
    %274 = vector.broadcast %273 : vector<1x512xf32> to vector<8x512xf32>
    %cst_64 = arith.constant dense<0.000000e+00> : vector<8x512xf32>
    %275 = tpu.matmul %265, %270, %cst_64 {dimension_numbers = #tpu.dot_dimension_numbers<[1], [0], [0], [1], [0, 0, 1, 1], [], []>} : vector<8x128xf32>, vector<128x512xf32>, vector<8x512xf32> -> vector<8x512xf32>
    %276 = arith.addf %275, %274 : vector<8x512xf32>
    %277 = vector.extract_strided_slice %276 {offsets = [0, 0], sizes = [8, 128], strides = [1, 1]} : vector<8x512xf32> to vector<8x128xf32>
    %278 = arith.negf %277 : vector<8x128xf32>
    %279 = math.exp %278 : vector<8x128xf32>
    %cst_65 = arith.constant 1.000000e+00 : f32
    %280 = vector.broadcast %cst_65 : f32 to vector<8x128xf32>
    %281 = arith.addf %280, %279 : vector<8x128xf32>
    %282 = arith.divf %280, %281 : vector<8x128xf32>
    %283 = vector.extract_strided_slice %276 {offsets = [0, 128], sizes = [8, 128], strides = [1, 1]} : vector<8x512xf32> to vector<8x128xf32>
    %284 = arith.negf %283 : vector<8x128xf32>
    %285 = math.exp %284 : vector<8x128xf32>
    %cst_66 = arith.constant 1.000000e+00 : f32
    %286 = vector.broadcast %cst_66 : f32 to vector<8x128xf32>
    %287 = arith.addf %286, %285 : vector<8x128xf32>
    %288 = arith.divf %286, %287 : vector<8x128xf32>
    %289 = vector.extract_strided_slice %276 {offsets = [0, 256], sizes = [8, 128], strides = [1, 1]} : vector<8x512xf32> to vector<8x128xf32>
    %290 = math.tanh %289 : vector<8x128xf32>
    %291 = vector.extract_strided_slice %276 {offsets = [0, 384], sizes = [8, 128], strides = [1, 1]} : vector<8x512xf32> to vector<8x128xf32>
    %292 = arith.negf %291 : vector<8x128xf32>
    %293 = math.exp %292 : vector<8x128xf32>
    %cst_67 = arith.constant 1.000000e+00 : f32
    %294 = vector.broadcast %cst_67 : f32 to vector<8x128xf32>
    %295 = arith.addf %294, %293 : vector<8x128xf32>
    %296 = arith.divf %294, %295 : vector<8x128xf32>
    %297 = arith.mulf %288, %263 : vector<8x128xf32>
    %298 = arith.mulf %282, %290 : vector<8x128xf32>
    %299 = arith.addf %297, %298 : vector<8x128xf32>
    %300 = math.tanh %299 : vector<8x128xf32>
    %301 = arith.mulf %296, %300 : vector<8x128xf32>
    %cst_68 = arith.constant dense<0.000000e+00> : vector<8x512xf32>
    %302 = tpu.matmul %301, %270, %cst_68 {dimension_numbers = #tpu.dot_dimension_numbers<[1], [0], [0], [1], [0, 0, 1, 1], [], []>} : vector<8x128xf32>, vector<128x512xf32>, vector<8x512xf32> -> vector<8x512xf32>
    %303 = arith.addf %302, %274 : vector<8x512xf32>
    %304 = vector.extract_strided_slice %303 {offsets = [0, 0], sizes = [8, 128], strides = [1, 1]} : vector<8x512xf32> to vector<8x128xf32>
    %305 = arith.negf %304 : vector<8x128xf32>
    %306 = math.exp %305 : vector<8x128xf32>
    %cst_69 = arith.constant 1.000000e+00 : f32
    %307 = vector.broadcast %cst_69 : f32 to vector<8x128xf32>
    %308 = arith.addf %307, %306 : vector<8x128xf32>
    %309 = arith.divf %307, %308 : vector<8x128xf32>
    %310 = vector.extract_strided_slice %303 {offsets = [0, 128], sizes = [8, 128], strides = [1, 1]} : vector<8x512xf32> to vector<8x128xf32>
    %311 = arith.negf %310 : vector<8x128xf32>
    %312 = math.exp %311 : vector<8x128xf32>
    %cst_70 = arith.constant 1.000000e+00 : f32
    %313 = vector.broadcast %cst_70 : f32 to vector<8x128xf32>
    %314 = arith.addf %313, %312 : vector<8x128xf32>
    %315 = arith.divf %313, %314 : vector<8x128xf32>
    %316 = vector.extract_strided_slice %303 {offsets = [0, 256], sizes = [8, 128], strides = [1, 1]} : vector<8x512xf32> to vector<8x128xf32>
    %317 = math.tanh %316 : vector<8x128xf32>
    %318 = vector.extract_strided_slice %303 {offsets = [0, 384], sizes = [8, 128], strides = [1, 1]} : vector<8x512xf32> to vector<8x128xf32>
    %319 = arith.negf %318 : vector<8x128xf32>
    %320 = math.exp %319 : vector<8x128xf32>
    %cst_71 = arith.constant 1.000000e+00 : f32
    %321 = vector.broadcast %cst_71 : f32 to vector<8x128xf32>
    %322 = arith.addf %321, %320 : vector<8x128xf32>
    %323 = arith.divf %321, %322 : vector<8x128xf32>
    %324 = arith.mulf %315, %299 : vector<8x128xf32>
    %325 = arith.mulf %309, %317 : vector<8x128xf32>
    %326 = arith.addf %324, %325 : vector<8x128xf32>
    %327 = math.tanh %326 : vector<8x128xf32>
    %328 = arith.mulf %323, %327 : vector<8x128xf32>
    %cst_72 = arith.constant dense<0.000000e+00> : vector<8x512xf32>
    %329 = tpu.matmul %328, %270, %cst_72 {dimension_numbers = #tpu.dot_dimension_numbers<[1], [0], [0], [1], [0, 0, 1, 1], [], []>} : vector<8x128xf32>, vector<128x512xf32>, vector<8x512xf32> -> vector<8x512xf32>
    %330 = arith.addf %329, %274 : vector<8x512xf32>
    %331 = vector.extract_strided_slice %330 {offsets = [0, 0], sizes = [8, 128], strides = [1, 1]} : vector<8x512xf32> to vector<8x128xf32>
    %332 = arith.negf %331 : vector<8x128xf32>
    %333 = math.exp %332 : vector<8x128xf32>
    %cst_73 = arith.constant 1.000000e+00 : f32
    %334 = vector.broadcast %cst_73 : f32 to vector<8x128xf32>
    %335 = arith.addf %334, %333 : vector<8x128xf32>
    %336 = arith.divf %334, %335 : vector<8x128xf32>
    %337 = vector.extract_strided_slice %330 {offsets = [0, 128], sizes = [8, 128], strides = [1, 1]} : vector<8x512xf32> to vector<8x128xf32>
    %338 = arith.negf %337 : vector<8x128xf32>
    %339 = math.exp %338 : vector<8x128xf32>
    %cst_74 = arith.constant 1.000000e+00 : f32
    %340 = vector.broadcast %cst_74 : f32 to vector<8x128xf32>
    %341 = arith.addf %340, %339 : vector<8x128xf32>
    %342 = arith.divf %340, %341 : vector<8x128xf32>
    %343 = vector.extract_strided_slice %330 {offsets = [0, 256], sizes = [8, 128], strides = [1, 1]} : vector<8x512xf32> to vector<8x128xf32>
    %344 = math.tanh %343 : vector<8x128xf32>
    %345 = vector.extract_strided_slice %330 {offsets = [0, 384], sizes = [8, 128], strides = [1, 1]} : vector<8x512xf32> to vector<8x128xf32>
    %346 = arith.negf %345 : vector<8x128xf32>
    %347 = math.exp %346 : vector<8x128xf32>
    %cst_75 = arith.constant 1.000000e+00 : f32
    %348 = vector.broadcast %cst_75 : f32 to vector<8x128xf32>
    %349 = arith.addf %348, %347 : vector<8x128xf32>
    %350 = arith.divf %348, %349 : vector<8x128xf32>
    %351 = arith.mulf %342, %326 : vector<8x128xf32>
    %352 = arith.mulf %336, %344 : vector<8x128xf32>
    %353 = arith.addf %351, %352 : vector<8x128xf32>
    %354 = math.tanh %353 : vector<8x128xf32>
    %355 = arith.mulf %350, %354 : vector<8x128xf32>
    %cst_76 = arith.constant dense<0.000000e+00> : vector<8x512xf32>
    %356 = tpu.matmul %355, %270, %cst_76 {dimension_numbers = #tpu.dot_dimension_numbers<[1], [0], [0], [1], [0, 0, 1, 1], [], []>} : vector<8x128xf32>, vector<128x512xf32>, vector<8x512xf32> -> vector<8x512xf32>
    %357 = arith.addf %356, %274 : vector<8x512xf32>
    %358 = vector.extract_strided_slice %357 {offsets = [0, 0], sizes = [8, 128], strides = [1, 1]} : vector<8x512xf32> to vector<8x128xf32>
    %359 = arith.negf %358 : vector<8x128xf32>
    %360 = math.exp %359 : vector<8x128xf32>
    %cst_77 = arith.constant 1.000000e+00 : f32
    %361 = vector.broadcast %cst_77 : f32 to vector<8x128xf32>
    %362 = arith.addf %361, %360 : vector<8x128xf32>
    %363 = arith.divf %361, %362 : vector<8x128xf32>
    %364 = vector.extract_strided_slice %357 {offsets = [0, 128], sizes = [8, 128], strides = [1, 1]} : vector<8x512xf32> to vector<8x128xf32>
    %365 = arith.negf %364 : vector<8x128xf32>
    %366 = math.exp %365 : vector<8x128xf32>
    %cst_78 = arith.constant 1.000000e+00 : f32
    %367 = vector.broadcast %cst_78 : f32 to vector<8x128xf32>
    %368 = arith.addf %367, %366 : vector<8x128xf32>
    %369 = arith.divf %367, %368 : vector<8x128xf32>
    %370 = vector.extract_strided_slice %357 {offsets = [0, 256], sizes = [8, 128], strides = [1, 1]} : vector<8x512xf32> to vector<8x128xf32>
    %371 = math.tanh %370 : vector<8x128xf32>
    %372 = vector.extract_strided_slice %357 {offsets = [0, 384], sizes = [8, 128], strides = [1, 1]} : vector<8x512xf32> to vector<8x128xf32>
    %373 = arith.negf %372 : vector<8x128xf32>
    %374 = math.exp %373 : vector<8x128xf32>
    %cst_79 = arith.constant 1.000000e+00 : f32
    %375 = vector.broadcast %cst_79 : f32 to vector<8x128xf32>
    %376 = arith.addf %375, %374 : vector<8x128xf32>
    %377 = arith.divf %375, %376 : vector<8x128xf32>
    %378 = arith.mulf %369, %353 : vector<8x128xf32>
    %379 = arith.mulf %363, %371 : vector<8x128xf32>
    %380 = arith.addf %378, %379 : vector<8x128xf32>
    %381 = math.tanh %380 : vector<8x128xf32>
    %382 = arith.mulf %377, %381 : vector<8x128xf32>
    %cst_80 = arith.constant 0.000000e+00 : f32
    %383 = vector.broadcast %cst_80 : f32 to vector<8x1xf32>
    %384 = arith.subf %7, %301 : vector<8x128xf32>
    %385 = arith.mulf %384, %384 : vector<8x128xf32>
    %cst_81 = arith.constant dense<0.000000e+00> : vector<8xf32>
    %386 = vector.multi_reduction <add>, %385, %cst_81 [1] : vector<8x128xf32> to vector<8xf32>
    %387 = vector.shape_cast %386 : vector<8xf32> to vector<8x1xf32>
    %388 = arith.addf %383, %387 : vector<8x1xf32>
    %389 = arith.subf %9, %328 : vector<8x128xf32>
    %390 = arith.mulf %389, %389 : vector<8x128xf32>
    %cst_82 = arith.constant dense<0.000000e+00> : vector<8xf32>
    %391 = vector.multi_reduction <add>, %390, %cst_82 [1] : vector<8x128xf32> to vector<8xf32>
    %392 = vector.shape_cast %391 : vector<8xf32> to vector<8x1xf32>
    %393 = arith.addf %388, %392 : vector<8x1xf32>
    %394 = arith.subf %11, %355 : vector<8x128xf32>
    %395 = arith.mulf %394, %394 : vector<8x128xf32>
    %cst_83 = arith.constant dense<0.000000e+00> : vector<8xf32>
    %396 = vector.multi_reduction <add>, %395, %cst_83 [1] : vector<8x128xf32> to vector<8xf32>
    %397 = vector.shape_cast %396 : vector<8xf32> to vector<8x1xf32>
    %398 = arith.addf %393, %397 : vector<8x1xf32>
    %399 = arith.subf %13, %382 : vector<8x128xf32>
    %400 = arith.mulf %399, %399 : vector<8x128xf32>
    %cst_84 = arith.constant dense<0.000000e+00> : vector<8xf32>
    %401 = vector.multi_reduction <add>, %400, %cst_84 [1] : vector<8x128xf32> to vector<8xf32>
    %402 = vector.shape_cast %401 : vector<8xf32> to vector<8x1xf32>
    %403 = arith.addf %398, %402 : vector<8x1xf32>
    %404 = arith.mulf %403, %4 : vector<8x1xf32>
    %cst_85 = arith.constant dense<0.000000e+00> : vector<1xf32>
    %405 = vector.multi_reduction <add>, %404, %cst_85 [0] : vector<8x1xf32> to vector<1xf32>
    %406 = vector.shape_cast %405 : vector<1xf32> to vector<1x1xf32>
    %407 = tpu.concatenate %13, %11, %9, %7 in 0 : vector<8x128xf32>, vector<8x128xf32>, vector<8x128xf32>, vector<8x128xf32> -> vector<32x128xf32>
    %c3 = arith.constant 3 : index
    %c0_86 = arith.constant 0 : index
    %c0_87 = arith.constant 0 : index
    %408 = vector.load %arg2[%c3, %c0_86, %c0_87] : memref<6x128x512xf32, #tpu.memory_space<vmem>>, vector<1x128x512xf32>
    %409 = vector.shape_cast %408 : vector<1x128x512xf32> to vector<128x512xf32>
    %cst_88 = arith.constant dense<0.000000e+00> : vector<32x512xf32>
    %410 = tpu.matmul %407, %409, %cst_88 {dimension_numbers = #tpu.dot_dimension_numbers<[1], [0], [0], [1], [0, 0, 1, 1], [], []>} : vector<32x128xf32>, vector<128x512xf32>, vector<32x512xf32> -> vector<32x512xf32>
    %c3_89 = arith.constant 3 : index
    %c0_90 = arith.constant 0 : index
    %c0_91 = arith.constant 0 : index
    %411 = vector.load %arg4[%c3_89, %c0_90, %c0_91] : memref<6x1x512xf32, #tpu.memory_space<vmem>>, vector<1x1x512xf32>
    %412 = vector.shape_cast %411 : vector<1x1x512xf32> to vector<1x512xf32>
    %413 = vector.broadcast %412 : vector<1x512xf32> to vector<32x512xf32>
    %414 = arith.addf %410, %413 : vector<32x512xf32>
    %c3_92 = arith.constant 3 : index
    %c0_93 = arith.constant 0 : index
    %c0_94 = arith.constant 0 : index
    %415 = vector.load %arg3[%c3_92, %c0_93, %c0_94] : memref<6x128x512xf32, #tpu.memory_space<vmem>>, vector<1x128x512xf32>
    %416 = vector.shape_cast %415 : vector<1x128x512xf32> to vector<128x512xf32>
    %cst_95 = arith.constant 0.000000e+00 : f32
    %417 = vector.broadcast %cst_95 : f32 to vector<8x128xf32>
    %cst_96 = arith.constant 0.000000e+00 : f32
    %418 = vector.broadcast %cst_96 : f32 to vector<8x128xf32>
    %419 = vector.extract_strided_slice %414 {offsets = [0, 0], sizes = [8, 512], strides = [1, 1]} : vector<32x512xf32> to vector<8x512xf32>
    %cst_97 = arith.constant dense<0.000000e+00> : vector<8x512xf32>
    %420 = tpu.matmul %417, %416, %cst_97 {dimension_numbers = #tpu.dot_dimension_numbers<[1], [0], [0], [1], [0, 0, 1, 1], [], []>} : vector<8x128xf32>, vector<128x512xf32>, vector<8x512xf32> -> vector<8x512xf32>
    %421 = arith.addf %419, %420 : vector<8x512xf32>
    %422 = vector.extract_strided_slice %421 {offsets = [0, 0], sizes = [8, 128], strides = [1, 1]} : vector<8x512xf32> to vector<8x128xf32>
    %423 = arith.negf %422 : vector<8x128xf32>
    %424 = math.exp %423 : vector<8x128xf32>
    %cst_98 = arith.constant 1.000000e+00 : f32
    %425 = vector.broadcast %cst_98 : f32 to vector<8x128xf32>
    %426 = arith.addf %425, %424 : vector<8x128xf32>
    %427 = arith.divf %425, %426 : vector<8x128xf32>
    %428 = vector.extract_strided_slice %421 {offsets = [0, 128], sizes = [8, 128], strides = [1, 1]} : vector<8x512xf32> to vector<8x128xf32>
    %429 = arith.negf %428 : vector<8x128xf32>
    %430 = math.exp %429 : vector<8x128xf32>
    %cst_99 = arith.constant 1.000000e+00 : f32
    %431 = vector.broadcast %cst_99 : f32 to vector<8x128xf32>
    %432 = arith.addf %431, %430 : vector<8x128xf32>
    %433 = arith.divf %431, %432 : vector<8x128xf32>
    %434 = vector.extract_strided_slice %421 {offsets = [0, 256], sizes = [8, 128], strides = [1, 1]} : vector<8x512xf32> to vector<8x128xf32>
    %435 = math.tanh %434 : vector<8x128xf32>
    %436 = vector.extract_strided_slice %421 {offsets = [0, 384], sizes = [8, 128], strides = [1, 1]} : vector<8x512xf32> to vector<8x128xf32>
    %437 = arith.negf %436 : vector<8x128xf32>
    %438 = math.exp %437 : vector<8x128xf32>
    %cst_100 = arith.constant 1.000000e+00 : f32
    %439 = vector.broadcast %cst_100 : f32 to vector<8x128xf32>
    %440 = arith.addf %439, %438 : vector<8x128xf32>
    %441 = arith.divf %439, %440 : vector<8x128xf32>
    %442 = arith.mulf %433, %418 : vector<8x128xf32>
    %443 = arith.mulf %427, %435 : vector<8x128xf32>
    %444 = arith.addf %442, %443 : vector<8x128xf32>
    %445 = math.tanh %444 : vector<8x128xf32>
    %446 = arith.mulf %441, %445 : vector<8x128xf32>
    %447 = vector.extract_strided_slice %414 {offsets = [8, 0], sizes = [8, 512], strides = [1, 1]} : vector<32x512xf32> to vector<8x512xf32>
    %cst_101 = arith.constant dense<0.000000e+00> : vector<8x512xf32>
    %448 = tpu.matmul %446, %416, %cst_101 {dimension_numbers = #tpu.dot_dimension_numbers<[1], [0], [0], [1], [0, 0, 1, 1], [], []>} : vector<8x128xf32>, vector<128x512xf32>, vector<8x512xf32> -> vector<8x512xf32>
    %449 = arith.addf %447, %448 : vector<8x512xf32>
    %450 = vector.extract_strided_slice %449 {offsets = [0, 0], sizes = [8, 128], strides = [1, 1]} : vector<8x512xf32> to vector<8x128xf32>
    %451 = arith.negf %450 : vector<8x128xf32>
    %452 = math.exp %451 : vector<8x128xf32>
    %cst_102 = arith.constant 1.000000e+00 : f32
    %453 = vector.broadcast %cst_102 : f32 to vector<8x128xf32>
    %454 = arith.addf %453, %452 : vector<8x128xf32>
    %455 = arith.divf %453, %454 : vector<8x128xf32>
    %456 = vector.extract_strided_slice %449 {offsets = [0, 128], sizes = [8, 128], strides = [1, 1]} : vector<8x512xf32> to vector<8x128xf32>
    %457 = arith.negf %456 : vector<8x128xf32>
    %458 = math.exp %457 : vector<8x128xf32>
    %cst_103 = arith.constant 1.000000e+00 : f32
    %459 = vector.broadcast %cst_103 : f32 to vector<8x128xf32>
    %460 = arith.addf %459, %458 : vector<8x128xf32>
    %461 = arith.divf %459, %460 : vector<8x128xf32>
    %462 = vector.extract_strided_slice %449 {offsets = [0, 256], sizes = [8, 128], strides = [1, 1]} : vector<8x512xf32> to vector<8x128xf32>
    %463 = math.tanh %462 : vector<8x128xf32>
    %464 = vector.extract_strided_slice %449 {offsets = [0, 384], sizes = [8, 128], strides = [1, 1]} : vector<8x512xf32> to vector<8x128xf32>
    %465 = arith.negf %464 : vector<8x128xf32>
    %466 = math.exp %465 : vector<8x128xf32>
    %cst_104 = arith.constant 1.000000e+00 : f32
    %467 = vector.broadcast %cst_104 : f32 to vector<8x128xf32>
    %468 = arith.addf %467, %466 : vector<8x128xf32>
    %469 = arith.divf %467, %468 : vector<8x128xf32>
    %470 = arith.mulf %461, %444 : vector<8x128xf32>
    %471 = arith.mulf %455, %463 : vector<8x128xf32>
    %472 = arith.addf %470, %471 : vector<8x128xf32>
    %473 = math.tanh %472 : vector<8x128xf32>
    %474 = arith.mulf %469, %473 : vector<8x128xf32>
    %475 = vector.extract_strided_slice %414 {offsets = [16, 0], sizes = [8, 512], strides = [1, 1]} : vector<32x512xf32> to vector<8x512xf32>
    %cst_105 = arith.constant dense<0.000000e+00> : vector<8x512xf32>
    %476 = tpu.matmul %474, %416, %cst_105 {dimension_numbers = #tpu.dot_dimension_numbers<[1], [0], [0], [1], [0, 0, 1, 1], [], []>} : vector<8x128xf32>, vector<128x512xf32>, vector<8x512xf32> -> vector<8x512xf32>
    %477 = arith.addf %475, %476 : vector<8x512xf32>
    %478 = vector.extract_strided_slice %477 {offsets = [0, 0], sizes = [8, 128], strides = [1, 1]} : vector<8x512xf32> to vector<8x128xf32>
    %479 = arith.negf %478 : vector<8x128xf32>
    %480 = math.exp %479 : vector<8x128xf32>
    %cst_106 = arith.constant 1.000000e+00 : f32
    %481 = vector.broadcast %cst_106 : f32 to vector<8x128xf32>
    %482 = arith.addf %481, %480 : vector<8x128xf32>
    %483 = arith.divf %481, %482 : vector<8x128xf32>
    %484 = vector.extract_strided_slice %477 {offsets = [0, 128], sizes = [8, 128], strides = [1, 1]} : vector<8x512xf32> to vector<8x128xf32>
    %485 = arith.negf %484 : vector<8x128xf32>
    %486 = math.exp %485 : vector<8x128xf32>
    %cst_107 = arith.constant 1.000000e+00 : f32
    %487 = vector.broadcast %cst_107 : f32 to vector<8x128xf32>
    %488 = arith.addf %487, %486 : vector<8x128xf32>
    %489 = arith.divf %487, %488 : vector<8x128xf32>
    %490 = vector.extract_strided_slice %477 {offsets = [0, 256], sizes = [8, 128], strides = [1, 1]} : vector<8x512xf32> to vector<8x128xf32>
    %491 = math.tanh %490 : vector<8x128xf32>
    %492 = vector.extract_strided_slice %477 {offsets = [0, 384], sizes = [8, 128], strides = [1, 1]} : vector<8x512xf32> to vector<8x128xf32>
    %493 = arith.negf %492 : vector<8x128xf32>
    %494 = math.exp %493 : vector<8x128xf32>
    %cst_108 = arith.constant 1.000000e+00 : f32
    %495 = vector.broadcast %cst_108 : f32 to vector<8x128xf32>
    %496 = arith.addf %495, %494 : vector<8x128xf32>
    %497 = arith.divf %495, %496 : vector<8x128xf32>
    %498 = arith.mulf %489, %472 : vector<8x128xf32>
    %499 = arith.mulf %483, %491 : vector<8x128xf32>
    %500 = arith.addf %498, %499 : vector<8x128xf32>
    %501 = math.tanh %500 : vector<8x128xf32>
    %502 = arith.mulf %497, %501 : vector<8x128xf32>
    %503 = vector.extract_strided_slice %414 {offsets = [24, 0], sizes = [8, 512], strides = [1, 1]} : vector<32x512xf32> to vector<8x512xf32>
    %cst_109 = arith.constant dense<0.000000e+00> : vector<8x512xf32>
    %504 = tpu.matmul %502, %416, %cst_109 {dimension_numbers = #tpu.dot_dimension_numbers<[1], [0], [0], [1], [0, 0, 1, 1], [], []>} : vector<8x128xf32>, vector<128x512xf32>, vector<8x512xf32> -> vector<8x512xf32>
    %505 = arith.addf %503, %504 : vector<8x512xf32>
    %506 = vector.extract_strided_slice %505 {offsets = [0, 0], sizes = [8, 128], strides = [1, 1]} : vector<8x512xf32> to vector<8x128xf32>
    %507 = arith.negf %506 : vector<8x128xf32>
    %508 = math.exp %507 : vector<8x128xf32>
    %cst_110 = arith.constant 1.000000e+00 : f32
    %509 = vector.broadcast %cst_110 : f32 to vector<8x128xf32>
    %510 = arith.addf %509, %508 : vector<8x128xf32>
    %511 = arith.divf %509, %510 : vector<8x128xf32>
    %512 = vector.extract_strided_slice %505 {offsets = [0, 128], sizes = [8, 128], strides = [1, 1]} : vector<8x512xf32> to vector<8x128xf32>
    %513 = arith.negf %512 : vector<8x128xf32>
    %514 = math.exp %513 : vector<8x128xf32>
    %cst_111 = arith.constant 1.000000e+00 : f32
    %515 = vector.broadcast %cst_111 : f32 to vector<8x128xf32>
    %516 = arith.addf %515, %514 : vector<8x128xf32>
    %517 = arith.divf %515, %516 : vector<8x128xf32>
    %518 = vector.extract_strided_slice %505 {offsets = [0, 256], sizes = [8, 128], strides = [1, 1]} : vector<8x512xf32> to vector<8x128xf32>
    %519 = math.tanh %518 : vector<8x128xf32>
    %520 = vector.extract_strided_slice %505 {offsets = [0, 384], sizes = [8, 128], strides = [1, 1]} : vector<8x512xf32> to vector<8x128xf32>
    %521 = arith.negf %520 : vector<8x128xf32>
    %522 = math.exp %521 : vector<8x128xf32>
    %cst_112 = arith.constant 1.000000e+00 : f32
    %523 = vector.broadcast %cst_112 : f32 to vector<8x128xf32>
    %524 = arith.addf %523, %522 : vector<8x128xf32>
    %525 = arith.divf %523, %524 : vector<8x128xf32>
    %526 = arith.mulf %517, %500 : vector<8x128xf32>
    %527 = arith.mulf %511, %519 : vector<8x128xf32>
    %528 = arith.addf %526, %527 : vector<8x128xf32>
    %529 = math.tanh %528 : vector<8x128xf32>
    %530 = arith.mulf %525, %529 : vector<8x128xf32>
    %531 = arith.addf %446, %13 : vector<8x128xf32>
    %532 = arith.addf %474, %11 : vector<8x128xf32>
    %533 = arith.addf %502, %9 : vector<8x128xf32>
    %534 = arith.addf %530, %7 : vector<8x128xf32>
    %535 = tpu.concatenate %531, %532, %533, %534 in 0 : vector<8x128xf32>, vector<8x128xf32>, vector<8x128xf32>, vector<8x128xf32> -> vector<32x128xf32>
    %c4 = arith.constant 4 : index
    %c0_113 = arith.constant 0 : index
    %c0_114 = arith.constant 0 : index
    %536 = vector.load %arg2[%c4, %c0_113, %c0_114] : memref<6x128x512xf32, #tpu.memory_space<vmem>>, vector<1x128x512xf32>
    %537 = vector.shape_cast %536 : vector<1x128x512xf32> to vector<128x512xf32>
    %cst_115 = arith.constant dense<0.000000e+00> : vector<32x512xf32>
    %538 = tpu.matmul %535, %537, %cst_115 {dimension_numbers = #tpu.dot_dimension_numbers<[1], [0], [0], [1], [0, 0, 1, 1], [], []>} : vector<32x128xf32>, vector<128x512xf32>, vector<32x512xf32> -> vector<32x512xf32>
    %c4_116 = arith.constant 4 : index
    %c0_117 = arith.constant 0 : index
    %c0_118 = arith.constant 0 : index
    %539 = vector.load %arg4[%c4_116, %c0_117, %c0_118] : memref<6x1x512xf32, #tpu.memory_space<vmem>>, vector<1x1x512xf32>
    %540 = vector.shape_cast %539 : vector<1x1x512xf32> to vector<1x512xf32>
    %541 = vector.broadcast %540 : vector<1x512xf32> to vector<32x512xf32>
    %542 = arith.addf %538, %541 : vector<32x512xf32>
    %c4_119 = arith.constant 4 : index
    %c0_120 = arith.constant 0 : index
    %c0_121 = arith.constant 0 : index
    %543 = vector.load %arg3[%c4_119, %c0_120, %c0_121] : memref<6x128x512xf32, #tpu.memory_space<vmem>>, vector<1x128x512xf32>
    %544 = vector.shape_cast %543 : vector<1x128x512xf32> to vector<128x512xf32>
    %cst_122 = arith.constant 0.000000e+00 : f32
    %545 = vector.broadcast %cst_122 : f32 to vector<8x128xf32>
    %cst_123 = arith.constant 0.000000e+00 : f32
    %546 = vector.broadcast %cst_123 : f32 to vector<8x128xf32>
    %547 = vector.extract_strided_slice %542 {offsets = [0, 0], sizes = [8, 512], strides = [1, 1]} : vector<32x512xf32> to vector<8x512xf32>
    %cst_124 = arith.constant dense<0.000000e+00> : vector<8x512xf32>
    %548 = tpu.matmul %545, %544, %cst_124 {dimension_numbers = #tpu.dot_dimension_numbers<[1], [0], [0], [1], [0, 0, 1, 1], [], []>} : vector<8x128xf32>, vector<128x512xf32>, vector<8x512xf32> -> vector<8x512xf32>
    %549 = arith.addf %547, %548 : vector<8x512xf32>
    %550 = vector.extract_strided_slice %549 {offsets = [0, 0], sizes = [8, 128], strides = [1, 1]} : vector<8x512xf32> to vector<8x128xf32>
    %551 = arith.negf %550 : vector<8x128xf32>
    %552 = math.exp %551 : vector<8x128xf32>
    %cst_125 = arith.constant 1.000000e+00 : f32
    %553 = vector.broadcast %cst_125 : f32 to vector<8x128xf32>
    %554 = arith.addf %553, %552 : vector<8x128xf32>
    %555 = arith.divf %553, %554 : vector<8x128xf32>
    %556 = vector.extract_strided_slice %549 {offsets = [0, 128], sizes = [8, 128], strides = [1, 1]} : vector<8x512xf32> to vector<8x128xf32>
    %557 = arith.negf %556 : vector<8x128xf32>
    %558 = math.exp %557 : vector<8x128xf32>
    %cst_126 = arith.constant 1.000000e+00 : f32
    %559 = vector.broadcast %cst_126 : f32 to vector<8x128xf32>
    %560 = arith.addf %559, %558 : vector<8x128xf32>
    %561 = arith.divf %559, %560 : vector<8x128xf32>
    %562 = vector.extract_strided_slice %549 {offsets = [0, 256], sizes = [8, 128], strides = [1, 1]} : vector<8x512xf32> to vector<8x128xf32>
    %563 = math.tanh %562 : vector<8x128xf32>
    %564 = vector.extract_strided_slice %549 {offsets = [0, 384], sizes = [8, 128], strides = [1, 1]} : vector<8x512xf32> to vector<8x128xf32>
    %565 = arith.negf %564 : vector<8x128xf32>
    %566 = math.exp %565 : vector<8x128xf32>
    %cst_127 = arith.constant 1.000000e+00 : f32
    %567 = vector.broadcast %cst_127 : f32 to vector<8x128xf32>
    %568 = arith.addf %567, %566 : vector<8x128xf32>
    %569 = arith.divf %567, %568 : vector<8x128xf32>
    %570 = arith.mulf %561, %546 : vector<8x128xf32>
    %571 = arith.mulf %555, %563 : vector<8x128xf32>
    %572 = arith.addf %570, %571 : vector<8x128xf32>
    %573 = math.tanh %572 : vector<8x128xf32>
    %574 = arith.mulf %569, %573 : vector<8x128xf32>
    %575 = vector.extract_strided_slice %542 {offsets = [8, 0], sizes = [8, 512], strides = [1, 1]} : vector<32x512xf32> to vector<8x512xf32>
    %cst_128 = arith.constant dense<0.000000e+00> : vector<8x512xf32>
    %576 = tpu.matmul %574, %544, %cst_128 {dimension_numbers = #tpu.dot_dimension_numbers<[1], [0], [0], [1], [0, 0, 1, 1], [], []>} : vector<8x128xf32>, vector<128x512xf32>, vector<8x512xf32> -> vector<8x512xf32>
    %577 = arith.addf %575, %576 : vector<8x512xf32>
    %578 = vector.extract_strided_slice %577 {offsets = [0, 0], sizes = [8, 128], strides = [1, 1]} : vector<8x512xf32> to vector<8x128xf32>
    %579 = arith.negf %578 : vector<8x128xf32>
    %580 = math.exp %579 : vector<8x128xf32>
    %cst_129 = arith.constant 1.000000e+00 : f32
    %581 = vector.broadcast %cst_129 : f32 to vector<8x128xf32>
    %582 = arith.addf %581, %580 : vector<8x128xf32>
    %583 = arith.divf %581, %582 : vector<8x128xf32>
    %584 = vector.extract_strided_slice %577 {offsets = [0, 128], sizes = [8, 128], strides = [1, 1]} : vector<8x512xf32> to vector<8x128xf32>
    %585 = arith.negf %584 : vector<8x128xf32>
    %586 = math.exp %585 : vector<8x128xf32>
    %cst_130 = arith.constant 1.000000e+00 : f32
    %587 = vector.broadcast %cst_130 : f32 to vector<8x128xf32>
    %588 = arith.addf %587, %586 : vector<8x128xf32>
    %589 = arith.divf %587, %588 : vector<8x128xf32>
    %590 = vector.extract_strided_slice %577 {offsets = [0, 256], sizes = [8, 128], strides = [1, 1]} : vector<8x512xf32> to vector<8x128xf32>
    %591 = math.tanh %590 : vector<8x128xf32>
    %592 = vector.extract_strided_slice %577 {offsets = [0, 384], sizes = [8, 128], strides = [1, 1]} : vector<8x512xf32> to vector<8x128xf32>
    %593 = arith.negf %592 : vector<8x128xf32>
    %594 = math.exp %593 : vector<8x128xf32>
    %cst_131 = arith.constant 1.000000e+00 : f32
    %595 = vector.broadcast %cst_131 : f32 to vector<8x128xf32>
    %596 = arith.addf %595, %594 : vector<8x128xf32>
    %597 = arith.divf %595, %596 : vector<8x128xf32>
    %598 = arith.mulf %589, %572 : vector<8x128xf32>
    %599 = arith.mulf %583, %591 : vector<8x128xf32>
    %600 = arith.addf %598, %599 : vector<8x128xf32>
    %601 = math.tanh %600 : vector<8x128xf32>
    %602 = arith.mulf %597, %601 : vector<8x128xf32>
    %603 = vector.extract_strided_slice %542 {offsets = [16, 0], sizes = [8, 512], strides = [1, 1]} : vector<32x512xf32> to vector<8x512xf32>
    %cst_132 = arith.constant dense<0.000000e+00> : vector<8x512xf32>
    %604 = tpu.matmul %602, %544, %cst_132 {dimension_numbers = #tpu.dot_dimension_numbers<[1], [0], [0], [1], [0, 0, 1, 1], [], []>} : vector<8x128xf32>, vector<128x512xf32>, vector<8x512xf32> -> vector<8x512xf32>
    %605 = arith.addf %603, %604 : vector<8x512xf32>
    %606 = vector.extract_strided_slice %605 {offsets = [0, 0], sizes = [8, 128], strides = [1, 1]} : vector<8x512xf32> to vector<8x128xf32>
    %607 = arith.negf %606 : vector<8x128xf32>
    %608 = math.exp %607 : vector<8x128xf32>
    %cst_133 = arith.constant 1.000000e+00 : f32
    %609 = vector.broadcast %cst_133 : f32 to vector<8x128xf32>
    %610 = arith.addf %609, %608 : vector<8x128xf32>
    %611 = arith.divf %609, %610 : vector<8x128xf32>
    %612 = vector.extract_strided_slice %605 {offsets = [0, 128], sizes = [8, 128], strides = [1, 1]} : vector<8x512xf32> to vector<8x128xf32>
    %613 = arith.negf %612 : vector<8x128xf32>
    %614 = math.exp %613 : vector<8x128xf32>
    %cst_134 = arith.constant 1.000000e+00 : f32
    %615 = vector.broadcast %cst_134 : f32 to vector<8x128xf32>
    %616 = arith.addf %615, %614 : vector<8x128xf32>
    %617 = arith.divf %615, %616 : vector<8x128xf32>
    %618 = vector.extract_strided_slice %605 {offsets = [0, 256], sizes = [8, 128], strides = [1, 1]} : vector<8x512xf32> to vector<8x128xf32>
    %619 = math.tanh %618 : vector<8x128xf32>
    %620 = vector.extract_strided_slice %605 {offsets = [0, 384], sizes = [8, 128], strides = [1, 1]} : vector<8x512xf32> to vector<8x128xf32>
    %621 = arith.negf %620 : vector<8x128xf32>
    %622 = math.exp %621 : vector<8x128xf32>
    %cst_135 = arith.constant 1.000000e+00 : f32
    %623 = vector.broadcast %cst_135 : f32 to vector<8x128xf32>
    %624 = arith.addf %623, %622 : vector<8x128xf32>
    %625 = arith.divf %623, %624 : vector<8x128xf32>
    %626 = arith.mulf %617, %600 : vector<8x128xf32>
    %627 = arith.mulf %611, %619 : vector<8x128xf32>
    %628 = arith.addf %626, %627 : vector<8x128xf32>
    %629 = math.tanh %628 : vector<8x128xf32>
    %630 = arith.mulf %625, %629 : vector<8x128xf32>
    %631 = vector.extract_strided_slice %542 {offsets = [24, 0], sizes = [8, 512], strides = [1, 1]} : vector<32x512xf32> to vector<8x512xf32>
    %cst_136 = arith.constant dense<0.000000e+00> : vector<8x512xf32>
    %632 = tpu.matmul %630, %544, %cst_136 {dimension_numbers = #tpu.dot_dimension_numbers<[1], [0], [0], [1], [0, 0, 1, 1], [], []>} : vector<8x128xf32>, vector<128x512xf32>, vector<8x512xf32> -> vector<8x512xf32>
    %633 = arith.addf %631, %632 : vector<8x512xf32>
    %634 = vector.extract_strided_slice %633 {offsets = [0, 0], sizes = [8, 128], strides = [1, 1]} : vector<8x512xf32> to vector<8x128xf32>
    %635 = arith.negf %634 : vector<8x128xf32>
    %636 = math.exp %635 : vector<8x128xf32>
    %cst_137 = arith.constant 1.000000e+00 : f32
    %637 = vector.broadcast %cst_137 : f32 to vector<8x128xf32>
    %638 = arith.addf %637, %636 : vector<8x128xf32>
    %639 = arith.divf %637, %638 : vector<8x128xf32>
    %640 = vector.extract_strided_slice %633 {offsets = [0, 128], sizes = [8, 128], strides = [1, 1]} : vector<8x512xf32> to vector<8x128xf32>
    %641 = arith.negf %640 : vector<8x128xf32>
    %642 = math.exp %641 : vector<8x128xf32>
    %cst_138 = arith.constant 1.000000e+00 : f32
    %643 = vector.broadcast %cst_138 : f32 to vector<8x128xf32>
    %644 = arith.addf %643, %642 : vector<8x128xf32>
    %645 = arith.divf %643, %644 : vector<8x128xf32>
    %646 = vector.extract_strided_slice %633 {offsets = [0, 256], sizes = [8, 128], strides = [1, 1]} : vector<8x512xf32> to vector<8x128xf32>
    %647 = math.tanh %646 : vector<8x128xf32>
    %648 = vector.extract_strided_slice %633 {offsets = [0, 384], sizes = [8, 128], strides = [1, 1]} : vector<8x512xf32> to vector<8x128xf32>
    %649 = arith.negf %648 : vector<8x128xf32>
    %650 = math.exp %649 : vector<8x128xf32>
    %cst_139 = arith.constant 1.000000e+00 : f32
    %651 = vector.broadcast %cst_139 : f32 to vector<8x128xf32>
    %652 = arith.addf %651, %650 : vector<8x128xf32>
    %653 = arith.divf %651, %652 : vector<8x128xf32>
    %654 = arith.mulf %645, %628 : vector<8x128xf32>
    %655 = arith.mulf %639, %647 : vector<8x128xf32>
    %656 = arith.addf %654, %655 : vector<8x128xf32>
    %657 = math.tanh %656 : vector<8x128xf32>
    %658 = arith.mulf %653, %657 : vector<8x128xf32>
    %c5 = arith.constant 5 : index
    %c0_140 = arith.constant 0 : index
    %c0_141 = arith.constant 0 : index
    %659 = vector.load %arg2[%c5, %c0_140, %c0_141] : memref<6x128x512xf32, #tpu.memory_space<vmem>>, vector<1x128x512xf32>
    %660 = vector.shape_cast %659 : vector<1x128x512xf32> to vector<128x512xf32>
    %c5_142 = arith.constant 5 : index
    %c0_143 = arith.constant 0 : index
    %c0_144 = arith.constant 0 : index
    %661 = vector.load %arg3[%c5_142, %c0_143, %c0_144] : memref<6x128x512xf32, #tpu.memory_space<vmem>>, vector<1x128x512xf32>
    %662 = vector.shape_cast %661 : vector<1x128x512xf32> to vector<128x512xf32>
    %cst_145 = arith.constant dense<0.000000e+00> : vector<8x512xf32>
    %663 = tpu.matmul %658, %662, %cst_145 {dimension_numbers = #tpu.dot_dimension_numbers<[1], [0], [0], [1], [0, 0, 1, 1], [], []>} : vector<8x128xf32>, vector<128x512xf32>, vector<8x512xf32> -> vector<8x512xf32>
    %c5_146 = arith.constant 5 : index
    %c0_147 = arith.constant 0 : index
    %c0_148 = arith.constant 0 : index
    %664 = vector.load %arg4[%c5_146, %c0_147, %c0_148] : memref<6x1x512xf32, #tpu.memory_space<vmem>>, vector<1x1x512xf32>
    %665 = vector.shape_cast %664 : vector<1x1x512xf32> to vector<1x512xf32>
    %666 = vector.broadcast %665 : vector<1x512xf32> to vector<8x512xf32>
    %667 = arith.addf %663, %666 : vector<8x512xf32>
    %cst_149 = arith.constant dense<0.000000e+00> : vector<8x512xf32>
    %668 = tpu.matmul %658, %660, %cst_149 {dimension_numbers = #tpu.dot_dimension_numbers<[1], [0], [0], [1], [0, 0, 1, 1], [], []>} : vector<8x128xf32>, vector<128x512xf32>, vector<8x512xf32> -> vector<8x512xf32>
    %669 = arith.addf %668, %667 : vector<8x512xf32>
    %670 = vector.extract_strided_slice %669 {offsets = [0, 0], sizes = [8, 128], strides = [1, 1]} : vector<8x512xf32> to vector<8x128xf32>
    %671 = arith.negf %670 : vector<8x128xf32>
    %672 = math.exp %671 : vector<8x128xf32>
    %cst_150 = arith.constant 1.000000e+00 : f32
    %673 = vector.broadcast %cst_150 : f32 to vector<8x128xf32>
    %674 = arith.addf %673, %672 : vector<8x128xf32>
    %675 = arith.divf %673, %674 : vector<8x128xf32>
    %676 = vector.extract_strided_slice %669 {offsets = [0, 128], sizes = [8, 128], strides = [1, 1]} : vector<8x512xf32> to vector<8x128xf32>
    %677 = arith.negf %676 : vector<8x128xf32>
    %678 = math.exp %677 : vector<8x128xf32>
    %cst_151 = arith.constant 1.000000e+00 : f32
    %679 = vector.broadcast %cst_151 : f32 to vector<8x128xf32>
    %680 = arith.addf %679, %678 : vector<8x128xf32>
    %681 = arith.divf %679, %680 : vector<8x128xf32>
    %682 = vector.extract_strided_slice %669 {offsets = [0, 256], sizes = [8, 128], strides = [1, 1]} : vector<8x512xf32> to vector<8x128xf32>
    %683 = math.tanh %682 : vector<8x128xf32>
    %684 = vector.extract_strided_slice %669 {offsets = [0, 384], sizes = [8, 128], strides = [1, 1]} : vector<8x512xf32> to vector<8x128xf32>
    %685 = arith.negf %684 : vector<8x128xf32>
    %686 = math.exp %685 : vector<8x128xf32>
    %cst_152 = arith.constant 1.000000e+00 : f32
    %687 = vector.broadcast %cst_152 : f32 to vector<8x128xf32>
    %688 = arith.addf %687, %686 : vector<8x128xf32>
    %689 = arith.divf %687, %688 : vector<8x128xf32>
    %690 = arith.mulf %681, %656 : vector<8x128xf32>
    %691 = arith.mulf %675, %683 : vector<8x128xf32>
    %692 = arith.addf %690, %691 : vector<8x128xf32>
    %693 = math.tanh %692 : vector<8x128xf32>
    %694 = arith.mulf %689, %693 : vector<8x128xf32>
    %cst_153 = arith.constant dense<0.000000e+00> : vector<8x512xf32>
    %695 = tpu.matmul %694, %660, %cst_153 {dimension_numbers = #tpu.dot_dimension_numbers<[1], [0], [0], [1], [0, 0, 1, 1], [], []>} : vector<8x128xf32>, vector<128x512xf32>, vector<8x512xf32> -> vector<8x512xf32>
    %696 = arith.addf %695, %667 : vector<8x512xf32>
    %697 = vector.extract_strided_slice %696 {offsets = [0, 0], sizes = [8, 128], strides = [1, 1]} : vector<8x512xf32> to vector<8x128xf32>
    %698 = arith.negf %697 : vector<8x128xf32>
    %699 = math.exp %698 : vector<8x128xf32>
    %cst_154 = arith.constant 1.000000e+00 : f32
    %700 = vector.broadcast %cst_154 : f32 to vector<8x128xf32>
    %701 = arith.addf %700, %699 : vector<8x128xf32>
    %702 = arith.divf %700, %701 : vector<8x128xf32>
    %703 = vector.extract_strided_slice %696 {offsets = [0, 128], sizes = [8, 128], strides = [1, 1]} : vector<8x512xf32> to vector<8x128xf32>
    %704 = arith.negf %703 : vector<8x128xf32>
    %705 = math.exp %704 : vector<8x128xf32>
    %cst_155 = arith.constant 1.000000e+00 : f32
    %706 = vector.broadcast %cst_155 : f32 to vector<8x128xf32>
    %707 = arith.addf %706, %705 : vector<8x128xf32>
    %708 = arith.divf %706, %707 : vector<8x128xf32>
    %709 = vector.extract_strided_slice %696 {offsets = [0, 256], sizes = [8, 128], strides = [1, 1]} : vector<8x512xf32> to vector<8x128xf32>
    %710 = math.tanh %709 : vector<8x128xf32>
    %711 = vector.extract_strided_slice %696 {offsets = [0, 384], sizes = [8, 128], strides = [1, 1]} : vector<8x512xf32> to vector<8x128xf32>
    %712 = arith.negf %711 : vector<8x128xf32>
    %713 = math.exp %712 : vector<8x128xf32>
    %cst_156 = arith.constant 1.000000e+00 : f32
    %714 = vector.broadcast %cst_156 : f32 to vector<8x128xf32>
    %715 = arith.addf %714, %713 : vector<8x128xf32>
    %716 = arith.divf %714, %715 : vector<8x128xf32>
    %717 = arith.mulf %708, %656 : vector<8x128xf32>
    %718 = arith.mulf %702, %710 : vector<8x128xf32>
    %719 = arith.addf %717, %718 : vector<8x128xf32>
    %720 = math.tanh %719 : vector<8x128xf32>
    %721 = arith.mulf %716, %720 : vector<8x128xf32>
    %cst_157 = arith.constant dense<0.000000e+00> : vector<8x512xf32>
    %722 = tpu.matmul %721, %660, %cst_157 {dimension_numbers = #tpu.dot_dimension_numbers<[1], [0], [0], [1], [0, 0, 1, 1], [], []>} : vector<8x128xf32>, vector<128x512xf32>, vector<8x512xf32> -> vector<8x512xf32>
    %723 = arith.addf %722, %667 : vector<8x512xf32>
    %724 = vector.extract_strided_slice %723 {offsets = [0, 0], sizes = [8, 128], strides = [1, 1]} : vector<8x512xf32> to vector<8x128xf32>
    %725 = arith.negf %724 : vector<8x128xf32>
    %726 = math.exp %725 : vector<8x128xf32>
    %cst_158 = arith.constant 1.000000e+00 : f32
    %727 = vector.broadcast %cst_158 : f32 to vector<8x128xf32>
    %728 = arith.addf %727, %726 : vector<8x128xf32>
    %729 = arith.divf %727, %728 : vector<8x128xf32>
    %730 = vector.extract_strided_slice %723 {offsets = [0, 128], sizes = [8, 128], strides = [1, 1]} : vector<8x512xf32> to vector<8x128xf32>
    %731 = arith.negf %730 : vector<8x128xf32>
    %732 = math.exp %731 : vector<8x128xf32>
    %cst_159 = arith.constant 1.000000e+00 : f32
    %733 = vector.broadcast %cst_159 : f32 to vector<8x128xf32>
    %734 = arith.addf %733, %732 : vector<8x128xf32>
    %735 = arith.divf %733, %734 : vector<8x128xf32>
    %736 = vector.extract_strided_slice %723 {offsets = [0, 256], sizes = [8, 128], strides = [1, 1]} : vector<8x512xf32> to vector<8x128xf32>
    %737 = math.tanh %736 : vector<8x128xf32>
    %738 = vector.extract_strided_slice %723 {offsets = [0, 384], sizes = [8, 128], strides = [1, 1]} : vector<8x512xf32> to vector<8x128xf32>
    %739 = arith.negf %738 : vector<8x128xf32>
    %740 = math.exp %739 : vector<8x128xf32>
    %cst_160 = arith.constant 1.000000e+00 : f32
    %741 = vector.broadcast %cst_160 : f32 to vector<8x128xf32>
    %742 = arith.addf %741, %740 : vector<8x128xf32>
    %743 = arith.divf %741, %742 : vector<8x128xf32>
    %744 = arith.mulf %735, %656 : vector<8x128xf32>
    %745 = arith.mulf %729, %737 : vector<8x128xf32>
    %746 = arith.addf %744, %745 : vector<8x128xf32>
    %747 = math.tanh %746 : vector<8x128xf32>
    %748 = arith.mulf %743, %747 : vector<8x128xf32>
    %cst_161 = arith.constant dense<0.000000e+00> : vector<8x512xf32>
    %749 = tpu.matmul %748, %660, %cst_161 {dimension_numbers = #tpu.dot_dimension_numbers<[1], [0], [0], [1], [0, 0, 1, 1], [], []>} : vector<8x128xf32>, vector<128x512xf32>, vector<8x512xf32> -> vector<8x512xf32>
    %750 = arith.addf %749, %667 : vector<8x512xf32>
    %751 = vector.extract_strided_slice %750 {offsets = [0, 0], sizes = [8, 128], strides = [1, 1]} : vector<8x512xf32> to vector<8x128xf32>
    %752 = arith.negf %751 : vector<8x128xf32>
    %753 = math.exp %752 : vector<8x128xf32>
    %cst_162 = arith.constant 1.000000e+00 : f32
    %754 = vector.broadcast %cst_162 : f32 to vector<8x128xf32>
    %755 = arith.addf %754, %753 : vector<8x128xf32>
    %756 = arith.divf %754, %755 : vector<8x128xf32>
    %757 = vector.extract_strided_slice %750 {offsets = [0, 128], sizes = [8, 128], strides = [1, 1]} : vector<8x512xf32> to vector<8x128xf32>
    %758 = arith.negf %757 : vector<8x128xf32>
    %759 = math.exp %758 : vector<8x128xf32>
    %cst_163 = arith.constant 1.000000e+00 : f32
    %760 = vector.broadcast %cst_163 : f32 to vector<8x128xf32>
    %761 = arith.addf %760, %759 : vector<8x128xf32>
    %762 = arith.divf %760, %761 : vector<8x128xf32>
    %763 = vector.extract_strided_slice %750 {offsets = [0, 256], sizes = [8, 128], strides = [1, 1]} : vector<8x512xf32> to vector<8x128xf32>
    %764 = math.tanh %763 : vector<8x128xf32>
    %765 = vector.extract_strided_slice %750 {offsets = [0, 384], sizes = [8, 128], strides = [1, 1]} : vector<8x512xf32> to vector<8x128xf32>
    %766 = arith.negf %765 : vector<8x128xf32>
    %767 = math.exp %766 : vector<8x128xf32>
    %cst_164 = arith.constant 1.000000e+00 : f32
    %768 = vector.broadcast %cst_164 : f32 to vector<8x128xf32>
    %769 = arith.addf %768, %767 : vector<8x128xf32>
    %770 = arith.divf %768, %769 : vector<8x128xf32>
    %771 = arith.mulf %762, %656 : vector<8x128xf32>
    %772 = arith.mulf %756, %764 : vector<8x128xf32>
    %773 = arith.addf %771, %772 : vector<8x128xf32>
    %774 = math.tanh %773 : vector<8x128xf32>
    %775 = arith.mulf %770, %774 : vector<8x128xf32>
    %cst_165 = arith.constant 0.000000e+00 : f32
    %776 = vector.broadcast %cst_165 : f32 to vector<8x1xf32>
    %777 = arith.subf %13, %694 : vector<8x128xf32>
    %778 = arith.mulf %777, %777 : vector<8x128xf32>
    %cst_166 = arith.constant dense<0.000000e+00> : vector<8xf32>
    %779 = vector.multi_reduction <add>, %778, %cst_166 [1] : vector<8x128xf32> to vector<8xf32>
    %780 = vector.shape_cast %779 : vector<8xf32> to vector<8x1xf32>
    %781 = arith.addf %776, %780 : vector<8x1xf32>
    %782 = arith.subf %11, %721 : vector<8x128xf32>
    %783 = arith.mulf %782, %782 : vector<8x128xf32>
    %cst_167 = arith.constant dense<0.000000e+00> : vector<8xf32>
    %784 = vector.multi_reduction <add>, %783, %cst_167 [1] : vector<8x128xf32> to vector<8xf32>
    %785 = vector.shape_cast %784 : vector<8xf32> to vector<8x1xf32>
    %786 = arith.addf %781, %785 : vector<8x1xf32>
    %787 = arith.subf %9, %748 : vector<8x128xf32>
    %788 = arith.mulf %787, %787 : vector<8x128xf32>
    %cst_168 = arith.constant dense<0.000000e+00> : vector<8xf32>
    %789 = vector.multi_reduction <add>, %788, %cst_168 [1] : vector<8x128xf32> to vector<8xf32>
    %790 = vector.shape_cast %789 : vector<8xf32> to vector<8x1xf32>
    %791 = arith.addf %786, %790 : vector<8x1xf32>
    %792 = arith.subf %7, %775 : vector<8x128xf32>
    %793 = arith.mulf %792, %792 : vector<8x128xf32>
    %cst_169 = arith.constant dense<0.000000e+00> : vector<8xf32>
    %794 = vector.multi_reduction <add>, %793, %cst_169 [1] : vector<8x128xf32> to vector<8xf32>
    %795 = vector.shape_cast %794 : vector<8xf32> to vector<8x1xf32>
    %796 = arith.addf %791, %795 : vector<8x1xf32>
    %797 = arith.mulf %796, %4 : vector<8x1xf32>
    %cst_170 = arith.constant dense<0.000000e+00> : vector<1xf32>
    %798 = vector.multi_reduction <add>, %797, %cst_170 [0] : vector<8x1xf32> to vector<1xf32>
    %799 = vector.shape_cast %798 : vector<1xf32> to vector<1x1xf32>
    %800 = arith.addf %7, %181 : vector<8x128xf32>
    %801 = arith.addf %800, %658 : vector<8x128xf32>
    %802 = arith.addf %9, %209 : vector<8x128xf32>
    %803 = arith.addf %802, %630 : vector<8x128xf32>
    %804 = arith.maximumf %801, %803 : vector<8x128xf32>
    %805 = arith.addf %11, %237 : vector<8x128xf32>
    %806 = arith.addf %805, %602 : vector<8x128xf32>
    %807 = arith.maximumf %804, %806 : vector<8x128xf32>
    %808 = arith.addf %13, %265 : vector<8x128xf32>
    %809 = arith.addf %808, %574 : vector<8x128xf32>
    %810 = arith.maximumf %807, %809 : vector<8x128xf32>
    %c0_171 = arith.constant 0 : index
    %c0_172 = arith.constant 0 : index
    %811 = vector.load %arg5[%c0_171, %c0_172] : memref<128x128xf32, #tpu.memory_space<vmem>>, vector<128x128xf32>
    %cst_173 = arith.constant dense<0.000000e+00> : vector<8x128xf32>
    %812 = tpu.matmul %810, %811, %cst_173 {dimension_numbers = #tpu.dot_dimension_numbers<[1], [0], [0], [1], [0, 0, 1, 1], [], []>} : vector<8x128xf32>, vector<128x128xf32>, vector<8x128xf32> -> vector<8x128xf32>
    %c0_174 = arith.constant 0 : index
    %c0_175 = arith.constant 0 : index
    %813 = vector.load %arg6[%c0_174, %c0_175] : memref<1x128xf32, #tpu.memory_space<vmem>>, vector<1x128xf32>
    %814 = vector.broadcast %813 : vector<1x128xf32> to vector<8x128xf32>
    %815 = arith.addf %812, %814 : vector<8x128xf32>
    %c0_176 = arith.constant 0 : index
    %c0_177 = arith.constant 0 : index
    %816 = vector.load %arg7[%c0_176, %c0_177] : memref<8x128xf32, #tpu.memory_space<vmem>>, vector<8x128xf32>
    tpu.vector_store %arg7[%c0_176, %c0_177], %815 {strides = array<i32>} : memref<8x128xf32, #tpu.memory_space<vmem>>, vector<8x128xf32>,
    %817 = arith.addf %406, %799 : vector<1x1xf32>
    %cst_178 = arith.constant 9.765625E-4 : f32
    %818 = vector.broadcast %cst_178 : f32 to vector<1x1xf32>
    %819 = arith.mulf %817, %818 : vector<1x1xf32>
    %c0_179 = arith.constant 0 : index
    %c0_180 = arith.constant 0 : index
    %820 = vector.load %arg8[%c0_179, %c0_180] : memref<1x1xf32, #tpu.memory_space<vmem>>, vector<1x1xf32>
    tpu.vector_store %arg8[%c0_179, %c0_180], %819 {strides = array<i32>} : memref<1x1xf32, #tpu.memory_space<vmem>>, vector<1x1xf32>,
    return
  }
  func.func @transform_0(%arg0: i32) -> (i32, i32, i32) {
    %c0_i32 = arith.constant 0 : i32
    %c0_i32_0 = arith.constant 0 : i32
    %c0_i32_1 = arith.constant 0 : i32
    %c0_i32_2 = arith.constant 0 : i32
    return %c0_i32, %c0_i32_0, %c0_i32_1 : i32, i32, i32
  }
  func.func @transform_1(%arg0: i32) -> (i32, i32, i32) {
    %c0_i32 = arith.constant 0 : i32
    %c0_i32_0 = arith.constant 0 : i32
    %c0_i32_1 = arith.constant 0 : i32
    %c0_i32_2 = arith.constant 0 : i32
    return %c0_i32, %c0_i32_0, %c0_i32_1 : i32, i32, i32
  }
  func.func @transform_2(%arg0: i32) -> (i32, i32, i32) {
    %c0_i32 = arith.constant 0 : i32
    %c0_i32_0 = arith.constant 0 : i32
    %c0_i32_1 = arith.constant 0 : i32
    %c0_i32_2 = arith.constant 0 : i32
    return %c0_i32, %c0_i32_0, %c0_i32_1 : i32, i32, i32
  }
  func.func @transform_3(%arg0: i32) -> (i32, i32, i32) {
    %c0_i32 = arith.constant 0 : i32
    %c0_i32_0 = arith.constant 0 : i32
    %c0_i32_1 = arith.constant 0 : i32
    %c0_i32_2 = arith.constant 0 : i32
    return %c0_i32, %c0_i32_0, %c0_i32_1 : i32, i32, i32
  }
  func.func @transform_4(%arg0: i32) -> (i32, i32) {
    %c0_i32 = arith.constant 0 : i32
    %c0_i32_0 = arith.constant 0 : i32
    %c0_i32_1 = arith.constant 0 : i32
    return %c0_i32, %c0_i32_0 : i32, i32
  }
  func.func @transform_5(%arg0: i32) -> (i32, i32) {
    %c0_i32 = arith.constant 0 : i32
    %c0_i32_0 = arith.constant 0 : i32
    %c0_i32_1 = arith.constant 0 : i32
    return %c0_i32, %c0_i32_0 : i32, i32
  }
  func.func @transform_6(%arg0: i32) -> (i32, i32) {
    %c0_i32 = arith.constant 0 : i32
    %c0_i32_0 = arith.constant 0 : i32
    %c0_i32_1 = arith.constant 0 : i32
    return %c0_i32, %c0_i32_0 : i32, i32
  }
  func.func @transform_7(%arg0: i32) -> (i32, i32) {
    %c0_i32 = arith.constant 0 : i32
    %c0_i32_0 = arith.constant 0 : i32
    %c0_i32_1 = arith.constant 0 : i32
    return %c0_i32, %c0_i32_0 : i32, i32
  }
}

</mosaic_0001>

<llo_original>
// kernel: elmo_max_forward.1
$region0: #{elmo_max_forward.1}
  #allocation0 [shape = 'u32[]', space=smem, size = 0x4, offset = 0x4, fixed_abs, tag = 'smem constant byte address 0x4 - core index']
  #allocation1 [shape = 'u32[144,128]{1,0:T(1,128)}', space=vmem, size = 0x12000, scoped, tag = 'internal scratch']
  %s0 = inlined_call_operand.vmem [shape: f32[4,8,128], index: 0, kind: input, shape index: {}]
  %s1 = inlined_call_operand.hbm [shape: f32[6,128,512], index: 1, kind: input, shape index: {}]
  %s2 = inlined_call_operand.hbm [shape: f32[6,128,512], index: 2, kind: input, shape index: {}]
  %s3 = inlined_call_operand.hbm [shape: f32[6,1,512], index: 3, kind: input, shape index: {}]
  %s4 = inlined_call_operand.hbm [shape: f32[128,128], index: 4, kind: input, shape index: {}]
  %s5 = inlined_call_operand.hbm [shape: f32[1,128], index: 5, kind: input, shape index: {}]
  %s6 = inlined_call_operand.vmem [shape: f32[8,128], index: 6, kind: output, shape index: {0}]
  %s7 = inlined_call_operand.hbm [shape: f32[1,1], index: 7, kind: output, shape index: {1}]
  %8 = xla_tuple %s6, %s7
  %s9 = sld [smem:[#allocation0]]
  $region62: #{elmo_max_forward.1} parent=0
    _
  %s11 = ssub.s32 1, %s9
  %s12 = scalar_select 0, %s11, %s9
  $region1: #{elmo_max_forward.1} parent=0
    #allocation2 [shape = 'u8[1572864]{0}', space=vmem, size = 0x180000, scoped, tag = 'input window, operand 1, single buffered']
    #allocation3 [shape = 's32[1]{0}', space=sflag, size = 0x4, scoped, tag = 'scoped memory for elmo_max_forward.1']
    #allocation4 [shape = 's32[1]{0}', space=sflag, size = 0x4, scoped, tag = 'scoped memory for elmo_max_forward.1']
    #allocation5 [shape = 'u8[1572864]{0}', space=vmem, size = 0x180000, scoped, tag = 'input window, operand 2, single buffered']
    #allocation6 [shape = 's32[1]{0}', space=sflag, size = 0x4, scoped, tag = 'scoped memory for elmo_max_forward.1']
    #allocation7 [shape = 'u8[12288]{0}', space=vmem, size = 0x3000, scoped, tag = 'input window, operand 3, single buffered']
    #allocation8 [shape = 'u8[65536]{0}', space=vmem, size = 0x10000, scoped, tag = 'input window, operand 4, single buffered']
    #allocation9 [shape = 's32[1]{0}', space=sflag, size = 0x4, scoped, tag = 'scoped memory for elmo_max_forward.1']
    #allocation10 [shape = 'u8[512]{0}', space=vmem, size = 0x400, scoped, tag = 'input window, operand 5, single buffered']
    #allocation11 [shape = 'u8[512]{0}', space=vmem, size = 0x400, scoped, tag = 'output window, operand 1, single buffered']
    %13 = vsyncpa [#allocation3], 0
    %14 = vsyncpa [#allocation6], 0
    %15 = vsyncpa [#allocation9], 0
    %16 = vsyncpa [#allocation4], 0
    // Predicated region
    $region2: #{elmo_max_forward.1} parent=1 // pred_check
      _
    $region3: #{elmo_max_forward.1} parent=1 // pred_check_branch
      %18 = sbr.rel (0) target = $region5
    $region4: #{elmo_max_forward.1} parent=1 // pred_region
      _
    $region5: #{elmo_max_forward.1} parent=1 // pred_fallthru
      _
    // Predicated region
    $region6: #{elmo_max_forward.1} parent=1 // pred_check
      _
    $region7: #{elmo_max_forward.1} parent=1 // pred_check_branch
      %20 = sbr.rel (0) target = $region9
    $region8: #{elmo_max_forward.1} parent=1 // pred_region
      %s22 = ssub.s32 49152, 49152
      %23 = vsyncadd [#allocation3], %s22
      %s24 = sshll.u32 [#allocation2], 4
      %s25 = int_to_ptr.vmem [resolvable:$true] %s24
      %30 = dma.hbm_to_vmem [thread:$0]  %s1, 49152, %s25, [#allocation3], 512, 512, 32
    $region9: #{elmo_max_forward.1} parent=1 // pred_fallthru
      _
    // Predicated region
    $region10: #{elmo_max_forward.1} parent=1 // pred_check
      _
    $region11: #{elmo_max_forward.1} parent=1 // pred_check_branch
      %32 = sbr.rel (0) target = $region13
    $region12: #{elmo_max_forward.1} parent=1 // pred_region
      %s34 = ssub.s32 49152, 49152
      %35 = vsyncadd [#allocation6], %s34
      %s36 = sshll.u32 [#allocation5], 4
      %s37 = int_to_ptr.vmem [resolvable:$true] %s36
      %42 = dma.hbm_to_vmem [thread:$0]  %s2, 49152, %s37, [#allocation6], 512, 512, 32
    $region13: #{elmo_max_forward.1} parent=1 // pred_fallthru
      _
    // Predicated region
    $region14: #{elmo_max_forward.1} parent=1 // pred_check
      _
    $region15: #{elmo_max_forward.1} parent=1 // pred_check_branch
      %44 = sbr.rel (0) target = $region17
    $region16: #{elmo_max_forward.1} parent=1 // pred_region
      %s46 = ssub.s32 384, 384
      %47 = vsyncadd [#allocation6], %s46
      %s48 = sshll.u32 [#allocation7], 4
      %s49 = int_to_ptr.vmem [resolvable:$true] %s48
      %54 = dma.hbm_to_vmem [thread:$0]  %s3, 384, %s49, [#allocation6], 64, 64, 4
    $region17: #{elmo_max_forward.1} parent=1 // pred_fallthru
      _
    // Predicated region
    $region18: #{elmo_max_forward.1} parent=1 // pred_check
      _
    $region19: #{elmo_max_forward.1} parent=1 // pred_check_branch
      %56 = sbr.rel (0) target = $region21
    $region20: #{elmo_max_forward.1} parent=1 // pred_region
      %s58 = ssub.s32 2048, 2048
      %59 = vsyncadd [#allocation9], %s58
      %s60 = sshll.u32 [#allocation8], 4
      %s61 = int_to_ptr.vmem [resolvable:$true] %s60
      %66 = dma.hbm_to_vmem [thread:$0]  %s4, 2048, %s61, [#allocation9], 128, 128, 8
    $region21: #{elmo_max_forward.1} parent=1 // pred_fallthru
      _
    // Predicated region
    $region22: #{elmo_max_forward.1} parent=1 // pred_check
      _
    $region23: #{elmo_max_forward.1} parent=1 // pred_check_branch
      %68 = sbr.rel (0) target = $region25
    $region24: #{elmo_max_forward.1} parent=1 // pred_region
      %s70 = ssub.s32 16, 16
      %71 = vsyncadd [#allocation9], %s70
      %s73 = sshll.u32 [#allocation10], 4
      %s74 = int_to_ptr.vmem [resolvable:$true] %s73
      %76 = dma.hbm_to_vmem [thread:$0]  %s5, 16, %s74, [#allocation9]
    $region25: #{elmo_max_forward.1} parent=1 // pred_fallthru
      _
    // Predicated region
    $region26: #{elmo_max_forward.1} parent=1 // pred_check
      _
    $region27: #{elmo_max_forward.1} parent=1 // pred_check_branch
      %78 = sbr.rel (0) target = $region29
    $region28: #{elmo_max_forward.1} parent=1 // pred_region
      %79 = dma.done [#allocation3], 49152
    $region29: #{elmo_max_forward.1} parent=1 // pred_fallthru
      _
    // Predicated region
    $region30: #{elmo_max_forward.1} parent=1 // pred_check
      _
    $region31: #{elmo_max_forward.1} parent=1 // pred_check_branch
      %81 = sbr.rel (0) target = $region33
    $region32: #{elmo_max_forward.1} parent=1 // pred_region
      %82 = dma.done [#allocation6], 49152
    $region33: #{elmo_max_forward.1} parent=1 // pred_fallthru
      _
    // Predicated region
    $region34: #{elmo_max_forward.1} parent=1 // pred_check
      _
    $region35: #{elmo_max_forward.1} parent=1 // pred_check_branch
      %84 = sbr.rel (0) target = $region37
    $region36: #{elmo_max_forward.1} parent=1 // pred_region
      %85 = dma.done [#allocation6], 384
    $region37: #{elmo_max_forward.1} parent=1 // pred_fallthru
      _
    // Predicated region
    $region38: #{elmo_max_forward.1} parent=1 // pred_check
      _
    $region39: #{elmo_max_forward.1} parent=1 // pred_check_branch
      %87 = sbr.rel (0) target = $region41
    $region40: #{elmo_max_forward.1} parent=1 // pred_region
      %88 = dma.done [#allocation9], 2048
    $region41: #{elmo_max_forward.1} parent=1 // pred_fallthru
      _
    // Predicated region
    $region42: #{elmo_max_forward.1} parent=1 // pred_check
      _
    $region43: #{elmo_max_forward.1} parent=1 // pred_check_branch
      %90 = sbr.rel (0) target = $region45
    $region44: #{elmo_max_forward.1} parent=1 // pred_region
      %91 = dma.done [#allocation9], 16
    $region45: #{elmo_max_forward.1} parent=1 // pred_fallthru
      _
    %v92 = vlaneseq
    %v93 = vshrl.u32 %v92, 7
    %vm94 = vcmp.lt.s32.totalorder %v93, 2
    %v95 = vsel %vm94, 1, 0
    %v96 = vcvt.s32.f32 %v95
    %v97 = vld [vmem:[%s0] sm:$0xff]
    %v98 = vld [vmem:[%s0 + $0x8] sm:$0xff]
    %v99 = vld [vmem:[%s0 + $0x10] sm:$0xff]
    %v100 = vld [vmem:[%s0 + $0x18] sm:$0xff]
    %v101 = vld [vmem:[#allocation2] sm:$0xff]
    %v102 = vld [vmem:[#allocation2 + $0x8] sm:$0xff]
    %v103 = vld [vmem:[#allocation2 + $0x10] sm:$0xff]
    %v104 = vld [vmem:[#allocation2 + $0x18] sm:$0xff]
    %v105 = vld [vmem:[#allocation2 + $0x20] sm:$0xff]
    %v106 = vld [vmem:[#allocation2 + $0x28] sm:$0xff]
    %v107 = vld [vmem:[#allocation2 + $0x30] sm:$0xff]
    %v108 = vld [vmem:[#allocation2 + $0x38] sm:$0xff]
    %v109 = vld [vmem:[#allocation2 + $0x40] sm:$0xff]
    %v110 = vld [vmem:[#allocation2 + $0x48] sm:$0xff]
    %v111 = vld [vmem:[#allocation2 + $0x50] sm:$0xff]
    %v112 = vld [vmem:[#allocation2 + $0x58] sm:$0xff]
    %v113 = vld [vmem:[#allocation2 + $0x60] sm:$0xff]
    %v114 = vld [vmem:[#allocation2 + $0x68] sm:$0xff]
    %v115 = vld [vmem:[#allocation2 + $0x70] sm:$0xff]
    %v116 = vld [vmem:[#allocation2 + $0x78] sm:$0xff]
    %v117 = vld [vmem:[#allocation2 + $0x80] sm:$0xff]
    %v118 = vld [vmem:[#allocation2 + $0x88] sm:$0xff]
    %v119 = vld [vmem:[#allocation2 + $0x90] sm:$0xff]
    %v120 = vld [vmem:[#allocation2 + $0x98] sm:$0xff]
    %v121 = vld [vmem:[#allocation2 + $0xa0] sm:$0xff]
    %v122 = vld [vmem:[#allocation2 + $0xa8] sm:$0xff]
    %v123 = vld [vmem:[#allocation2 + $0xb0] sm:$0xff]
    %v124 = vld [vmem:[#allocation2 + $0xb8] sm:$0xff]
    %v125 = vld [vmem:[#allocation2 + $0xc0] sm:$0xff]
    %v126 = vld [vmem:[#allocation2 + $0xc8] sm:$0xff]
    %v127 = vld [vmem:[#allocation2 + $0xd0] sm:$0xff]
    %v128 = vld [vmem:[#allocation2 + $0xd8] sm:$0xff]
    %v129 = vld [vmem:[#allocation2 + $0xe0] sm:$0xff]
    %v130 = vld [vmem:[#allocation2 + $0xe8] sm:$0xff]
    %v131 = vld [vmem:[#allocation2 + $0xf0] sm:$0xff]
    %v132 = vld [vmem:[#allocation2 + $0xf8] sm:$0xff]
    %v133 = vld [vmem:[#allocation2 + $0x100] sm:$0xff]
    %v134 = vld [vmem:[#allocation2 + $0x108] sm:$0xff]
    %v135 = vld [vmem:[#allocation2 + $0x110] sm:$0xff]
    %v136 = vld [vmem:[#allocation2 + $0x118] sm:$0xff]
    %v137 = vld [vmem:[#allocation2 + $0x120] sm:$0xff]
    %v138 = vld [vmem:[#allocation2 + $0x128] sm:$0xff]
    %v139 = vld [vmem:[#allocation2 + $0x130] sm:$0xff]
    %v140 = vld [vmem:[#allocation2 + $0x138] sm:$0xff]
    %v141 = vld [vmem:[#allocation2 + $0x140] sm:$0xff]
    %v142 = vld [vmem:[#allocation2 + $0x148] sm:$0xff]
    %v143 = vld [vmem:[#allocation2 + $0x150] sm:$0xff]
    %v144 = vld [vmem:[#allocation2 + $0x158] sm:$0xff]
    %v145 = vld [vmem:[#allocation2 + $0x160] sm:$0xff]
    %v146 = vld [vmem:[#allocation2 + $0x168] sm:$0xff]
    %v147 = vld [vmem:[#allocation2 + $0x170] sm:$0xff]
    %v148 = vld [vmem:[#allocation2 + $0x178] sm:$0xff]
    %v149 = vld [vmem:[#allocation2 + $0x180] sm:$0xff]
    %v150 = vld [vmem:[#allocation2 + $0x188] sm:$0xff]
    %v151 = vld [vmem:[#allocation2 + $0x190] sm:$0xff]
    %v152 = vld [vmem:[#allocation2 + $0x198] sm:$0xff]
    %v153 = vld [vmem:[#allocation2 + $0x1a0] sm:$0xff]
    %v154 = vld [vmem:[#allocation2 + $0x1a8] sm:$0xff]
    %v155 = vld [vmem:[#allocation2 + $0x1b0] sm:$0xff]
    %v156 = vld [vmem:[#allocation2 + $0x1b8] sm:$0xff]
    %v157 = vld [vmem:[#allocation2 + $0x1c0] sm:$0xff]
    %v158 = vld [vmem:[#allocation2 + $0x1c8] sm:$0xff]
    %v159 = vld [vmem:[#allocation2 + $0x1d0] sm:$0xff]
    %v160 = vld [vmem:[#allocation2 + $0x1d8] sm:$0xff]
    %v161 = vld [vmem:[#allocation2 + $0x1e0] sm:$0xff]
    %v162 = vld [vmem:[#allocation2 + $0x1e8] sm:$0xff]
    %v163 = vld [vmem:[#allocation2 + $0x1f0] sm:$0xff]
    %v164 = vld [vmem:[#allocation2 + $0x1f8] sm:$0xff]
    %v165 = vld [vmem:[#allocation7] sm:$0xf]
    %v167 = vlaneseq
    %v168 = vshrl.u32 %v167, 7
    %v169 = vsub.s32 0, %v168
    %v170 = vrot.slane %v165, %v169
    %v171 = vlaneseq
    %v172 = vshrl.u32 %v171, 7
    %v173 = vsub.s32 1, %v172
    %v174 = vrot.slane %v165, %v173
    %v175 = vlaneseq
    %v176 = vshrl.u32 %v175, 7
    %v177 = vsub.s32 2, %v176
    %v178 = vrot.slane %v165, %v177
    %v179 = vlaneseq
    %v180 = vshrl.u32 %v179, 7
    %v181 = vsub.s32 3, %v180
    %v182 = vrot.slane %v165, %v181
    %187 = vmatprep.subr.mxu0 %v102
    %188 = vmatpush1.msra.mxu0 %v101
    %189 = vmatprep.subr.mxu0 %v106
    %190 = vmatpush1.msra.mxu0 %v105
    %191 = vmatprep.subr.mxu0 %v110
    %192 = vmatpush1.msra.mxu0 %v109
    %193 = vmatprep.subr.mxu0 %v114
    %194 = vmatpush1.msra.mxu0 %v113
    %195 = vmatprep.subr.mxu0 %v118
    %196 = vmatpush1.msra.mxu0 %v117
    %197 = vmatprep.subr.mxu0 %v122
    %198 = vmatpush1.msra.mxu0 %v121
    %199 = vmatprep.subr.mxu0 %v126
    %200 = vmatpush1.msra.mxu0 %v125
    %201 = vmatprep.subr.mxu0 %v130
    %202 = vmatpush1.msra.mxu0 %v129
    %203 = vmatprep.subr.mxu0 %v134
    %204 = vmatpush1.msra.mxu0 %v133
    %205 = vmatprep.subr.mxu0 %v138
    %206 = vmatpush1.msra.mxu0 %v137
    %207 = vmatprep.subr.mxu0 %v142
    %208 = vmatpush1.msra.mxu0 %v141
    %209 = vmatprep.subr.mxu0 %v146
    %210 = vmatpush1.msra.mxu0 %v145
    %211 = vmatprep.subr.mxu0 %v150
    %212 = vmatpush1.msra.mxu0 %v149
    %213 = vmatprep.subr.mxu0 %v154
    %214 = vmatpush1.msra.mxu0 %v153
    %215 = vmatprep.subr.mxu0 %v158
    %216 = vmatpush1.msra.mxu0 %v157
    %217 = vmatprep.subr.mxu0 %v162
    %218 = vmatpush1.msra.mxu0 %v161
    %219 = vmatprep.subr.mxu0 0.0
    %220 = vmatpush1.msra.mxu0 0.0
    %221 = vmatprep.subr.mxu0 0.0
    %222 = vmatpush1.msra.mxu0 0.0
    %223 = vmatprep.subr.mxu0 0.0
    %224 = vmatpush1.msra.mxu0 0.0
    %225 = vmatprep.subr.mxu0 0.0
    %226 = vmatpush1.msra.mxu0 0.0
    %227 = vmatprep.subr.mxu0 0.0
    %228 = vmatpush1.msra.mxu0 0.0
    %229 = vmatprep.subr.mxu0 0.0
    %230 = vmatpush1.msra.mxu0 0.0
    %231 = vmatprep.subr.mxu0 0.0
    %232 = vmatpush1.msra.mxu0 0.0
    %233 = vmatprep.subr.mxu0 0.0
    %234 = vmatpush1.msra.mxu0 0.0
    %235 = vmatprep.subr.mxu0 0.0
    %236 = vmatpush1.msra.mxu0 0.0
    %237 = vmatprep.subr.mxu0 0.0
    %238 = vmatpush1.msra.mxu0 0.0
    %239 = vmatprep.subr.mxu0 0.0
    %240 = vmatpush1.msra.mxu0 0.0
    %241 = vmatprep.subr.mxu0 0.0
    %242 = vmatpush1.msra.mxu0 0.0
    %243 = vmatprep.subr.mxu0 0.0
    %244 = vmatpush1.msra.mxu0 0.0
    %245 = vmatprep.subr.mxu0 0.0
    %246 = vmatpush1.msra.mxu0 0.0
    %247 = vmatprep.subr.mxu0 0.0
    %248 = vmatpush1.msra.mxu0 0.0
    %249 = vmatprep.subr.mxu0 0.0
    %250 = vmatpush1.msra.mxu0 0.0
    %251 = vmatprep.mubr.f32.mxu0 0.0
    %252 = vmatmul.mubr.f32.gmra.mrb[0].mxu0 %v97
    %v253 = vpop.f32.mrb[0].mxu0
    %v254 = vadd.f32 %v170, %v253
    %v255 = vpop.f32.mrb[0].mxu0
    %v256 = vadd.f32 %v174, %v255
    %257 = vmatprep.mubr.f32.mxu0 0.0
    %258 = vmatmul.mubr.f32.gmra.mrb[0].mxu0 %v98
    %v259 = vpop.f32.mrb[0].mxu0
    %v260 = vadd.f32 %v170, %v259
    %v261 = vpop.f32.mrb[0].mxu0
    %v262 = vadd.f32 %v174, %v261
    %263 = vmatprep.mubr.f32.mxu0 0.0
    %264 = vmatmul.mubr.f32.gmra.mrb[0].mxu0 %v99
    %v265 = vpop.f32.mrb[0].mxu0
    %v266 = vadd.f32 %v170, %v265
    %v267 = vpop.f32.mrb[0].mxu0
    %v268 = vadd.f32 %v174, %v267
    %269 = vmatprep.mubr.f32.mxu0 0.0
    %270 = vmatmul.mubr.f32.gmra.mrb[0].mxu0 %v100
    %v271 = vpop.f32.mrb[0].mxu0
    %v272 = vadd.f32 %v170, %v271
    %v273 = vpop.f32.mrb[0].mxu0
    %v274 = vadd.f32 %v174, %v273
    %275 = vdwg.mxu0
    %276 = vmatprep.subr.mxu0 %v104
    %277 = vmatpush1.msra.mxu0 %v103
    %278 = vmatprep.subr.mxu0 %v108
    %279 = vmatpush1.msra.mxu0 %v107
    %280 = vmatprep.subr.mxu0 %v112
    %281 = vmatpush1.msra.mxu0 %v111
    %282 = vmatprep.subr.mxu0 %v116
    %283 = vmatpush1.msra.mxu0 %v115
    %284 = vmatprep.subr.mxu0 %v120
    %285 = vmatpush1.msra.mxu0 %v119
    %286 = vmatprep.subr.mxu0 %v124
    %287 = vmatpush1.msra.mxu0 %v123
    %288 = vmatprep.subr.mxu0 %v128
    %289 = vmatpush1.msra.mxu0 %v127
    %290 = vmatprep.subr.mxu0 %v132
    %291 = vmatpush1.msra.mxu0 %v131
    %292 = vmatprep.subr.mxu0 %v136
    %293 = vmatpush1.msra.mxu0 %v135
    %294 = vmatprep.subr.mxu0 %v140
    %295 = vmatpush1.msra.mxu0 %v139
    %296 = vmatprep.subr.mxu0 %v144
    %297 = vmatpush1.msra.mxu0 %v143
    %298 = vmatprep.subr.mxu0 %v148
    %299 = vmatpush1.msra.mxu0 %v147
    %300 = vmatprep.subr.mxu0 %v152
    %301 = vmatpush1.msra.mxu0 %v151
    %302 = vmatprep.subr.mxu0 %v156
    %303 = vmatpush1.msra.mxu0 %v155
    %304 = vmatprep.subr.mxu0 %v160
    %305 = vmatpush1.msra.mxu0 %v159
    %306 = vmatprep.subr.mxu0 %v164
    %307 = vmatpush1.msra.mxu0 %v163
    %308 = vmatprep.subr.mxu0 0.0
    %309 = vmatpush1.msra.mxu0 0.0
    %310 = vmatprep.subr.mxu0 0.0
    %311 = vmatpush1.msra.mxu0 0.0
    %312 = vmatprep.subr.mxu0 0.0
    %313 = vmatpush1.msra.mxu0 0.0
    %314 = vmatprep.subr.mxu0 0.0
    %315 = vmatpush1.msra.mxu0 0.0
    %316 = vmatprep.subr.mxu0 0.0
    %317 = vmatpush1.msra.mxu0 0.0
    %318 = vmatprep.subr.mxu0 0.0
    %319 = vmatpush1.msra.mxu0 0.0
    %320 = vmatprep.subr.mxu0 0.0
    %321 = vmatpush1.msra.mxu0 0.0
    %322 = vmatprep.subr.mxu0 0.0
    %323 = vmatpush1.msra.mxu0 0.0
    %324 = vmatprep.subr.mxu0 0.0
    %325 = vmatpush1.msra.mxu0 0.0
    %326 = vmatprep.subr.mxu0 0.0
    %327 = vmatpush1.msra.mxu0 0.0
    %328 = vmatprep.subr.mxu0 0.0
    %329 = vmatpush1.msra.mxu0 0.0
    %330 = vmatprep.subr.mxu0 0.0
    %331 = vmatpush1.msra.mxu0 0.0
    %332 = vmatprep.subr.mxu0 0.0
    %333 = vmatpush1.msra.mxu0 0.0
    %334 = vmatprep.subr.mxu0 0.0
    %335 = vmatpush1.msra.mxu0 0.0
    %336 = vmatprep.subr.mxu0 0.0
    %337 = vmatpush1.msra.mxu0 0.0
    %338 = vmatprep.subr.mxu0 0.0
    %339 = vmatpush1.msra.mxu0 0.0
    %340 = vmatprep.mubr.f32.mxu0 0.0
    %341 = vmatmul.mubr.f32.gmra.mrb[0].mxu0 %v97
    %v342 = vpop.f32.mrb[0].mxu0
    %v343 = vadd.f32 %v178, %v342
    %v344 = vpop.f32.mrb[0].mxu0
    %v345 = vadd.f32 %v182, %v344
    %346 = vmatprep.mubr.f32.mxu0 0.0
    %347 = vmatmul.mubr.f32.gmra.mrb[0].mxu0 %v98
    %v348 = vpop.f32.mrb[0].mxu0
    %v349 = vadd.f32 %v178, %v348
    %v350 = vpop.f32.mrb[0].mxu0
    %v351 = vadd.f32 %v182, %v350
    %352 = vmatprep.mubr.f32.mxu0 0.0
    %353 = vmatmul.mubr.f32.gmra.mrb[0].mxu0 %v99
    %v354 = vpop.f32.mrb[0].mxu0
    %v355 = vadd.f32 %v178, %v354
    %v356 = vpop.f32.mrb[0].mxu0
    %v357 = vadd.f32 %v182, %v356
    %358 = vmatprep.mubr.f32.mxu0 0.0
    %359 = vmatmul.mubr.f32.gmra.mrb[0].mxu0 %v100
    %v360 = vpop.f32.mrb[0].mxu0
    %v361 = vadd.f32 %v178, %v360
    %v362 = vpop.f32.mrb[0].mxu0
    %v363 = vadd.f32 %v182, %v362
    %364 = vdwg.mxu0
    %v365 = vld [vmem:[#allocation5] sm:$0xff]
    %v366 = vld [vmem:[#allocation5 + $0x8] sm:$0xff]
    %v367 = vld [vmem:[#allocation5 + $0x10] sm:$0xff]
    %v368 = vld [vmem:[#allocation5 + $0x18] sm:$0xff]
    %v369 = vld [vmem:[#allocation5 + $0x20] sm:$0xff]
    %v370 = vld [vmem:[#allocation5 + $0x28] sm:$0xff]
    %v371 = vld [vmem:[#allocation5 + $0x30] sm:$0xff]
    %v372 = vld [vmem:[#allocation5 + $0x38] sm:$0xff]
    %v373 = vld [vmem:[#allocation5 + $0x40] sm:$0xff]
    %v374 = vld [vmem:[#allocation5 + $0x48] sm:$0xff]
    %v375 = vld [vmem:[#allocation5 + $0x50] sm:$0xff]
    %v376 = vld [vmem:[#allocation5 + $0x58] sm:$0xff]
    %v377 = vld [vmem:[#allocation5 + $0x60] sm:$0xff]
    %v378 = vld [vmem:[#allocation5 + $0x68] sm:$0xff]
    %v379 = vld [vmem:[#allocation5 + $0x70] sm:$0xff]
    %v380 = vld [vmem:[#allocation5 + $0x78] sm:$0xff]
    %v381 = vld [vmem:[#allocation5 + $0x80] sm:$0xff]
    %v382 = vld [vmem:[#allocation5 + $0x88] sm:$0xff]
    %v383 = vld [vmem:[#allocation5 + $0x90] sm:$0xff]
    %v384 = vld [vmem:[#allocation5 + $0x98] sm:$0xff]
    %v385 = vld [vmem:[#allocation5 + $0xa0] sm:$0xff]
    %v386 = vld [vmem:[#allocation5 + $0xa8] sm:$0xff]
    %v387 = vld [vmem:[#allocation5 + $0xb0] sm:$0xff]
    %v388 = vld [vmem:[#allocation5 + $0xb8] sm:$0xff]
    %v389 = vld [vmem:[#allocation5 + $0xc0] sm:$0xff]
    %v390 = vld [vmem:[#allocation5 + $0xc8] sm:$0xff]
    %v391 = vld [vmem:[#allocation5 + $0xd0] sm:$0xff]
    %v392 = vld [vmem:[#allocation5 + $0xd8] sm:$0xff]
    %v393 = vld [vmem:[#allocation5 + $0xe0] sm:$0xff]
    %v394 = vld [vmem:[#allocation5 + $0xe8] sm:$0xff]
    %v395 = vld [vmem:[#allocation5 + $0xf0] sm:$0xff]
    %v396 = vld [vmem:[#allocation5 + $0xf8] sm:$0xff]
    %v397 = vld [vmem:[#allocation5 + $0x100] sm:$0xff]
    %v398 = vld [vmem:[#allocation5 + $0x108] sm:$0xff]
    %v399 = vld [vmem:[#allocation5 + $0x110] sm:$0xff]
    %v400 = vld [vmem:[#allocation5 + $0x118] sm:$0xff]
    %v401 = vld [vmem:[#allocation5 + $0x120] sm:$0xff]
    %v402 = vld [vmem:[#allocation5 + $0x128] sm:$0xff]
    %v403 = vld [vmem:[#allocation5 + $0x130] sm:$0xff]
    %v404 = vld [vmem:[#allocation5 + $0x138] sm:$0xff]
    %v405 = vld [vmem:[#allocation5 + $0x140] sm:$0xff]
    %v406 = vld [vmem:[#allocation5 + $0x148] sm:$0xff]
    %v407 = vld [vmem:[#allocation5 + $0x150] sm:$0xff]
    %v408 = vld [vmem:[#allocation5 + $0x158] sm:$0xff]
    %v409 = vld [vmem:[#allocation5 + $0x160] sm:$0xff]
    %v410 = vld [vmem:[#allocation5 + $0x168] sm:$0xff]
    %v411 = vld [vmem:[#allocation5 + $0x170] sm:$0xff]
    %v412 = vld [vmem:[#allocation5 + $0x178] sm:$0xff]
    %v413 = vld [vmem:[#allocation5 + $0x180] sm:$0xff]
    %v414 = vld [vmem:[#allocation5 + $0x188] sm:$0xff]
    %v415 = vld [vmem:[#allocation5 + $0x190] sm:$0xff]
    %v416 = vld [vmem:[#allocation5 + $0x198] sm:$0xff]
    %v417 = vld [vmem:[#allocation5 + $0x1a0] sm:$0xff]
    %v418 = vld [vmem:[#allocation5 + $0x1a8] sm:$0xff]
    %v419 = vld [vmem:[#allocation5 + $0x1b0] sm:$0xff]
    %v420 = vld [vmem:[#allocation5 + $0x1b8] sm:$0xff]
    %v421 = vld [vmem:[#allocation5 + $0x1c0] sm:$0xff]
    %v422 = vld [vmem:[#allocation5 + $0x1c8] sm:$0xff]
    %v423 = vld [vmem:[#allocation5 + $0x1d0] sm:$0xff]
    %v424 = vld [vmem:[#allocation5 + $0x1d8] sm:$0xff]
    %v425 = vld [vmem:[#allocation5 + $0x1e0] sm:$0xff]
    %v426 = vld [vmem:[#allocation5 + $0x1e8] sm:$0xff]
    %v427 = vld [vmem:[#allocation5 + $0x1f0] sm:$0xff]
    %v428 = vld [vmem:[#allocation5 + $0x1f8] sm:$0xff]
    %429 = vmatprep.subr.mxu0 %v366
    %430 = vmatpush1.msra.mxu0 %v365
    %431 = vmatprep.subr.mxu0 %v370
    %432 = vmatpush1.msra.mxu0 %v369
    %433 = vmatprep.subr.mxu0 %v374
    %434 = vmatpush1.msra.mxu0 %v373
    %435 = vmatprep.subr.mxu0 %v378
    %436 = vmatpush1.msra.mxu0 %v377
    %437 = vmatprep.subr.mxu0 %v382
    %438 = vmatpush1.msra.mxu0 %v381
    %439 = vmatprep.subr.mxu0 %v386
    %440 = vmatpush1.msra.mxu0 %v385
    %441 = vmatprep.subr.mxu0 %v390
    %442 = vmatpush1.msra.mxu0 %v389
    %443 = vmatprep.subr.mxu0 %v394
    %444 = vmatpush1.msra.mxu0 %v393
    %445 = vmatprep.subr.mxu0 %v398
    %446 = vmatpush1.msra.mxu0 %v397
    %447 = vmatprep.subr.mxu0 %v402
    %448 = vmatpush1.msra.mxu0 %v401
    %449 = vmatprep.subr.mxu0 %v406
    %450 = vmatpush1.msra.mxu0 %v405
    %451 = vmatprep.subr.mxu0 %v410
    %452 = vmatpush1.msra.mxu0 %v409
    %453 = vmatprep.subr.mxu0 %v414
    %454 = vmatpush1.msra.mxu0 %v413
    %455 = vmatprep.subr.mxu0 %v418
    %456 = vmatpush1.msra.mxu0 %v417
    %457 = vmatprep.subr.mxu0 %v422
    %458 = vmatpush1.msra.mxu0 %v421
    %459 = vmatprep.subr.mxu0 %v426
    %460 = vmatpush1.msra.mxu0 %v425
    %461 = vmatprep.subr.mxu0 0.0
    %462 = vmatpush1.msra.mxu0 0.0
    %463 = vmatprep.subr.mxu0 0.0
    %464 = vmatpush1.msra.mxu0 0.0
    %465 = vmatprep.subr.mxu0 0.0
    %466 = vmatpush1.msra.mxu0 0.0
    %467 = vmatprep.subr.mxu0 0.0
    %468 = vmatpush1.msra.mxu0 0.0
    %469 = vmatprep.subr.mxu0 0.0
    %470 = vmatpush1.msra.mxu0 0.0
    %471 = vmatprep.subr.mxu0 0.0
    %472 = vmatpush1.msra.mxu0 0.0
    %473 = vmatprep.subr.mxu0 0.0
    %474 = vmatpush1.msra.mxu0 0.0
    %475 = vmatprep.subr.mxu0 0.0
    %476 = vmatpush1.msra.mxu0 0.0
    %477 = vmatprep.subr.mxu0 0.0
    %478 = vmatpush1.msra.mxu0 0.0
    %479 = vmatprep.subr.mxu0 0.0
    %480 = vmatpush1.msra.mxu0 0.0
    %481 = vmatprep.subr.mxu0 0.0
    %482 = vmatpush1.msra.mxu0 0.0
    %483 = vmatprep.subr.mxu0 0.0
    %484 = vmatpush1.msra.mxu0 0.0
    %485 = vmatprep.subr.mxu0 0.0
    %486 = vmatpush1.msra.mxu0 0.0
    %487 = vmatprep.subr.mxu0 0.0
    %488 = vmatpush1.msra.mxu0 0.0
    %489 = vmatprep.subr.mxu0 0.0
    %490 = vmatpush1.msra.mxu0 0.0
    %491 = vmatprep.subr.mxu0 0.0
    %492 = vmatpush1.msra.mxu0 0.0
    %493 = vmatprep.mubr.f32.mxu0 0.0
    %494 = vmatmul.mubr.f32.gmra.mrb[0].mxu0 0.0
    %v495 = vpop.f32.mrb[0].mxu0
    %v496 = vadd.f32 0.0, %v495
    %v497 = vpop.f32.mrb[0].mxu0
    %v498 = vadd.f32 0.0, %v497
    %499 = vdwg.mxu0
    %500 = vmatprep.subr.mxu0 %v368
    %501 = vmatpush1.msra.mxu0 %v367
    %502 = vmatprep.subr.mxu0 %v372
    %503 = vmatpush1.msra.mxu0 %v371
    %504 = vmatprep.subr.mxu0 %v376
    %505 = vmatpush1.msra.mxu0 %v375
    %506 = vmatprep.subr.mxu0 %v380
    %507 = vmatpush1.msra.mxu0 %v379
    %508 = vmatprep.subr.mxu0 %v384
    %509 = vmatpush1.msra.mxu0 %v383
    %510 = vmatprep.subr.mxu0 %v388
    %511 = vmatpush1.msra.mxu0 %v387
    %512 = vmatprep.subr.mxu0 %v392
    %513 = vmatpush1.msra.mxu0 %v391
    %514 = vmatprep.subr.mxu0 %v396
    %515 = vmatpush1.msra.mxu0 %v395
    %516 = vmatprep.subr.mxu0 %v400
    %517 = vmatpush1.msra.mxu0 %v399
    %518 = vmatprep.subr.mxu0 %v404
    %519 = vmatpush1.msra.mxu0 %v403
    %520 = vmatprep.subr.mxu0 %v408
    %521 = vmatpush1.msra.mxu0 %v407
    %522 = vmatprep.subr.mxu0 %v412
    %523 = vmatpush1.msra.mxu0 %v411
    %524 = vmatprep.subr.mxu0 %v416
    %525 = vmatpush1.msra.mxu0 %v415
    %526 = vmatprep.subr.mxu0 %v420
    %527 = vmatpush1.msra.mxu0 %v419
    %528 = vmatprep.subr.mxu0 %v424
    %529 = vmatpush1.msra.mxu0 %v423
    %530 = vmatprep.subr.mxu0 %v428
    %531 = vmatpush1.msra.mxu0 %v427
    %532 = vmatprep.subr.mxu0 0.0
    %533 = vmatpush1.msra.mxu0 0.0
    %534 = vmatprep.subr.mxu0 0.0
    %535 = vmatpush1.msra.mxu0 0.0
    %536 = vmatprep.subr.mxu0 0.0
    %537 = vmatpush1.msra.mxu0 0.0
    %538 = vmatprep.subr.mxu0 0.0
    %539 = vmatpush1.msra.mxu0 0.0
    %540 = vmatprep.subr.mxu0 0.0
    %541 = vmatpush1.msra.mxu0 0.0
    %542 = vmatprep.subr.mxu0 0.0
    %543 = vmatpush1.msra.mxu0 0.0
    %544 = vmatprep.subr.mxu0 0.0
    %545 = vmatpush1.msra.mxu0 0.0
    %546 = vmatprep.subr.mxu0 0.0
    %547 = vmatpush1.msra.mxu0 0.0
    %548 = vmatprep.subr.mxu0 0.0
    %549 = vmatpush1.msra.mxu0 0.0
    %550 = vmatprep.subr.mxu0 0.0
    %551 = vmatpush1.msra.mxu0 0.0
    %552 = vmatprep.subr.mxu0 0.0
    %553 = vmatpush1.msra.mxu0 0.0
    %554 = vmatprep.subr.mxu0 0.0
    %555 = vmatpush1.msra.mxu0 0.0
    %556 = vmatprep.subr.mxu0 0.0
    %557 = vmatpush1.msra.mxu0 0.0
    %558 = vmatprep.subr.mxu0 0.0
    %559 = vmatpush1.msra.mxu0 0.0
    %560 = vmatprep.subr.mxu0 0.0
    %561 = vmatpush1.msra.mxu0 0.0
    %562 = vmatprep.subr.mxu0 0.0
    %563 = vmatpush1.msra.mxu0 0.0
    %564 = vmatprep.mubr.f32.mxu0 0.0
    %565 = vmatmul.mubr.f32.gmra.mrb[0].mxu0 0.0
    %v566 = vpop.f32.mrb[0].mxu0
    %v567 = vadd.f32 0.0, %v566
    %v568 = vpop.f32.mrb[0].mxu0
    %v569 = vadd.f32 0.0, %v568
    %570 = vdwg.mxu0
    %v571 = vadd.f32 %v254, %v496
    %v572 = vadd.f32 %v256, %v498
    %v573 = vadd.f32 %v343, %v567
    %v574 = vadd.f32 %v345, %v569
    %v575 = vxor.u32 %v571, 2147483648
    %v576 = vmul.f32 %v575, 1.442695
    %v577 = vpow.pop %v576
    %v578 = vadd.f32 %v577, 1.0
    %v579 = vrcp.pop %v578
    %v580 = vmul.f32 1.0, %v579
    %v581 = vxor.u32 %v572, 2147483648
    %v582 = vmul.f32 %v581, 1.442695
    %v583 = vpow.pop %v582
    %v584 = vadd.f32 %v583, 1.0
    %v585 = vrcp.pop %v584
    %v586 = vmul.f32 1.0, %v585
    %v587 = vtanh.pop %v573
    %v588 = vxor.u32 %v574, 2147483648
    %v589 = vmul.f32 %v588, 1.442695
    %v590 = vpow.pop %v589
    %v591 = vadd.f32 %v590, 1.0
    %v592 = vrcp.pop %v591
    %v593 = vmul.f32 1.0, %v592
    %v594 = vmul.f32 %v586, 0.0
    %v595 = vmul.f32 %v580, %v587
    %v596 = vadd.f32 %v594, %v595
    %v597 = vtanh.pop %v596
    %v598 = vmul.f32 %v593, %v597
    %599 = vmatprep.subr.mxu0 %v366
    %600 = vmatpush1.msra.mxu0 %v365
    %601 = vmatprep.subr.mxu0 %v370
    %602 = vmatpush1.msra.mxu0 %v369
    %603 = vmatprep.subr.mxu0 %v374
    %604 = vmatpush1.msra.mxu0 %v373
    %605 = vmatprep.subr.mxu0 %v378
    %606 = vmatpush1.msra.mxu0 %v377
    %607 = vmatprep.subr.mxu0 %v382
    %608 = vmatpush1.msra.mxu0 %v381
    %609 = vmatprep.subr.mxu0 %v386
    %610 = vmatpush1.msra.mxu0 %v385
    %611 = vmatprep.subr.mxu0 %v390
    %612 = vmatpush1.msra.mxu0 %v389
    %613 = vmatprep.subr.mxu0 %v394
    %614 = vmatpush1.msra.mxu0 %v393
    %615 = vmatprep.subr.mxu0 %v398
    %616 = vmatpush1.msra.mxu0 %v397
    %617 = vmatprep.subr.mxu0 %v402
    %618 = vmatpush1.msra.mxu0 %v401
    %619 = vmatprep.subr.mxu0 %v406
    %620 = vmatpush1.msra.mxu0 %v405
    %621 = vmatprep.subr.mxu0 %v410
    %622 = vmatpush1.msra.mxu0 %v409
    %623 = vmatprep.subr.mxu0 %v414
    %624 = vmatpush1.msra.mxu0 %v413
    %625 = vmatprep.subr.mxu0 %v418
    %626 = vmatpush1.msra.mxu0 %v417
    %627 = vmatprep.subr.mxu0 %v422
    %628 = vmatpush1.msra.mxu0 %v421
    %629 = vmatprep.subr.mxu0 %v426
    %630 = vmatpush1.msra.mxu0 %v425
    %631 = vmatprep.subr.mxu0 0.0
    %632 = vmatpush1.msra.mxu0 0.0
    %633 = vmatprep.subr.mxu0 0.0
    %634 = vmatpush1.msra.mxu0 0.0
    %635 = vmatprep.subr.mxu0 0.0
    %636 = vmatpush1.msra.mxu0 0.0
    %637 = vmatprep.subr.mxu0 0.0
    %638 = vmatpush1.msra.mxu0 0.0
    %639 = vmatprep.subr.mxu0 0.0
    %640 = vmatpush1.msra.mxu0 0.0
    %641 = vmatprep.subr.mxu0 0.0
    %642 = vmatpush1.msra.mxu0 0.0
    %643 = vmatprep.subr.mxu0 0.0
    %644 = vmatpush1.msra.mxu0 0.0
    %645 = vmatprep.subr.mxu0 0.0
    %646 = vmatpush1.msra.mxu0 0.0
    %647 = vmatprep.subr.mxu0 0.0
    %648 = vmatpush1.msra.mxu0 0.0
    %649 = vmatprep.subr.mxu0 0.0
    %650 = vmatpush1.msra.mxu0 0.0
    %651 = vmatprep.subr.mxu0 0.0
    %652 = vmatpush1.msra.mxu0 0.0
    %653 = vmatprep.subr.mxu0 0.0
    %654 = vmatpush1.msra.mxu0 0.0
    %655 = vmatprep.subr.mxu0 0.0
    %656 = vmatpush1.msra.mxu0 0.0
    %657 = vmatprep.subr.mxu0 0.0
    %658 = vmatpush1.msra.mxu0 0.0
    %659 = vmatprep.subr.mxu0 0.0
    %660 = vmatpush1.msra.mxu0 0.0
    %661 = vmatprep.subr.mxu0 0.0
    %662 = vmatpush1.msra.mxu0 0.0
    %663 = vmatprep.mubr.f32.mxu0 0.0
    %664 = vmatmul.mubr.f32.gmra.mrb[0].mxu0 %v598
    %v665 = vpop.f32.mrb[0].mxu0
    %v666 = vadd.f32 0.0, %v665
    %v667 = vpop.f32.mrb[0].mxu0
    %v668 = vadd.f32 0.0, %v667
    %669 = vdwg.mxu0
    %670 = vmatprep.subr.mxu0 %v368
    %671 = vmatpush1.msra.mxu0 %v367
    %672 = vmatprep.subr.mxu0 %v372
    %673 = vmatpush1.msra.mxu0 %v371
    %674 = vmatprep.subr.mxu0 %v376
    %675 = vmatpush1.msra.mxu0 %v375
    %676 = vmatprep.subr.mxu0 %v380
    %677 = vmatpush1.msra.mxu0 %v379
    %678 = vmatprep.subr.mxu0 %v384
    %679 = vmatpush1.msra.mxu0 %v383
    %680 = vmatprep.subr.mxu0 %v388
    %681 = vmatpush1.msra.mxu0 %v387
    %682 = vmatprep.subr.mxu0 %v392
    %683 = vmatpush1.msra.mxu0 %v391
    %684 = vmatprep.subr.mxu0 %v396
    %685 = vmatpush1.msra.mxu0 %v395
    %686 = vmatprep.subr.mxu0 %v400
    %687 = vmatpush1.msra.mxu0 %v399
    %688 = vmatprep.subr.mxu0 %v404
    %689 = vmatpush1.msra.mxu0 %v403
    %690 = vmatprep.subr.mxu0 %v408
    %691 = vmatpush1.msra.mxu0 %v407
    %692 = vmatprep.subr.mxu0 %v412
    %693 = vmatpush1.msra.mxu0 %v411
    %694 = vmatprep.subr.mxu0 %v416
    %695 = vmatpush1.msra.mxu0 %v415
    %696 = vmatprep.subr.mxu0 %v420
    %697 = vmatpush1.msra.mxu0 %v419
    %698 = vmatprep.subr.mxu0 %v424
    %699 = vmatpush1.msra.mxu0 %v423
    %700 = vmatprep.subr.mxu0 %v428
    %701 = vmatpush1.msra.mxu0 %v427
    %702 = vmatprep.subr.mxu0 0.0
    %703 = vmatpush1.msra.mxu0 0.0
    %704 = vmatprep.subr.mxu0 0.0
    %705 = vmatpush1.msra.mxu0 0.0
    %706 = vmatprep.subr.mxu0 0.0
    %707 = vmatpush1.msra.mxu0 0.0
    %708 = vmatprep.subr.mxu0 0.0
    %709 = vmatpush1.msra.mxu0 0.0
    %710 = vmatprep.subr.mxu0 0.0
    %711 = vmatpush1.msra.mxu0 0.0
    %712 = vmatprep.subr.mxu0 0.0
    %713 = vmatpush1.msra.mxu0 0.0
    %714 = vmatprep.subr.mxu0 0.0
    %715 = vmatpush1.msra.mxu0 0.0
    %716 = vmatprep.subr.mxu0 0.0
    %717 = vmatpush1.msra.mxu0 0.0
    %718 = vmatprep.subr.mxu0 0.0
    %719 = vmatpush1.msra.mxu0 0.0
    %720 = vmatprep.subr.mxu0 0.0
    %721 = vmatpush1.msra.mxu0 0.0
    %722 = vmatprep.subr.mxu0 0.0
    %723 = vmatpush1.msra.mxu0 0.0
    %724 = vmatprep.subr.mxu0 0.0
    %725 = vmatpush1.msra.mxu0 0.0
    %726 = vmatprep.subr.mxu0 0.0
    %727 = vmatpush1.msra.mxu0 0.0
    %728 = vmatprep.subr.mxu0 0.0
    %729 = vmatpush1.msra.mxu0 0.0
    %730 = vmatprep.subr.mxu0 0.0
    %731 = vmatpush1.msra.mxu0 0.0
    %732 = vmatprep.subr.mxu0 0.0
    %733 = vmatpush1.msra.mxu0 0.0
    %734 = vmatprep.mubr.f32.mxu0 0.0
    %735 = vmatmul.mubr.f32.gmra.mrb[0].mxu0 %v598
    %v736 = vpop.f32.mrb[0].mxu0
    %v737 = vadd.f32 0.0, %v736
    %v738 = vpop.f32.mrb[0].mxu0
    %v739 = vadd.f32 0.0, %v738
    %740 = vdwg.mxu0
    %v741 = vadd.f32 %v260, %v666
    %v742 = vadd.f32 %v262, %v668
    %v743 = vadd.f32 %v349, %v737
    %v744 = vadd.f32 %v351, %v739
    %v745 = vxor.u32 %v741, 2147483648
    %v746 = vmul.f32 %v745, 1.442695
    %v747 = vpow.pop %v746
    %v748 = vadd.f32 %v747, 1.0
    %v749 = vrcp.pop %v748
    %v750 = vmul.f32 1.0, %v749
    %v751 = vxor.u32 %v742, 2147483648
    %v752 = vmul.f32 %v751, 1.442695
    %v753 = vpow.pop %v752
    %v754 = vadd.f32 %v753, 1.0
    %v755 = vrcp.pop %v754
    %v756 = vmul.f32 1.0, %v755
    %v757 = vtanh.pop %v743
    %v758 = vxor.u32 %v744, 2147483648
    %v759 = vmul.f32 %v758, 1.442695
    %v760 = vpow.pop %v759
    %v761 = vadd.f32 %v760, 1.0
    %v762 = vrcp.pop %v761
    %v763 = vmul.f32 1.0, %v762
    %v764 = vmul.f32 %v756, %v596
    %v765 = vmul.f32 %v750, %v757
    %v766 = vadd.f32 %v764, %v765
    %v767 = vtanh.pop %v766
    %v768 = vmul.f32 %v763, %v767
    %769 = vmatprep.subr.mxu0 %v366
    %770 = vmatpush1.msra.mxu0 %v365
    %771 = vmatprep.subr.mxu0 %v370
    %772 = vmatpush1.msra.mxu0 %v369
    %773 = vmatprep.subr.mxu0 %v374
    %774 = vmatpush1.msra.mxu0 %v373
    %775 = vmatprep.subr.mxu0 %v378
    %776 = vmatpush1.msra.mxu0 %v377
    %777 = vmatprep.subr.mxu0 %v382
    %778 = vmatpush1.msra.mxu0 %v381
    %779 = vmatprep.subr.mxu0 %v386
    %780 = vmatpush1.msra.mxu0 %v385
    %781 = vmatprep.subr.mxu0 %v390
    %782 = vmatpush1.msra.mxu0 %v389
    %783 = vmatprep.subr.mxu0 %v394
    %784 = vmatpush1.msra.mxu0 %v393
    %785 = vmatprep.subr.mxu0 %v398
    %786 = vmatpush1.msra.mxu0 %v397
    %787 = vmatprep.subr.mxu0 %v402
    %788 = vmatpush1.msra.mxu0 %v401
    %789 = vmatprep.subr.mxu0 %v406
    %790 = vmatpush1.msra.mxu0 %v405
    %791 = vmatprep.subr.mxu0 %v410
    %792 = vmatpush1.msra.mxu0 %v409
    %793 = vmatprep.subr.mxu0 %v414
    %794 = vmatpush1.msra.mxu0 %v413
    %795 = vmatprep.subr.mxu0 %v418
    %796 = vmatpush1.msra.mxu0 %v417
    %797 = vmatprep.subr.mxu0 %v422
    %798 = vmatpush1.msra.mxu0 %v421
    %799 = vmatprep.subr.mxu0 %v426
    %800 = vmatpush1.msra.mxu0 %v425
    %801 = vmatprep.subr.mxu0 0.0
    %802 = vmatpush1.msra.mxu0 0.0
    %803 = vmatprep.subr.mxu0 0.0
    %804 = vmatpush1.msra.mxu0 0.0
    %805 = vmatprep.subr.mxu0 0.0
    %806 = vmatpush1.msra.mxu0 0.0
    %807 = vmatprep.subr.mxu0 0.0
    %808 = vmatpush1.msra.mxu0 0.0
    %809 = vmatprep.subr.mxu0 0.0
    %810 = vmatpush1.msra.mxu0 0.0
    %811 = vmatprep.subr.mxu0 0.0
    %812 = vmatpush1.msra.mxu0 0.0
    %813 = vmatprep.subr.mxu0 0.0
    %814 = vmatpush1.msra.mxu0 0.0
    %815 = vmatprep.subr.mxu0 0.0
    %816 = vmatpush1.msra.mxu0 0.0
    %817 = vmatprep.subr.mxu0 0.0
    %818 = vmatpush1.msra.mxu0 0.0
    %819 = vmatprep.subr.mxu0 0.0
    %820 = vmatpush1.msra.mxu0 0.0
    %821 = vmatprep.subr.mxu0 0.0
    %822 = vmatpush1.msra.mxu0 0.0
    %823 = vmatprep.subr.mxu0 0.0
    %824 = vmatpush1.msra.mxu0 0.0
    %825 = vmatprep.subr.mxu0 0.0
    %826 = vmatpush1.msra.mxu0 0.0
    %827 = vmatprep.subr.mxu0 0.0
    %828 = vmatpush1.msra.mxu0 0.0
    %829 = vmatprep.subr.mxu0 0.0
    %830 = vmatpush1.msra.mxu0 0.0
    %831 = vmatprep.subr.mxu0 0.0
    %832 = vmatpush1.msra.mxu0 0.0
    %833 = vmatprep.mubr.f32.mxu0 0.0
    %834 = vmatmul.mubr.f32.gmra.mrb[0].mxu0 %v768
    %v835 = vpop.f32.mrb[0].mxu0
    %v836 = vadd.f32 0.0, %v835
    %v837 = vpop.f32.mrb[0].mxu0
    %v838 = vadd.f32 0.0, %v837
    %839 = vdwg.mxu0
    %840 = vmatprep.subr.mxu0 %v368
    %841 = vmatpush1.msra.mxu0 %v367
    %842 = vmatprep.subr.mxu0 %v372
    %843 = vmatpush1.msra.mxu0 %v371
    %844 = vmatprep.subr.mxu0 %v376
    %845 = vmatpush1.msra.mxu0 %v375
    %846 = vmatprep.subr.mxu0 %v380
    %847 = vmatpush1.msra.mxu0 %v379
    %848 = vmatprep.subr.mxu0 %v384
    %849 = vmatpush1.msra.mxu0 %v383
    %850 = vmatprep.subr.mxu0 %v388
    %851 = vmatpush1.msra.mxu0 %v387
    %852 = vmatprep.subr.mxu0 %v392
    %853 = vmatpush1.msra.mxu0 %v391
    %854 = vmatprep.subr.mxu0 %v396
    %855 = vmatpush1.msra.mxu0 %v395
    %856 = vmatprep.subr.mxu0 %v400
    %857 = vmatpush1.msra.mxu0 %v399
    %858 = vmatprep.subr.mxu0 %v404
    %859 = vmatpush1.msra.mxu0 %v403
    %860 = vmatprep.subr.mxu0 %v408
    %861 = vmatpush1.msra.mxu0 %v407
    %862 = vmatprep.subr.mxu0 %v412
    %863 = vmatpush1.msra.mxu0 %v411
    %864 = vmatprep.subr.mxu0 %v416
    %865 = vmatpush1.msra.mxu0 %v415
    %866 = vmatprep.subr.mxu0 %v420
    %867 = vmatpush1.msra.mxu0 %v419
    %868 = vmatprep.subr.mxu0 %v424
    %869 = vmatpush1.msra.mxu0 %v423
    %870 = vmatprep.subr.mxu0 %v428
    %871 = vmatpush1.msra.mxu0 %v427
    %872 = vmatprep.subr.mxu0 0.0
    %873 = vmatpush1.msra.mxu0 0.0
    %874 = vmatprep.subr.mxu0 0.0
    %875 = vmatpush1.msra.mxu0 0.0
    %876 = vmatprep.subr.mxu0 0.0
    %877 = vmatpush1.msra.mxu0 0.0
    %878 = vmatprep.subr.mxu0 0.0
    %879 = vmatpush1.msra.mxu0 0.0
    %880 = vmatprep.subr.mxu0 0.0
    %881 = vmatpush1.msra.mxu0 0.0
    %882 = vmatprep.subr.mxu0 0.0
    %883 = vmatpush1.msra.mxu0 0.0
    %884 = vmatprep.subr.mxu0 0.0
    %885 = vmatpush1.msra.mxu0 0.0
    %886 = vmatprep.subr.mxu0 0.0
    %887 = vmatpush1.msra.mxu0 0.0
    %888 = vmatprep.subr.mxu0 0.0
    %889 = vmatpush1.msra.mxu0 0.0
    %890 = vmatprep.subr.mxu0 0.0
    %891 = vmatpush1.msra.mxu0 0.0
    %892 = vmatprep.subr.mxu0 0.0
    %893 = vmatpush1.msra.mxu0 0.0
    %894 = vmatprep.subr.mxu0 0.0
    %895 = vmatpush1.msra.mxu0 0.0
    %896 = vmatprep.subr.mxu0 0.0
    %897 = vmatpush1.msra.mxu0 0.0
    %898 = vmatprep.subr.mxu0 0.0
    %899 = vmatpush1.msra.mxu0 0.0
    %900 = vmatprep.subr.mxu0 0.0
    %901 = vmatpush1.msra.mxu0 0.0
    %902 = vmatprep.subr.mxu0 0.0
    %903 = vmatpush1.msra.mxu0 0.0
    %904 = vmatprep.mubr.f32.mxu0 0.0
    %905 = vmatmul.mubr.f32.gmra.mrb[0].mxu0 %v768
    %v906 = vpop.f32.mrb[0].mxu0
    %v907 = vadd.f32 0.0, %v906
    %v908 = vpop.f32.mrb[0].mxu0
    %v909 = vadd.f32 0.0, %v908
    %910 = vdwg.mxu0
    %v911 = vadd.f32 %v266, %v836
    %v912 = vadd.f32 %v268, %v838
    %v913 = vadd.f32 %v355, %v907
    %v914 = vadd.f32 %v357, %v909
    %v915 = vxor.u32 %v911, 2147483648
    %v916 = vmul.f32 %v915, 1.442695
    %v917 = vpow.pop %v916
    %v918 = vadd.f32 %v917, 1.0
    %v919 = vrcp.pop %v918
    %v920 = vmul.f32 1.0, %v919
    %v921 = vxor.u32 %v912, 2147483648
    %v922 = vmul.f32 %v921, 1.442695
    %v923 = vpow.pop %v922
    %v924 = vadd.f32 %v923, 1.0
    %v925 = vrcp.pop %v924
    %v926 = vmul.f32 1.0, %v925
    %v927 = vtanh.pop %v913
    %v928 = vxor.u32 %v914, 2147483648
    %v929 = vmul.f32 %v928, 1.442695
    %v930 = vpow.pop %v929
    %v931 = vadd.f32 %v930, 1.0
    %v932 = vrcp.pop %v931
    %v933 = vmul.f32 1.0, %v932
    %v934 = vmul.f32 %v926, %v766
    %v935 = vmul.f32 %v920, %v927
    %v936 = vadd.f32 %v934, %v935
    %v937 = vtanh.pop %v936
    %v938 = vmul.f32 %v933, %v937
    %939 = vmatprep.subr.mxu0 %v366
    %940 = vmatpush1.msra.mxu0 %v365
    %941 = vmatprep.subr.mxu0 %v370
    %942 = vmatpush1.msra.mxu0 %v369
    %943 = vmatprep.subr.mxu0 %v374
    %944 = vmatpush1.msra.mxu0 %v373
    %945 = vmatprep.subr.mxu0 %v378
    %946 = vmatpush1.msra.mxu0 %v377
    %947 = vmatprep.subr.mxu0 %v382
    %948 = vmatpush1.msra.mxu0 %v381
    %949 = vmatprep.subr.mxu0 %v386
    %950 = vmatpush1.msra.mxu0 %v385
    %951 = vmatprep.subr.mxu0 %v390
    %952 = vmatpush1.msra.mxu0 %v389
    %953 = vmatprep.subr.mxu0 %v394
    %954 = vmatpush1.msra.mxu0 %v393
    %955 = vmatprep.subr.mxu0 %v398
    %956 = vmatpush1.msra.mxu0 %v397
    %957 = vmatprep.subr.mxu0 %v402
    %958 = vmatpush1.msra.mxu0 %v401
    %959 = vmatprep.subr.mxu0 %v406
    %960 = vmatpush1.msra.mxu0 %v405
    %961 = vmatprep.subr.mxu0 %v410
    %962 = vmatpush1.msra.mxu0 %v409
    %963 = vmatprep.subr.mxu0 %v414
    %964 = vmatpush1.msra.mxu0 %v413
    %965 = vmatprep.subr.mxu0 %v418
    %966 = vmatpush1.msra.mxu0 %v417
    %967 = vmatprep.subr.mxu0 %v422
    %968 = vmatpush1.msra.mxu0 %v421
    %969 = vmatprep.subr.mxu0 %v426
    %970 = vmatpush1.msra.mxu0 %v425
    %971 = vmatprep.subr.mxu0 0.0
    %972 = vmatpush1.msra.mxu0 0.0
    %973 = vmatprep.subr.mxu0 0.0
    %974 = vmatpush1.msra.mxu0 0.0
    %975 = vmatprep.subr.mxu0 0.0
    %976 = vmatpush1.msra.mxu0 0.0
    %977 = vmatprep.subr.mxu0 0.0
    %978 = vmatpush1.msra.mxu0 0.0
    %979 = vmatprep.subr.mxu0 0.0
    %980 = vmatpush1.msra.mxu0 0.0
    %981 = vmatprep.subr.mxu0 0.0
    %982 = vmatpush1.msra.mxu0 0.0
    %983 = vmatprep.subr.mxu0 0.0
    %984 = vmatpush1.msra.mxu0 0.0
    %985 = vmatprep.subr.mxu0 0.0
    %986 = vmatpush1.msra.mxu0 0.0
    %987 = vmatprep.subr.mxu0 0.0
    %988 = vmatpush1.msra.mxu0 0.0
    %989 = vmatprep.subr.mxu0 0.0
    %990 = vmatpush1.msra.mxu0 0.0
    %991 = vmatprep.subr.mxu0 0.0
    %992 = vmatpush1.msra.mxu0 0.0
    %993 = vmatprep.subr.mxu0 0.0
    %994 = vmatpush1.msra.mxu0 0.0
    %995 = vmatprep.subr.mxu0 0.0
    %996 = vmatpush1.msra.mxu0 0.0
    %997 = vmatprep.subr.mxu0 0.0
    %998 = vmatpush1.msra.mxu0 0.0
    %999 = vmatprep.subr.mxu0 0.0
    %1000 = vmatpush1.msra.mxu0 0.0
    %1001 = vmatprep.subr.mxu0 0.0
    %1002 = vmatpush1.msra.mxu0 0.0
    %1003 = vmatprep.mubr.f32.mxu0 0.0
    %1004 = vmatmul.mubr.f32.gmra.mrb[0].mxu0 %v938
    %v1005 = vpop.f32.mrb[0].mxu0
    %v1006 = vadd.f32 0.0, %v1005
    %v1007 = vpop.f32.mrb[0].mxu0
    %v1008 = vadd.f32 0.0, %v1007
    %1009 = vdwg.mxu0
    %1010 = vmatprep.subr.mxu0 %v368
    %1011 = vmatpush1.msra.mxu0 %v367
    %1012 = vmatprep.subr.mxu0 %v372
    %1013 = vmatpush1.msra.mxu0 %v371
    %1014 = vmatprep.subr.mxu0 %v376
    %1015 = vmatpush1.msra.mxu0 %v375
    %1016 = vmatprep.subr.mxu0 %v380
    %1017 = vmatpush1.msra.mxu0 %v379
    %1018 = vmatprep.subr.mxu0 %v384
    %1019 = vmatpush1.msra.mxu0 %v383
    %1020 = vmatprep.subr.mxu0 %v388
    %1021 = vmatpush1.msra.mxu0 %v387
    %1022 = vmatprep.subr.mxu0 %v392
    %1023 = vmatpush1.msra.mxu0 %v391
    %1024 = vmatprep.subr.mxu0 %v396
    %1025 = vmatpush1.msra.mxu0 %v395
    %1026 = vmatprep.subr.mxu0 %v400
    %1027 = vmatpush1.msra.mxu0 %v399
    %1028 = vmatprep.subr.mxu0 %v404
    %1029 = vmatpush1.msra.mxu0 %v403
    %1030 = vmatprep.subr.mxu0 %v408
    %1031 = vmatpush1.msra.mxu0 %v407
    %1032 = vmatprep.subr.mxu0 %v412
    %1033 = vmatpush1.msra.mxu0 %v411
    %1034 = vmatprep.subr.mxu0 %v416
    %1035 = vmatpush1.msra.mxu0 %v415
    %1036 = vmatprep.subr.mxu0 %v420
    %1037 = vmatpush1.msra.mxu0 %v419
    %1038 = vmatprep.subr.mxu0 %v424
    %1039 = vmatpush1.msra.mxu0 %v423
    %1040 = vmatprep.subr.mxu0 %v428
    %1041 = vmatpush1.msra.mxu0 %v427
    %1042 = vmatprep.subr.mxu0 0.0
    %1043 = vmatpush1.msra.mxu0 0.0
    %1044 = vmatprep.subr.mxu0 0.0
    %1045 = vmatpush1.msra.mxu0 0.0
    %1046 = vmatprep.subr.mxu0 0.0
    %1047 = vmatpush1.msra.mxu0 0.0
    %1048 = vmatprep.subr.mxu0 0.0
    %1049 = vmatpush1.msra.mxu0 0.0
    %1050 = vmatprep.subr.mxu0 0.0
    %1051 = vmatpush1.msra.mxu0 0.0
    %1052 = vmatprep.subr.mxu0 0.0
    %1053 = vmatpush1.msra.mxu0 0.0
    %1054 = vmatprep.subr.mxu0 0.0
    %1055 = vmatpush1.msra.mxu0 0.0
    %1056 = vmatprep.subr.mxu0 0.0
    %1057 = vmatpush1.msra.mxu0 0.0
    %1058 = vmatprep.subr.mxu0 0.0
    %1059 = vmatpush1.msra.mxu0 0.0
    %1060 = vmatprep.subr.mxu0 0.0
    %1061 = vmatpush1.msra.mxu0 0.0
    %1062 = vmatprep.subr.mxu0 0.0
    %1063 = vmatpush1.msra.mxu0 0.0
    %1064 = vmatprep.subr.mxu0 0.0
    %1065 = vmatpush1.msra.mxu0 0.0
    %1066 = vmatprep.subr.mxu0 0.0
    %1067 = vmatpush1.msra.mxu0 0.0
    %1068 = vmatprep.subr.mxu0 0.0
    %1069 = vmatpush1.msra.mxu0 0.0
    %1070 = vmatprep.subr.mxu0 0.0
    %1071 = vmatpush1.msra.mxu0 0.0
    %1072 = vmatprep.subr.mxu0 0.0
    %1073 = vmatpush1.msra.mxu0 0.0
    %1074 = vmatprep.mubr.f32.mxu0 0.0
    %1075 = vmatmul.mubr.f32.gmra.mrb[0].mxu0 %v938
    %v1076 = vpop.f32.mrb[0].mxu0
    %v1077 = vadd.f32 0.0, %v1076
    %v1078 = vpop.f32.mrb[0].mxu0
    %v1079 = vadd.f32 0.0, %v1078
    %1080 = vdwg.mxu0
    %v1081 = vadd.f32 %v272, %v1006
    %v1082 = vadd.f32 %v274, %v1008
    %v1083 = vadd.f32 %v361, %v1077
    %v1084 = vadd.f32 %v363, %v1079
    %v1085 = vxor.u32 %v1081, 2147483648
    %v1086 = vmul.f32 %v1085, 1.442695
    %v1087 = vpow.pop %v1086
    %v1088 = vadd.f32 %v1087, 1.0
    %v1089 = vrcp.pop %v1088
    %v1090 = vmul.f32 1.0, %v1089
    %v1091 = vxor.u32 %v1082, 2147483648
    %v1092 = vmul.f32 %v1091, 1.442695
    %v1093 = vpow.pop %v1092
    %v1094 = vadd.f32 %v1093, 1.0
    %v1095 = vrcp.pop %v1094
    %v1096 = vmul.f32 1.0, %v1095
    %v1097 = vtanh.pop %v1083
    %v1098 = vxor.u32 %v1084, 2147483648
    %v1099 = vmul.f32 %v1098, 1.442695
    %v1100 = vpow.pop %v1099
    %v1101 = vadd.f32 %v1100, 1.0
    %v1102 = vrcp.pop %v1101
    %v1103 = vmul.f32 1.0, %v1102
    %v1104 = vmul.f32 %v1096, %v936
    %v1105 = vmul.f32 %v1090, %v1097
    %v1106 = vadd.f32 %v1104, %v1105
    %v1107 = vtanh.pop %v1106
    %v1108 = vmul.f32 %v1103, %v1107
    %v1109 = vadd.f32 %v598, %v97
    %v1110 = vadd.f32 %v768, %v98
    %v1111 = vadd.f32 %v938, %v99
    %v1112 = vadd.f32 %v1108, %v100
    %s1113 = scalar_lea.vmem [#allocation2], 512
    %v1114 = vld [vmem:[%s1113] sm:$0xff]
    %v1115 = vld [vmem:[%s1113 + $0x8] sm:$0xff]
    %v1116 = vld [vmem:[%s1113 + $0x10] sm:$0xff]
    %v1117 = vld [vmem:[%s1113 + $0x18] sm:$0xff]
    %v1118 = vld [vmem:[%s1113 + $0x20] sm:$0xff]
    %v1119 = vld [vmem:[%s1113 + $0x28] sm:$0xff]
    %v1120 = vld [vmem:[%s1113 + $0x30] sm:$0xff]
    %v1121 = vld [vmem:[%s1113 + $0x38] sm:$0xff]
    %v1122 = vld [vmem:[%s1113 + $0x40] sm:$0xff]
    %v1123 = vld [vmem:[%s1113 + $0x48] sm:$0xff]
    %v1124 = vld [vmem:[%s1113 + $0x50] sm:$0xff]
    %v1125 = vld [vmem:[%s1113 + $0x58] sm:$0xff]
    %v1126 = vld [vmem:[%s1113 + $0x60] sm:$0xff]
    %v1127 = vld [vmem:[%s1113 + $0x68] sm:$0xff]
    %v1128 = vld [vmem:[%s1113 + $0x70] sm:$0xff]
    %v1129 = vld [vmem:[%s1113 + $0x78] sm:$0xff]
    %v1130 = vld [vmem:[%s1113 + $0x80] sm:$0xff]
    %v1131 = vld [vmem:[%s1113 + $0x88] sm:$0xff]
    %v1132 = vld [vmem:[%s1113 + $0x90] sm:$0xff]
    %v1133 = vld [vmem:[%s1113 + $0x98] sm:$0xff]
    %v1134 = vld [vmem:[%s1113 + $0xa0] sm:$0xff]
    %v1135 = vld [vmem:[%s1113 + $0xa8] sm:$0xff]
    %v1136 = vld [vmem:[%s1113 + $0xb0] sm:$0xff]
    %v1137 = vld [vmem:[%s1113 + $0xb8] sm:$0xff]
    %v1138 = vld [vmem:[%s1113 + $0xc0] sm:$0xff]
    %v1139 = vld [vmem:[%s1113 + $0xc8] sm:$0xff]
    %v1140 = vld [vmem:[%s1113 + $0xd0] sm:$0xff]
    %v1141 = vld [vmem:[%s1113 + $0xd8] sm:$0xff]
    %v1142 = vld [vmem:[%s1113 + $0xe0] sm:$0xff]
    %v1143 = vld [vmem:[%s1113 + $0xe8] sm:$0xff]
    %v1144 = vld [vmem:[%s1113 + $0xf0] sm:$0xff]
    %v1145 = vld [vmem:[%s1113 + $0xf8] sm:$0xff]
    %v1146 = vld [vmem:[%s1113 + $0x100] sm:$0xff]
    %v1147 = vld [vmem:[%s1113 + $0x108] sm:$0xff]
    %v1148 = vld [vmem:[%s1113 + $0x110] sm:$0xff]
    %v1149 = vld [vmem:[%s1113 + $0x118] sm:$0xff]
    %v1150 = vld [vmem:[%s1113 + $0x120] sm:$0xff]
    %v1151 = vld [vmem:[%s1113 + $0x128] sm:$0xff]
    %v1152 = vld [vmem:[%s1113 + $0x130] sm:$0xff]
    %v1153 = vld [vmem:[%s1113 + $0x138] sm:$0xff]
    %v1154 = vld [vmem:[%s1113 + $0x140] sm:$0xff]
    %v1155 = vld [vmem:[%s1113 + $0x148] sm:$0xff]
    %v1156 = vld [vmem:[%s1113 + $0x150] sm:$0xff]
    %v1157 = vld [vmem:[%s1113 + $0x158] sm:$0xff]
    %v1158 = vld [vmem:[%s1113 + $0x160] sm:$0xff]
    %v1159 = vld [vmem:[%s1113 + $0x168] sm:$0xff]
    %v1160 = vld [vmem:[%s1113 + $0x170] sm:$0xff]
    %v1161 = vld [vmem:[%s1113 + $0x178] sm:$0xff]
    %v1162 = vld [vmem:[%s1113 + $0x180] sm:$0xff]
    %v1163 = vld [vmem:[%s1113 + $0x188] sm:$0xff]
    %v1164 = vld [vmem:[%s1113 + $0x190] sm:$0xff]
    %v1165 = vld [vmem:[%s1113 + $0x198] sm:$0xff]
    %v1166 = vld [vmem:[%s1113 + $0x1a0] sm:$0xff]
    %v1167 = vld [vmem:[%s1113 + $0x1a8] sm:$0xff]
    %v1168 = vld [vmem:[%s1113 + $0x1b0] sm:$0xff]
    %v1169 = vld [vmem:[%s1113 + $0x1b8] sm:$0xff]
    %v1170 = vld [vmem:[%s1113 + $0x1c0] sm:$0xff]
    %v1171 = vld [vmem:[%s1113 + $0x1c8] sm:$0xff]
    %v1172 = vld [vmem:[%s1113 + $0x1d0] sm:$0xff]
    %v1173 = vld [vmem:[%s1113 + $0x1d8] sm:$0xff]
    %v1174 = vld [vmem:[%s1113 + $0x1e0] sm:$0xff]
    %v1175 = vld [vmem:[%s1113 + $0x1e8] sm:$0xff]
    %v1176 = vld [vmem:[%s1113 + $0x1f0] sm:$0xff]
    %v1177 = vld [vmem:[%s1113 + $0x1f8] sm:$0xff]
    %s1178 = scalar_lea.vmem [#allocation7], 4
    %v1179 = vld [vmem:[%s1178] sm:$0xf]
    %v1181 = vlaneseq
    %v1182 = vshrl.u32 %v1181, 7
    %v1183 = vsub.s32 0, %v1182
    %v1184 = vrot.slane %v1179, %v1183
    %v1185 = vlaneseq
    %v1186 = vshrl.u32 %v1185, 7
    %v1187 = vsub.s32 1, %v1186
    %v1188 = vrot.slane %v1179, %v1187
    %v1189 = vlaneseq
    %v1190 = vshrl.u32 %v1189, 7
    %v1191 = vsub.s32 2, %v1190
    %v1192 = vrot.slane %v1179, %v1191
    %v1193 = vlaneseq
    %v1194 = vshrl.u32 %v1193, 7
    %v1195 = vsub.s32 3, %v1194
    %v1196 = vrot.slane %v1179, %v1195
    %1201 = vmatprep.subr.mxu0 %v1115
    %1202 = vmatpush1.msra.mxu0 %v1114
    %1203 = vmatprep.subr.mxu0 %v1119
    %1204 = vmatpush1.msra.mxu0 %v1118
    %1205 = vmatprep.subr.mxu0 %v1123
    %1206 = vmatpush1.msra.mxu0 %v1122
    %1207 = vmatprep.subr.mxu0 %v1127
    %1208 = vmatpush1.msra.mxu0 %v1126
    %1209 = vmatprep.subr.mxu0 %v1131
    %1210 = vmatpush1.msra.mxu0 %v1130
    %1211 = vmatprep.subr.mxu0 %v1135
    %1212 = vmatpush1.msra.mxu0 %v1134
    %1213 = vmatprep.subr.mxu0 %v1139
    %1214 = vmatpush1.msra.mxu0 %v1138
    %1215 = vmatprep.subr.mxu0 %v1143
    %1216 = vmatpush1.msra.mxu0 %v1142
    %1217 = vmatprep.subr.mxu0 %v1147
    %1218 = vmatpush1.msra.mxu0 %v1146
    %1219 = vmatprep.subr.mxu0 %v1151
    %1220 = vmatpush1.msra.mxu0 %v1150
    %1221 = vmatprep.subr.mxu0 %v1155
    %1222 = vmatpush1.msra.mxu0 %v1154
    %1223 = vmatprep.subr.mxu0 %v1159
    %1224 = vmatpush1.msra.mxu0 %v1158
    %1225 = vmatprep.subr.mxu0 %v1163
    %1226 = vmatpush1.msra.mxu0 %v1162
    %1227 = vmatprep.subr.mxu0 %v1167
    %1228 = vmatpush1.msra.mxu0 %v1166
    %1229 = vmatprep.subr.mxu0 %v1171
    %1230 = vmatpush1.msra.mxu0 %v1170
    %1231 = vmatprep.subr.mxu0 %v1175
    %1232 = vmatpush1.msra.mxu0 %v1174
    %1233 = vmatprep.subr.mxu0 0.0
    %1234 = vmatpush1.msra.mxu0 0.0
    %1235 = vmatprep.subr.mxu0 0.0
    %1236 = vmatpush1.msra.mxu0 0.0
    %1237 = vmatprep.subr.mxu0 0.0
    %1238 = vmatpush1.msra.mxu0 0.0
    %1239 = vmatprep.subr.mxu0 0.0
    %1240 = vmatpush1.msra.mxu0 0.0
    %1241 = vmatprep.subr.mxu0 0.0
    %1242 = vmatpush1.msra.mxu0 0.0
    %1243 = vmatprep.subr.mxu0 0.0
    %1244 = vmatpush1.msra.mxu0 0.0
    %1245 = vmatprep.subr.mxu0 0.0
    %1246 = vmatpush1.msra.mxu0 0.0
    %1247 = vmatprep.subr.mxu0 0.0
    %1248 = vmatpush1.msra.mxu0 0.0
    %1249 = vmatprep.subr.mxu0 0.0
    %1250 = vmatpush1.msra.mxu0 0.0
    %1251 = vmatprep.subr.mxu0 0.0
    %1252 = vmatpush1.msra.mxu0 0.0
    %1253 = vmatprep.subr.mxu0 0.0
    %1254 = vmatpush1.msra.mxu0 0.0
    %1255 = vmatprep.subr.mxu0 0.0
    %1256 = vmatpush1.msra.mxu0 0.0
    %1257 = vmatprep.subr.mxu0 0.0
    %1258 = vmatpush1.msra.mxu0 0.0
    %1259 = vmatprep.subr.mxu0 0.0
    %1260 = vmatpush1.msra.mxu0 0.0
    %1261 = vmatprep.subr.mxu0 0.0
    %1262 = vmatpush1.msra.mxu0 0.0
    %1263 = vmatprep.subr.mxu0 0.0
    %1264 = vmatpush1.msra.mxu0 0.0
    %1265 = vmatprep.mubr.f32.mxu0 0.0
    %1266 = vmatmul.mubr.f32.gmra.mrb[0].mxu0 %v1109
    %v1267 = vpop.f32.mrb[0].mxu0
    %v1268 = vadd.f32 %v1184, %v1267
    %v1269 = vpop.f32.mrb[0].mxu0
    %v1270 = vadd.f32 %v1188, %v1269
    %1271 = vmatprep.mubr.f32.mxu0 0.0
    %1272 = vmatmul.mubr.f32.gmra.mrb[0].mxu0 %v1110
    %v1273 = vpop.f32.mrb[0].mxu0
    %v1274 = vadd.f32 %v1184, %v1273
    %v1275 = vpop.f32.mrb[0].mxu0
    %v1276 = vadd.f32 %v1188, %v1275
    %1277 = vmatprep.mubr.f32.mxu0 0.0
    %1278 = vmatmul.mubr.f32.gmra.mrb[0].mxu0 %v1111
    %v1279 = vpop.f32.mrb[0].mxu0
    %v1280 = vadd.f32 %v1184, %v1279
    %v1281 = vpop.f32.mrb[0].mxu0
    %v1282 = vadd.f32 %v1188, %v1281
    %1283 = vmatprep.mubr.f32.mxu0 0.0
    %1284 = vmatmul.mubr.f32.gmra.mrb[0].mxu0 %v1112
    %v1285 = vpop.f32.mrb[0].mxu0
    %v1286 = vadd.f32 %v1184, %v1285
    %v1287 = vpop.f32.mrb[0].mxu0
    %v1288 = vadd.f32 %v1188, %v1287
    %1289 = vdwg.mxu0
    %1290 = vmatprep.subr.mxu0 %v1117
    %1291 = vmatpush1.msra.mxu0 %v1116
    %1292 = vmatprep.subr.mxu0 %v1121
    %1293 = vmatpush1.msra.mxu0 %v1120
    %1294 = vmatprep.subr.mxu0 %v1125
    %1295 = vmatpush1.msra.mxu0 %v1124
    %1296 = vmatprep.subr.mxu0 %v1129
    %1297 = vmatpush1.msra.mxu0 %v1128
    %1298 = vmatprep.subr.mxu0 %v1133
    %1299 = vmatpush1.msra.mxu0 %v1132
    %1300 = vmatprep.subr.mxu0 %v1137
    %1301 = vmatpush1.msra.mxu0 %v1136
    %1302 = vmatprep.subr.mxu0 %v1141
    %1303 = vmatpush1.msra.mxu0 %v1140
    %1304 = vmatprep.subr.mxu0 %v1145
    %1305 = vmatpush1.msra.mxu0 %v1144
    %1306 = vmatprep.subr.mxu0 %v1149
    %1307 = vmatpush1.msra.mxu0 %v1148
    %1308 = vmatprep.subr.mxu0 %v1153
    %1309 = vmatpush1.msra.mxu0 %v1152
    %1310 = vmatprep.subr.mxu0 %v1157
    %1311 = vmatpush1.msra.mxu0 %v1156
    %1312 = vmatprep.subr.mxu0 %v1161
    %1313 = vmatpush1.msra.mxu0 %v1160
    %1314 = vmatprep.subr.mxu0 %v1165
    %1315 = vmatpush1.msra.mxu0 %v1164
    %1316 = vmatprep.subr.mxu0 %v1169
    %1317 = vmatpush1.msra.mxu0 %v1168
    %1318 = vmatprep.subr.mxu0 %v1173
    %1319 = vmatpush1.msra.mxu0 %v1172
    %1320 = vmatprep.subr.mxu0 %v1177
    %1321 = vmatpush1.msra.mxu0 %v1176
    %1322 = vmatprep.subr.mxu0 0.0
    %1323 = vmatpush1.msra.mxu0 0.0
    %1324 = vmatprep.subr.mxu0 0.0
    %1325 = vmatpush1.msra.mxu0 0.0
    %1326 = vmatprep.subr.mxu0 0.0
    %1327 = vmatpush1.msra.mxu0 0.0
    %1328 = vmatprep.subr.mxu0 0.0
    %1329 = vmatpush1.msra.mxu0 0.0
    %1330 = vmatprep.subr.mxu0 0.0
    %1331 = vmatpush1.msra.mxu0 0.0
    %1332 = vmatprep.subr.mxu0 0.0
    %1333 = vmatpush1.msra.mxu0 0.0
    %1334 = vmatprep.subr.mxu0 0.0
    %1335 = vmatpush1.msra.mxu0 0.0
    %1336 = vmatprep.subr.mxu0 0.0
    %1337 = vmatpush1.msra.mxu0 0.0
    %1338 = vmatprep.subr.mxu0 0.0
    %1339 = vmatpush1.msra.mxu0 0.0
    %1340 = vmatprep.subr.mxu0 0.0
    %1341 = vmatpush1.msra.mxu0 0.0
    %1342 = vmatprep.subr.mxu0 0.0
    %1343 = vmatpush1.msra.mxu0 0.0
    %1344 = vmatprep.subr.mxu0 0.0
    %1345 = vmatpush1.msra.mxu0 0.0
    %1346 = vmatprep.subr.mxu0 0.0
    %1347 = vmatpush1.msra.mxu0 0.0
    %1348 = vmatprep.subr.mxu0 0.0
    %1349 = vmatpush1.msra.mxu0 0.0
    %1350 = vmatprep.subr.mxu0 0.0
    %1351 = vmatpush1.msra.mxu0 0.0
    %1352 = vmatprep.subr.mxu0 0.0
    %1353 = vmatpush1.msra.mxu0 0.0
    %1354 = vmatprep.mubr.f32.mxu0 0.0
    %1355 = vmatmul.mubr.f32.gmra.mrb[0].mxu0 %v1109
    %v1356 = vpop.f32.mrb[0].mxu0
    %v1357 = vadd.f32 %v1192, %v1356
    %v1358 = vpop.f32.mrb[0].mxu0
    %v1359 = vadd.f32 %v1196, %v1358
    %1360 = vmatprep.mubr.f32.mxu0 0.0
    %1361 = vmatmul.mubr.f32.gmra.mrb[0].mxu0 %v1110
    %v1362 = vpop.f32.mrb[0].mxu0
    %v1363 = vadd.f32 %v1192, %v1362
    %v1364 = vpop.f32.mrb[0].mxu0
    %v1365 = vadd.f32 %v1196, %v1364
    %1366 = vmatprep.mubr.f32.mxu0 0.0
    %1367 = vmatmul.mubr.f32.gmra.mrb[0].mxu0 %v1111
    %v1368 = vpop.f32.mrb[0].mxu0
    %v1369 = vadd.f32 %v1192, %v1368
    %v1370 = vpop.f32.mrb[0].mxu0
    %v1371 = vadd.f32 %v1196, %v1370
    %1372 = vmatprep.mubr.f32.mxu0 0.0
    %1373 = vmatmul.mubr.f32.gmra.mrb[0].mxu0 %v1112
    %v1374 = vpop.f32.mrb[0].mxu0
    %v1375 = vadd.f32 %v1192, %v1374
    %v1376 = vpop.f32.mrb[0].mxu0
    %v1377 = vadd.f32 %v1196, %v1376
    %1378 = vdwg.mxu0
    %s1379 = scalar_lea.vmem [#allocation5], 512
    %v1380 = vld [vmem:[%s1379] sm:$0xff]
    %v1381 = vld [vmem:[%s1379 + $0x8] sm:$0xff]
    %v1382 = vld [vmem:[%s1379 + $0x10] sm:$0xff]
    %v1383 = vld [vmem:[%s1379 + $0x18] sm:$0xff]
    %v1384 = vld [vmem:[%s1379 + $0x20] sm:$0xff]
    %v1385 = vld [vmem:[%s1379 + $0x28] sm:$0xff]
    %v1386 = vld [vmem:[%s1379 + $0x30] sm:$0xff]
    %v1387 = vld [vmem:[%s1379 + $0x38] sm:$0xff]
    %v1388 = vld [vmem:[%s1379 + $0x40] sm:$0xff]
    %v1389 = vld [vmem:[%s1379 + $0x48] sm:$0xff]
    %v1390 = vld [vmem:[%s1379 + $0x50] sm:$0xff]
    %v1391 = vld [vmem:[%s1379 + $0x58] sm:$0xff]
    %v1392 = vld [vmem:[%s1379 + $0x60] sm:$0xff]
    %v1393 = vld [vmem:[%s1379 + $0x68] sm:$0xff]
    %v1394 = vld [vmem:[%s1379 + $0x70] sm:$0xff]
    %v1395 = vld [vmem:[%s1379 + $0x78] sm:$0xff]
    %v1396 = vld [vmem:[%s1379 + $0x80] sm:$0xff]
    %v1397 = vld [vmem:[%s1379 + $0x88] sm:$0xff]
    %v1398 = vld [vmem:[%s1379 + $0x90] sm:$0xff]
    %v1399 = vld [vmem:[%s1379 + $0x98] sm:$0xff]
    %v1400 = vld [vmem:[%s1379 + $0xa0] sm:$0xff]
    %v1401 = vld [vmem:[%s1379 + $0xa8] sm:$0xff]
    %v1402 = vld [vmem:[%s1379 + $0xb0] sm:$0xff]
    %v1403 = vld [vmem:[%s1379 + $0xb8] sm:$0xff]
    %v1404 = vld [vmem:[%s1379 + $0xc0] sm:$0xff]
    %v1405 = vld [vmem:[%s1379 + $0xc8] sm:$0xff]
    %v1406 = vld [vmem:[%s1379 + $0xd0] sm:$0xff]
    %v1407 = vld [vmem:[%s1379 + $0xd8] sm:$0xff]
    %v1408 = vld [vmem:[%s1379 + $0xe0] sm:$0xff]
    %v1409 = vld [vmem:[%s1379 + $0xe8] sm:$0xff]
    %v1410 = vld [vmem:[%s1379 + $0xf0] sm:$0xff]
    %v1411 = vld [vmem:[%s1379 + $0xf8] sm:$0xff]
    %v1412 = vld [vmem:[%s1379 + $0x100] sm:$0xff]
    %v1413 = vld [vmem:[%s1379 + $0x108] sm:$0xff]
    %v1414 = vld [vmem:[%s1379 + $0x110] sm:$0xff]
    %v1415 = vld [vmem:[%s1379 + $0x118] sm:$0xff]
    %v1416 = vld [vmem:[%s1379 + $0x120] sm:$0xff]
    %v1417 = vld [vmem:[%s1379 + $0x128] sm:$0xff]
    %v1418 = vld [vmem:[%s1379 + $0x130] sm:$0xff]
    %v1419 = vld [vmem:[%s1379 + $0x138] sm:$0xff]
    %v1420 = vld [vmem:[%s1379 + $0x140] sm:$0xff]
    %v1421 = vld [vmem:[%s1379 + $0x148] sm:$0xff]
    %v1422 = vld [vmem:[%s1379 + $0x150] sm:$0xff]
    %v1423 = vld [vmem:[%s1379 + $0x158] sm:$0xff]
    %v1424 = vld [vmem:[%s1379 + $0x160] sm:$0xff]
    %v1425 = vld [vmem:[%s1379 + $0x168] sm:$0xff]
    %v1426 = vld [vmem:[%s1379 + $0x170] sm:$0xff]
    %v1427 = vld [vmem:[%s1379 + $0x178] sm:$0xff]
    %v1428 = vld [vmem:[%s1379 + $0x180] sm:$0xff]
    %v1429 = vld [vmem:[%s1379 + $0x188] sm:$0xff]
    %v1430 = vld [vmem:[%s1379 + $0x190] sm:$0xff]
    %v1431 = vld [vmem:[%s1379 + $0x198] sm:$0xff]
    %v1432 = vld [vmem:[%s1379 + $0x1a0] sm:$0xff]
    %v1433 = vld [vmem:[%s1379 + $0x1a8] sm:$0xff]
    %v1434 = vld [vmem:[%s1379 + $0x1b0] sm:$0xff]
    %v1435 = vld [vmem:[%s1379 + $0x1b8] sm:$0xff]
    %v1436 = vld [vmem:[%s1379 + $0x1c0] sm:$0xff]
    %v1437 = vld [vmem:[%s1379 + $0x1c8] sm:$0xff]
    %v1438 = vld [vmem:[%s1379 + $0x1d0] sm:$0xff]
    %v1439 = vld [vmem:[%s1379 + $0x1d8] sm:$0xff]
    %v1440 = vld [vmem:[%s1379 + $0x1e0] sm:$0xff]
    %v1441 = vld [vmem:[%s1379 + $0x1e8] sm:$0xff]
    %v1442 = vld [vmem:[%s1379 + $0x1f0] sm:$0xff]
    %v1443 = vld [vmem:[%s1379 + $0x1f8] sm:$0xff]
    %1444 = vmatprep.subr.mxu0 %v1381
    %1445 = vmatpush1.msra.mxu0 %v1380
    %1446 = vmatprep.subr.mxu0 %v1385
    %1447 = vmatpush1.msra.mxu0 %v1384
    %1448 = vmatprep.subr.mxu0 %v1389
    %1449 = vmatpush1.msra.mxu0 %v1388
    %1450 = vmatprep.subr.mxu0 %v1393
    %1451 = vmatpush1.msra.mxu0 %v1392
    %1452 = vmatprep.subr.mxu0 %v1397
    %1453 = vmatpush1.msra.mxu0 %v1396
    %1454 = vmatprep.subr.mxu0 %v1401
    %1455 = vmatpush1.msra.mxu0 %v1400
    %1456 = vmatprep.subr.mxu0 %v1405
    %1457 = vmatpush1.msra.mxu0 %v1404
    %1458 = vmatprep.subr.mxu0 %v1409
    %1459 = vmatpush1.msra.mxu0 %v1408
    %1460 = vmatprep.subr.mxu0 %v1413
    %1461 = vmatpush1.msra.mxu0 %v1412
    %1462 = vmatprep.subr.mxu0 %v1417
    %1463 = vmatpush1.msra.mxu0 %v1416
    %1464 = vmatprep.subr.mxu0 %v1421
    %1465 = vmatpush1.msra.mxu0 %v1420
    %1466 = vmatprep.subr.mxu0 %v1425
    %1467 = vmatpush1.msra.mxu0 %v1424
    %1468 = vmatprep.subr.mxu0 %v1429
    %1469 = vmatpush1.msra.mxu0 %v1428
    %1470 = vmatprep.subr.mxu0 %v1433
    %1471 = vmatpush1.msra.mxu0 %v1432
    %1472 = vmatprep.subr.mxu0 %v1437
    %1473 = vmatpush1.msra.mxu0 %v1436
    %1474 = vmatprep.subr.mxu0 %v1441
    %1475 = vmatpush1.msra.mxu0 %v1440
    %1476 = vmatprep.subr.mxu0 0.0
    %1477 = vmatpush1.msra.mxu0 0.0
    %1478 = vmatprep.subr.mxu0 0.0
    %1479 = vmatpush1.msra.mxu0 0.0
    %1480 = vmatprep.subr.mxu0 0.0
    %1481 = vmatpush1.msra.mxu0 0.0
    %1482 = vmatprep.subr.mxu0 0.0
    %1483 = vmatpush1.msra.mxu0 0.0
    %1484 = vmatprep.subr.mxu0 0.0
    %1485 = vmatpush1.msra.mxu0 0.0
    %1486 = vmatprep.subr.mxu0 0.0
    %1487 = vmatpush1.msra.mxu0 0.0
    %1488 = vmatprep.subr.mxu0 0.0
    %1489 = vmatpush1.msra.mxu0 0.0
    %1490 = vmatprep.subr.mxu0 0.0
    %1491 = vmatpush1.msra.mxu0 0.0
    %1492 = vmatprep.subr.mxu0 0.0
    %1493 = vmatpush1.msra.mxu0 0.0
    %1494 = vmatprep.subr.mxu0 0.0
    %1495 = vmatpush1.msra.mxu0 0.0
    %1496 = vmatprep.subr.mxu0 0.0
    %1497 = vmatpush1.msra.mxu0 0.0
    %1498 = vmatprep.subr.mxu0 0.0
    %1499 = vmatpush1.msra.mxu0 0.0
    %1500 = vmatprep.subr.mxu0 0.0
    %1501 = vmatpush1.msra.mxu0 0.0
    %1502 = vmatprep.subr.mxu0 0.0
    %1503 = vmatpush1.msra.mxu0 0.0
    %1504 = vmatprep.subr.mxu0 0.0
    %1505 = vmatpush1.msra.mxu0 0.0
    %1506 = vmatprep.subr.mxu0 0.0
    %1507 = vmatpush1.msra.mxu0 0.0
    %1508 = vmatprep.mubr.f32.mxu0 0.0
    %1509 = vmatmul.mubr.f32.gmra.mrb[0].mxu0 0.0
    %v1510 = vpop.f32.mrb[0].mxu0
    %v1511 = vadd.f32 0.0, %v1510
    %v1512 = vpop.f32.mrb[0].mxu0
    %v1513 = vadd.f32 0.0, %v1512
    %1514 = vdwg.mxu0
    %1515 = vmatprep.subr.mxu0 %v1383
    %1516 = vmatpush1.msra.mxu0 %v1382
    %1517 = vmatprep.subr.mxu0 %v1387
    %1518 = vmatpush1.msra.mxu0 %v1386
    %1519 = vmatprep.subr.mxu0 %v1391
    %1520 = vmatpush1.msra.mxu0 %v1390
    %1521 = vmatprep.subr.mxu0 %v1395
    %1522 = vmatpush1.msra.mxu0 %v1394
    %1523 = vmatprep.subr.mxu0 %v1399
    %1524 = vmatpush1.msra.mxu0 %v1398
    %1525 = vmatprep.subr.mxu0 %v1403
    %1526 = vmatpush1.msra.mxu0 %v1402
    %1527 = vmatprep.subr.mxu0 %v1407
    %1528 = vmatpush1.msra.mxu0 %v1406
    %1529 = vmatprep.subr.mxu0 %v1411
    %1530 = vmatpush1.msra.mxu0 %v1410
    %1531 = vmatprep.subr.mxu0 %v1415
    %1532 = vmatpush1.msra.mxu0 %v1414
    %1533 = vmatprep.subr.mxu0 %v1419
    %1534 = vmatpush1.msra.mxu0 %v1418
    %1535 = vmatprep.subr.mxu0 %v1423
    %1536 = vmatpush1.msra.mxu0 %v1422
    %1537 = vmatprep.subr.mxu0 %v1427
    %1538 = vmatpush1.msra.mxu0 %v1426
    %1539 = vmatprep.subr.mxu0 %v1431
    %1540 = vmatpush1.msra.mxu0 %v1430
    %1541 = vmatprep.subr.mxu0 %v1435
    %1542 = vmatpush1.msra.mxu0 %v1434
    %1543 = vmatprep.subr.mxu0 %v1439
    %1544 = vmatpush1.msra.mxu0 %v1438
    %1545 = vmatprep.subr.mxu0 %v1443
    %1546 = vmatpush1.msra.mxu0 %v1442
    %1547 = vmatprep.subr.mxu0 0.0
    %1548 = vmatpush1.msra.mxu0 0.0
    %1549 = vmatprep.subr.mxu0 0.0
    %1550 = vmatpush1.msra.mxu0 0.0
    %1551 = vmatprep.subr.mxu0 0.0
    %1552 = vmatpush1.msra.mxu0 0.0
    %1553 = vmatprep.subr.mxu0 0.0
    %1554 = vmatpush1.msra.mxu0 0.0
    %1555 = vmatprep.subr.mxu0 0.0
    %1556 = vmatpush1.msra.mxu0 0.0
    %1557 = vmatprep.subr.mxu0 0.0
    %1558 = vmatpush1.msra.mxu0 0.0
    %1559 = vmatprep.subr.mxu0 0.0
    %1560 = vmatpush1.msra.mxu0 0.0
    %1561 = vmatprep.subr.mxu0 0.0
    %1562 = vmatpush1.msra.mxu0 0.0
    %1563 = vmatprep.subr.mxu0 0.0
    %1564 = vmatpush1.msra.mxu0 0.0
    %1565 = vmatprep.subr.mxu0 0.0
    %1566 = vmatpush1.msra.mxu0 0.0
    %1567 = vmatprep.subr.mxu0 0.0
    %1568 = vmatpush1.msra.mxu0 0.0
    %1569 = vmatprep.subr.mxu0 0.0
    %1570 = vmatpush1.msra.mxu0 0.0
    %1571 = vmatprep.subr.mxu0 0.0
    %1572 = vmatpush1.msra.mxu0 0.0
    %1573 = vmatprep.subr.mxu0 0.0
    %1574 = vmatpush1.msra.mxu0 0.0
    %1575 = vmatprep.subr.mxu0 0.0
    %1576 = vmatpush1.msra.mxu0 0.0
    %1577 = vmatprep.subr.mxu0 0.0
    %1578 = vmatpush1.msra.mxu0 0.0
    %1579 = vmatprep.mubr.f32.mxu0 0.0
    %1580 = vmatmul.mubr.f32.gmra.mrb[0].mxu0 0.0
    %v1581 = vpop.f32.mrb[0].mxu0
    %v1582 = vadd.f32 0.0, %v1581
    %v1583 = vpop.f32.mrb[0].mxu0
    %v1584 = vadd.f32 0.0, %v1583
    %1585 = vdwg.mxu0
    %v1586 = vadd.f32 %v1268, %v1511
    %v1587 = vadd.f32 %v1270, %v1513
    %v1588 = vadd.f32 %v1357, %v1582
    %v1589 = vadd.f32 %v1359, %v1584
    %v1590 = vxor.u32 %v1586, 2147483648
    %v1591 = vmul.f32 %v1590, 1.442695
    %v1592 = vpow.pop %v1591
    %v1593 = vadd.f32 %v1592, 1.0
    %v1594 = vrcp.pop %v1593
    %v1595 = vmul.f32 1.0, %v1594
    %v1596 = vxor.u32 %v1587, 2147483648
    %v1597 = vmul.f32 %v1596, 1.442695
    %v1598 = vpow.pop %v1597
    %v1599 = vadd.f32 %v1598, 1.0
    %v1600 = vrcp.pop %v1599
    %v1601 = vmul.f32 1.0, %v1600
    %v1602 = vtanh.pop %v1588
    %v1603 = vxor.u32 %v1589, 2147483648
    %v1604 = vmul.f32 %v1603, 1.442695
    %v1605 = vpow.pop %v1604
    %v1606 = vadd.f32 %v1605, 1.0
    %v1607 = vrcp.pop %v1606
    %v1608 = vmul.f32 1.0, %v1607
    %v1609 = vmul.f32 %v1601, 0.0
    %v1610 = vmul.f32 %v1595, %v1602
    %v1611 = vadd.f32 %v1609, %v1610
    %v1612 = vtanh.pop %v1611
    %v1613 = vmul.f32 %v1608, %v1612
    %1614 = vmatprep.subr.mxu0 %v1381
    %1615 = vmatpush1.msra.mxu0 %v1380
    %1616 = vmatprep.subr.mxu0 %v1385
    %1617 = vmatpush1.msra.mxu0 %v1384
    %1618 = vmatprep.subr.mxu0 %v1389
    %1619 = vmatpush1.msra.mxu0 %v1388
    %1620 = vmatprep.subr.mxu0 %v1393
    %1621 = vmatpush1.msra.mxu0 %v1392
    %1622 = vmatprep.subr.mxu0 %v1397
    %1623 = vmatpush1.msra.mxu0 %v1396
    %1624 = vmatprep.subr.mxu0 %v1401
    %1625 = vmatpush1.msra.mxu0 %v1400
    %1626 = vmatprep.subr.mxu0 %v1405
    %1627 = vmatpush1.msra.mxu0 %v1404
    %1628 = vmatprep.subr.mxu0 %v1409
    %1629 = vmatpush1.msra.mxu0 %v1408
    %1630 = vmatprep.subr.mxu0 %v1413
    %1631 = vmatpush1.msra.mxu0 %v1412
    %1632 = vmatprep.subr.mxu0 %v1417
    %1633 = vmatpush1.msra.mxu0 %v1416
    %1634 = vmatprep.subr.mxu0 %v1421
    %1635 = vmatpush1.msra.mxu0 %v1420
    %1636 = vmatprep.subr.mxu0 %v1425
    %1637 = vmatpush1.msra.mxu0 %v1424
    %1638 = vmatprep.subr.mxu0 %v1429
    %1639 = vmatpush1.msra.mxu0 %v1428
    %1640 = vmatprep.subr.mxu0 %v1433
    %1641 = vmatpush1.msra.mxu0 %v1432
    %1642 = vmatprep.subr.mxu0 %v1437
    %1643 = vmatpush1.msra.mxu0 %v1436
    %1644 = vmatprep.subr.mxu0 %v1441
    %1645 = vmatpush1.msra.mxu0 %v1440
    %1646 = vmatprep.subr.mxu0 0.0
    %1647 = vmatpush1.msra.mxu0 0.0
    %1648 = vmatprep.subr.mxu0 0.0
    %1649 = vmatpush1.msra.mxu0 0.0
    %1650 = vmatprep.subr.mxu0 0.0
    %1651 = vmatpush1.msra.mxu0 0.0
    %1652 = vmatprep.subr.mxu0 0.0
    %1653 = vmatpush1.msra.mxu0 0.0
    %1654 = vmatprep.subr.mxu0 0.0
    %1655 = vmatpush1.msra.mxu0 0.0
    %1656 = vmatprep.subr.mxu0 0.0
    %1657 = vmatpush1.msra.mxu0 0.0
    %1658 = vmatprep.subr.mxu0 0.0
    %1659 = vmatpush1.msra.mxu0 0.0
    %1660 = vmatprep.subr.mxu0 0.0
    %1661 = vmatpush1.msra.mxu0 0.0
    %1662 = vmatprep.subr.mxu0 0.0
    %1663 = vmatpush1.msra.mxu0 0.0
    %1664 = vmatprep.subr.mxu0 0.0
    %1665 = vmatpush1.msra.mxu0 0.0
    %1666 = vmatprep.subr.mxu0 0.0
    %1667 = vmatpush1.msra.mxu0 0.0
    %1668 = vmatprep.subr.mxu0 0.0
    %1669 = vmatpush1.msra.mxu0 0.0
    %1670 = vmatprep.subr.mxu0 0.0
    %1671 = vmatpush1.msra.mxu0 0.0
    %1672 = vmatprep.subr.mxu0 0.0
    %1673 = vmatpush1.msra.mxu0 0.0
    %1674 = vmatprep.subr.mxu0 0.0
    %1675 = vmatpush1.msra.mxu0 0.0
    %1676 = vmatprep.subr.mxu0 0.0
    %1677 = vmatpush1.msra.mxu0 0.0
    %1678 = vmatprep.mubr.f32.mxu0 0.0
    %1679 = vmatmul.mubr.f32.gmra.mrb[0].mxu0 %v1613
    %v1680 = vpop.f32.mrb[0].mxu0
    %v1681 = vadd.f32 0.0, %v1680
    %v1682 = vpop.f32.mrb[0].mxu0
    %v1683 = vadd.f32 0.0, %v1682
    %1684 = vdwg.mxu0
    %1685 = vmatprep.subr.mxu0 %v1383
    %1686 = vmatpush1.msra.mxu0 %v1382
    %1687 = vmatprep.subr.mxu0 %v1387
    %1688 = vmatpush1.msra.mxu0 %v1386
    %1689 = vmatprep.subr.mxu0 %v1391
    %1690 = vmatpush1.msra.mxu0 %v1390
    %1691 = vmatprep.subr.mxu0 %v1395
    %1692 = vmatpush1.msra.mxu0 %v1394
    %1693 = vmatprep.subr.mxu0 %v1399
    %1694 = vmatpush1.msra.mxu0 %v1398
    %1695 = vmatprep.subr.mxu0 %v1403
    %1696 = vmatpush1.msra.mxu0 %v1402
    %1697 = vmatprep.subr.mxu0 %v1407
    %1698 = vmatpush1.msra.mxu0 %v1406
    %1699 = vmatprep.subr.mxu0 %v1411
    %1700 = vmatpush1.msra.mxu0 %v1410
    %1701 = vmatprep.subr.mxu0 %v1415
    %1702 = vmatpush1.msra.mxu0 %v1414
    %1703 = vmatprep.subr.mxu0 %v1419
    %1704 = vmatpush1.msra.mxu0 %v1418
    %1705 = vmatprep.subr.mxu0 %v1423
    %1706 = vmatpush1.msra.mxu0 %v1422
    %1707 = vmatprep.subr.mxu0 %v1427
    %1708 = vmatpush1.msra.mxu0 %v1426
    %1709 = vmatprep.subr.mxu0 %v1431
    %1710 = vmatpush1.msra.mxu0 %v1430
    %1711 = vmatprep.subr.mxu0 %v1435
    %1712 = vmatpush1.msra.mxu0 %v1434
    %1713 = vmatprep.subr.mxu0 %v1439
    %1714 = vmatpush1.msra.mxu0 %v1438
    %1715 = vmatprep.subr.mxu0 %v1443
    %1716 = vmatpush1.msra.mxu0 %v1442
    %1717 = vmatprep.subr.mxu0 0.0
    %1718 = vmatpush1.msra.mxu0 0.0
    %1719 = vmatprep.subr.mxu0 0.0
    %1720 = vmatpush1.msra.mxu0 0.0
    %1721 = vmatprep.subr.mxu0 0.0
    %1722 = vmatpush1.msra.mxu0 0.0
    %1723 = vmatprep.subr.mxu0 0.0
    %1724 = vmatpush1.msra.mxu0 0.0
    %1725 = vmatprep.subr.mxu0 0.0
    %1726 = vmatpush1.msra.mxu0 0.0
    %1727 = vmatprep.subr.mxu0 0.0
    %1728 = vmatpush1.msra.mxu0 0.0
    %1729 = vmatprep.subr.mxu0 0.0
    %1730 = vmatpush1.msra.mxu0 0.0
    %1731 = vmatprep.subr.mxu0 0.0
    %1732 = vmatpush1.msra.mxu0 0.0
    %1733 = vmatprep.subr.mxu0 0.0
    %1734 = vmatpush1.msra.mxu0 0.0
    %1735 = vmatprep.subr.mxu0 0.0
    %1736 = vmatpush1.msra.mxu0 0.0
    %1737 = vmatprep.subr.mxu0 0.0
    %1738 = vmatpush1.msra.mxu0 0.0
    %1739 = vmatprep.subr.mxu0 0.0
    %1740 = vmatpush1.msra.mxu0 0.0
    %1741 = vmatprep.subr.mxu0 0.0
    %1742 = vmatpush1.msra.mxu0 0.0
    %1743 = vmatprep.subr.mxu0 0.0
    %1744 = vmatpush1.msra.mxu0 0.0
    %1745 = vmatprep.subr.mxu0 0.0
    %1746 = vmatpush1.msra.mxu0 0.0
    %1747 = vmatprep.subr.mxu0 0.0
    %1748 = vmatpush1.msra.mxu0 0.0
    %1749 = vmatprep.mubr.f32.mxu0 0.0
    %1750 = vmatmul.mubr.f32.gmra.mrb[0].mxu0 %v1613
    %v1751 = vpop.f32.mrb[0].mxu0
    %v1752 = vadd.f32 0.0, %v1751
    %v1753 = vpop.f32.mrb[0].mxu0
    %v1754 = vadd.f32 0.0, %v1753
    %1755 = vdwg.mxu0
    %v1756 = vadd.f32 %v1274, %v1681
    %v1757 = vadd.f32 %v1276, %v1683
    %v1758 = vadd.f32 %v1363, %v1752
    %v1759 = vadd.f32 %v1365, %v1754
    %v1760 = vxor.u32 %v1756, 2147483648
    %v1761 = vmul.f32 %v1760, 1.442695
    %v1762 = vpow.pop %v1761
    %v1763 = vadd.f32 %v1762, 1.0
    %v1764 = vrcp.pop %v1763
    %v1765 = vmul.f32 1.0, %v1764
    %v1766 = vxor.u32 %v1757, 2147483648
    %v1767 = vmul.f32 %v1766, 1.442695
    %v1768 = vpow.pop %v1767
    %v1769 = vadd.f32 %v1768, 1.0
    %v1770 = vrcp.pop %v1769
    %v1771 = vmul.f32 1.0, %v1770
    %v1772 = vtanh.pop %v1758
    %v1773 = vxor.u32 %v1759, 2147483648
    %v1774 = vmul.f32 %v1773, 1.442695
    %v1775 = vpow.pop %v1774
    %v1776 = vadd.f32 %v1775, 1.0
    %v1777 = vrcp.pop %v1776
    %v1778 = vmul.f32 1.0, %v1777
    %v1779 = vmul.f32 %v1771, %v1611
    %v1780 = vmul.f32 %v1765, %v1772
    %v1781 = vadd.f32 %v1779, %v1780
    %v1782 = vtanh.pop %v1781
    %v1783 = vmul.f32 %v1778, %v1782
    %1784 = vmatprep.subr.mxu0 %v1381
    %1785 = vmatpush1.msra.mxu0 %v1380
    %1786 = vmatprep.subr.mxu0 %v1385
    %1787 = vmatpush1.msra.mxu0 %v1384
    %1788 = vmatprep.subr.mxu0 %v1389
    %1789 = vmatpush1.msra.mxu0 %v1388
    %1790 = vmatprep.subr.mxu0 %v1393
    %1791 = vmatpush1.msra.mxu0 %v1392
    %1792 = vmatprep.subr.mxu0 %v1397
    %1793 = vmatpush1.msra.mxu0 %v1396
    %1794 = vmatprep.subr.mxu0 %v1401
    %1795 = vmatpush1.msra.mxu0 %v1400
    %1796 = vmatprep.subr.mxu0 %v1405
    %1797 = vmatpush1.msra.mxu0 %v1404
    %1798 = vmatprep.subr.mxu0 %v1409
    %1799 = vmatpush1.msra.mxu0 %v1408
    %1800 = vmatprep.subr.mxu0 %v1413
    %1801 = vmatpush1.msra.mxu0 %v1412
    %1802 = vmatprep.subr.mxu0 %v1417
    %1803 = vmatpush1.msra.mxu0 %v1416
    %1804 = vmatprep.subr.mxu0 %v1421
    %1805 = vmatpush1.msra.mxu0 %v1420
    %1806 = vmatprep.subr.mxu0 %v1425
    %1807 = vmatpush1.msra.mxu0 %v1424
    %1808 = vmatprep.subr.mxu0 %v1429
    %1809 = vmatpush1.msra.mxu0 %v1428
    %1810 = vmatprep.subr.mxu0 %v1433
    %1811 = vmatpush1.msra.mxu0 %v1432
    %1812 = vmatprep.subr.mxu0 %v1437
    %1813 = vmatpush1.msra.mxu0 %v1436
    %1814 = vmatprep.subr.mxu0 %v1441
    %1815 = vmatpush1.msra.mxu0 %v1440
    %1816 = vmatprep.subr.mxu0 0.0
    %1817 = vmatpush1.msra.mxu0 0.0
    %1818 = vmatprep.subr.mxu0 0.0
    %1819 = vmatpush1.msra.mxu0 0.0
    %1820 = vmatprep.subr.mxu0 0.0
    %1821 = vmatpush1.msra.mxu0 0.0
    %1822 = vmatprep.subr.mxu0 0.0
    %1823 = vmatpush1.msra.mxu0 0.0
    %1824 = vmatprep.subr.mxu0 0.0
    %1825 = vmatpush1.msra.mxu0 0.0
    %1826 = vmatprep.subr.mxu0 0.0
    %1827 = vmatpush1.msra.mxu0 0.0
    %1828 = vmatprep.subr.mxu0 0.0
    %1829 = vmatpush1.msra.mxu0 0.0
    %1830 = vmatprep.subr.mxu0 0.0
    %1831 = vmatpush1.msra.mxu0 0.0
    %1832 = vmatprep.subr.mxu0 0.0
    %1833 = vmatpush1.msra.mxu0 0.0
    %1834 = vmatprep.subr.mxu0 0.0
    %1835 = vmatpush1.msra.mxu0 0.0
    %1836 = vmatprep.subr.mxu0 0.0
    %1837 = vmatpush1.msra.mxu0 0.0
    %1838 = vmatprep.subr.mxu0 0.0
    %1839 = vmatpush1.msra.mxu0 0.0
    %1840 = vmatprep.subr.mxu0 0.0
    %1841 = vmatpush1.msra.mxu0 0.0
    %1842 = vmatprep.subr.mxu0 0.0
    %1843 = vmatpush1.msra.mxu0 0.0
    %1844 = vmatprep.subr.mxu0 0.0
    %1845 = vmatpush1.msra.mxu0 0.0
    %1846 = vmatprep.subr.mxu0 0.0
    %1847 = vmatpush1.msra.mxu0 0.0
    %1848 = vmatprep.mubr.f32.mxu0 0.0
    %1849 = vmatmul.mubr.f32.gmra.mrb[0].mxu0 %v1783
    %v1850 = vpop.f32.mrb[0].mxu0
    %v1851 = vadd.f32 0.0, %v1850
    %v1852 = vpop.f32.mrb[0].mxu0
    %v1853 = vadd.f32 0.0, %v1852
    %1854 = vdwg.mxu0
    %1855 = vmatprep.subr.mxu0 %v1383
    %1856 = vmatpush1.msra.mxu0 %v1382
    %1857 = vmatprep.subr.mxu0 %v1387
    %1858 = vmatpush1.msra.mxu0 %v1386
    %1859 = vmatprep.subr.mxu0 %v1391
    %1860 = vmatpush1.msra.mxu0 %v1390
    %1861 = vmatprep.subr.mxu0 %v1395
    %1862 = vmatpush1.msra.mxu0 %v1394
    %1863 = vmatprep.subr.mxu0 %v1399
    %1864 = vmatpush1.msra.mxu0 %v1398
    %1865 = vmatprep.subr.mxu0 %v1403
    %1866 = vmatpush1.msra.mxu0 %v1402
    %1867 = vmatprep.subr.mxu0 %v1407
    %1868 = vmatpush1.msra.mxu0 %v1406
    %1869 = vmatprep.subr.mxu0 %v1411
    %1870 = vmatpush1.msra.mxu0 %v1410
    %1871 = vmatprep.subr.mxu0 %v1415
    %1872 = vmatpush1.msra.mxu0 %v1414
    %1873 = vmatprep.subr.mxu0 %v1419
    %1874 = vmatpush1.msra.mxu0 %v1418
    %1875 = vmatprep.subr.mxu0 %v1423
    %1876 = vmatpush1.msra.mxu0 %v1422
    %1877 = vmatprep.subr.mxu0 %v1427
    %1878 = vmatpush1.msra.mxu0 %v1426
    %1879 = vmatprep.subr.mxu0 %v1431
    %1880 = vmatpush1.msra.mxu0 %v1430
    %1881 = vmatprep.subr.mxu0 %v1435
    %1882 = vmatpush1.msra.mxu0 %v1434
    %1883 = vmatprep.subr.mxu0 %v1439
    %1884 = vmatpush1.msra.mxu0 %v1438
    %1885 = vmatprep.subr.mxu0 %v1443
    %1886 = vmatpush1.msra.mxu0 %v1442
    %1887 = vmatprep.subr.mxu0 0.0
    %1888 = vmatpush1.msra.mxu0 0.0
    %1889 = vmatprep.subr.mxu0 0.0
    %1890 = vmatpush1.msra.mxu0 0.0
    %1891 = vmatprep.subr.mxu0 0.0
    %1892 = vmatpush1.msra.mxu0 0.0
    %1893 = vmatprep.subr.mxu0 0.0
    %1894 = vmatpush1.msra.mxu0 0.0
    %1895 = vmatprep.subr.mxu0 0.0
    %1896 = vmatpush1.msra.mxu0 0.0
    %1897 = vmatprep.subr.mxu0 0.0
    %1898 = vmatpush1.msra.mxu0 0.0
    %1899 = vmatprep.subr.mxu0 0.0
    %1900 = vmatpush1.msra.mxu0 0.0
    %1901 = vmatprep.subr.mxu0 0.0
    %1902 = vmatpush1.msra.mxu0 0.0
    %1903 = vmatprep.subr.mxu0 0.0
    %1904 = vmatpush1.msra.mxu0 0.0
    %1905 = vmatprep.subr.mxu0 0.0
    %1906 = vmatpush1.msra.mxu0 0.0
    %1907 = vmatprep.subr.mxu0 0.0
    %1908 = vmatpush1.msra.mxu0 0.0
    %1909 = vmatprep.subr.mxu0 0.0
    %1910 = vmatpush1.msra.mxu0 0.0
    %1911 = vmatprep.subr.mxu0 0.0
    %1912 = vmatpush1.msra.mxu0 0.0
    %1913 = vmatprep.subr.mxu0 0.0
    %1914 = vmatpush1.msra.mxu0 0.0
    %1915 = vmatprep.subr.mxu0 0.0
    %1916 = vmatpush1.msra.mxu0 0.0
    %1917 = vmatprep.subr.mxu0 0.0
    %1918 = vmatpush1.msra.mxu0 0.0
    %1919 = vmatprep.mubr.f32.mxu0 0.0
    %1920 = vmatmul.mubr.f32.gmra.mrb[0].mxu0 %v1783
    %v1921 = vpop.f32.mrb[0].mxu0
    %v1922 = vadd.f32 0.0, %v1921
    %v1923 = vpop.f32.mrb[0].mxu0
    %v1924 = vadd.f32 0.0, %v1923
    %1925 = vdwg.mxu0
    %v1926 = vadd.f32 %v1280, %v1851
    %v1927 = vadd.f32 %v1282, %v1853
    %v1928 = vadd.f32 %v1369, %v1922
    %v1929 = vadd.f32 %v1371, %v1924
    %v1930 = vxor.u32 %v1926, 2147483648
    %v1931 = vmul.f32 %v1930, 1.442695
    %v1932 = vpow.pop %v1931
    %v1933 = vadd.f32 %v1932, 1.0
    %v1934 = vrcp.pop %v1933
    %v1935 = vmul.f32 1.0, %v1934
    %v1936 = vxor.u32 %v1927, 2147483648
    %v1937 = vmul.f32 %v1936, 1.442695
    %v1938 = vpow.pop %v1937
    %v1939 = vadd.f32 %v1938, 1.0
    %v1940 = vrcp.pop %v1939
    %v1941 = vmul.f32 1.0, %v1940
    %v1942 = vtanh.pop %v1928
    %v1943 = vxor.u32 %v1929, 2147483648
    %v1944 = vmul.f32 %v1943, 1.442695
    %v1945 = vpow.pop %v1944
    %v1946 = vadd.f32 %v1945, 1.0
    %v1947 = vrcp.pop %v1946
    %v1948 = vmul.f32 1.0, %v1947
    %v1949 = vmul.f32 %v1941, %v1781
    %v1950 = vmul.f32 %v1935, %v1942
    %v1951 = vadd.f32 %v1949, %v1950
    %v1952 = vtanh.pop %v1951
    %v1953 = vmul.f32 %v1948, %v1952
    %1954 = vmatprep.subr.mxu0 %v1381
    %1955 = vmatpush1.msra.mxu0 %v1380
    %1956 = vmatprep.subr.mxu0 %v1385
    %1957 = vmatpush1.msra.mxu0 %v1384
    %1958 = vmatprep.subr.mxu0 %v1389
    %1959 = vmatpush1.msra.mxu0 %v1388
    %1960 = vmatprep.subr.mxu0 %v1393
    %1961 = vmatpush1.msra.mxu0 %v1392
    %1962 = vmatprep.subr.mxu0 %v1397
    %1963 = vmatpush1.msra.mxu0 %v1396
    %1964 = vmatprep.subr.mxu0 %v1401
    %1965 = vmatpush1.msra.mxu0 %v1400
    %1966 = vmatprep.subr.mxu0 %v1405
    %1967 = vmatpush1.msra.mxu0 %v1404
    %1968 = vmatprep.subr.mxu0 %v1409
    %1969 = vmatpush1.msra.mxu0 %v1408
    %1970 = vmatprep.subr.mxu0 %v1413
    %1971 = vmatpush1.msra.mxu0 %v1412
    %1972 = vmatprep.subr.mxu0 %v1417
    %1973 = vmatpush1.msra.mxu0 %v1416
    %1974 = vmatprep.subr.mxu0 %v1421
    %1975 = vmatpush1.msra.mxu0 %v1420
    %1976 = vmatprep.subr.mxu0 %v1425
    %1977 = vmatpush1.msra.mxu0 %v1424
    %1978 = vmatprep.subr.mxu0 %v1429
    %1979 = vmatpush1.msra.mxu0 %v1428
    %1980 = vmatprep.subr.mxu0 %v1433
    %1981 = vmatpush1.msra.mxu0 %v1432
    %1982 = vmatprep.subr.mxu0 %v1437
    %1983 = vmatpush1.msra.mxu0 %v1436
    %1984 = vmatprep.subr.mxu0 %v1441
    %1985 = vmatpush1.msra.mxu0 %v1440
    %1986 = vmatprep.subr.mxu0 0.0
    %1987 = vmatpush1.msra.mxu0 0.0
    %1988 = vmatprep.subr.mxu0 0.0
    %1989 = vmatpush1.msra.mxu0 0.0
    %1990 = vmatprep.subr.mxu0 0.0
    %1991 = vmatpush1.msra.mxu0 0.0
    %1992 = vmatprep.subr.mxu0 0.0
    %1993 = vmatpush1.msra.mxu0 0.0
    %1994 = vmatprep.subr.mxu0 0.0
    %1995 = vmatpush1.msra.mxu0 0.0
    %1996 = vmatprep.subr.mxu0 0.0
    %1997 = vmatpush1.msra.mxu0 0.0
    %1998 = vmatprep.subr.mxu0 0.0
    %1999 = vmatpush1.msra.mxu0 0.0
    %2000 = vmatprep.subr.mxu0 0.0
    %2001 = vmatpush1.msra.mxu0 0.0
    %2002 = vmatprep.subr.mxu0 0.0
    %2003 = vmatpush1.msra.mxu0 0.0
    %2004 = vmatprep.subr.mxu0 0.0
    %2005 = vmatpush1.msra.mxu0 0.0
    %2006 = vmatprep.subr.mxu0 0.0
    %2007 = vmatpush1.msra.mxu0 0.0
    %2008 = vmatprep.subr.mxu0 0.0
    %2009 = vmatpush1.msra.mxu0 0.0
    %2010 = vmatprep.subr.mxu0 0.0
    %2011 = vmatpush1.msra.mxu0 0.0
    %2012 = vmatprep.subr.mxu0 0.0
    %2013 = vmatpush1.msra.mxu0 0.0
    %2014 = vmatprep.subr.mxu0 0.0
    %2015 = vmatpush1.msra.mxu0 0.0
    %2016 = vmatprep.subr.mxu0 0.0
    %2017 = vmatpush1.msra.mxu0 0.0
    %2018 = vmatprep.mubr.f32.mxu0 0.0
    %2019 = vmatmul.mubr.f32.gmra.mrb[0].mxu0 %v1953
    %v2020 = vpop.f32.mrb[0].mxu0
    %v2021 = vadd.f32 0.0, %v2020
    %v2022 = vpop.f32.mrb[0].mxu0
    %v2023 = vadd.f32 0.0, %v2022
    %2024 = vdwg.mxu0
    %2025 = vmatprep.subr.mxu0 %v1383
    %2026 = vmatpush1.msra.mxu0 %v1382
    %2027 = vmatprep.subr.mxu0 %v1387
    %2028 = vmatpush1.msra.mxu0 %v1386
    %2029 = vmatprep.subr.mxu0 %v1391
    %2030 = vmatpush1.msra.mxu0 %v1390
    %2031 = vmatprep.subr.mxu0 %v1395
    %2032 = vmatpush1.msra.mxu0 %v1394
    %2033 = vmatprep.subr.mxu0 %v1399
    %2034 = vmatpush1.msra.mxu0 %v1398
    %2035 = vmatprep.subr.mxu0 %v1403
    %2036 = vmatpush1.msra.mxu0 %v1402
    %2037 = vmatprep.subr.mxu0 %v1407
    %2038 = vmatpush1.msra.mxu0 %v1406
    %2039 = vmatprep.subr.mxu0 %v1411
    %2040 = vmatpush1.msra.mxu0 %v1410
    %2041 = vmatprep.subr.mxu0 %v1415
    %2042 = vmatpush1.msra.mxu0 %v1414
    %2043 = vmatprep.subr.mxu0 %v1419
    %2044 = vmatpush1.msra.mxu0 %v1418
    %2045 = vmatprep.subr.mxu0 %v1423
    %2046 = vmatpush1.msra.mxu0 %v1422
    %2047 = vmatprep.subr.mxu0 %v1427
    %2048 = vmatpush1.msra.mxu0 %v1426
    %2049 = vmatprep.subr.mxu0 %v1431
    %2050 = vmatpush1.msra.mxu0 %v1430
    %2051 = vmatprep.subr.mxu0 %v1435
    %2052 = vmatpush1.msra.mxu0 %v1434
    %2053 = vmatprep.subr.mxu0 %v1439
    %2054 = vmatpush1.msra.mxu0 %v1438
    %2055 = vmatprep.subr.mxu0 %v1443
    %2056 = vmatpush1.msra.mxu0 %v1442
    %2057 = vmatprep.subr.mxu0 0.0
    %2058 = vmatpush1.msra.mxu0 0.0
    %2059 = vmatprep.subr.mxu0 0.0
    %2060 = vmatpush1.msra.mxu0 0.0
    %2061 = vmatprep.subr.mxu0 0.0
    %2062 = vmatpush1.msra.mxu0 0.0
    %2063 = vmatprep.subr.mxu0 0.0
    %2064 = vmatpush1.msra.mxu0 0.0
    %2065 = vmatprep.subr.mxu0 0.0
    %2066 = vmatpush1.msra.mxu0 0.0
    %2067 = vmatprep.subr.mxu0 0.0
    %2068 = vmatpush1.msra.mxu0 0.0
    %2069 = vmatprep.subr.mxu0 0.0
    %2070 = vmatpush1.msra.mxu0 0.0
    %2071 = vmatprep.subr.mxu0 0.0
    %2072 = vmatpush1.msra.mxu0 0.0
    %2073 = vmatprep.subr.mxu0 0.0
    %2074 = vmatpush1.msra.mxu0 0.0
    %2075 = vmatprep.subr.mxu0 0.0
    %2076 = vmatpush1.msra.mxu0 0.0
    %2077 = vmatprep.subr.mxu0 0.0
    %2078 = vmatpush1.msra.mxu0 0.0
    %2079 = vmatprep.subr.mxu0 0.0
    %2080 = vmatpush1.msra.mxu0 0.0
    %2081 = vmatprep.subr.mxu0 0.0
    %2082 = vmatpush1.msra.mxu0 0.0
    %2083 = vmatprep.subr.mxu0 0.0
    %2084 = vmatpush1.msra.mxu0 0.0
    %2085 = vmatprep.subr.mxu0 0.0
    %2086 = vmatpush1.msra.mxu0 0.0
    %2087 = vmatprep.subr.mxu0 0.0
    %2088 = vmatpush1.msra.mxu0 0.0
    %2089 = vmatprep.mubr.f32.mxu0 0.0
    %2090 = vmatmul.mubr.f32.gmra.mrb[0].mxu0 %v1953
    %v2091 = vpop.f32.mrb[0].mxu0
    %v2092 = vadd.f32 0.0, %v2091
    %v2093 = vpop.f32.mrb[0].mxu0
    %v2094 = vadd.f32 0.0, %v2093
    %2095 = vdwg.mxu0
    %v2096 = vadd.f32 %v1286, %v2021
    %v2097 = vadd.f32 %v1288, %v2023
    %v2098 = vadd.f32 %v1375, %v2092
    %v2099 = vadd.f32 %v1377, %v2094
    %v2100 = vxor.u32 %v2096, 2147483648
    %v2101 = vmul.f32 %v2100, 1.442695
    %v2102 = vpow.pop %v2101
    %v2103 = vadd.f32 %v2102, 1.0
    %v2104 = vrcp.pop %v2103
    %v2105 = vmul.f32 1.0, %v2104
    %v2106 = vxor.u32 %v2097, 2147483648
    %v2107 = vmul.f32 %v2106, 1.442695
    %v2108 = vpow.pop %v2107
    %v2109 = vadd.f32 %v2108, 1.0
    %v2110 = vrcp.pop %v2109
    %v2111 = vmul.f32 1.0, %v2110
    %v2112 = vtanh.pop %v2098
    %v2113 = vxor.u32 %v2099, 2147483648
    %v2114 = vmul.f32 %v2113, 1.442695
    %v2115 = vpow.pop %v2114
    %v2116 = vadd.f32 %v2115, 1.0
    %v2117 = vrcp.pop %v2116
    %v2118 = vmul.f32 1.0, %v2117
    %v2119 = vmul.f32 %v2111, %v1951
    %v2120 = vmul.f32 %v2105, %v2112
    %v2121 = vadd.f32 %v2119, %v2120
    %v2122 = vtanh.pop %v2121
    %v2123 = vmul.f32 %v2118, %v2122
    %s2124 = scalar_lea.vmem [#allocation2], 1024
    %v2125 = vld [vmem:[%s2124] sm:$0xff]
    %v2126 = vld [vmem:[%s2124 + $0x8] sm:$0xff]
    %v2127 = vld [vmem:[%s2124 + $0x10] sm:$0xff]
    %v2128 = vld [vmem:[%s2124 + $0x18] sm:$0xff]
    %v2129 = vld [vmem:[%s2124 + $0x20] sm:$0xff]
    %v2130 = vld [vmem:[%s2124 + $0x28] sm:$0xff]
    %v2131 = vld [vmem:[%s2124 + $0x30] sm:$0xff]
    %v2132 = vld [vmem:[%s2124 + $0x38] sm:$0xff]
    %v2133 = vld [vmem:[%s2124 + $0x40] sm:$0xff]
    %v2134 = vld [vmem:[%s2124 + $0x48] sm:$0xff]
    %v2135 = vld [vmem:[%s2124 + $0x50] sm:$0xff]
    %v2136 = vld [vmem:[%s2124 + $0x58] sm:$0xff]
    %v2137 = vld [vmem:[%s2124 + $0x60] sm:$0xff]
    %v2138 = vld [vmem:[%s2124 + $0x68] sm:$0xff]
    %v2139 = vld [vmem:[%s2124 + $0x70] sm:$0xff]
    %v2140 = vld [vmem:[%s2124 + $0x78] sm:$0xff]
    %v2141 = vld [vmem:[%s2124 + $0x80] sm:$0xff]
    %v2142 = vld [vmem:[%s2124 + $0x88] sm:$0xff]
    %v2143 = vld [vmem:[%s2124 + $0x90] sm:$0xff]
    %v2144 = vld [vmem:[%s2124 + $0x98] sm:$0xff]
    %v2145 = vld [vmem:[%s2124 + $0xa0] sm:$0xff]
    %v2146 = vld [vmem:[%s2124 + $0xa8] sm:$0xff]
    %v2147 = vld [vmem:[%s2124 + $0xb0] sm:$0xff]
    %v2148 = vld [vmem:[%s2124 + $0xb8] sm:$0xff]
    %v2149 = vld [vmem:[%s2124 + $0xc0] sm:$0xff]
    %v2150 = vld [vmem:[%s2124 + $0xc8] sm:$0xff]
    %v2151 = vld [vmem:[%s2124 + $0xd0] sm:$0xff]
    %v2152 = vld [vmem:[%s2124 + $0xd8] sm:$0xff]
    %v2153 = vld [vmem:[%s2124 + $0xe0] sm:$0xff]
    %v2154 = vld [vmem:[%s2124 + $0xe8] sm:$0xff]
    %v2155 = vld [vmem:[%s2124 + $0xf0] sm:$0xff]
    %v2156 = vld [vmem:[%s2124 + $0xf8] sm:$0xff]
    %v2157 = vld [vmem:[%s2124 + $0x100] sm:$0xff]
    %v2158 = vld [vmem:[%s2124 + $0x108] sm:$0xff]
    %v2159 = vld [vmem:[%s2124 + $0x110] sm:$0xff]
    %v2160 = vld [vmem:[%s2124 + $0x118] sm:$0xff]
    %v2161 = vld [vmem:[%s2124 + $0x120] sm:$0xff]
    %v2162 = vld [vmem:[%s2124 + $0x128] sm:$0xff]
    %v2163 = vld [vmem:[%s2124 + $0x130] sm:$0xff]
    %v2164 = vld [vmem:[%s2124 + $0x138] sm:$0xff]
    %v2165 = vld [vmem:[%s2124 + $0x140] sm:$0xff]
    %v2166 = vld [vmem:[%s2124 + $0x148] sm:$0xff]
    %v2167 = vld [vmem:[%s2124 + $0x150] sm:$0xff]
    %v2168 = vld [vmem:[%s2124 + $0x158] sm:$0xff]
    %v2169 = vld [vmem:[%s2124 + $0x160] sm:$0xff]
    %v2170 = vld [vmem:[%s2124 + $0x168] sm:$0xff]
    %v2171 = vld [vmem:[%s2124 + $0x170] sm:$0xff]
    %v2172 = vld [vmem:[%s2124 + $0x178] sm:$0xff]
    %v2173 = vld [vmem:[%s2124 + $0x180] sm:$0xff]
    %v2174 = vld [vmem:[%s2124 + $0x188] sm:$0xff]
    %v2175 = vld [vmem:[%s2124 + $0x190] sm:$0xff]
    %v2176 = vld [vmem:[%s2124 + $0x198] sm:$0xff]
    %v2177 = vld [vmem:[%s2124 + $0x1a0] sm:$0xff]
    %v2178 = vld [vmem:[%s2124 + $0x1a8] sm:$0xff]
    %v2179 = vld [vmem:[%s2124 + $0x1b0] sm:$0xff]
    %v2180 = vld [vmem:[%s2124 + $0x1b8] sm:$0xff]
    %v2181 = vld [vmem:[%s2124 + $0x1c0] sm:$0xff]
    %v2182 = vld [vmem:[%s2124 + $0x1c8] sm:$0xff]
    %v2183 = vld [vmem:[%s2124 + $0x1d0] sm:$0xff]
    %v2184 = vld [vmem:[%s2124 + $0x1d8] sm:$0xff]
    %v2185 = vld [vmem:[%s2124 + $0x1e0] sm:$0xff]
    %v2186 = vld [vmem:[%s2124 + $0x1e8] sm:$0xff]
    %v2187 = vld [vmem:[%s2124 + $0x1f0] sm:$0xff]
    %v2188 = vld [vmem:[%s2124 + $0x1f8] sm:$0xff]
    %s2189 = scalar_lea.vmem [#allocation5], 1024
    %v2190 = vld [vmem:[%s2189] sm:$0xff]
    %v2191 = vld [vmem:[%s2189 + $0x8] sm:$0xff]
    %v2192 = vld [vmem:[%s2189 + $0x10] sm:$0xff]
    %v2193 = vld [vmem:[%s2189 + $0x18] sm:$0xff]
    %v2194 = vld [vmem:[%s2189 + $0x20] sm:$0xff]
    %v2195 = vld [vmem:[%s2189 + $0x28] sm:$0xff]
    %v2196 = vld [vmem:[%s2189 + $0x30] sm:$0xff]
    %v2197 = vld [vmem:[%s2189 + $0x38] sm:$0xff]
    %v2198 = vld [vmem:[%s2189 + $0x40] sm:$0xff]
    %v2199 = vld [vmem:[%s2189 + $0x48] sm:$0xff]
    %v2200 = vld [vmem:[%s2189 + $0x50] sm:$0xff]
    %v2201 = vld [vmem:[%s2189 + $0x58] sm:$0xff]
    %v2202 = vld [vmem:[%s2189 + $0x60] sm:$0xff]
    %v2203 = vld [vmem:[%s2189 + $0x68] sm:$0xff]
    %v2204 = vld [vmem:[%s2189 + $0x70] sm:$0xff]
    %v2205 = vld [vmem:[%s2189 + $0x78] sm:$0xff]
    %v2206 = vld [vmem:[%s2189 + $0x80] sm:$0xff]
    %v2207 = vld [vmem:[%s2189 + $0x88] sm:$0xff]
    %v2208 = vld [vmem:[%s2189 + $0x90] sm:$0xff]
    %v2209 = vld [vmem:[%s2189 + $0x98] sm:$0xff]
    %v2210 = vld [vmem:[%s2189 + $0xa0] sm:$0xff]
    %v2211 = vld [vmem:[%s2189 + $0xa8] sm:$0xff]
    %v2212 = vld [vmem:[%s2189 + $0xb0] sm:$0xff]
    %v2213 = vld [vmem:[%s2189 + $0xb8] sm:$0xff]
    %v2214 = vld [vmem:[%s2189 + $0xc0] sm:$0xff]
    %v2215 = vld [vmem:[%s2189 + $0xc8] sm:$0xff]
    %v2216 = vld [vmem:[%s2189 + $0xd0] sm:$0xff]
    %v2217 = vld [vmem:[%s2189 + $0xd8] sm:$0xff]
    %v2218 = vld [vmem:[%s2189 + $0xe0] sm:$0xff]
    %v2219 = vld [vmem:[%s2189 + $0xe8] sm:$0xff]
    %v2220 = vld [vmem:[%s2189 + $0xf0] sm:$0xff]
    %v2221 = vld [vmem:[%s2189 + $0xf8] sm:$0xff]
    %v2222 = vld [vmem:[%s2189 + $0x100] sm:$0xff]
    %v2223 = vld [vmem:[%s2189 + $0x108] sm:$0xff]
    %v2224 = vld [vmem:[%s2189 + $0x110] sm:$0xff]
    %v2225 = vld [vmem:[%s2189 + $0x118] sm:$0xff]
    %v2226 = vld [vmem:[%s2189 + $0x120] sm:$0xff]
    %v2227 = vld [vmem:[%s2189 + $0x128] sm:$0xff]
    %v2228 = vld [vmem:[%s2189 + $0x130] sm:$0xff]
    %v2229 = vld [vmem:[%s2189 + $0x138] sm:$0xff]
    %v2230 = vld [vmem:[%s2189 + $0x140] sm:$0xff]
    %v2231 = vld [vmem:[%s2189 + $0x148] sm:$0xff]
    %v2232 = vld [vmem:[%s2189 + $0x150] sm:$0xff]
    %v2233 = vld [vmem:[%s2189 + $0x158] sm:$0xff]
    %v2234 = vld [vmem:[%s2189 + $0x160] sm:$0xff]
    %v2235 = vld [vmem:[%s2189 + $0x168] sm:$0xff]
    %v2236 = vld [vmem:[%s2189 + $0x170] sm:$0xff]
    %v2237 = vld [vmem:[%s2189 + $0x178] sm:$0xff]
    %v2238 = vld [vmem:[%s2189 + $0x180] sm:$0xff]
    %v2239 = vld [vmem:[%s2189 + $0x188] sm:$0xff]
    %v2240 = vld [vmem:[%s2189 + $0x190] sm:$0xff]
    %v2241 = vld [vmem:[%s2189 + $0x198] sm:$0xff]
    %v2242 = vld [vmem:[%s2189 + $0x1a0] sm:$0xff]
    %v2243 = vld [vmem:[%s2189 + $0x1a8] sm:$0xff]
    %v2244 = vld [vmem:[%s2189 + $0x1b0] sm:$0xff]
    %v2245 = vld [vmem:[%s2189 + $0x1b8] sm:$0xff]
    %v2246 = vld [vmem:[%s2189 + $0x1c0] sm:$0xff]
    %v2247 = vld [vmem:[%s2189 + $0x1c8] sm:$0xff]
    %v2248 = vld [vmem:[%s2189 + $0x1d0] sm:$0xff]
    %v2249 = vld [vmem:[%s2189 + $0x1d8] sm:$0xff]
    %v2250 = vld [vmem:[%s2189 + $0x1e0] sm:$0xff]
    %v2251 = vld [vmem:[%s2189 + $0x1e8] sm:$0xff]
    %v2252 = vld [vmem:[%s2189 + $0x1f0] sm:$0xff]
    %v2253 = vld [vmem:[%s2189 + $0x1f8] sm:$0xff]
    %v2254 = vadd.f32 %v2125, %v2190
    %v2255 = vadd.f32 %v2126, %v2191
    %v2256 = vadd.f32 %v2127, %v2192
    %v2257 = vadd.f32 %v2128, %v2193
    %v2258 = vadd.f32 %v2129, %v2194
    %v2259 = vadd.f32 %v2130, %v2195
    %v2260 = vadd.f32 %v2131, %v2196
    %v2261 = vadd.f32 %v2132, %v2197
    %v2262 = vadd.f32 %v2133, %v2198
    %v2263 = vadd.f32 %v2134, %v2199
    %v2264 = vadd.f32 %v2135, %v2200
    %v2265 = vadd.f32 %v2136, %v2201
    %v2266 = vadd.f32 %v2137, %v2202
    %v2267 = vadd.f32 %v2138, %v2203
    %v2268 = vadd.f32 %v2139, %v2204
    %v2269 = vadd.f32 %v2140, %v2205
    %v2270 = vadd.f32 %v2141, %v2206
    %v2271 = vadd.f32 %v2142, %v2207
    %v2272 = vadd.f32 %v2143, %v2208
    %v2273 = vadd.f32 %v2144, %v2209
    %v2274 = vadd.f32 %v2145, %v2210
    %v2275 = vadd.f32 %v2146, %v2211
    %v2276 = vadd.f32 %v2147, %v2212
    %v2277 = vadd.f32 %v2148, %v2213
    %v2278 = vadd.f32 %v2149, %v2214
    %v2279 = vadd.f32 %v2150, %v2215
    %v2280 = vadd.f32 %v2151, %v2216
    %v2281 = vadd.f32 %v2152, %v2217
    %v2282 = vadd.f32 %v2153, %v2218
    %v2283 = vadd.f32 %v2154, %v2219
    %v2284 = vadd.f32 %v2155, %v2220
    %v2285 = vadd.f32 %v2156, %v2221
    %v2286 = vadd.f32 %v2157, %v2222
    %v2287 = vadd.f32 %v2158, %v2223
    %v2288 = vadd.f32 %v2159, %v2224
    %v2289 = vadd.f32 %v2160, %v2225
    %v2290 = vadd.f32 %v2161, %v2226
    %v2291 = vadd.f32 %v2162, %v2227
    %v2292 = vadd.f32 %v2163, %v2228
    %v2293 = vadd.f32 %v2164, %v2229
    %v2294 = vadd.f32 %v2165, %v2230
    %v2295 = vadd.f32 %v2166, %v2231
    %v2296 = vadd.f32 %v2167, %v2232
    %v2297 = vadd.f32 %v2168, %v2233
    %v2298 = vadd.f32 %v2169, %v2234
    %v2299 = vadd.f32 %v2170, %v2235
    %v2300 = vadd.f32 %v2171, %v2236
    %v2301 = vadd.f32 %v2172, %v2237
    %v2302 = vadd.f32 %v2173, %v2238
    %v2303 = vadd.f32 %v2174, %v2239
    %v2304 = vadd.f32 %v2175, %v2240
    %v2305 = vadd.f32 %v2176, %v2241
    %v2306 = vadd.f32 %v2177, %v2242
    %v2307 = vadd.f32 %v2178, %v2243
    %v2308 = vadd.f32 %v2179, %v2244
    %v2309 = vadd.f32 %v2180, %v2245
    %v2310 = vadd.f32 %v2181, %v2246
    %v2311 = vadd.f32 %v2182, %v2247
    %v2312 = vadd.f32 %v2183, %v2248
    %v2313 = vadd.f32 %v2184, %v2249
    %v2314 = vadd.f32 %v2185, %v2250
    %v2315 = vadd.f32 %v2186, %v2251
    %v2316 = vadd.f32 %v2187, %v2252
    %v2317 = vadd.f32 %v2188, %v2253
    %s2318 = scalar_lea.vmem [#allocation7], 8
    %v2319 = vld [vmem:[%s2318] sm:$0xf]
    %v2321 = vlaneseq
    %v2322 = vshrl.u32 %v2321, 7
    %v2323 = vsub.s32 0, %v2322
    %v2324 = vrot.slane %v2319, %v2323
    %v2325 = vlaneseq
    %v2326 = vshrl.u32 %v2325, 7
    %v2327 = vsub.s32 1, %v2326
    %v2328 = vrot.slane %v2319, %v2327
    %v2329 = vlaneseq
    %v2330 = vshrl.u32 %v2329, 7
    %v2331 = vsub.s32 2, %v2330
    %v2332 = vrot.slane %v2319, %v2331
    %v2333 = vlaneseq
    %v2334 = vshrl.u32 %v2333, 7
    %v2335 = vsub.s32 3, %v2334
    %v2336 = vrot.slane %v2319, %v2335
    %2341 = vmatprep.subr.mxu0 %v2255
    %2342 = vmatpush1.msra.mxu0 %v2254
    %2343 = vmatprep.subr.mxu0 %v2259
    %2344 = vmatpush1.msra.mxu0 %v2258
    %2345 = vmatprep.subr.mxu0 %v2263
    %2346 = vmatpush1.msra.mxu0 %v2262
    %2347 = vmatprep.subr.mxu0 %v2267
    %2348 = vmatpush1.msra.mxu0 %v2266
    %2349 = vmatprep.subr.mxu0 %v2271
    %2350 = vmatpush1.msra.mxu0 %v2270
    %2351 = vmatprep.subr.mxu0 %v2275
    %2352 = vmatpush1.msra.mxu0 %v2274
    %2353 = vmatprep.subr.mxu0 %v2279
    %2354 = vmatpush1.msra.mxu0 %v2278
    %2355 = vmatprep.subr.mxu0 %v2283
    %2356 = vmatpush1.msra.mxu0 %v2282
    %2357 = vmatprep.subr.mxu0 %v2287
    %2358 = vmatpush1.msra.mxu0 %v2286
    %2359 = vmatprep.subr.mxu0 %v2291
    %2360 = vmatpush1.msra.mxu0 %v2290
    %2361 = vmatprep.subr.mxu0 %v2295
    %2362 = vmatpush1.msra.mxu0 %v2294
    %2363 = vmatprep.subr.mxu0 %v2299
    %2364 = vmatpush1.msra.mxu0 %v2298
    %2365 = vmatprep.subr.mxu0 %v2303
    %2366 = vmatpush1.msra.mxu0 %v2302
    %2367 = vmatprep.subr.mxu0 %v2307
    %2368 = vmatpush1.msra.mxu0 %v2306
    %2369 = vmatprep.subr.mxu0 %v2311
    %2370 = vmatpush1.msra.mxu0 %v2310
    %2371 = vmatprep.subr.mxu0 %v2315
    %2372 = vmatpush1.msra.mxu0 %v2314
    %2373 = vmatprep.subr.mxu0 0.0
    %2374 = vmatpush1.msra.mxu0 0.0
    %2375 = vmatprep.subr.mxu0 0.0
    %2376 = vmatpush1.msra.mxu0 0.0
    %2377 = vmatprep.subr.mxu0 0.0
    %2378 = vmatpush1.msra.mxu0 0.0
    %2379 = vmatprep.subr.mxu0 0.0
    %2380 = vmatpush1.msra.mxu0 0.0
    %2381 = vmatprep.subr.mxu0 0.0
    %2382 = vmatpush1.msra.mxu0 0.0
    %2383 = vmatprep.subr.mxu0 0.0
    %2384 = vmatpush1.msra.mxu0 0.0
    %2385 = vmatprep.subr.mxu0 0.0
    %2386 = vmatpush1.msra.mxu0 0.0
    %2387 = vmatprep.subr.mxu0 0.0
    %2388 = vmatpush1.msra.mxu0 0.0
    %2389 = vmatprep.subr.mxu0 0.0
    %2390 = vmatpush1.msra.mxu0 0.0
    %2391 = vmatprep.subr.mxu0 0.0
    %2392 = vmatpush1.msra.mxu0 0.0
    %2393 = vmatprep.subr.mxu0 0.0
    %2394 = vmatpush1.msra.mxu0 0.0
    %2395 = vmatprep.subr.mxu0 0.0
    %2396 = vmatpush1.msra.mxu0 0.0
    %2397 = vmatprep.subr.mxu0 0.0
    %2398 = vmatpush1.msra.mxu0 0.0
    %2399 = vmatprep.subr.mxu0 0.0
    %2400 = vmatpush1.msra.mxu0 0.0
    %2401 = vmatprep.subr.mxu0 0.0
    %2402 = vmatpush1.msra.mxu0 0.0
    %2403 = vmatprep.subr.mxu0 0.0
    %2404 = vmatpush1.msra.mxu0 0.0
    %2405 = vmatprep.mubr.f32.mxu0 0.0
    %2406 = vmatmul.mubr.f32.gmra.mrb[0].mxu0 %v2123
    %v2407 = vpop.f32.mrb[0].mxu0
    %v2408 = vadd.f32 %v2324, %v2407
    %v2409 = vpop.f32.mrb[0].mxu0
    %v2410 = vadd.f32 %v2328, %v2409
    %2411 = vdwg.mxu0
    %2412 = vmatprep.subr.mxu0 %v2257
    %2413 = vmatpush1.msra.mxu0 %v2256
    %2414 = vmatprep.subr.mxu0 %v2261
    %2415 = vmatpush1.msra.mxu0 %v2260
    %2416 = vmatprep.subr.mxu0 %v2265
    %2417 = vmatpush1.msra.mxu0 %v2264
    %2418 = vmatprep.subr.mxu0 %v2269
    %2419 = vmatpush1.msra.mxu0 %v2268
    %2420 = vmatprep.subr.mxu0 %v2273
    %2421 = vmatpush1.msra.mxu0 %v2272
    %2422 = vmatprep.subr.mxu0 %v2277
    %2423 = vmatpush1.msra.mxu0 %v2276
    %2424 = vmatprep.subr.mxu0 %v2281
    %2425 = vmatpush1.msra.mxu0 %v2280
    %2426 = vmatprep.subr.mxu0 %v2285
    %2427 = vmatpush1.msra.mxu0 %v2284
    %2428 = vmatprep.subr.mxu0 %v2289
    %2429 = vmatpush1.msra.mxu0 %v2288
    %2430 = vmatprep.subr.mxu0 %v2293
    %2431 = vmatpush1.msra.mxu0 %v2292
    %2432 = vmatprep.subr.mxu0 %v2297
    %2433 = vmatpush1.msra.mxu0 %v2296
    %2434 = vmatprep.subr.mxu0 %v2301
    %2435 = vmatpush1.msra.mxu0 %v2300
    %2436 = vmatprep.subr.mxu0 %v2305
    %2437 = vmatpush1.msra.mxu0 %v2304
    %2438 = vmatprep.subr.mxu0 %v2309
    %2439 = vmatpush1.msra.mxu0 %v2308
    %2440 = vmatprep.subr.mxu0 %v2313
    %2441 = vmatpush1.msra.mxu0 %v2312
    %2442 = vmatprep.subr.mxu0 %v2317
    %2443 = vmatpush1.msra.mxu0 %v2316
    %2444 = vmatprep.subr.mxu0 0.0
    %2445 = vmatpush1.msra.mxu0 0.0
    %2446 = vmatprep.subr.mxu0 0.0
    %2447 = vmatpush1.msra.mxu0 0.0
    %2448 = vmatprep.subr.mxu0 0.0
    %2449 = vmatpush1.msra.mxu0 0.0
    %2450 = vmatprep.subr.mxu0 0.0
    %2451 = vmatpush1.msra.mxu0 0.0
    %2452 = vmatprep.subr.mxu0 0.0
    %2453 = vmatpush1.msra.mxu0 0.0
    %2454 = vmatprep.subr.mxu0 0.0
    %2455 = vmatpush1.msra.mxu0 0.0
    %2456 = vmatprep.subr.mxu0 0.0
    %2457 = vmatpush1.msra.mxu0 0.0
    %2458 = vmatprep.subr.mxu0 0.0
    %2459 = vmatpush1.msra.mxu0 0.0
    %2460 = vmatprep.subr.mxu0 0.0
    %2461 = vmatpush1.msra.mxu0 0.0
    %2462 = vmatprep.subr.mxu0 0.0
    %2463 = vmatpush1.msra.mxu0 0.0
    %2464 = vmatprep.subr.mxu0 0.0
    %2465 = vmatpush1.msra.mxu0 0.0
    %2466 = vmatprep.subr.mxu0 0.0
    %2467 = vmatpush1.msra.mxu0 0.0
    %2468 = vmatprep.subr.mxu0 0.0
    %2469 = vmatpush1.msra.mxu0 0.0
    %2470 = vmatprep.subr.mxu0 0.0
    %2471 = vmatpush1.msra.mxu0 0.0
    %2472 = vmatprep.subr.mxu0 0.0
    %2473 = vmatpush1.msra.mxu0 0.0
    %2474 = vmatprep.subr.mxu0 0.0
    %2475 = vmatpush1.msra.mxu0 0.0
    %2476 = vmatprep.mubr.f32.mxu0 0.0
    %2477 = vmatmul.mubr.f32.gmra.mrb[0].mxu0 %v2123
    %v2478 = vpop.f32.mrb[0].mxu0
    %v2479 = vadd.f32 %v2332, %v2478
    %v2480 = vpop.f32.mrb[0].mxu0
    %v2481 = vadd.f32 %v2336, %v2480
    %2482 = vdwg.mxu0
    %v2483 = vxor.u32 %v2408, 2147483648
    %v2484 = vmul.f32 %v2483, 1.442695
    %v2485 = vpow.pop %v2484
    %v2486 = vadd.f32 %v2485, 1.0
    %v2487 = vrcp.pop %v2486
    %v2488 = vmul.f32 1.0, %v2487
    %v2489 = vxor.u32 %v2410, 2147483648
    %v2490 = vmul.f32 %v2489, 1.442695
    %v2491 = vpow.pop %v2490
    %v2492 = vadd.f32 %v2491, 1.0
    %v2493 = vrcp.pop %v2492
    %v2494 = vmul.f32 1.0, %v2493
    %v2495 = vtanh.pop %v2479
    %v2496 = vxor.u32 %v2481, 2147483648
    %v2497 = vmul.f32 %v2496, 1.442695
    %v2498 = vpow.pop %v2497
    %v2499 = vadd.f32 %v2498, 1.0
    %v2500 = vrcp.pop %v2499
    %v2501 = vmul.f32 1.0, %v2500
    %v2502 = vmul.f32 %v2494, %v2121
    %v2503 = vmul.f32 %v2488, %v2495
    %v2504 = vadd.f32 %v2502, %v2503
    %v2505 = vtanh.pop %v2504
    %v2506 = vmul.f32 %v2501, %v2505
    %2507 = vmatprep.subr.mxu0 %v2255
    %2508 = vmatpush1.msra.mxu0 %v2254
    %2509 = vmatprep.subr.mxu0 %v2259
    %2510 = vmatpush1.msra.mxu0 %v2258
    %2511 = vmatprep.subr.mxu0 %v2263
    %2512 = vmatpush1.msra.mxu0 %v2262
    %2513 = vmatprep.subr.mxu0 %v2267
    %2514 = vmatpush1.msra.mxu0 %v2266
    %2515 = vmatprep.subr.mxu0 %v2271
    %2516 = vmatpush1.msra.mxu0 %v2270
    %2517 = vmatprep.subr.mxu0 %v2275
    %2518 = vmatpush1.msra.mxu0 %v2274
    %2519 = vmatprep.subr.mxu0 %v2279
    %2520 = vmatpush1.msra.mxu0 %v2278
    %2521 = vmatprep.subr.mxu0 %v2283
    %2522 = vmatpush1.msra.mxu0 %v2282
    %2523 = vmatprep.subr.mxu0 %v2287
    %2524 = vmatpush1.msra.mxu0 %v2286
    %2525 = vmatprep.subr.mxu0 %v2291
    %2526 = vmatpush1.msra.mxu0 %v2290
    %2527 = vmatprep.subr.mxu0 %v2295
    %2528 = vmatpush1.msra.mxu0 %v2294
    %2529 = vmatprep.subr.mxu0 %v2299
    %2530 = vmatpush1.msra.mxu0 %v2298
    %2531 = vmatprep.subr.mxu0 %v2303
    %2532 = vmatpush1.msra.mxu0 %v2302
    %2533 = vmatprep.subr.mxu0 %v2307
    %2534 = vmatpush1.msra.mxu0 %v2306
    %2535 = vmatprep.subr.mxu0 %v2311
    %2536 = vmatpush1.msra.mxu0 %v2310
    %2537 = vmatprep.subr.mxu0 %v2315
    %2538 = vmatpush1.msra.mxu0 %v2314
    %2539 = vmatprep.subr.mxu0 0.0
    %2540 = vmatpush1.msra.mxu0 0.0
    %2541 = vmatprep.subr.mxu0 0.0
    %2542 = vmatpush1.msra.mxu0 0.0
    %2543 = vmatprep.subr.mxu0 0.0
    %2544 = vmatpush1.msra.mxu0 0.0
    %2545 = vmatprep.subr.mxu0 0.0
    %2546 = vmatpush1.msra.mxu0 0.0
    %2547 = vmatprep.subr.mxu0 0.0
    %2548 = vmatpush1.msra.mxu0 0.0
    %2549 = vmatprep.subr.mxu0 0.0
    %2550 = vmatpush1.msra.mxu0 0.0
    %2551 = vmatprep.subr.mxu0 0.0
    %2552 = vmatpush1.msra.mxu0 0.0
    %2553 = vmatprep.subr.mxu0 0.0
    %2554 = vmatpush1.msra.mxu0 0.0
    %2555 = vmatprep.subr.mxu0 0.0
    %2556 = vmatpush1.msra.mxu0 0.0
    %2557 = vmatprep.subr.mxu0 0.0
    %2558 = vmatpush1.msra.mxu0 0.0
    %2559 = vmatprep.subr.mxu0 0.0
    %2560 = vmatpush1.msra.mxu0 0.0
    %2561 = vmatprep.subr.mxu0 0.0
    %2562 = vmatpush1.msra.mxu0 0.0
    %2563 = vmatprep.subr.mxu0 0.0
    %2564 = vmatpush1.msra.mxu0 0.0
    %2565 = vmatprep.subr.mxu0 0.0
    %2566 = vmatpush1.msra.mxu0 0.0
    %2567 = vmatprep.subr.mxu0 0.0
    %2568 = vmatpush1.msra.mxu0 0.0
    %2569 = vmatprep.subr.mxu0 0.0
    %2570 = vmatpush1.msra.mxu0 0.0
    %2571 = vmatprep.mubr.f32.mxu0 0.0
    %2572 = vmatmul.mubr.f32.gmra.mrb[0].mxu0 %v2506
    %v2573 = vpop.f32.mrb[0].mxu0
    %v2574 = vadd.f32 %v2324, %v2573
    %v2575 = vpop.f32.mrb[0].mxu0
    %v2576 = vadd.f32 %v2328, %v2575
    %2577 = vdwg.mxu0
    %2578 = vmatprep.subr.mxu0 %v2257
    %2579 = vmatpush1.msra.mxu0 %v2256
    %2580 = vmatprep.subr.mxu0 %v2261
    %2581 = vmatpush1.msra.mxu0 %v2260
    %2582 = vmatprep.subr.mxu0 %v2265
    %2583 = vmatpush1.msra.mxu0 %v2264
    %2584 = vmatprep.subr.mxu0 %v2269
    %2585 = vmatpush1.msra.mxu0 %v2268
    %2586 = vmatprep.subr.mxu0 %v2273
    %2587 = vmatpush1.msra.mxu0 %v2272
    %2588 = vmatprep.subr.mxu0 %v2277
    %2589 = vmatpush1.msra.mxu0 %v2276
    %2590 = vmatprep.subr.mxu0 %v2281
    %2591 = vmatpush1.msra.mxu0 %v2280
    %2592 = vmatprep.subr.mxu0 %v2285
    %2593 = vmatpush1.msra.mxu0 %v2284
    %2594 = vmatprep.subr.mxu0 %v2289
    %2595 = vmatpush1.msra.mxu0 %v2288
    %2596 = vmatprep.subr.mxu0 %v2293
    %2597 = vmatpush1.msra.mxu0 %v2292
    %2598 = vmatprep.subr.mxu0 %v2297
    %2599 = vmatpush1.msra.mxu0 %v2296
    %2600 = vmatprep.subr.mxu0 %v2301
    %2601 = vmatpush1.msra.mxu0 %v2300
    %2602 = vmatprep.subr.mxu0 %v2305
    %2603 = vmatpush1.msra.mxu0 %v2304
    %2604 = vmatprep.subr.mxu0 %v2309
    %2605 = vmatpush1.msra.mxu0 %v2308
    %2606 = vmatprep.subr.mxu0 %v2313
    %2607 = vmatpush1.msra.mxu0 %v2312
    %2608 = vmatprep.subr.mxu0 %v2317
    %2609 = vmatpush1.msra.mxu0 %v2316
    %2610 = vmatprep.subr.mxu0 0.0
    %2611 = vmatpush1.msra.mxu0 0.0
    %2612 = vmatprep.subr.mxu0 0.0
    %2613 = vmatpush1.msra.mxu0 0.0
    %2614 = vmatprep.subr.mxu0 0.0
    %2615 = vmatpush1.msra.mxu0 0.0
    %2616 = vmatprep.subr.mxu0 0.0
    %2617 = vmatpush1.msra.mxu0 0.0
    %2618 = vmatprep.subr.mxu0 0.0
    %2619 = vmatpush1.msra.mxu0 0.0
    %2620 = vmatprep.subr.mxu0 0.0
    %2621 = vmatpush1.msra.mxu0 0.0
    %2622 = vmatprep.subr.mxu0 0.0
    %2623 = vmatpush1.msra.mxu0 0.0
    %2624 = vmatprep.subr.mxu0 0.0
    %2625 = vmatpush1.msra.mxu0 0.0
    %2626 = vmatprep.subr.mxu0 0.0
    %2627 = vmatpush1.msra.mxu0 0.0
    %2628 = vmatprep.subr.mxu0 0.0
    %2629 = vmatpush1.msra.mxu0 0.0
    %2630 = vmatprep.subr.mxu0 0.0
    %2631 = vmatpush1.msra.mxu0 0.0
    %2632 = vmatprep.subr.mxu0 0.0
    %2633 = vmatpush1.msra.mxu0 0.0
    %2634 = vmatprep.subr.mxu0 0.0
    %2635 = vmatpush1.msra.mxu0 0.0
    %2636 = vmatprep.subr.mxu0 0.0
    %2637 = vmatpush1.msra.mxu0 0.0
    %2638 = vmatprep.subr.mxu0 0.0
    %2639 = vmatpush1.msra.mxu0 0.0
    %2640 = vmatprep.subr.mxu0 0.0
    %2641 = vmatpush1.msra.mxu0 0.0
    %2642 = vmatprep.mubr.f32.mxu0 0.0
    %2643 = vmatmul.mubr.f32.gmra.mrb[0].mxu0 %v2506
    %v2644 = vpop.f32.mrb[0].mxu0
    %v2645 = vadd.f32 %v2332, %v2644
    %v2646 = vpop.f32.mrb[0].mxu0
    %v2647 = vadd.f32 %v2336, %v2646
    %2648 = vdwg.mxu0
    %v2649 = vxor.u32 %v2574, 2147483648
    %v2650 = vmul.f32 %v2649, 1.442695
    %v2651 = vpow.pop %v2650
    %v2652 = vadd.f32 %v2651, 1.0
    %v2653 = vrcp.pop %v2652
    %v2654 = vmul.f32 1.0, %v2653
    %v2655 = vxor.u32 %v2576, 2147483648
    %v2656 = vmul.f32 %v2655, 1.442695
    %v2657 = vpow.pop %v2656
    %v2658 = vadd.f32 %v2657, 1.0
    %v2659 = vrcp.pop %v2658
    %v2660 = vmul.f32 1.0, %v2659
    %v2661 = vtanh.pop %v2645
    %v2662 = vxor.u32 %v2647, 2147483648
    %v2663 = vmul.f32 %v2662, 1.442695
    %v2664 = vpow.pop %v2663
    %v2665 = vadd.f32 %v2664, 1.0
    %v2666 = vrcp.pop %v2665
    %v2667 = vmul.f32 1.0, %v2666
    %v2668 = vmul.f32 %v2660, %v2504
    %v2669 = vmul.f32 %v2654, %v2661
    %v2670 = vadd.f32 %v2668, %v2669
    %v2671 = vtanh.pop %v2670
    %v2672 = vmul.f32 %v2667, %v2671
    %2673 = vmatprep.subr.mxu0 %v2255
    %2674 = vmatpush1.msra.mxu0 %v2254
    %2675 = vmatprep.subr.mxu0 %v2259
    %2676 = vmatpush1.msra.mxu0 %v2258
    %2677 = vmatprep.subr.mxu0 %v2263
    %2678 = vmatpush1.msra.mxu0 %v2262
    %2679 = vmatprep.subr.mxu0 %v2267
    %2680 = vmatpush1.msra.mxu0 %v2266
    %2681 = vmatprep.subr.mxu0 %v2271
    %2682 = vmatpush1.msra.mxu0 %v2270
    %2683 = vmatprep.subr.mxu0 %v2275
    %2684 = vmatpush1.msra.mxu0 %v2274
    %2685 = vmatprep.subr.mxu0 %v2279
    %2686 = vmatpush1.msra.mxu0 %v2278
    %2687 = vmatprep.subr.mxu0 %v2283
    %2688 = vmatpush1.msra.mxu0 %v2282
    %2689 = vmatprep.subr.mxu0 %v2287
    %2690 = vmatpush1.msra.mxu0 %v2286
    %2691 = vmatprep.subr.mxu0 %v2291
    %2692 = vmatpush1.msra.mxu0 %v2290
    %2693 = vmatprep.subr.mxu0 %v2295
    %2694 = vmatpush1.msra.mxu0 %v2294
    %2695 = vmatprep.subr.mxu0 %v2299
    %2696 = vmatpush1.msra.mxu0 %v2298
    %2697 = vmatprep.subr.mxu0 %v2303
    %2698 = vmatpush1.msra.mxu0 %v2302
    %2699 = vmatprep.subr.mxu0 %v2307
    %2700 = vmatpush1.msra.mxu0 %v2306
    %2701 = vmatprep.subr.mxu0 %v2311
    %2702 = vmatpush1.msra.mxu0 %v2310
    %2703 = vmatprep.subr.mxu0 %v2315
    %2704 = vmatpush1.msra.mxu0 %v2314
    %2705 = vmatprep.subr.mxu0 0.0
    %2706 = vmatpush1.msra.mxu0 0.0
    %2707 = vmatprep.subr.mxu0 0.0
    %2708 = vmatpush1.msra.mxu0 0.0
    %2709 = vmatprep.subr.mxu0 0.0
    %2710 = vmatpush1.msra.mxu0 0.0
    %2711 = vmatprep.subr.mxu0 0.0
    %2712 = vmatpush1.msra.mxu0 0.0
    %2713 = vmatprep.subr.mxu0 0.0
    %2714 = vmatpush1.msra.mxu0 0.0
    %2715 = vmatprep.subr.mxu0 0.0
    %2716 = vmatpush1.msra.mxu0 0.0
    %2717 = vmatprep.subr.mxu0 0.0
    %2718 = vmatpush1.msra.mxu0 0.0
    %2719 = vmatprep.subr.mxu0 0.0
    %2720 = vmatpush1.msra.mxu0 0.0
    %2721 = vmatprep.subr.mxu0 0.0
    %2722 = vmatpush1.msra.mxu0 0.0
    %2723 = vmatprep.subr.mxu0 0.0
    %2724 = vmatpush1.msra.mxu0 0.0
    %2725 = vmatprep.subr.mxu0 0.0
    %2726 = vmatpush1.msra.mxu0 0.0
    %2727 = vmatprep.subr.mxu0 0.0
    %2728 = vmatpush1.msra.mxu0 0.0
    %2729 = vmatprep.subr.mxu0 0.0
    %2730 = vmatpush1.msra.mxu0 0.0
    %2731 = vmatprep.subr.mxu0 0.0
    %2732 = vmatpush1.msra.mxu0 0.0
    %2733 = vmatprep.subr.mxu0 0.0
    %2734 = vmatpush1.msra.mxu0 0.0
    %2735 = vmatprep.subr.mxu0 0.0
    %2736 = vmatpush1.msra.mxu0 0.0
    %2737 = vmatprep.mubr.f32.mxu0 0.0
    %2738 = vmatmul.mubr.f32.gmra.mrb[0].mxu0 %v2672
    %v2739 = vpop.f32.mrb[0].mxu0
    %v2740 = vadd.f32 %v2324, %v2739
    %v2741 = vpop.f32.mrb[0].mxu0
    %v2742 = vadd.f32 %v2328, %v2741
    %2743 = vdwg.mxu0
    %2744 = vmatprep.subr.mxu0 %v2257
    %2745 = vmatpush1.msra.mxu0 %v2256
    %2746 = vmatprep.subr.mxu0 %v2261
    %2747 = vmatpush1.msra.mxu0 %v2260
    %2748 = vmatprep.subr.mxu0 %v2265
    %2749 = vmatpush1.msra.mxu0 %v2264
    %2750 = vmatprep.subr.mxu0 %v2269
    %2751 = vmatpush1.msra.mxu0 %v2268
    %2752 = vmatprep.subr.mxu0 %v2273
    %2753 = vmatpush1.msra.mxu0 %v2272
    %2754 = vmatprep.subr.mxu0 %v2277
    %2755 = vmatpush1.msra.mxu0 %v2276
    %2756 = vmatprep.subr.mxu0 %v2281
    %2757 = vmatpush1.msra.mxu0 %v2280
    %2758 = vmatprep.subr.mxu0 %v2285
    %2759 = vmatpush1.msra.mxu0 %v2284
    %2760 = vmatprep.subr.mxu0 %v2289
    %2761 = vmatpush1.msra.mxu0 %v2288
    %2762 = vmatprep.subr.mxu0 %v2293
    %2763 = vmatpush1.msra.mxu0 %v2292
    %2764 = vmatprep.subr.mxu0 %v2297
    %2765 = vmatpush1.msra.mxu0 %v2296
    %2766 = vmatprep.subr.mxu0 %v2301
    %2767 = vmatpush1.msra.mxu0 %v2300
    %2768 = vmatprep.subr.mxu0 %v2305
    %2769 = vmatpush1.msra.mxu0 %v2304
    %2770 = vmatprep.subr.mxu0 %v2309
    %2771 = vmatpush1.msra.mxu0 %v2308
    %2772 = vmatprep.subr.mxu0 %v2313
    %2773 = vmatpush1.msra.mxu0 %v2312
    %2774 = vmatprep.subr.mxu0 %v2317
    %2775 = vmatpush1.msra.mxu0 %v2316
    %2776 = vmatprep.subr.mxu0 0.0
    %2777 = vmatpush1.msra.mxu0 0.0
    %2778 = vmatprep.subr.mxu0 0.0
    %2779 = vmatpush1.msra.mxu0 0.0
    %2780 = vmatprep.subr.mxu0 0.0
    %2781 = vmatpush1.msra.mxu0 0.0
    %2782 = vmatprep.subr.mxu0 0.0
    %2783 = vmatpush1.msra.mxu0 0.0
    %2784 = vmatprep.subr.mxu0 0.0
    %2785 = vmatpush1.msra.mxu0 0.0
    %2786 = vmatprep.subr.mxu0 0.0
    %2787 = vmatpush1.msra.mxu0 0.0
    %2788 = vmatprep.subr.mxu0 0.0
    %2789 = vmatpush1.msra.mxu0 0.0
    %2790 = vmatprep.subr.mxu0 0.0
    %2791 = vmatpush1.msra.mxu0 0.0
    %2792 = vmatprep.subr.mxu0 0.0
    %2793 = vmatpush1.msra.mxu0 0.0
    %2794 = vmatprep.subr.mxu0 0.0
    %2795 = vmatpush1.msra.mxu0 0.0
    %2796 = vmatprep.subr.mxu0 0.0
    %2797 = vmatpush1.msra.mxu0 0.0
    %2798 = vmatprep.subr.mxu0 0.0
    %2799 = vmatpush1.msra.mxu0 0.0
    %2800 = vmatprep.subr.mxu0 0.0
    %2801 = vmatpush1.msra.mxu0 0.0
    %2802 = vmatprep.subr.mxu0 0.0
    %2803 = vmatpush1.msra.mxu0 0.0
    %2804 = vmatprep.subr.mxu0 0.0
    %2805 = vmatpush1.msra.mxu0 0.0
    %2806 = vmatprep.subr.mxu0 0.0
    %2807 = vmatpush1.msra.mxu0 0.0
    %2808 = vmatprep.mubr.f32.mxu0 0.0
    %2809 = vmatmul.mubr.f32.gmra.mrb[0].mxu0 %v2672
    %v2810 = vpop.f32.mrb[0].mxu0
    %v2811 = vadd.f32 %v2332, %v2810
    %v2812 = vpop.f32.mrb[0].mxu0
    %v2813 = vadd.f32 %v2336, %v2812
    %2814 = vdwg.mxu0
    %v2815 = vxor.u32 %v2740, 2147483648
    %v2816 = vmul.f32 %v2815, 1.442695
    %v2817 = vpow.pop %v2816
    %v2818 = vadd.f32 %v2817, 1.0
    %v2819 = vrcp.pop %v2818
    %v2820 = vmul.f32 1.0, %v2819
    %v2821 = vxor.u32 %v2742, 2147483648
    %v2822 = vmul.f32 %v2821, 1.442695
    %v2823 = vpow.pop %v2822
    %v2824 = vadd.f32 %v2823, 1.0
    %v2825 = vrcp.pop %v2824
    %v2826 = vmul.f32 1.0, %v2825
    %v2827 = vtanh.pop %v2811
    %v2828 = vxor.u32 %v2813, 2147483648
    %v2829 = vmul.f32 %v2828, 1.442695
    %v2830 = vpow.pop %v2829
    %v2831 = vadd.f32 %v2830, 1.0
    %v2832 = vrcp.pop %v2831
    %v2833 = vmul.f32 1.0, %v2832
    %v2834 = vmul.f32 %v2826, %v2670
    %v2835 = vmul.f32 %v2820, %v2827
    %v2836 = vadd.f32 %v2834, %v2835
    %v2837 = vtanh.pop %v2836
    %v2838 = vmul.f32 %v2833, %v2837
    %2839 = vmatprep.subr.mxu0 %v2255
    %2840 = vmatpush1.msra.mxu0 %v2254
    %2841 = vmatprep.subr.mxu0 %v2259
    %2842 = vmatpush1.msra.mxu0 %v2258
    %2843 = vmatprep.subr.mxu0 %v2263
    %2844 = vmatpush1.msra.mxu0 %v2262
    %2845 = vmatprep.subr.mxu0 %v2267
    %2846 = vmatpush1.msra.mxu0 %v2266
    %2847 = vmatprep.subr.mxu0 %v2271
    %2848 = vmatpush1.msra.mxu0 %v2270
    %2849 = vmatprep.subr.mxu0 %v2275
    %2850 = vmatpush1.msra.mxu0 %v2274
    %2851 = vmatprep.subr.mxu0 %v2279
    %2852 = vmatpush1.msra.mxu0 %v2278
    %2853 = vmatprep.subr.mxu0 %v2283
    %2854 = vmatpush1.msra.mxu0 %v2282
    %2855 = vmatprep.subr.mxu0 %v2287
    %2856 = vmatpush1.msra.mxu0 %v2286
    %2857 = vmatprep.subr.mxu0 %v2291
    %2858 = vmatpush1.msra.mxu0 %v2290
    %2859 = vmatprep.subr.mxu0 %v2295
    %2860 = vmatpush1.msra.mxu0 %v2294
    %2861 = vmatprep.subr.mxu0 %v2299
    %2862 = vmatpush1.msra.mxu0 %v2298
    %2863 = vmatprep.subr.mxu0 %v2303
    %2864 = vmatpush1.msra.mxu0 %v2302
    %2865 = vmatprep.subr.mxu0 %v2307
    %2866 = vmatpush1.msra.mxu0 %v2306
    %2867 = vmatprep.subr.mxu0 %v2311
    %2868 = vmatpush1.msra.mxu0 %v2310
    %2869 = vmatprep.subr.mxu0 %v2315
    %2870 = vmatpush1.msra.mxu0 %v2314
    %2871 = vmatprep.subr.mxu0 0.0
    %2872 = vmatpush1.msra.mxu0 0.0
    %2873 = vmatprep.subr.mxu0 0.0
    %2874 = vmatpush1.msra.mxu0 0.0
    %2875 = vmatprep.subr.mxu0 0.0
    %2876 = vmatpush1.msra.mxu0 0.0
    %2877 = vmatprep.subr.mxu0 0.0
    %2878 = vmatpush1.msra.mxu0 0.0
    %2879 = vmatprep.subr.mxu0 0.0
    %2880 = vmatpush1.msra.mxu0 0.0
    %2881 = vmatprep.subr.mxu0 0.0
    %2882 = vmatpush1.msra.mxu0 0.0
    %2883 = vmatprep.subr.mxu0 0.0
    %2884 = vmatpush1.msra.mxu0 0.0
    %2885 = vmatprep.subr.mxu0 0.0
    %2886 = vmatpush1.msra.mxu0 0.0
    %2887 = vmatprep.subr.mxu0 0.0
    %2888 = vmatpush1.msra.mxu0 0.0
    %2889 = vmatprep.subr.mxu0 0.0
    %2890 = vmatpush1.msra.mxu0 0.0
    %2891 = vmatprep.subr.mxu0 0.0
    %2892 = vmatpush1.msra.mxu0 0.0
    %2893 = vmatprep.subr.mxu0 0.0
    %2894 = vmatpush1.msra.mxu0 0.0
    %2895 = vmatprep.subr.mxu0 0.0
    %2896 = vmatpush1.msra.mxu0 0.0
    %2897 = vmatprep.subr.mxu0 0.0
    %2898 = vmatpush1.msra.mxu0 0.0
    %2899 = vmatprep.subr.mxu0 0.0
    %2900 = vmatpush1.msra.mxu0 0.0
    %2901 = vmatprep.subr.mxu0 0.0
    %2902 = vmatpush1.msra.mxu0 0.0
    %2903 = vmatprep.mubr.f32.mxu0 0.0
    %2904 = vmatmul.mubr.f32.gmra.mrb[0].mxu0 %v2838
    %v2905 = vpop.f32.mrb[0].mxu0
    %v2906 = vadd.f32 %v2324, %v2905
    %v2907 = vpop.f32.mrb[0].mxu0
    %v2908 = vadd.f32 %v2328, %v2907
    %2909 = vdwg.mxu0
    %2910 = vmatprep.subr.mxu0 %v2257
    %2911 = vmatpush1.msra.mxu0 %v2256
    %2912 = vmatprep.subr.mxu0 %v2261
    %2913 = vmatpush1.msra.mxu0 %v2260
    %2914 = vmatprep.subr.mxu0 %v2265
    %2915 = vmatpush1.msra.mxu0 %v2264
    %2916 = vmatprep.subr.mxu0 %v2269
    %2917 = vmatpush1.msra.mxu0 %v2268
    %2918 = vmatprep.subr.mxu0 %v2273
    %2919 = vmatpush1.msra.mxu0 %v2272
    %2920 = vmatprep.subr.mxu0 %v2277
    %2921 = vmatpush1.msra.mxu0 %v2276
    %2922 = vmatprep.subr.mxu0 %v2281
    %2923 = vmatpush1.msra.mxu0 %v2280
    %2924 = vmatprep.subr.mxu0 %v2285
    %2925 = vmatpush1.msra.mxu0 %v2284
    %2926 = vmatprep.subr.mxu0 %v2289
    %2927 = vmatpush1.msra.mxu0 %v2288
    %2928 = vmatprep.subr.mxu0 %v2293
    %2929 = vmatpush1.msra.mxu0 %v2292
    %2930 = vmatprep.subr.mxu0 %v2297
    %2931 = vmatpush1.msra.mxu0 %v2296
    %2932 = vmatprep.subr.mxu0 %v2301
    %2933 = vmatpush1.msra.mxu0 %v2300
    %2934 = vmatprep.subr.mxu0 %v2305
    %2935 = vmatpush1.msra.mxu0 %v2304
    %2936 = vmatprep.subr.mxu0 %v2309
    %2937 = vmatpush1.msra.mxu0 %v2308
    %2938 = vmatprep.subr.mxu0 %v2313
    %2939 = vmatpush1.msra.mxu0 %v2312
    %2940 = vmatprep.subr.mxu0 %v2317
    %2941 = vmatpush1.msra.mxu0 %v2316
    %2942 = vmatprep.subr.mxu0 0.0
    %2943 = vmatpush1.msra.mxu0 0.0
    %2944 = vmatprep.subr.mxu0 0.0
    %2945 = vmatpush1.msra.mxu0 0.0
    %2946 = vmatprep.subr.mxu0 0.0
    %2947 = vmatpush1.msra.mxu0 0.0
    %2948 = vmatprep.subr.mxu0 0.0
    %2949 = vmatpush1.msra.mxu0 0.0
    %2950 = vmatprep.subr.mxu0 0.0
    %2951 = vmatpush1.msra.mxu0 0.0
    %2952 = vmatprep.subr.mxu0 0.0
    %2953 = vmatpush1.msra.mxu0 0.0
    %2954 = vmatprep.subr.mxu0 0.0
    %2955 = vmatpush1.msra.mxu0 0.0
    %2956 = vmatprep.subr.mxu0 0.0
    %2957 = vmatpush1.msra.mxu0 0.0
    %2958 = vmatprep.subr.mxu0 0.0
    %2959 = vmatpush1.msra.mxu0 0.0
    %2960 = vmatprep.subr.mxu0 0.0
    %2961 = vmatpush1.msra.mxu0 0.0
    %2962 = vmatprep.subr.mxu0 0.0
    %2963 = vmatpush1.msra.mxu0 0.0
    %2964 = vmatprep.subr.mxu0 0.0
    %2965 = vmatpush1.msra.mxu0 0.0
    %2966 = vmatprep.subr.mxu0 0.0
    %2967 = vmatpush1.msra.mxu0 0.0
    %2968 = vmatprep.subr.mxu0 0.0
    %2969 = vmatpush1.msra.mxu0 0.0
    %2970 = vmatprep.subr.mxu0 0.0
    %2971 = vmatpush1.msra.mxu0 0.0
    %2972 = vmatprep.subr.mxu0 0.0
    %2973 = vmatpush1.msra.mxu0 0.0
    %2974 = vmatprep.mubr.f32.mxu0 0.0
    %2975 = vmatmul.mubr.f32.gmra.mrb[0].mxu0 %v2838
    %v2976 = vpop.f32.mrb[0].mxu0
    %v2977 = vadd.f32 %v2332, %v2976
    %v2978 = vpop.f32.mrb[0].mxu0
    %v2979 = vadd.f32 %v2336, %v2978
    %2980 = vdwg.mxu0
    %v2981 = vxor.u32 %v2906, 2147483648
    %v2982 = vmul.f32 %v2981, 1.442695
    %v2983 = vpow.pop %v2982
    %v2984 = vadd.f32 %v2983, 1.0
    %v2985 = vrcp.pop %v2984
    %v2986 = vmul.f32 1.0, %v2985
    %v2987 = vxor.u32 %v2908, 2147483648
    %v2988 = vmul.f32 %v2987, 1.442695
    %v2989 = vpow.pop %v2988
    %v2990 = vadd.f32 %v2989, 1.0
    %v2991 = vrcp.pop %v2990
    %v2992 = vmul.f32 1.0, %v2991
    %v2993 = vtanh.pop %v2977
    %v2994 = vxor.u32 %v2979, 2147483648
    %v2995 = vmul.f32 %v2994, 1.442695
    %v2996 = vpow.pop %v2995
    %v2997 = vadd.f32 %v2996, 1.0
    %v2998 = vrcp.pop %v2997
    %v2999 = vmul.f32 1.0, %v2998
    %v3000 = vmul.f32 %v2992, %v2836
    %v3001 = vmul.f32 %v2986, %v2993
    %v3002 = vadd.f32 %v3000, %v3001
    %v3003 = vtanh.pop %v3002
    %v3004 = vmul.f32 %v2999, %v3003
    %v3005 = vsub.f32 %v97, %v2506
    %v3006 = vmul.f32 %v3005, %v3005
    %3007 = vadd.xlane.f32.xlu0 %v3006
    %v3008 = vpop.xlane.xlu0 %3007
    %v3009 = vadd.f32 %v3008, 0.0
    %v3010 = vsub.f32 %v98, %v2672
    %v3011 = vmul.f32 %v3010, %v3010
    %3012 = vadd.xlane.f32.xlu0 %v3011
    %v3013 = vpop.xlane.xlu0 %3012
    %v3014 = vadd.f32 %v3009, %v3013
    %v3015 = vsub.f32 %v99, %v2838
    %v3016 = vmul.f32 %v3015, %v3015
    %3017 = vadd.xlane.f32.xlu0 %v3016
    %v3018 = vpop.xlane.xlu0 %3017
    %v3019 = vadd.f32 %v3014, %v3018
    %v3020 = vsub.f32 %v100, %v3004
    %v3021 = vmul.f32 %v3020, %v3020
    %3022 = vadd.xlane.f32.xlu0 %v3021
    %v3023 = vpop.xlane.xlu0 %3022
    %v3024 = vadd.f32 %v3019, %v3023
    %v3025 = vmul.f32 %v3024, %v96
    %v3026 = vrot.slane %v3025, 4
    %v3027 = vadd.f32 %v3025, %v3026
    %v3028 = vrot.slane %v3027, 2
    %v3029 = vadd.f32 %v3027, %v3028
    %v3030 = vrot.slane %v3029, 1
    %v3031 = vadd.f32 %v3029, %v3030
    %s3032 = scalar_lea.vmem [#allocation2], 1536
    %v3033 = vld [vmem:[%s3032] sm:$0xff]
    %v3034 = vld [vmem:[%s3032 + $0x8] sm:$0xff]
    %v3035 = vld [vmem:[%s3032 + $0x10] sm:$0xff]
    %v3036 = vld [vmem:[%s3032 + $0x18] sm:$0xff]
    %v3037 = vld [vmem:[%s3032 + $0x20] sm:$0xff]
    %v3038 = vld [vmem:[%s3032 + $0x28] sm:$0xff]
    %v3039 = vld [vmem:[%s3032 + $0x30] sm:$0xff]
    %v3040 = vld [vmem:[%s3032 + $0x38] sm:$0xff]
    %v3041 = vld [vmem:[%s3032 + $0x40] sm:$0xff]
    %v3042 = vld [vmem:[%s3032 + $0x48] sm:$0xff]
    %v3043 = vld [vmem:[%s3032 + $0x50] sm:$0xff]
    %v3044 = vld [vmem:[%s3032 + $0x58] sm:$0xff]
    %v3045 = vld [vmem:[%s3032 + $0x60] sm:$0xff]
    %v3046 = vld [vmem:[%s3032 + $0x68] sm:$0xff]
    %v3047 = vld [vmem:[%s3032 + $0x70] sm:$0xff]
    %v3048 = vld [vmem:[%s3032 + $0x78] sm:$0xff]
    %v3049 = vld [vmem:[%s3032 + $0x80] sm:$0xff]
    %v3050 = vld [vmem:[%s3032 + $0x88] sm:$0xff]
    %v3051 = vld [vmem:[%s3032 + $0x90] sm:$0xff]
    %v3052 = vld [vmem:[%s3032 + $0x98] sm:$0xff]
    %v3053 = vld [vmem:[%s3032 + $0xa0] sm:$0xff]
    %v3054 = vld [vmem:[%s3032 + $0xa8] sm:$0xff]
    %v3055 = vld [vmem:[%s3032 + $0xb0] sm:$0xff]
    %v3056 = vld [vmem:[%s3032 + $0xb8] sm:$0xff]
    %v3057 = vld [vmem:[%s3032 + $0xc0] sm:$0xff]
    %v3058 = vld [vmem:[%s3032 + $0xc8] sm:$0xff]
    %v3059 = vld [vmem:[%s3032 + $0xd0] sm:$0xff]
    %v3060 = vld [vmem:[%s3032 + $0xd8] sm:$0xff]
    %v3061 = vld [vmem:[%s3032 + $0xe0] sm:$0xff]
    %v3062 = vld [vmem:[%s3032 + $0xe8] sm:$0xff]
    %v3063 = vld [vmem:[%s3032 + $0xf0] sm:$0xff]
    %v3064 = vld [vmem:[%s3032 + $0xf8] sm:$0xff]
    %v3065 = vld [vmem:[%s3032 + $0x100] sm:$0xff]
    %v3066 = vld [vmem:[%s3032 + $0x108] sm:$0xff]
    %v3067 = vld [vmem:[%s3032 + $0x110] sm:$0xff]
    %v3068 = vld [vmem:[%s3032 + $0x118] sm:$0xff]
    %v3069 = vld [vmem:[%s3032 + $0x120] sm:$0xff]
    %v3070 = vld [vmem:[%s3032 + $0x128] sm:$0xff]
    %v3071 = vld [vmem:[%s3032 + $0x130] sm:$0xff]
    %v3072 = vld [vmem:[%s3032 + $0x138] sm:$0xff]
    %v3073 = vld [vmem:[%s3032 + $0x140] sm:$0xff]
    %v3074 = vld [vmem:[%s3032 + $0x148] sm:$0xff]
    %v3075 = vld [vmem:[%s3032 + $0x150] sm:$0xff]
    %v3076 = vld [vmem:[%s3032 + $0x158] sm:$0xff]
    %v3077 = vld [vmem:[%s3032 + $0x160] sm:$0xff]
    %v3078 = vld [vmem:[%s3032 + $0x168] sm:$0xff]
    %v3079 = vld [vmem:[%s3032 + $0x170] sm:$0xff]
    %v3080 = vld [vmem:[%s3032 + $0x178] sm:$0xff]
    %v3081 = vld [vmem:[%s3032 + $0x180] sm:$0xff]
    %v3082 = vld [vmem:[%s3032 + $0x188] sm:$0xff]
    %v3083 = vld [vmem:[%s3032 + $0x190] sm:$0xff]
    %v3084 = vld [vmem:[%s3032 + $0x198] sm:$0xff]
    %v3085 = vld [vmem:[%s3032 + $0x1a0] sm:$0xff]
    %v3086 = vld [vmem:[%s3032 + $0x1a8] sm:$0xff]
    %v3087 = vld [vmem:[%s3032 + $0x1b0] sm:$0xff]
    %v3088 = vld [vmem:[%s3032 + $0x1b8] sm:$0xff]
    %v3089 = vld [vmem:[%s3032 + $0x1c0] sm:$0xff]
    %v3090 = vld [vmem:[%s3032 + $0x1c8] sm:$0xff]
    %v3091 = vld [vmem:[%s3032 + $0x1d0] sm:$0xff]
    %v3092 = vld [vmem:[%s3032 + $0x1d8] sm:$0xff]
    %v3093 = vld [vmem:[%s3032 + $0x1e0] sm:$0xff]
    %v3094 = vld [vmem:[%s3032 + $0x1e8] sm:$0xff]
    %v3095 = vld [vmem:[%s3032 + $0x1f0] sm:$0xff]
    %v3096 = vld [vmem:[%s3032 + $0x1f8] sm:$0xff]
    %s3097 = scalar_lea.vmem [#allocation7], 12
    %v3098 = vld [vmem:[%s3097] sm:$0xf]
    %v3100 = vlaneseq
    %v3101 = vshrl.u32 %v3100, 7
    %v3102 = vsub.s32 0, %v3101
    %v3103 = vrot.slane %v3098, %v3102
    %v3104 = vlaneseq
    %v3105 = vshrl.u32 %v3104, 7
    %v3106 = vsub.s32 1, %v3105
    %v3107 = vrot.slane %v3098, %v3106
    %v3108 = vlaneseq
    %v3109 = vshrl.u32 %v3108, 7
    %v3110 = vsub.s32 2, %v3109
    %v3111 = vrot.slane %v3098, %v3110
    %v3112 = vlaneseq
    %v3113 = vshrl.u32 %v3112, 7
    %v3114 = vsub.s32 3, %v3113
    %v3115 = vrot.slane %v3098, %v3114
    %3120 = vmatprep.subr.mxu0 %v3034
    %3121 = vmatpush1.msra.mxu0 %v3033
    %3122 = vmatprep.subr.mxu0 %v3038
    %3123 = vmatpush1.msra.mxu0 %v3037
    %3124 = vmatprep.subr.mxu0 %v3042
    %3125 = vmatpush1.msra.mxu0 %v3041
    %3126 = vmatprep.subr.mxu0 %v3046
    %3127 = vmatpush1.msra.mxu0 %v3045
    %3128 = vmatprep.subr.mxu0 %v3050
    %3129 = vmatpush1.msra.mxu0 %v3049
    %3130 = vmatprep.subr.mxu0 %v3054
    %3131 = vmatpush1.msra.mxu0 %v3053
    %3132 = vmatprep.subr.mxu0 %v3058
    %3133 = vmatpush1.msra.mxu0 %v3057
    %3134 = vmatprep.subr.mxu0 %v3062
    %3135 = vmatpush1.msra.mxu0 %v3061
    %3136 = vmatprep.subr.mxu0 %v3066
    %3137 = vmatpush1.msra.mxu0 %v3065
    %3138 = vmatprep.subr.mxu0 %v3070
    %3139 = vmatpush1.msra.mxu0 %v3069
    %3140 = vmatprep.subr.mxu0 %v3074
    %3141 = vmatpush1.msra.mxu0 %v3073
    %3142 = vmatprep.subr.mxu0 %v3078
    %3143 = vmatpush1.msra.mxu0 %v3077
    %3144 = vmatprep.subr.mxu0 %v3082
    %3145 = vmatpush1.msra.mxu0 %v3081
    %3146 = vmatprep.subr.mxu0 %v3086
    %3147 = vmatpush1.msra.mxu0 %v3085
    %3148 = vmatprep.subr.mxu0 %v3090
    %3149 = vmatpush1.msra.mxu0 %v3089
    %3150 = vmatprep.subr.mxu0 %v3094
    %3151 = vmatpush1.msra.mxu0 %v3093
    %3152 = vmatprep.subr.mxu0 0.0
    %3153 = vmatpush1.msra.mxu0 0.0
    %3154 = vmatprep.subr.mxu0 0.0
    %3155 = vmatpush1.msra.mxu0 0.0
    %3156 = vmatprep.subr.mxu0 0.0
    %3157 = vmatpush1.msra.mxu0 0.0
    %3158 = vmatprep.subr.mxu0 0.0
    %3159 = vmatpush1.msra.mxu0 0.0
    %3160 = vmatprep.subr.mxu0 0.0
    %3161 = vmatpush1.msra.mxu0 0.0
    %3162 = vmatprep.subr.mxu0 0.0
    %3163 = vmatpush1.msra.mxu0 0.0
    %3164 = vmatprep.subr.mxu0 0.0
    %3165 = vmatpush1.msra.mxu0 0.0
    %3166 = vmatprep.subr.mxu0 0.0
    %3167 = vmatpush1.msra.mxu0 0.0
    %3168 = vmatprep.subr.mxu0 0.0
    %3169 = vmatpush1.msra.mxu0 0.0
    %3170 = vmatprep.subr.mxu0 0.0
    %3171 = vmatpush1.msra.mxu0 0.0
    %3172 = vmatprep.subr.mxu0 0.0
    %3173 = vmatpush1.msra.mxu0 0.0
    %3174 = vmatprep.subr.mxu0 0.0
    %3175 = vmatpush1.msra.mxu0 0.0
    %3176 = vmatprep.subr.mxu0 0.0
    %3177 = vmatpush1.msra.mxu0 0.0
    %3178 = vmatprep.subr.mxu0 0.0
    %3179 = vmatpush1.msra.mxu0 0.0
    %3180 = vmatprep.subr.mxu0 0.0
    %3181 = vmatpush1.msra.mxu0 0.0
    %3182 = vmatprep.subr.mxu0 0.0
    %3183 = vmatpush1.msra.mxu0 0.0
    %3184 = vmatprep.mubr.f32.mxu0 0.0
    %3185 = vmatmul.mubr.f32.gmra.mrb[0].mxu0 %v100
    %v3186 = vpop.f32.mrb[0].mxu0
    %v3187 = vadd.f32 %v3103, %v3186
    %v3188 = vpop.f32.mrb[0].mxu0
    %v3189 = vadd.f32 %v3107, %v3188
    %3190 = vmatprep.mubr.f32.mxu0 0.0
    %3191 = vmatmul.mubr.f32.gmra.mrb[0].mxu0 %v99
    %v3192 = vpop.f32.mrb[0].mxu0
    %v3193 = vadd.f32 %v3103, %v3192
    %v3194 = vpop.f32.mrb[0].mxu0
    %v3195 = vadd.f32 %v3107, %v3194
    %3196 = vmatprep.mubr.f32.mxu0 0.0
    %3197 = vmatmul.mubr.f32.gmra.mrb[0].mxu0 %v98
    %v3198 = vpop.f32.mrb[0].mxu0
    %v3199 = vadd.f32 %v3103, %v3198
    %v3200 = vpop.f32.mrb[0].mxu0
    %v3201 = vadd.f32 %v3107, %v3200
    %3202 = vmatprep.mubr.f32.mxu0 0.0
    %3203 = vmatmul.mubr.f32.gmra.mrb[0].mxu0 %v97
    %v3204 = vpop.f32.mrb[0].mxu0
    %v3205 = vadd.f32 %v3103, %v3204
    %v3206 = vpop.f32.mrb[0].mxu0
    %v3207 = vadd.f32 %v3107, %v3206
    %3208 = vdwg.mxu0
    %3209 = vmatprep.subr.mxu0 %v3036
    %3210 = vmatpush1.msra.mxu0 %v3035
    %3211 = vmatprep.subr.mxu0 %v3040
    %3212 = vmatpush1.msra.mxu0 %v3039
    %3213 = vmatprep.subr.mxu0 %v3044
    %3214 = vmatpush1.msra.mxu0 %v3043
    %3215 = vmatprep.subr.mxu0 %v3048
    %3216 = vmatpush1.msra.mxu0 %v3047
    %3217 = vmatprep.subr.mxu0 %v3052
    %3218 = vmatpush1.msra.mxu0 %v3051
    %3219 = vmatprep.subr.mxu0 %v3056
    %3220 = vmatpush1.msra.mxu0 %v3055
    %3221 = vmatprep.subr.mxu0 %v3060
    %3222 = vmatpush1.msra.mxu0 %v3059
    %3223 = vmatprep.subr.mxu0 %v3064
    %3224 = vmatpush1.msra.mxu0 %v3063
    %3225 = vmatprep.subr.mxu0 %v3068
    %3226 = vmatpush1.msra.mxu0 %v3067
    %3227 = vmatprep.subr.mxu0 %v3072
    %3228 = vmatpush1.msra.mxu0 %v3071
    %3229 = vmatprep.subr.mxu0 %v3076
    %3230 = vmatpush1.msra.mxu0 %v3075
    %3231 = vmatprep.subr.mxu0 %v3080
    %3232 = vmatpush1.msra.mxu0 %v3079
    %3233 = vmatprep.subr.mxu0 %v3084
    %3234 = vmatpush1.msra.mxu0 %v3083
    %3235 = vmatprep.subr.mxu0 %v3088
    %3236 = vmatpush1.msra.mxu0 %v3087
    %3237 = vmatprep.subr.mxu0 %v3092
    %3238 = vmatpush1.msra.mxu0 %v3091
    %3239 = vmatprep.subr.mxu0 %v3096
    %3240 = vmatpush1.msra.mxu0 %v3095
    %3241 = vmatprep.subr.mxu0 0.0
    %3242 = vmatpush1.msra.mxu0 0.0
    %3243 = vmatprep.subr.mxu0 0.0
    %3244 = vmatpush1.msra.mxu0 0.0
    %3245 = vmatprep.subr.mxu0 0.0
    %3246 = vmatpush1.msra.mxu0 0.0
    %3247 = vmatprep.subr.mxu0 0.0
    %3248 = vmatpush1.msra.mxu0 0.0
    %3249 = vmatprep.subr.mxu0 0.0
    %3250 = vmatpush1.msra.mxu0 0.0
    %3251 = vmatprep.subr.mxu0 0.0
    %3252 = vmatpush1.msra.mxu0 0.0
    %3253 = vmatprep.subr.mxu0 0.0
    %3254 = vmatpush1.msra.mxu0 0.0
    %3255 = vmatprep.subr.mxu0 0.0
    %3256 = vmatpush1.msra.mxu0 0.0
    %3257 = vmatprep.subr.mxu0 0.0
    %3258 = vmatpush1.msra.mxu0 0.0
    %3259 = vmatprep.subr.mxu0 0.0
    %3260 = vmatpush1.msra.mxu0 0.0
    %3261 = vmatprep.subr.mxu0 0.0
    %3262 = vmatpush1.msra.mxu0 0.0
    %3263 = vmatprep.subr.mxu0 0.0
    %3264 = vmatpush1.msra.mxu0 0.0
    %3265 = vmatprep.subr.mxu0 0.0
    %3266 = vmatpush1.msra.mxu0 0.0
    %3267 = vmatprep.subr.mxu0 0.0
    %3268 = vmatpush1.msra.mxu0 0.0
    %3269 = vmatprep.subr.mxu0 0.0
    %3270 = vmatpush1.msra.mxu0 0.0
    %3271 = vmatprep.subr.mxu0 0.0
    %3272 = vmatpush1.msra.mxu0 0.0
    %3273 = vmatprep.mubr.f32.mxu0 0.0
    %3274 = vmatmul.mubr.f32.gmra.mrb[0].mxu0 %v100
    %v3275 = vpop.f32.mrb[0].mxu0
    %v3276 = vadd.f32 %v3111, %v3275
    %v3277 = vpop.f32.mrb[0].mxu0
    %v3278 = vadd.f32 %v3115, %v3277
    %3279 = vmatprep.mubr.f32.mxu0 0.0
    %3280 = vmatmul.mubr.f32.gmra.mrb[0].mxu0 %v99
    %v3281 = vpop.f32.mrb[0].mxu0
    %v3282 = vadd.f32 %v3111, %v3281
    %v3283 = vpop.f32.mrb[0].mxu0
    %v3284 = vadd.f32 %v3115, %v3283
    %3285 = vmatprep.mubr.f32.mxu0 0.0
    %3286 = vmatmul.mubr.f32.gmra.mrb[0].mxu0 %v98
    %v3287 = vpop.f32.mrb[0].mxu0
    %v3288 = vadd.f32 %v3111, %v3287
    %v3289 = vpop.f32.mrb[0].mxu0
    %v3290 = vadd.f32 %v3115, %v3289
    %3291 = vmatprep.mubr.f32.mxu0 0.0
    %3292 = vmatmul.mubr.f32.gmra.mrb[0].mxu0 %v97
    %v3293 = vpop.f32.mrb[0].mxu0
    %v3294 = vadd.f32 %v3111, %v3293
    %v3295 = vpop.f32.mrb[0].mxu0
    %v3296 = vadd.f32 %v3115, %v3295
    %3297 = vdwg.mxu0
    %s3298 = scalar_lea.vmem [#allocation5], 1536
    %v3299 = vld [vmem:[%s3298] sm:$0xff]
    %v3300 = vld [vmem:[%s3298 + $0x8] sm:$0xff]
    %v3301 = vld [vmem:[%s3298 + $0x10] sm:$0xff]
    %v3302 = vld [vmem:[%s3298 + $0x18] sm:$0xff]
    %v3303 = vld [vmem:[%s3298 + $0x20] sm:$0xff]
    %v3304 = vld [vmem:[%s3298 + $0x28] sm:$0xff]
    %v3305 = vld [vmem:[%s3298 + $0x30] sm:$0xff]
    %v3306 = vld [vmem:[%s3298 + $0x38] sm:$0xff]
    %v3307 = vld [vmem:[%s3298 + $0x40] sm:$0xff]
    %v3308 = vld [vmem:[%s3298 + $0x48] sm:$0xff]
    %v3309 = vld [vmem:[%s3298 + $0x50] sm:$0xff]
    %v3310 = vld [vmem:[%s3298 + $0x58] sm:$0xff]
    %v3311 = vld [vmem:[%s3298 + $0x60] sm:$0xff]
    %v3312 = vld [vmem:[%s3298 + $0x68] sm:$0xff]
    %v3313 = vld [vmem:[%s3298 + $0x70] sm:$0xff]
    %v3314 = vld [vmem:[%s3298 + $0x78] sm:$0xff]
    %v3315 = vld [vmem:[%s3298 + $0x80] sm:$0xff]
    %v3316 = vld [vmem:[%s3298 + $0x88] sm:$0xff]
    %v3317 = vld [vmem:[%s3298 + $0x90] sm:$0xff]
    %v3318 = vld [vmem:[%s3298 + $0x98] sm:$0xff]
    %v3319 = vld [vmem:[%s3298 + $0xa0] sm:$0xff]
    %v3320 = vld [vmem:[%s3298 + $0xa8] sm:$0xff]
    %v3321 = vld [vmem:[%s3298 + $0xb0] sm:$0xff]
    %v3322 = vld [vmem:[%s3298 + $0xb8] sm:$0xff]
    %v3323 = vld [vmem:[%s3298 + $0xc0] sm:$0xff]
    %v3324 = vld [vmem:[%s3298 + $0xc8] sm:$0xff]
    %v3325 = vld [vmem:[%s3298 + $0xd0] sm:$0xff]
    %v3326 = vld [vmem:[%s3298 + $0xd8] sm:$0xff]
    %v3327 = vld [vmem:[%s3298 + $0xe0] sm:$0xff]
    %v3328 = vld [vmem:[%s3298 + $0xe8] sm:$0xff]
    %v3329 = vld [vmem:[%s3298 + $0xf0] sm:$0xff]
    %v3330 = vld [vmem:[%s3298 + $0xf8] sm:$0xff]
    %v3331 = vld [vmem:[%s3298 + $0x100] sm:$0xff]
    %v3332 = vld [vmem:[%s3298 + $0x108] sm:$0xff]
    %v3333 = vld [vmem:[%s3298 + $0x110] sm:$0xff]
    %v3334 = vld [vmem:[%s3298 + $0x118] sm:$0xff]
    %v3335 = vld [vmem:[%s3298 + $0x120] sm:$0xff]
    %v3336 = vld [vmem:[%s3298 + $0x128] sm:$0xff]
    %v3337 = vld [vmem:[%s3298 + $0x130] sm:$0xff]
    %v3338 = vld [vmem:[%s3298 + $0x138] sm:$0xff]
    %v3339 = vld [vmem:[%s3298 + $0x140] sm:$0xff]
    %v3340 = vld [vmem:[%s3298 + $0x148] sm:$0xff]
    %v3341 = vld [vmem:[%s3298 + $0x150] sm:$0xff]
    %v3342 = vld [vmem:[%s3298 + $0x158] sm:$0xff]
    %v3343 = vld [vmem:[%s3298 + $0x160] sm:$0xff]
    %v3344 = vld [vmem:[%s3298 + $0x168] sm:$0xff]
    %v3345 = vld [vmem:[%s3298 + $0x170] sm:$0xff]
    %v3346 = vld [vmem:[%s3298 + $0x178] sm:$0xff]
    %v3347 = vld [vmem:[%s3298 + $0x180] sm:$0xff]
    %v3348 = vld [vmem:[%s3298 + $0x188] sm:$0xff]
    %v3349 = vld [vmem:[%s3298 + $0x190] sm:$0xff]
    %v3350 = vld [vmem:[%s3298 + $0x198] sm:$0xff]
    %v3351 = vld [vmem:[%s3298 + $0x1a0] sm:$0xff]
    %v3352 = vld [vmem:[%s3298 + $0x1a8] sm:$0xff]
    %v3353 = vld [vmem:[%s3298 + $0x1b0] sm:$0xff]
    %v3354 = vld [vmem:[%s3298 + $0x1b8] sm:$0xff]
    %v3355 = vld [vmem:[%s3298 + $0x1c0] sm:$0xff]
    %v3356 = vld [vmem:[%s3298 + $0x1c8] sm:$0xff]
    %v3357 = vld [vmem:[%s3298 + $0x1d0] sm:$0xff]
    %v3358 = vld [vmem:[%s3298 + $0x1d8] sm:$0xff]
    %v3359 = vld [vmem:[%s3298 + $0x1e0] sm:$0xff]
    %v3360 = vld [vmem:[%s3298 + $0x1e8] sm:$0xff]
    %v3361 = vld [vmem:[%s3298 + $0x1f0] sm:$0xff]
    %v3362 = vld [vmem:[%s3298 + $0x1f8] sm:$0xff]
    %3363 = vmatprep.subr.mxu0 %v3300
    %3364 = vmatpush1.msra.mxu0 %v3299
    %3365 = vmatprep.subr.mxu0 %v3304
    %3366 = vmatpush1.msra.mxu0 %v3303
    %3367 = vmatprep.subr.mxu0 %v3308
    %3368 = vmatpush1.msra.mxu0 %v3307
    %3369 = vmatprep.subr.mxu0 %v3312
    %3370 = vmatpush1.msra.mxu0 %v3311
    %3371 = vmatprep.subr.mxu0 %v3316
    %3372 = vmatpush1.msra.mxu0 %v3315
    %3373 = vmatprep.subr.mxu0 %v3320
    %3374 = vmatpush1.msra.mxu0 %v3319
    %3375 = vmatprep.subr.mxu0 %v3324
    %3376 = vmatpush1.msra.mxu0 %v3323
    %3377 = vmatprep.subr.mxu0 %v3328
    %3378 = vmatpush1.msra.mxu0 %v3327
    %3379 = vmatprep.subr.mxu0 %v3332
    %3380 = vmatpush1.msra.mxu0 %v3331
    %3381 = vmatprep.subr.mxu0 %v3336
    %3382 = vmatpush1.msra.mxu0 %v3335
    %3383 = vmatprep.subr.mxu0 %v3340
    %3384 = vmatpush1.msra.mxu0 %v3339
    %3385 = vmatprep.subr.mxu0 %v3344
    %3386 = vmatpush1.msra.mxu0 %v3343
    %3387 = vmatprep.subr.mxu0 %v3348
    %3388 = vmatpush1.msra.mxu0 %v3347
    %3389 = vmatprep.subr.mxu0 %v3352
    %3390 = vmatpush1.msra.mxu0 %v3351
    %3391 = vmatprep.subr.mxu0 %v3356
    %3392 = vmatpush1.msra.mxu0 %v3355
    %3393 = vmatprep.subr.mxu0 %v3360
    %3394 = vmatpush1.msra.mxu0 %v3359
    %3395 = vmatprep.subr.mxu0 0.0
    %3396 = vmatpush1.msra.mxu0 0.0
    %3397 = vmatprep.subr.mxu0 0.0
    %3398 = vmatpush1.msra.mxu0 0.0
    %3399 = vmatprep.subr.mxu0 0.0
    %3400 = vmatpush1.msra.mxu0 0.0
    %3401 = vmatprep.subr.mxu0 0.0
    %3402 = vmatpush1.msra.mxu0 0.0
    %3403 = vmatprep.subr.mxu0 0.0
    %3404 = vmatpush1.msra.mxu0 0.0
    %3405 = vmatprep.subr.mxu0 0.0
    %3406 = vmatpush1.msra.mxu0 0.0
    %3407 = vmatprep.subr.mxu0 0.0
    %3408 = vmatpush1.msra.mxu0 0.0
    %3409 = vmatprep.subr.mxu0 0.0
    %3410 = vmatpush1.msra.mxu0 0.0
    %3411 = vmatprep.subr.mxu0 0.0
    %3412 = vmatpush1.msra.mxu0 0.0
    %3413 = vmatprep.subr.mxu0 0.0
    %3414 = vmatpush1.msra.mxu0 0.0
    %3415 = vmatprep.subr.mxu0 0.0
    %3416 = vmatpush1.msra.mxu0 0.0
    %3417 = vmatprep.subr.mxu0 0.0
    %3418 = vmatpush1.msra.mxu0 0.0
    %3419 = vmatprep.subr.mxu0 0.0
    %3420 = vmatpush1.msra.mxu0 0.0
    %3421 = vmatprep.subr.mxu0 0.0
    %3422 = vmatpush1.msra.mxu0 0.0
    %3423 = vmatprep.subr.mxu0 0.0
    %3424 = vmatpush1.msra.mxu0 0.0
    %3425 = vmatprep.subr.mxu0 0.0
    %3426 = vmatpush1.msra.mxu0 0.0
    %3427 = vmatprep.mubr.f32.mxu0 0.0
    %3428 = vmatmul.mubr.f32.gmra.mrb[0].mxu0 0.0
    %v3429 = vpop.f32.mrb[0].mxu0
    %v3430 = vadd.f32 0.0, %v3429
    %v3431 = vpop.f32.mrb[0].mxu0
    %v3432 = vadd.f32 0.0, %v3431
    %3433 = vdwg.mxu0
    %3434 = vmatprep.subr.mxu0 %v3302
    %3435 = vmatpush1.msra.mxu0 %v3301
    %3436 = vmatprep.subr.mxu0 %v3306
    %3437 = vmatpush1.msra.mxu0 %v3305
    %3438 = vmatprep.subr.mxu0 %v3310
    %3439 = vmatpush1.msra.mxu0 %v3309
    %3440 = vmatprep.subr.mxu0 %v3314
    %3441 = vmatpush1.msra.mxu0 %v3313
    %3442 = vmatprep.subr.mxu0 %v3318
    %3443 = vmatpush1.msra.mxu0 %v3317
    %3444 = vmatprep.subr.mxu0 %v3322
    %3445 = vmatpush1.msra.mxu0 %v3321
    %3446 = vmatprep.subr.mxu0 %v3326
    %3447 = vmatpush1.msra.mxu0 %v3325
    %3448 = vmatprep.subr.mxu0 %v3330
    %3449 = vmatpush1.msra.mxu0 %v3329
    %3450 = vmatprep.subr.mxu0 %v3334
    %3451 = vmatpush1.msra.mxu0 %v3333
    %3452 = vmatprep.subr.mxu0 %v3338
    %3453 = vmatpush1.msra.mxu0 %v3337
    %3454 = vmatprep.subr.mxu0 %v3342
    %3455 = vmatpush1.msra.mxu0 %v3341
    %3456 = vmatprep.subr.mxu0 %v3346
    %3457 = vmatpush1.msra.mxu0 %v3345
    %3458 = vmatprep.subr.mxu0 %v3350
    %3459 = vmatpush1.msra.mxu0 %v3349
    %3460 = vmatprep.subr.mxu0 %v3354
    %3461 = vmatpush1.msra.mxu0 %v3353
    %3462 = vmatprep.subr.mxu0 %v3358
    %3463 = vmatpush1.msra.mxu0 %v3357
    %3464 = vmatprep.subr.mxu0 %v3362
    %3465 = vmatpush1.msra.mxu0 %v3361
    %3466 = vmatprep.subr.mxu0 0.0
    %3467 = vmatpush1.msra.mxu0 0.0
    %3468 = vmatprep.subr.mxu0 0.0
    %3469 = vmatpush1.msra.mxu0 0.0
    %3470 = vmatprep.subr.mxu0 0.0
    %3471 = vmatpush1.msra.mxu0 0.0
    %3472 = vmatprep.subr.mxu0 0.0
    %3473 = vmatpush1.msra.mxu0 0.0
    %3474 = vmatprep.subr.mxu0 0.0
    %3475 = vmatpush1.msra.mxu0 0.0
    %3476 = vmatprep.subr.mxu0 0.0
    %3477 = vmatpush1.msra.mxu0 0.0
    %3478 = vmatprep.subr.mxu0 0.0
    %3479 = vmatpush1.msra.mxu0 0.0
    %3480 = vmatprep.subr.mxu0 0.0
    %3481 = vmatpush1.msra.mxu0 0.0
    %3482 = vmatprep.subr.mxu0 0.0
    %3483 = vmatpush1.msra.mxu0 0.0
    %3484 = vmatprep.subr.mxu0 0.0
    %3485 = vmatpush1.msra.mxu0 0.0
    %3486 = vmatprep.subr.mxu0 0.0
    %3487 = vmatpush1.msra.mxu0 0.0
    %3488 = vmatprep.subr.mxu0 0.0
    %3489 = vmatpush1.msra.mxu0 0.0
    %3490 = vmatprep.subr.mxu0 0.0
    %3491 = vmatpush1.msra.mxu0 0.0
    %3492 = vmatprep.subr.mxu0 0.0
    %3493 = vmatpush1.msra.mxu0 0.0
    %3494 = vmatprep.subr.mxu0 0.0
    %3495 = vmatpush1.msra.mxu0 0.0
    %3496 = vmatprep.subr.mxu0 0.0
    %3497 = vmatpush1.msra.mxu0 0.0
    %3498 = vmatprep.mubr.f32.mxu0 0.0
    %3499 = vmatmul.mubr.f32.gmra.mrb[0].mxu0 0.0
    %v3500 = vpop.f32.mrb[0].mxu0
    %v3501 = vadd.f32 0.0, %v3500
    %v3502 = vpop.f32.mrb[0].mxu0
    %v3503 = vadd.f32 0.0, %v3502
    %3504 = vdwg.mxu0
    %v3505 = vadd.f32 %v3187, %v3430
    %v3506 = vadd.f32 %v3189, %v3432
    %v3507 = vadd.f32 %v3276, %v3501
    %v3508 = vadd.f32 %v3278, %v3503
    %v3509 = vxor.u32 %v3505, 2147483648
    %v3510 = vmul.f32 %v3509, 1.442695
    %v3511 = vpow.pop %v3510
    %v3512 = vadd.f32 %v3511, 1.0
    %v3513 = vrcp.pop %v3512
    %v3514 = vmul.f32 1.0, %v3513
    %v3515 = vxor.u32 %v3506, 2147483648
    %v3516 = vmul.f32 %v3515, 1.442695
    %v3517 = vpow.pop %v3516
    %v3518 = vadd.f32 %v3517, 1.0
    %v3519 = vrcp.pop %v3518
    %v3520 = vmul.f32 1.0, %v3519
    %v3521 = vtanh.pop %v3507
    %v3522 = vxor.u32 %v3508, 2147483648
    %v3523 = vmul.f32 %v3522, 1.442695
    %v3524 = vpow.pop %v3523
    %v3525 = vadd.f32 %v3524, 1.0
    %v3526 = vrcp.pop %v3525
    %v3527 = vmul.f32 1.0, %v3526
    %v3528 = vmul.f32 %v3520, 0.0
    %v3529 = vmul.f32 %v3514, %v3521
    %v3530 = vadd.f32 %v3528, %v3529
    %v3531 = vtanh.pop %v3530
    %v3532 = vmul.f32 %v3527, %v3531
    %3533 = vmatprep.subr.mxu0 %v3300
    %3534 = vmatpush1.msra.mxu0 %v3299
    %3535 = vmatprep.subr.mxu0 %v3304
    %3536 = vmatpush1.msra.mxu0 %v3303
    %3537 = vmatprep.subr.mxu0 %v3308
    %3538 = vmatpush1.msra.mxu0 %v3307
    %3539 = vmatprep.subr.mxu0 %v3312
    %3540 = vmatpush1.msra.mxu0 %v3311
    %3541 = vmatprep.subr.mxu0 %v3316
    %3542 = vmatpush1.msra.mxu0 %v3315
    %3543 = vmatprep.subr.mxu0 %v3320
    %3544 = vmatpush1.msra.mxu0 %v3319
    %3545 = vmatprep.subr.mxu0 %v3324
    %3546 = vmatpush1.msra.mxu0 %v3323
    %3547 = vmatprep.subr.mxu0 %v3328
    %3548 = vmatpush1.msra.mxu0 %v3327
    %3549 = vmatprep.subr.mxu0 %v3332
    %3550 = vmatpush1.msra.mxu0 %v3331
    %3551 = vmatprep.subr.mxu0 %v3336
    %3552 = vmatpush1.msra.mxu0 %v3335
    %3553 = vmatprep.subr.mxu0 %v3340
    %3554 = vmatpush1.msra.mxu0 %v3339
    %3555 = vmatprep.subr.mxu0 %v3344
    %3556 = vmatpush1.msra.mxu0 %v3343
    %3557 = vmatprep.subr.mxu0 %v3348
    %3558 = vmatpush1.msra.mxu0 %v3347
    %3559 = vmatprep.subr.mxu0 %v3352
    %3560 = vmatpush1.msra.mxu0 %v3351
    %3561 = vmatprep.subr.mxu0 %v3356
    %3562 = vmatpush1.msra.mxu0 %v3355
    %3563 = vmatprep.subr.mxu0 %v3360
    %3564 = vmatpush1.msra.mxu0 %v3359
    %3565 = vmatprep.subr.mxu0 0.0
    %3566 = vmatpush1.msra.mxu0 0.0
    %3567 = vmatprep.subr.mxu0 0.0
    %3568 = vmatpush1.msra.mxu0 0.0
    %3569 = vmatprep.subr.mxu0 0.0
    %3570 = vmatpush1.msra.mxu0 0.0
    %3571 = vmatprep.subr.mxu0 0.0
    %3572 = vmatpush1.msra.mxu0 0.0
    %3573 = vmatprep.subr.mxu0 0.0
    %3574 = vmatpush1.msra.mxu0 0.0
    %3575 = vmatprep.subr.mxu0 0.0
    %3576 = vmatpush1.msra.mxu0 0.0
    %3577 = vmatprep.subr.mxu0 0.0
    %3578 = vmatpush1.msra.mxu0 0.0
    %3579 = vmatprep.subr.mxu0 0.0
    %3580 = vmatpush1.msra.mxu0 0.0
    %3581 = vmatprep.subr.mxu0 0.0
    %3582 = vmatpush1.msra.mxu0 0.0
    %3583 = vmatprep.subr.mxu0 0.0
    %3584 = vmatpush1.msra.mxu0 0.0
    %3585 = vmatprep.subr.mxu0 0.0
    %3586 = vmatpush1.msra.mxu0 0.0
    %3587 = vmatprep.subr.mxu0 0.0
    %3588 = vmatpush1.msra.mxu0 0.0
    %3589 = vmatprep.subr.mxu0 0.0
    %3590 = vmatpush1.msra.mxu0 0.0
    %3591 = vmatprep.subr.mxu0 0.0
    %3592 = vmatpush1.msra.mxu0 0.0
    %3593 = vmatprep.subr.mxu0 0.0
    %3594 = vmatpush1.msra.mxu0 0.0
    %3595 = vmatprep.subr.mxu0 0.0
    %3596 = vmatpush1.msra.mxu0 0.0
    %3597 = vmatprep.mubr.f32.mxu0 0.0
    %3598 = vmatmul.mubr.f32.gmra.mrb[0].mxu0 %v3532
    %v3599 = vpop.f32.mrb[0].mxu0
    %v3600 = vadd.f32 0.0, %v3599
    %v3601 = vpop.f32.mrb[0].mxu0
    %v3602 = vadd.f32 0.0, %v3601
    %3603 = vdwg.mxu0
    %3604 = vmatprep.subr.mxu0 %v3302
    %3605 = vmatpush1.msra.mxu0 %v3301
    %3606 = vmatprep.subr.mxu0 %v3306
    %3607 = vmatpush1.msra.mxu0 %v3305
    %3608 = vmatprep.subr.mxu0 %v3310
    %3609 = vmatpush1.msra.mxu0 %v3309
    %3610 = vmatprep.subr.mxu0 %v3314
    %3611 = vmatpush1.msra.mxu0 %v3313
    %3612 = vmatprep.subr.mxu0 %v3318
    %3613 = vmatpush1.msra.mxu0 %v3317
    %3614 = vmatprep.subr.mxu0 %v3322
    %3615 = vmatpush1.msra.mxu0 %v3321
    %3616 = vmatprep.subr.mxu0 %v3326
    %3617 = vmatpush1.msra.mxu0 %v3325
    %3618 = vmatprep.subr.mxu0 %v3330
    %3619 = vmatpush1.msra.mxu0 %v3329
    %3620 = vmatprep.subr.mxu0 %v3334
    %3621 = vmatpush1.msra.mxu0 %v3333
    %3622 = vmatprep.subr.mxu0 %v3338
    %3623 = vmatpush1.msra.mxu0 %v3337
    %3624 = vmatprep.subr.mxu0 %v3342
    %3625 = vmatpush1.msra.mxu0 %v3341
    %3626 = vmatprep.subr.mxu0 %v3346
    %3627 = vmatpush1.msra.mxu0 %v3345
    %3628 = vmatprep.subr.mxu0 %v3350
    %3629 = vmatpush1.msra.mxu0 %v3349
    %3630 = vmatprep.subr.mxu0 %v3354
    %3631 = vmatpush1.msra.mxu0 %v3353
    %3632 = vmatprep.subr.mxu0 %v3358
    %3633 = vmatpush1.msra.mxu0 %v3357
    %3634 = vmatprep.subr.mxu0 %v3362
    %3635 = vmatpush1.msra.mxu0 %v3361
    %3636 = vmatprep.subr.mxu0 0.0
    %3637 = vmatpush1.msra.mxu0 0.0
    %3638 = vmatprep.subr.mxu0 0.0
    %3639 = vmatpush1.msra.mxu0 0.0
    %3640 = vmatprep.subr.mxu0 0.0
    %3641 = vmatpush1.msra.mxu0 0.0
    %3642 = vmatprep.subr.mxu0 0.0
    %3643 = vmatpush1.msra.mxu0 0.0
    %3644 = vmatprep.subr.mxu0 0.0
    %3645 = vmatpush1.msra.mxu0 0.0
    %3646 = vmatprep.subr.mxu0 0.0
    %3647 = vmatpush1.msra.mxu0 0.0
    %3648 = vmatprep.subr.mxu0 0.0
    %3649 = vmatpush1.msra.mxu0 0.0
    %3650 = vmatprep.subr.mxu0 0.0
    %3651 = vmatpush1.msra.mxu0 0.0
    %3652 = vmatprep.subr.mxu0 0.0
    %3653 = vmatpush1.msra.mxu0 0.0
    %3654 = vmatprep.subr.mxu0 0.0
    %3655 = vmatpush1.msra.mxu0 0.0
    %3656 = vmatprep.subr.mxu0 0.0
    %3657 = vmatpush1.msra.mxu0 0.0
    %3658 = vmatprep.subr.mxu0 0.0
    %3659 = vmatpush1.msra.mxu0 0.0
    %3660 = vmatprep.subr.mxu0 0.0
    %3661 = vmatpush1.msra.mxu0 0.0
    %3662 = vmatprep.subr.mxu0 0.0
    %3663 = vmatpush1.msra.mxu0 0.0
    %3664 = vmatprep.subr.mxu0 0.0
    %3665 = vmatpush1.msra.mxu0 0.0
    %3666 = vmatprep.subr.mxu0 0.0
    %3667 = vmatpush1.msra.mxu0 0.0
    %3668 = vmatprep.mubr.f32.mxu0 0.0
    %3669 = vmatmul.mubr.f32.gmra.mrb[0].mxu0 %v3532
    %v3670 = vpop.f32.mrb[0].mxu0
    %v3671 = vadd.f32 0.0, %v3670
    %v3672 = vpop.f32.mrb[0].mxu0
    %v3673 = vadd.f32 0.0, %v3672
    %3674 = vdwg.mxu0
    %v3675 = vadd.f32 %v3193, %v3600
    %v3676 = vadd.f32 %v3195, %v3602
    %v3677 = vadd.f32 %v3282, %v3671
    %v3678 = vadd.f32 %v3284, %v3673
    %v3679 = vxor.u32 %v3675, 2147483648
    %v3680 = vmul.f32 %v3679, 1.442695
    %v3681 = vpow.pop %v3680
    %v3682 = vadd.f32 %v3681, 1.0
    %v3683 = vrcp.pop %v3682
    %v3684 = vmul.f32 1.0, %v3683
    %v3685 = vxor.u32 %v3676, 2147483648
    %v3686 = vmul.f32 %v3685, 1.442695
    %v3687 = vpow.pop %v3686
    %v3688 = vadd.f32 %v3687, 1.0
    %v3689 = vrcp.pop %v3688
    %v3690 = vmul.f32 1.0, %v3689
    %v3691 = vtanh.pop %v3677
    %v3692 = vxor.u32 %v3678, 2147483648
    %v3693 = vmul.f32 %v3692, 1.442695
    %v3694 = vpow.pop %v3693
    %v3695 = vadd.f32 %v3694, 1.0
    %v3696 = vrcp.pop %v3695
    %v3697 = vmul.f32 1.0, %v3696
    %v3698 = vmul.f32 %v3690, %v3530
    %v3699 = vmul.f32 %v3684, %v3691
    %v3700 = vadd.f32 %v3698, %v3699
    %v3701 = vtanh.pop %v3700
    %v3702 = vmul.f32 %v3697, %v3701
    %3703 = vmatprep.subr.mxu0 %v3300
    %3704 = vmatpush1.msra.mxu0 %v3299
    %3705 = vmatprep.subr.mxu0 %v3304
    %3706 = vmatpush1.msra.mxu0 %v3303
    %3707 = vmatprep.subr.mxu0 %v3308
    %3708 = vmatpush1.msra.mxu0 %v3307
    %3709 = vmatprep.subr.mxu0 %v3312
    %3710 = vmatpush1.msra.mxu0 %v3311
    %3711 = vmatprep.subr.mxu0 %v3316
    %3712 = vmatpush1.msra.mxu0 %v3315
    %3713 = vmatprep.subr.mxu0 %v3320
    %3714 = vmatpush1.msra.mxu0 %v3319
    %3715 = vmatprep.subr.mxu0 %v3324
    %3716 = vmatpush1.msra.mxu0 %v3323
    %3717 = vmatprep.subr.mxu0 %v3328
    %3718 = vmatpush1.msra.mxu0 %v3327
    %3719 = vmatprep.subr.mxu0 %v3332
    %3720 = vmatpush1.msra.mxu0 %v3331
    %3721 = vmatprep.subr.mxu0 %v3336
    %3722 = vmatpush1.msra.mxu0 %v3335
    %3723 = vmatprep.subr.mxu0 %v3340
    %3724 = vmatpush1.msra.mxu0 %v3339
    %3725 = vmatprep.subr.mxu0 %v3344
    %3726 = vmatpush1.msra.mxu0 %v3343
    %3727 = vmatprep.subr.mxu0 %v3348
    %3728 = vmatpush1.msra.mxu0 %v3347
    %3729 = vmatprep.subr.mxu0 %v3352
    %3730 = vmatpush1.msra.mxu0 %v3351
    %3731 = vmatprep.subr.mxu0 %v3356
    %3732 = vmatpush1.msra.mxu0 %v3355
    %3733 = vmatprep.subr.mxu0 %v3360
    %3734 = vmatpush1.msra.mxu0 %v3359
    %3735 = vmatprep.subr.mxu0 0.0
    %3736 = vmatpush1.msra.mxu0 0.0
    %3737 = vmatprep.subr.mxu0 0.0
    %3738 = vmatpush1.msra.mxu0 0.0
    %3739 = vmatprep.subr.mxu0 0.0
    %3740 = vmatpush1.msra.mxu0 0.0
    %3741 = vmatprep.subr.mxu0 0.0
    %3742 = vmatpush1.msra.mxu0 0.0
    %3743 = vmatprep.subr.mxu0 0.0
    %3744 = vmatpush1.msra.mxu0 0.0
    %3745 = vmatprep.subr.mxu0 0.0
    %3746 = vmatpush1.msra.mxu0 0.0
    %3747 = vmatprep.subr.mxu0 0.0
    %3748 = vmatpush1.msra.mxu0 0.0
    %3749 = vmatprep.subr.mxu0 0.0
    %3750 = vmatpush1.msra.mxu0 0.0
    %3751 = vmatprep.subr.mxu0 0.0
    %3752 = vmatpush1.msra.mxu0 0.0
    %3753 = vmatprep.subr.mxu0 0.0
    %3754 = vmatpush1.msra.mxu0 0.0
    %3755 = vmatprep.subr.mxu0 0.0
    %3756 = vmatpush1.msra.mxu0 0.0
    %3757 = vmatprep.subr.mxu0 0.0
    %3758 = vmatpush1.msra.mxu0 0.0
    %3759 = vmatprep.subr.mxu0 0.0
    %3760 = vmatpush1.msra.mxu0 0.0
    %3761 = vmatprep.subr.mxu0 0.0
    %3762 = vmatpush1.msra.mxu0 0.0
    %3763 = vmatprep.subr.mxu0 0.0
    %3764 = vmatpush1.msra.mxu0 0.0
    %3765 = vmatprep.subr.mxu0 0.0
    %3766 = vmatpush1.msra.mxu0 0.0
    %3767 = vmatprep.mubr.f32.mxu0 0.0
    %3768 = vmatmul.mubr.f32.gmra.mrb[0].mxu0 %v3702
    %v3769 = vpop.f32.mrb[0].mxu0
    %v3770 = vadd.f32 0.0, %v3769
    %v3771 = vpop.f32.mrb[0].mxu0
    %v3772 = vadd.f32 0.0, %v3771
    %3773 = vdwg.mxu0
    %3774 = vmatprep.subr.mxu0 %v3302
    %3775 = vmatpush1.msra.mxu0 %v3301
    %3776 = vmatprep.subr.mxu0 %v3306
    %3777 = vmatpush1.msra.mxu0 %v3305
    %3778 = vmatprep.subr.mxu0 %v3310
    %3779 = vmatpush1.msra.mxu0 %v3309
    %3780 = vmatprep.subr.mxu0 %v3314
    %3781 = vmatpush1.msra.mxu0 %v3313
    %3782 = vmatprep.subr.mxu0 %v3318
    %3783 = vmatpush1.msra.mxu0 %v3317
    %3784 = vmatprep.subr.mxu0 %v3322
    %3785 = vmatpush1.msra.mxu0 %v3321
    %3786 = vmatprep.subr.mxu0 %v3326
    %3787 = vmatpush1.msra.mxu0 %v3325
    %3788 = vmatprep.subr.mxu0 %v3330
    %3789 = vmatpush1.msra.mxu0 %v3329
    %3790 = vmatprep.subr.mxu0 %v3334
    %3791 = vmatpush1.msra.mxu0 %v3333
    %3792 = vmatprep.subr.mxu0 %v3338
    %3793 = vmatpush1.msra.mxu0 %v3337
    %3794 = vmatprep.subr.mxu0 %v3342
    %3795 = vmatpush1.msra.mxu0 %v3341
    %3796 = vmatprep.subr.mxu0 %v3346
    %3797 = vmatpush1.msra.mxu0 %v3345
    %3798 = vmatprep.subr.mxu0 %v3350
    %3799 = vmatpush1.msra.mxu0 %v3349
    %3800 = vmatprep.subr.mxu0 %v3354
    %3801 = vmatpush1.msra.mxu0 %v3353
    %3802 = vmatprep.subr.mxu0 %v3358
    %3803 = vmatpush1.msra.mxu0 %v3357
    %3804 = vmatprep.subr.mxu0 %v3362
    %3805 = vmatpush1.msra.mxu0 %v3361
    %3806 = vmatprep.subr.mxu0 0.0
    %3807 = vmatpush1.msra.mxu0 0.0
    %3808 = vmatprep.subr.mxu0 0.0
    %3809 = vmatpush1.msra.mxu0 0.0
    %3810 = vmatprep.subr.mxu0 0.0
    %3811 = vmatpush1.msra.mxu0 0.0
    %3812 = vmatprep.subr.mxu0 0.0
    %3813 = vmatpush1.msra.mxu0 0.0
    %3814 = vmatprep.subr.mxu0 0.0
    %3815 = vmatpush1.msra.mxu0 0.0
    %3816 = vmatprep.subr.mxu0 0.0
    %3817 = vmatpush1.msra.mxu0 0.0
    %3818 = vmatprep.subr.mxu0 0.0
    %3819 = vmatpush1.msra.mxu0 0.0
    %3820 = vmatprep.subr.mxu0 0.0
    %3821 = vmatpush1.msra.mxu0 0.0
    %3822 = vmatprep.subr.mxu0 0.0
    %3823 = vmatpush1.msra.mxu0 0.0
    %3824 = vmatprep.subr.mxu0 0.0
    %3825 = vmatpush1.msra.mxu0 0.0
    %3826 = vmatprep.subr.mxu0 0.0
    %3827 = vmatpush1.msra.mxu0 0.0
    %3828 = vmatprep.subr.mxu0 0.0
    %3829 = vmatpush1.msra.mxu0 0.0
    %3830 = vmatprep.subr.mxu0 0.0
    %3831 = vmatpush1.msra.mxu0 0.0
    %3832 = vmatprep.subr.mxu0 0.0
    %3833 = vmatpush1.msra.mxu0 0.0
    %3834 = vmatprep.subr.mxu0 0.0
    %3835 = vmatpush1.msra.mxu0 0.0
    %3836 = vmatprep.subr.mxu0 0.0
    %3837 = vmatpush1.msra.mxu0 0.0
    %3838 = vmatprep.mubr.f32.mxu0 0.0
    %3839 = vmatmul.mubr.f32.gmra.mrb[0].mxu0 %v3702
    %v3840 = vpop.f32.mrb[0].mxu0
    %v3841 = vadd.f32 0.0, %v3840
    %v3842 = vpop.f32.mrb[0].mxu0
    %v3843 = vadd.f32 0.0, %v3842
    %3844 = vdwg.mxu0
    %v3845 = vadd.f32 %v3199, %v3770
    %v3846 = vadd.f32 %v3201, %v3772
    %v3847 = vadd.f32 %v3288, %v3841
    %v3848 = vadd.f32 %v3290, %v3843
    %v3849 = vxor.u32 %v3845, 2147483648
    %v3850 = vmul.f32 %v3849, 1.442695
    %v3851 = vpow.pop %v3850
    %v3852 = vadd.f32 %v3851, 1.0
    %v3853 = vrcp.pop %v3852
    %v3854 = vmul.f32 1.0, %v3853
    %v3855 = vxor.u32 %v3846, 2147483648
    %v3856 = vmul.f32 %v3855, 1.442695
    %v3857 = vpow.pop %v3856
    %v3858 = vadd.f32 %v3857, 1.0
    %v3859 = vrcp.pop %v3858
    %v3860 = vmul.f32 1.0, %v3859
    %v3861 = vtanh.pop %v3847
    %v3862 = vxor.u32 %v3848, 2147483648
    %v3863 = vmul.f32 %v3862, 1.442695
    %v3864 = vpow.pop %v3863
    %v3865 = vadd.f32 %v3864, 1.0
    %v3866 = vrcp.pop %v3865
    %v3867 = vmul.f32 1.0, %v3866
    %v3868 = vmul.f32 %v3860, %v3700
    %v3869 = vmul.f32 %v3854, %v3861
    %v3870 = vadd.f32 %v3868, %v3869
    %v3871 = vtanh.pop %v3870
    %v3872 = vmul.f32 %v3867, %v3871
    %3873 = vmatprep.subr.mxu0 %v3300
    %3874 = vmatpush1.msra.mxu0 %v3299
    %3875 = vmatprep.subr.mxu0 %v3304
    %3876 = vmatpush1.msra.mxu0 %v3303
    %3877 = vmatprep.subr.mxu0 %v3308
    %3878 = vmatpush1.msra.mxu0 %v3307
    %3879 = vmatprep.subr.mxu0 %v3312
    %3880 = vmatpush1.msra.mxu0 %v3311
    %3881 = vmatprep.subr.mxu0 %v3316
    %3882 = vmatpush1.msra.mxu0 %v3315
    %3883 = vmatprep.subr.mxu0 %v3320
    %3884 = vmatpush1.msra.mxu0 %v3319
    %3885 = vmatprep.subr.mxu0 %v3324
    %3886 = vmatpush1.msra.mxu0 %v3323
    %3887 = vmatprep.subr.mxu0 %v3328
    %3888 = vmatpush1.msra.mxu0 %v3327
    %3889 = vmatprep.subr.mxu0 %v3332
    %3890 = vmatpush1.msra.mxu0 %v3331
    %3891 = vmatprep.subr.mxu0 %v3336
    %3892 = vmatpush1.msra.mxu0 %v3335
    %3893 = vmatprep.subr.mxu0 %v3340
    %3894 = vmatpush1.msra.mxu0 %v3339
    %3895 = vmatprep.subr.mxu0 %v3344
    %3896 = vmatpush1.msra.mxu0 %v3343
    %3897 = vmatprep.subr.mxu0 %v3348
    %3898 = vmatpush1.msra.mxu0 %v3347
    %3899 = vmatprep.subr.mxu0 %v3352
    %3900 = vmatpush1.msra.mxu0 %v3351
    %3901 = vmatprep.subr.mxu0 %v3356
    %3902 = vmatpush1.msra.mxu0 %v3355
    %3903 = vmatprep.subr.mxu0 %v3360
    %3904 = vmatpush1.msra.mxu0 %v3359
    %3905 = vmatprep.subr.mxu0 0.0
    %3906 = vmatpush1.msra.mxu0 0.0
    %3907 = vmatprep.subr.mxu0 0.0
    %3908 = vmatpush1.msra.mxu0 0.0
    %3909 = vmatprep.subr.mxu0 0.0
    %3910 = vmatpush1.msra.mxu0 0.0
    %3911 = vmatprep.subr.mxu0 0.0
    %3912 = vmatpush1.msra.mxu0 0.0
    %3913 = vmatprep.subr.mxu0 0.0
    %3914 = vmatpush1.msra.mxu0 0.0
    %3915 = vmatprep.subr.mxu0 0.0
    %3916 = vmatpush1.msra.mxu0 0.0
    %3917 = vmatprep.subr.mxu0 0.0
    %3918 = vmatpush1.msra.mxu0 0.0
    %3919 = vmatprep.subr.mxu0 0.0
    %3920 = vmatpush1.msra.mxu0 0.0
    %3921 = vmatprep.subr.mxu0 0.0
    %3922 = vmatpush1.msra.mxu0 0.0
    %3923 = vmatprep.subr.mxu0 0.0
    %3924 = vmatpush1.msra.mxu0 0.0
    %3925 = vmatprep.subr.mxu0 0.0
    %3926 = vmatpush1.msra.mxu0 0.0
    %3927 = vmatprep.subr.mxu0 0.0
    %3928 = vmatpush1.msra.mxu0 0.0
    %3929 = vmatprep.subr.mxu0 0.0
    %3930 = vmatpush1.msra.mxu0 0.0
    %3931 = vmatprep.subr.mxu0 0.0
    %3932 = vmatpush1.msra.mxu0 0.0
    %3933 = vmatprep.subr.mxu0 0.0
    %3934 = vmatpush1.msra.mxu0 0.0
    %3935 = vmatprep.subr.mxu0 0.0
    %3936 = vmatpush1.msra.mxu0 0.0
    %3937 = vmatprep.mubr.f32.mxu0 0.0
    %3938 = vmatmul.mubr.f32.gmra.mrb[0].mxu0 %v3872
    %v3939 = vpop.f32.mrb[0].mxu0
    %v3940 = vadd.f32 0.0, %v3939
    %v3941 = vpop.f32.mrb[0].mxu0
    %v3942 = vadd.f32 0.0, %v3941
    %3943 = vdwg.mxu0
    %3944 = vmatprep.subr.mxu0 %v3302
    %3945 = vmatpush1.msra.mxu0 %v3301
    %3946 = vmatprep.subr.mxu0 %v3306
    %3947 = vmatpush1.msra.mxu0 %v3305
    %3948 = vmatprep.subr.mxu0 %v3310
    %3949 = vmatpush1.msra.mxu0 %v3309
    %3950 = vmatprep.subr.mxu0 %v3314
    %3951 = vmatpush1.msra.mxu0 %v3313
    %3952 = vmatprep.subr.mxu0 %v3318
    %3953 = vmatpush1.msra.mxu0 %v3317
    %3954 = vmatprep.subr.mxu0 %v3322
    %3955 = vmatpush1.msra.mxu0 %v3321
    %3956 = vmatprep.subr.mxu0 %v3326
    %3957 = vmatpush1.msra.mxu0 %v3325
    %3958 = vmatprep.subr.mxu0 %v3330
    %3959 = vmatpush1.msra.mxu0 %v3329
    %3960 = vmatprep.subr.mxu0 %v3334
    %3961 = vmatpush1.msra.mxu0 %v3333
    %3962 = vmatprep.subr.mxu0 %v3338
    %3963 = vmatpush1.msra.mxu0 %v3337
    %3964 = vmatprep.subr.mxu0 %v3342
    %3965 = vmatpush1.msra.mxu0 %v3341
    %3966 = vmatprep.subr.mxu0 %v3346
    %3967 = vmatpush1.msra.mxu0 %v3345
    %3968 = vmatprep.subr.mxu0 %v3350
    %3969 = vmatpush1.msra.mxu0 %v3349
    %3970 = vmatprep.subr.mxu0 %v3354
    %3971 = vmatpush1.msra.mxu0 %v3353
    %3972 = vmatprep.subr.mxu0 %v3358
    %3973 = vmatpush1.msra.mxu0 %v3357
    %3974 = vmatprep.subr.mxu0 %v3362
    %3975 = vmatpush1.msra.mxu0 %v3361
    %3976 = vmatprep.subr.mxu0 0.0
    %3977 = vmatpush1.msra.mxu0 0.0
    %3978 = vmatprep.subr.mxu0 0.0
    %3979 = vmatpush1.msra.mxu0 0.0
    %3980 = vmatprep.subr.mxu0 0.0
    %3981 = vmatpush1.msra.mxu0 0.0
    %3982 = vmatprep.subr.mxu0 0.0
    %3983 = vmatpush1.msra.mxu0 0.0
    %3984 = vmatprep.subr.mxu0 0.0
    %3985 = vmatpush1.msra.mxu0 0.0
    %3986 = vmatprep.subr.mxu0 0.0
    %3987 = vmatpush1.msra.mxu0 0.0
    %3988 = vmatprep.subr.mxu0 0.0
    %3989 = vmatpush1.msra.mxu0 0.0
    %3990 = vmatprep.subr.mxu0 0.0
    %3991 = vmatpush1.msra.mxu0 0.0
    %3992 = vmatprep.subr.mxu0 0.0
    %3993 = vmatpush1.msra.mxu0 0.0
    %3994 = vmatprep.subr.mxu0 0.0
    %3995 = vmatpush1.msra.mxu0 0.0
    %3996 = vmatprep.subr.mxu0 0.0
    %3997 = vmatpush1.msra.mxu0 0.0
    %3998 = vmatprep.subr.mxu0 0.0
    %3999 = vmatpush1.msra.mxu0 0.0
    %4000 = vmatprep.subr.mxu0 0.0
    %4001 = vmatpush1.msra.mxu0 0.0
    %4002 = vmatprep.subr.mxu0 0.0
    %4003 = vmatpush1.msra.mxu0 0.0
    %4004 = vmatprep.subr.mxu0 0.0
    %4005 = vmatpush1.msra.mxu0 0.0
    %4006 = vmatprep.subr.mxu0 0.0
    %4007 = vmatpush1.msra.mxu0 0.0
    %4008 = vmatprep.mubr.f32.mxu0 0.0
    %4009 = vmatmul.mubr.f32.gmra.mrb[0].mxu0 %v3872
    %v4010 = vpop.f32.mrb[0].mxu0
    %v4011 = vadd.f32 0.0, %v4010
    %v4012 = vpop.f32.mrb[0].mxu0
    %v4013 = vadd.f32 0.0, %v4012
    %4014 = vdwg.mxu0
    %v4015 = vadd.f32 %v3205, %v3940
    %v4016 = vadd.f32 %v3207, %v3942
    %v4017 = vadd.f32 %v3294, %v4011
    %v4018 = vadd.f32 %v3296, %v4013
    %v4019 = vxor.u32 %v4015, 2147483648
    %v4020 = vmul.f32 %v4019, 1.442695
    %v4021 = vpow.pop %v4020
    %v4022 = vadd.f32 %v4021, 1.0
    %v4023 = vrcp.pop %v4022
    %v4024 = vmul.f32 1.0, %v4023
    %v4025 = vxor.u32 %v4016, 2147483648
    %v4026 = vmul.f32 %v4025, 1.442695
    %v4027 = vpow.pop %v4026
    %v4028 = vadd.f32 %v4027, 1.0
    %v4029 = vrcp.pop %v4028
    %v4030 = vmul.f32 1.0, %v4029
    %v4031 = vtanh.pop %v4017
    %v4032 = vxor.u32 %v4018, 2147483648
    %v4033 = vmul.f32 %v4032, 1.442695
    %v4034 = vpow.pop %v4033
    %v4035 = vadd.f32 %v4034, 1.0
    %v4036 = vrcp.pop %v4035
    %v4037 = vmul.f32 1.0, %v4036
    %v4038 = vmul.f32 %v4030, %v3870
    %v4039 = vmul.f32 %v4024, %v4031
    %v4040 = vadd.f32 %v4038, %v4039
    %v4041 = vtanh.pop %v4040
    %v4042 = vmul.f32 %v4037, %v4041
    %v4043 = vadd.f32 %v3532, %v100
    %v4044 = vadd.f32 %v3702, %v99
    %v4045 = vadd.f32 %v3872, %v98
    %v4046 = vadd.f32 %v4042, %v97
    %s4047 = scalar_lea.vmem [#allocation2], 2048
    %v4048 = vld [vmem:[%s4047] sm:$0xff]
    %v4049 = vld [vmem:[%s4047 + $0x8] sm:$0xff]
    %v4050 = vld [vmem:[%s4047 + $0x10] sm:$0xff]
    %v4051 = vld [vmem:[%s4047 + $0x18] sm:$0xff]
    %v4052 = vld [vmem:[%s4047 + $0x20] sm:$0xff]
    %v4053 = vld [vmem:[%s4047 + $0x28] sm:$0xff]
    %v4054 = vld [vmem:[%s4047 + $0x30] sm:$0xff]
    %v4055 = vld [vmem:[%s4047 + $0x38] sm:$0xff]
    %v4056 = vld [vmem:[%s4047 + $0x40] sm:$0xff]
    %v4057 = vld [vmem:[%s4047 + $0x48] sm:$0xff]
    %v4058 = vld [vmem:[%s4047 + $0x50] sm:$0xff]
    %v4059 = vld [vmem:[%s4047 + $0x58] sm:$0xff]
    %v4060 = vld [vmem:[%s4047 + $0x60] sm:$0xff]
    %v4061 = vld [vmem:[%s4047 + $0x68] sm:$0xff]
    %v4062 = vld [vmem:[%s4047 + $0x70] sm:$0xff]
    %v4063 = vld [vmem:[%s4047 + $0x78] sm:$0xff]
    %v4064 = vld [vmem:[%s4047 + $0x80] sm:$0xff]
    %v4065 = vld [vmem:[%s4047 + $0x88] sm:$0xff]
    %v4066 = vld [vmem:[%s4047 + $0x90] sm:$0xff]
    %v4067 = vld [vmem:[%s4047 + $0x98] sm:$0xff]
    %v4068 = vld [vmem:[%s4047 + $0xa0] sm:$0xff]
    %v4069 = vld [vmem:[%s4047 + $0xa8] sm:$0xff]
    %v4070 = vld [vmem:[%s4047 + $0xb0] sm:$0xff]
    %v4071 = vld [vmem:[%s4047 + $0xb8] sm:$0xff]
    %v4072 = vld [vmem:[%s4047 + $0xc0] sm:$0xff]
    %v4073 = vld [vmem:[%s4047 + $0xc8] sm:$0xff]
    %v4074 = vld [vmem:[%s4047 + $0xd0] sm:$0xff]
    %v4075 = vld [vmem:[%s4047 + $0xd8] sm:$0xff]
    %v4076 = vld [vmem:[%s4047 + $0xe0] sm:$0xff]
    %v4077 = vld [vmem:[%s4047 + $0xe8] sm:$0xff]
    %v4078 = vld [vmem:[%s4047 + $0xf0] sm:$0xff]
    %v4079 = vld [vmem:[%s4047 + $0xf8] sm:$0xff]
    %v4080 = vld [vmem:[%s4047 + $0x100] sm:$0xff]
    %v4081 = vld [vmem:[%s4047 + $0x108] sm:$0xff]
    %v4082 = vld [vmem:[%s4047 + $0x110] sm:$0xff]
    %v4083 = vld [vmem:[%s4047 + $0x118] sm:$0xff]
    %v4084 = vld [vmem:[%s4047 + $0x120] sm:$0xff]
    %v4085 = vld [vmem:[%s4047 + $0x128] sm:$0xff]
    %v4086 = vld [vmem:[%s4047 + $0x130] sm:$0xff]
    %v4087 = vld [vmem:[%s4047 + $0x138] sm:$0xff]
    %v4088 = vld [vmem:[%s4047 + $0x140] sm:$0xff]
    %v4089 = vld [vmem:[%s4047 + $0x148] sm:$0xff]
    %v4090 = vld [vmem:[%s4047 + $0x150] sm:$0xff]
    %v4091 = vld [vmem:[%s4047 + $0x158] sm:$0xff]
    %v4092 = vld [vmem:[%s4047 + $0x160] sm:$0xff]
    %v4093 = vld [vmem:[%s4047 + $0x168] sm:$0xff]
    %v4094 = vld [vmem:[%s4047 + $0x170] sm:$0xff]
    %v4095 = vld [vmem:[%s4047 + $0x178] sm:$0xff]
    %v4096 = vld [vmem:[%s4047 + $0x180] sm:$0xff]
    %v4097 = vld [vmem:[%s4047 + $0x188] sm:$0xff]
    %v4098 = vld [vmem:[%s4047 + $0x190] sm:$0xff]
    %v4099 = vld [vmem:[%s4047 + $0x198] sm:$0xff]
    %v4100 = vld [vmem:[%s4047 + $0x1a0] sm:$0xff]
    %v4101 = vld [vmem:[%s4047 + $0x1a8] sm:$0xff]
    %v4102 = vld [vmem:[%s4047 + $0x1b0] sm:$0xff]
    %v4103 = vld [vmem:[%s4047 + $0x1b8] sm:$0xff]
    %v4104 = vld [vmem:[%s4047 + $0x1c0] sm:$0xff]
    %v4105 = vld [vmem:[%s4047 + $0x1c8] sm:$0xff]
    %v4106 = vld [vmem:[%s4047 + $0x1d0] sm:$0xff]
    %v4107 = vld [vmem:[%s4047 + $0x1d8] sm:$0xff]
    %v4108 = vld [vmem:[%s4047 + $0x1e0] sm:$0xff]
    %v4109 = vld [vmem:[%s4047 + $0x1e8] sm:$0xff]
    %v4110 = vld [vmem:[%s4047 + $0x1f0] sm:$0xff]
    %v4111 = vld [vmem:[%s4047 + $0x1f8] sm:$0xff]
    %s4112 = scalar_lea.vmem [#allocation7], 16
    %v4113 = vld [vmem:[%s4112] sm:$0xf]
    %v4115 = vlaneseq
    %v4116 = vshrl.u32 %v4115, 7
    %v4117 = vsub.s32 0, %v4116
    %v4118 = vrot.slane %v4113, %v4117
    %v4119 = vlaneseq
    %v4120 = vshrl.u32 %v4119, 7
    %v4121 = vsub.s32 1, %v4120
    %v4122 = vrot.slane %v4113, %v4121
    %v4123 = vlaneseq
    %v4124 = vshrl.u32 %v4123, 7
    %v4125 = vsub.s32 2, %v4124
    %v4126 = vrot.slane %v4113, %v4125
    %v4127 = vlaneseq
    %v4128 = vshrl.u32 %v4127, 7
    %v4129 = vsub.s32 3, %v4128
    %v4130 = vrot.slane %v4113, %v4129
    %4135 = vmatprep.subr.mxu0 %v4049
    %4136 = vmatpush1.msra.mxu0 %v4048
    %4137 = vmatprep.subr.mxu0 %v4053
    %4138 = vmatpush1.msra.mxu0 %v4052
    %4139 = vmatprep.subr.mxu0 %v4057
    %4140 = vmatpush1.msra.mxu0 %v4056
    %4141 = vmatprep.subr.mxu0 %v4061
    %4142 = vmatpush1.msra.mxu0 %v4060
    %4143 = vmatprep.subr.mxu0 %v4065
    %4144 = vmatpush1.msra.mxu0 %v4064
    %4145 = vmatprep.subr.mxu0 %v4069
    %4146 = vmatpush1.msra.mxu0 %v4068
    %4147 = vmatprep.subr.mxu0 %v4073
    %4148 = vmatpush1.msra.mxu0 %v4072
    %4149 = vmatprep.subr.mxu0 %v4077
    %4150 = vmatpush1.msra.mxu0 %v4076
    %4151 = vmatprep.subr.mxu0 %v4081
    %4152 = vmatpush1.msra.mxu0 %v4080
    %4153 = vmatprep.subr.mxu0 %v4085
    %4154 = vmatpush1.msra.mxu0 %v4084
    %4155 = vmatprep.subr.mxu0 %v4089
    %4156 = vmatpush1.msra.mxu0 %v4088
    %4157 = vmatprep.subr.mxu0 %v4093
    %4158 = vmatpush1.msra.mxu0 %v4092
    %4159 = vmatprep.subr.mxu0 %v4097
    %4160 = vmatpush1.msra.mxu0 %v4096
    %4161 = vmatprep.subr.mxu0 %v4101
    %4162 = vmatpush1.msra.mxu0 %v4100
    %4163 = vmatprep.subr.mxu0 %v4105
    %4164 = vmatpush1.msra.mxu0 %v4104
    %4165 = vmatprep.subr.mxu0 %v4109
    %4166 = vmatpush1.msra.mxu0 %v4108
    %4167 = vmatprep.subr.mxu0 0.0
    %4168 = vmatpush1.msra.mxu0 0.0
    %4169 = vmatprep.subr.mxu0 0.0
    %4170 = vmatpush1.msra.mxu0 0.0
    %4171 = vmatprep.subr.mxu0 0.0
    %4172 = vmatpush1.msra.mxu0 0.0
    %4173 = vmatprep.subr.mxu0 0.0
    %4174 = vmatpush1.msra.mxu0 0.0
    %4175 = vmatprep.subr.mxu0 0.0
    %4176 = vmatpush1.msra.mxu0 0.0
    %4177 = vmatprep.subr.mxu0 0.0
    %4178 = vmatpush1.msra.mxu0 0.0
    %4179 = vmatprep.subr.mxu0 0.0
    %4180 = vmatpush1.msra.mxu0 0.0
    %4181 = vmatprep.subr.mxu0 0.0
    %4182 = vmatpush1.msra.mxu0 0.0
    %4183 = vmatprep.subr.mxu0 0.0
    %4184 = vmatpush1.msra.mxu0 0.0
    %4185 = vmatprep.subr.mxu0 0.0
    %4186 = vmatpush1.msra.mxu0 0.0
    %4187 = vmatprep.subr.mxu0 0.0
    %4188 = vmatpush1.msra.mxu0 0.0
    %4189 = vmatprep.subr.mxu0 0.0
    %4190 = vmatpush1.msra.mxu0 0.0
    %4191 = vmatprep.subr.mxu0 0.0
    %4192 = vmatpush1.msra.mxu0 0.0
    %4193 = vmatprep.subr.mxu0 0.0
    %4194 = vmatpush1.msra.mxu0 0.0
    %4195 = vmatprep.subr.mxu0 0.0
    %4196 = vmatpush1.msra.mxu0 0.0
    %4197 = vmatprep.subr.mxu0 0.0
    %4198 = vmatpush1.msra.mxu0 0.0
    %4199 = vmatprep.mubr.f32.mxu0 0.0
    %4200 = vmatmul.mubr.f32.gmra.mrb[0].mxu0 %v4043
    %v4201 = vpop.f32.mrb[0].mxu0
    %v4202 = vadd.f32 %v4118, %v4201
    %v4203 = vpop.f32.mrb[0].mxu0
    %v4204 = vadd.f32 %v4122, %v4203
    %4205 = vmatprep.mubr.f32.mxu0 0.0
    %4206 = vmatmul.mubr.f32.gmra.mrb[0].mxu0 %v4044
    %v4207 = vpop.f32.mrb[0].mxu0
    %v4208 = vadd.f32 %v4118, %v4207
    %v4209 = vpop.f32.mrb[0].mxu0
    %v4210 = vadd.f32 %v4122, %v4209
    %4211 = vmatprep.mubr.f32.mxu0 0.0
    %4212 = vmatmul.mubr.f32.gmra.mrb[0].mxu0 %v4045
    %v4213 = vpop.f32.mrb[0].mxu0
    %v4214 = vadd.f32 %v4118, %v4213
    %v4215 = vpop.f32.mrb[0].mxu0
    %v4216 = vadd.f32 %v4122, %v4215
    %4217 = vmatprep.mubr.f32.mxu0 0.0
    %4218 = vmatmul.mubr.f32.gmra.mrb[0].mxu0 %v4046
    %v4219 = vpop.f32.mrb[0].mxu0
    %v4220 = vadd.f32 %v4118, %v4219
    %v4221 = vpop.f32.mrb[0].mxu0
    %v4222 = vadd.f32 %v4122, %v4221
    %4223 = vdwg.mxu0
    %4224 = vmatprep.subr.mxu0 %v4051
    %4225 = vmatpush1.msra.mxu0 %v4050
    %4226 = vmatprep.subr.mxu0 %v4055
    %4227 = vmatpush1.msra.mxu0 %v4054
    %4228 = vmatprep.subr.mxu0 %v4059
    %4229 = vmatpush1.msra.mxu0 %v4058
    %4230 = vmatprep.subr.mxu0 %v4063
    %4231 = vmatpush1.msra.mxu0 %v4062
    %4232 = vmatprep.subr.mxu0 %v4067
    %4233 = vmatpush1.msra.mxu0 %v4066
    %4234 = vmatprep.subr.mxu0 %v4071
    %4235 = vmatpush1.msra.mxu0 %v4070
    %4236 = vmatprep.subr.mxu0 %v4075
    %4237 = vmatpush1.msra.mxu0 %v4074
    %4238 = vmatprep.subr.mxu0 %v4079
    %4239 = vmatpush1.msra.mxu0 %v4078
    %4240 = vmatprep.subr.mxu0 %v4083
    %4241 = vmatpush1.msra.mxu0 %v4082
    %4242 = vmatprep.subr.mxu0 %v4087
    %4243 = vmatpush1.msra.mxu0 %v4086
    %4244 = vmatprep.subr.mxu0 %v4091
    %4245 = vmatpush1.msra.mxu0 %v4090
    %4246 = vmatprep.subr.mxu0 %v4095
    %4247 = vmatpush1.msra.mxu0 %v4094
    %4248 = vmatprep.subr.mxu0 %v4099
    %4249 = vmatpush1.msra.mxu0 %v4098
    %4250 = vmatprep.subr.mxu0 %v4103
    %4251 = vmatpush1.msra.mxu0 %v4102
    %4252 = vmatprep.subr.mxu0 %v4107
    %4253 = vmatpush1.msra.mxu0 %v4106
    %4254 = vmatprep.subr.mxu0 %v4111
    %4255 = vmatpush1.msra.mxu0 %v4110
    %4256 = vmatprep.subr.mxu0 0.0
    %4257 = vmatpush1.msra.mxu0 0.0
    %4258 = vmatprep.subr.mxu0 0.0
    %4259 = vmatpush1.msra.mxu0 0.0
    %4260 = vmatprep.subr.mxu0 0.0
    %4261 = vmatpush1.msra.mxu0 0.0
    %4262 = vmatprep.subr.mxu0 0.0
    %4263 = vmatpush1.msra.mxu0 0.0
    %4264 = vmatprep.subr.mxu0 0.0
    %4265 = vmatpush1.msra.mxu0 0.0
    %4266 = vmatprep.subr.mxu0 0.0
    %4267 = vmatpush1.msra.mxu0 0.0
    %4268 = vmatprep.subr.mxu0 0.0
    %4269 = vmatpush1.msra.mxu0 0.0
    %4270 = vmatprep.subr.mxu0 0.0
    %4271 = vmatpush1.msra.mxu0 0.0
    %4272 = vmatprep.subr.mxu0 0.0
    %4273 = vmatpush1.msra.mxu0 0.0
    %4274 = vmatprep.subr.mxu0 0.0
    %4275 = vmatpush1.msra.mxu0 0.0
    %4276 = vmatprep.subr.mxu0 0.0
    %4277 = vmatpush1.msra.mxu0 0.0
    %4278 = vmatprep.subr.mxu0 0.0
    %4279 = vmatpush1.msra.mxu0 0.0
    %4280 = vmatprep.subr.mxu0 0.0
    %4281 = vmatpush1.msra.mxu0 0.0
    %4282 = vmatprep.subr.mxu0 0.0
    %4283 = vmatpush1.msra.mxu0 0.0
    %4284 = vmatprep.subr.mxu0 0.0
    %4285 = vmatpush1.msra.mxu0 0.0
    %4286 = vmatprep.subr.mxu0 0.0
    %4287 = vmatpush1.msra.mxu0 0.0
    %4288 = vmatprep.mubr.f32.mxu0 0.0
    %4289 = vmatmul.mubr.f32.gmra.mrb[0].mxu0 %v4043
    %v4290 = vpop.f32.mrb[0].mxu0
    %v4291 = vadd.f32 %v4126, %v4290
    %v4292 = vpop.f32.mrb[0].mxu0
    %v4293 = vadd.f32 %v4130, %v4292
    %4294 = vmatprep.mubr.f32.mxu0 0.0
    %4295 = vmatmul.mubr.f32.gmra.mrb[0].mxu0 %v4044
    %v4296 = vpop.f32.mrb[0].mxu0
    %v4297 = vadd.f32 %v4126, %v4296
    %v4298 = vpop.f32.mrb[0].mxu0
    %v4299 = vadd.f32 %v4130, %v4298
    %4300 = vmatprep.mubr.f32.mxu0 0.0
    %4301 = vmatmul.mubr.f32.gmra.mrb[0].mxu0 %v4045
    %v4302 = vpop.f32.mrb[0].mxu0
    %v4303 = vadd.f32 %v4126, %v4302
    %v4304 = vpop.f32.mrb[0].mxu0
    %v4305 = vadd.f32 %v4130, %v4304
    %4306 = vmatprep.mubr.f32.mxu0 0.0
    %4307 = vmatmul.mubr.f32.gmra.mrb[0].mxu0 %v4046
    %v4308 = vpop.f32.mrb[0].mxu0
    %v4309 = vadd.f32 %v4126, %v4308
    %v4310 = vpop.f32.mrb[0].mxu0
    %v4311 = vadd.f32 %v4130, %v4310
    %4312 = vdwg.mxu0
    %s4313 = scalar_lea.vmem [#allocation5], 2048
    %v4314 = vld [vmem:[%s4313] sm:$0xff]
    %v4315 = vld [vmem:[%s4313 + $0x8] sm:$0xff]
    %v4316 = vld [vmem:[%s4313 + $0x10] sm:$0xff]
    %v4317 = vld [vmem:[%s4313 + $0x18] sm:$0xff]
    %v4318 = vld [vmem:[%s4313 + $0x20] sm:$0xff]
    %v4319 = vld [vmem:[%s4313 + $0x28] sm:$0xff]
    %v4320 = vld [vmem:[%s4313 + $0x30] sm:$0xff]
    %v4321 = vld [vmem:[%s4313 + $0x38] sm:$0xff]
    %v4322 = vld [vmem:[%s4313 + $0x40] sm:$0xff]
    %v4323 = vld [vmem:[%s4313 + $0x48] sm:$0xff]
    %v4324 = vld [vmem:[%s4313 + $0x50] sm:$0xff]
    %v4325 = vld [vmem:[%s4313 + $0x58] sm:$0xff]
    %v4326 = vld [vmem:[%s4313 + $0x60] sm:$0xff]
    %v4327 = vld [vmem:[%s4313 + $0x68] sm:$0xff]
    %v4328 = vld [vmem:[%s4313 + $0x70] sm:$0xff]
    %v4329 = vld [vmem:[%s4313 + $0x78] sm:$0xff]
    %v4330 = vld [vmem:[%s4313 + $0x80] sm:$0xff]
    %v4331 = vld [vmem:[%s4313 + $0x88] sm:$0xff]
    %v4332 = vld [vmem:[%s4313 + $0x90] sm:$0xff]
    %v4333 = vld [vmem:[%s4313 + $0x98] sm:$0xff]
    %v4334 = vld [vmem:[%s4313 + $0xa0] sm:$0xff]
    %v4335 = vld [vmem:[%s4313 + $0xa8] sm:$0xff]
    %v4336 = vld [vmem:[%s4313 + $0xb0] sm:$0xff]
    %v4337 = vld [vmem:[%s4313 + $0xb8] sm:$0xff]
    %v4338 = vld [vmem:[%s4313 + $0xc0] sm:$0xff]
    %v4339 = vld [vmem:[%s4313 + $0xc8] sm:$0xff]
    %v4340 = vld [vmem:[%s4313 + $0xd0] sm:$0xff]
    %v4341 = vld [vmem:[%s4313 + $0xd8] sm:$0xff]
    %v4342 = vld [vmem:[%s4313 + $0xe0] sm:$0xff]
    %v4343 = vld [vmem:[%s4313 + $0xe8] sm:$0xff]
    %v4344 = vld [vmem:[%s4313 + $0xf0] sm:$0xff]
    %v4345 = vld [vmem:[%s4313 + $0xf8] sm:$0xff]
    %v4346 = vld [vmem:[%s4313 + $0x100] sm:$0xff]
    %v4347 = vld [vmem:[%s4313 + $0x108] sm:$0xff]
    %v4348 = vld [vmem:[%s4313 + $0x110] sm:$0xff]
    %v4349 = vld [vmem:[%s4313 + $0x118] sm:$0xff]
    %v4350 = vld [vmem:[%s4313 + $0x120] sm:$0xff]
    %v4351 = vld [vmem:[%s4313 + $0x128] sm:$0xff]
    %v4352 = vld [vmem:[%s4313 + $0x130] sm:$0xff]
    %v4353 = vld [vmem:[%s4313 + $0x138] sm:$0xff]
    %v4354 = vld [vmem:[%s4313 + $0x140] sm:$0xff]
    %v4355 = vld [vmem:[%s4313 + $0x148] sm:$0xff]
    %v4356 = vld [vmem:[%s4313 + $0x150] sm:$0xff]
    %v4357 = vld [vmem:[%s4313 + $0x158] sm:$0xff]
    %v4358 = vld [vmem:[%s4313 + $0x160] sm:$0xff]
    %v4359 = vld [vmem:[%s4313 + $0x168] sm:$0xff]
    %v4360 = vld [vmem:[%s4313 + $0x170] sm:$0xff]
    %v4361 = vld [vmem:[%s4313 + $0x178] sm:$0xff]
    %v4362 = vld [vmem:[%s4313 + $0x180] sm:$0xff]
    %v4363 = vld [vmem:[%s4313 + $0x188] sm:$0xff]
    %v4364 = vld [vmem:[%s4313 + $0x190] sm:$0xff]
    %v4365 = vld [vmem:[%s4313 + $0x198] sm:$0xff]
    %v4366 = vld [vmem:[%s4313 + $0x1a0] sm:$0xff]
    %v4367 = vld [vmem:[%s4313 + $0x1a8] sm:$0xff]
    %v4368 = vld [vmem:[%s4313 + $0x1b0] sm:$0xff]
    %v4369 = vld [vmem:[%s4313 + $0x1b8] sm:$0xff]
    %v4370 = vld [vmem:[%s4313 + $0x1c0] sm:$0xff]
    %v4371 = vld [vmem:[%s4313 + $0x1c8] sm:$0xff]
    %v4372 = vld [vmem:[%s4313 + $0x1d0] sm:$0xff]
    %v4373 = vld [vmem:[%s4313 + $0x1d8] sm:$0xff]
    %v4374 = vld [vmem:[%s4313 + $0x1e0] sm:$0xff]
    %v4375 = vld [vmem:[%s4313 + $0x1e8] sm:$0xff]
    %v4376 = vld [vmem:[%s4313 + $0x1f0] sm:$0xff]
    %v4377 = vld [vmem:[%s4313 + $0x1f8] sm:$0xff]
    %4378 = vmatprep.subr.mxu0 %v4315
    %4379 = vmatpush1.msra.mxu0 %v4314
    %4380 = vmatprep.subr.mxu0 %v4319
    %4381 = vmatpush1.msra.mxu0 %v4318
    %4382 = vmatprep.subr.mxu0 %v4323
    %4383 = vmatpush1.msra.mxu0 %v4322
    %4384 = vmatprep.subr.mxu0 %v4327
    %4385 = vmatpush1.msra.mxu0 %v4326
    %4386 = vmatprep.subr.mxu0 %v4331
    %4387 = vmatpush1.msra.mxu0 %v4330
    %4388 = vmatprep.subr.mxu0 %v4335
    %4389 = vmatpush1.msra.mxu0 %v4334
    %4390 = vmatprep.subr.mxu0 %v4339
    %4391 = vmatpush1.msra.mxu0 %v4338
    %4392 = vmatprep.subr.mxu0 %v4343
    %4393 = vmatpush1.msra.mxu0 %v4342
    %4394 = vmatprep.subr.mxu0 %v4347
    %4395 = vmatpush1.msra.mxu0 %v4346
    %4396 = vmatprep.subr.mxu0 %v4351
    %4397 = vmatpush1.msra.mxu0 %v4350
    %4398 = vmatprep.subr.mxu0 %v4355
    %4399 = vmatpush1.msra.mxu0 %v4354
    %4400 = vmatprep.subr.mxu0 %v4359
    %4401 = vmatpush1.msra.mxu0 %v4358
    %4402 = vmatprep.subr.mxu0 %v4363
    %4403 = vmatpush1.msra.mxu0 %v4362
    %4404 = vmatprep.subr.mxu0 %v4367
    %4405 = vmatpush1.msra.mxu0 %v4366
    %4406 = vmatprep.subr.mxu0 %v4371
    %4407 = vmatpush1.msra.mxu0 %v4370
    %4408 = vmatprep.subr.mxu0 %v4375
    %4409 = vmatpush1.msra.mxu0 %v4374
    %4410 = vmatprep.subr.mxu0 0.0
    %4411 = vmatpush1.msra.mxu0 0.0
    %4412 = vmatprep.subr.mxu0 0.0
    %4413 = vmatpush1.msra.mxu0 0.0
    %4414 = vmatprep.subr.mxu0 0.0
    %4415 = vmatpush1.msra.mxu0 0.0
    %4416 = vmatprep.subr.mxu0 0.0
    %4417 = vmatpush1.msra.mxu0 0.0
    %4418 = vmatprep.subr.mxu0 0.0
    %4419 = vmatpush1.msra.mxu0 0.0
    %4420 = vmatprep.subr.mxu0 0.0
    %4421 = vmatpush1.msra.mxu0 0.0
    %4422 = vmatprep.subr.mxu0 0.0
    %4423 = vmatpush1.msra.mxu0 0.0
    %4424 = vmatprep.subr.mxu0 0.0
    %4425 = vmatpush1.msra.mxu0 0.0
    %4426 = vmatprep.subr.mxu0 0.0
    %4427 = vmatpush1.msra.mxu0 0.0
    %4428 = vmatprep.subr.mxu0 0.0
    %4429 = vmatpush1.msra.mxu0 0.0
    %4430 = vmatprep.subr.mxu0 0.0
    %4431 = vmatpush1.msra.mxu0 0.0
    %4432 = vmatprep.subr.mxu0 0.0
    %4433 = vmatpush1.msra.mxu0 0.0
    %4434 = vmatprep.subr.mxu0 0.0
    %4435 = vmatpush1.msra.mxu0 0.0
    %4436 = vmatprep.subr.mxu0 0.0
    %4437 = vmatpush1.msra.mxu0 0.0
    %4438 = vmatprep.subr.mxu0 0.0
    %4439 = vmatpush1.msra.mxu0 0.0
    %4440 = vmatprep.subr.mxu0 0.0
    %4441 = vmatpush1.msra.mxu0 0.0
    %4442 = vmatprep.mubr.f32.mxu0 0.0
    %4443 = vmatmul.mubr.f32.gmra.mrb[0].mxu0 0.0
    %v4444 = vpop.f32.mrb[0].mxu0
    %v4445 = vadd.f32 0.0, %v4444
    %v4446 = vpop.f32.mrb[0].mxu0
    %v4447 = vadd.f32 0.0, %v4446
    %4448 = vdwg.mxu0
    %4449 = vmatprep.subr.mxu0 %v4317
    %4450 = vmatpush1.msra.mxu0 %v4316
    %4451 = vmatprep.subr.mxu0 %v4321
    %4452 = vmatpush1.msra.mxu0 %v4320
    %4453 = vmatprep.subr.mxu0 %v4325
    %4454 = vmatpush1.msra.mxu0 %v4324
    %4455 = vmatprep.subr.mxu0 %v4329
    %4456 = vmatpush1.msra.mxu0 %v4328
    %4457 = vmatprep.subr.mxu0 %v4333
    %4458 = vmatpush1.msra.mxu0 %v4332
    %4459 = vmatprep.subr.mxu0 %v4337
    %4460 = vmatpush1.msra.mxu0 %v4336
    %4461 = vmatprep.subr.mxu0 %v4341
    %4462 = vmatpush1.msra.mxu0 %v4340
    %4463 = vmatprep.subr.mxu0 %v4345
    %4464 = vmatpush1.msra.mxu0 %v4344
    %4465 = vmatprep.subr.mxu0 %v4349
    %4466 = vmatpush1.msra.mxu0 %v4348
    %4467 = vmatprep.subr.mxu0 %v4353
    %4468 = vmatpush1.msra.mxu0 %v4352
    %4469 = vmatprep.subr.mxu0 %v4357
    %4470 = vmatpush1.msra.mxu0 %v4356
    %4471 = vmatprep.subr.mxu0 %v4361
    %4472 = vmatpush1.msra.mxu0 %v4360
    %4473 = vmatprep.subr.mxu0 %v4365
    %4474 = vmatpush1.msra.mxu0 %v4364
    %4475 = vmatprep.subr.mxu0 %v4369
    %4476 = vmatpush1.msra.mxu0 %v4368
    %4477 = vmatprep.subr.mxu0 %v4373
    %4478 = vmatpush1.msra.mxu0 %v4372
    %4479 = vmatprep.subr.mxu0 %v4377
    %4480 = vmatpush1.msra.mxu0 %v4376
    %4481 = vmatprep.subr.mxu0 0.0
    %4482 = vmatpush1.msra.mxu0 0.0
    %4483 = vmatprep.subr.mxu0 0.0
    %4484 = vmatpush1.msra.mxu0 0.0
    %4485 = vmatprep.subr.mxu0 0.0
    %4486 = vmatpush1.msra.mxu0 0.0
    %4487 = vmatprep.subr.mxu0 0.0
    %4488 = vmatpush1.msra.mxu0 0.0
    %4489 = vmatprep.subr.mxu0 0.0
    %4490 = vmatpush1.msra.mxu0 0.0
    %4491 = vmatprep.subr.mxu0 0.0
    %4492 = vmatpush1.msra.mxu0 0.0
    %4493 = vmatprep.subr.mxu0 0.0
    %4494 = vmatpush1.msra.mxu0 0.0
    %4495 = vmatprep.subr.mxu0 0.0
    %4496 = vmatpush1.msra.mxu0 0.0
    %4497 = vmatprep.subr.mxu0 0.0
    %4498 = vmatpush1.msra.mxu0 0.0
    %4499 = vmatprep.subr.mxu0 0.0
    %4500 = vmatpush1.msra.mxu0 0.0
    %4501 = vmatprep.subr.mxu0 0.0
    %4502 = vmatpush1.msra.mxu0 0.0
    %4503 = vmatprep.subr.mxu0 0.0
    %4504 = vmatpush1.msra.mxu0 0.0
    %4505 = vmatprep.subr.mxu0 0.0
    %4506 = vmatpush1.msra.mxu0 0.0
    %4507 = vmatprep.subr.mxu0 0.0
    %4508 = vmatpush1.msra.mxu0 0.0
    %4509 = vmatprep.subr.mxu0 0.0
    %4510 = vmatpush1.msra.mxu0 0.0
    %4511 = vmatprep.subr.mxu0 0.0
    %4512 = vmatpush1.msra.mxu0 0.0
    %4513 = vmatprep.mubr.f32.mxu0 0.0
    %4514 = vmatmul.mubr.f32.gmra.mrb[0].mxu0 0.0
    %v4515 = vpop.f32.mrb[0].mxu0
    %v4516 = vadd.f32 0.0, %v4515
    %v4517 = vpop.f32.mrb[0].mxu0
    %v4518 = vadd.f32 0.0, %v4517
    %4519 = vdwg.mxu0
    %v4520 = vadd.f32 %v4202, %v4445
    %v4521 = vadd.f32 %v4204, %v4447
    %v4522 = vadd.f32 %v4291, %v4516
    %v4523 = vadd.f32 %v4293, %v4518
    %v4524 = vxor.u32 %v4520, 2147483648
    %v4525 = vmul.f32 %v4524, 1.442695
    %v4526 = vpow.pop %v4525
    %v4527 = vadd.f32 %v4526, 1.0
    %v4528 = vrcp.pop %v4527
    %v4529 = vmul.f32 1.0, %v4528
    %v4530 = vxor.u32 %v4521, 2147483648
    %v4531 = vmul.f32 %v4530, 1.442695
    %v4532 = vpow.pop %v4531
    %v4533 = vadd.f32 %v4532, 1.0
    %v4534 = vrcp.pop %v4533
    %v4535 = vmul.f32 1.0, %v4534
    %v4536 = vtanh.pop %v4522
    %v4537 = vxor.u32 %v4523, 2147483648
    %v4538 = vmul.f32 %v4537, 1.442695
    %v4539 = vpow.pop %v4538
    %v4540 = vadd.f32 %v4539, 1.0
    %v4541 = vrcp.pop %v4540
    %v4542 = vmul.f32 1.0, %v4541
    %v4543 = vmul.f32 %v4535, 0.0
    %v4544 = vmul.f32 %v4529, %v4536
    %v4545 = vadd.f32 %v4543, %v4544
    %v4546 = vtanh.pop %v4545
    %v4547 = vmul.f32 %v4542, %v4546
    %4548 = vmatprep.subr.mxu0 %v4315
    %4549 = vmatpush1.msra.mxu0 %v4314
    %4550 = vmatprep.subr.mxu0 %v4319
    %4551 = vmatpush1.msra.mxu0 %v4318
    %4552 = vmatprep.subr.mxu0 %v4323
    %4553 = vmatpush1.msra.mxu0 %v4322
    %4554 = vmatprep.subr.mxu0 %v4327
    %4555 = vmatpush1.msra.mxu0 %v4326
    %4556 = vmatprep.subr.mxu0 %v4331
    %4557 = vmatpush1.msra.mxu0 %v4330
    %4558 = vmatprep.subr.mxu0 %v4335
    %4559 = vmatpush1.msra.mxu0 %v4334
    %4560 = vmatprep.subr.mxu0 %v4339
    %4561 = vmatpush1.msra.mxu0 %v4338
    %4562 = vmatprep.subr.mxu0 %v4343
    %4563 = vmatpush1.msra.mxu0 %v4342
    %4564 = vmatprep.subr.mxu0 %v4347
    %4565 = vmatpush1.msra.mxu0 %v4346
    %4566 = vmatprep.subr.mxu0 %v4351
    %4567 = vmatpush1.msra.mxu0 %v4350
    %4568 = vmatprep.subr.mxu0 %v4355
    %4569 = vmatpush1.msra.mxu0 %v4354
    %4570 = vmatprep.subr.mxu0 %v4359
    %4571 = vmatpush1.msra.mxu0 %v4358
    %4572 = vmatprep.subr.mxu0 %v4363
    %4573 = vmatpush1.msra.mxu0 %v4362
    %4574 = vmatprep.subr.mxu0 %v4367
    %4575 = vmatpush1.msra.mxu0 %v4366
    %4576 = vmatprep.subr.mxu0 %v4371
    %4577 = vmatpush1.msra.mxu0 %v4370
    %4578 = vmatprep.subr.mxu0 %v4375
    %4579 = vmatpush1.msra.mxu0 %v4374
    %4580 = vmatprep.subr.mxu0 0.0
    %4581 = vmatpush1.msra.mxu0 0.0
    %4582 = vmatprep.subr.mxu0 0.0
    %4583 = vmatpush1.msra.mxu0 0.0
    %4584 = vmatprep.subr.mxu0 0.0
    %4585 = vmatpush1.msra.mxu0 0.0
    %4586 = vmatprep.subr.mxu0 0.0
    %4587 = vmatpush1.msra.mxu0 0.0
    %4588 = vmatprep.subr.mxu0 0.0
    %4589 = vmatpush1.msra.mxu0 0.0
    %4590 = vmatprep.subr.mxu0 0.0
    %4591 = vmatpush1.msra.mxu0 0.0
    %4592 = vmatprep.subr.mxu0 0.0
    %4593 = vmatpush1.msra.mxu0 0.0
    %4594 = vmatprep.subr.mxu0 0.0
    %4595 = vmatpush1.msra.mxu0 0.0
    %4596 = vmatprep.subr.mxu0 0.0
    %4597 = vmatpush1.msra.mxu0 0.0
    %4598 = vmatprep.subr.mxu0 0.0
    %4599 = vmatpush1.msra.mxu0 0.0
    %4600 = vmatprep.subr.mxu0 0.0
    %4601 = vmatpush1.msra.mxu0 0.0
    %4602 = vmatprep.subr.mxu0 0.0
    %4603 = vmatpush1.msra.mxu0 0.0
    %4604 = vmatprep.subr.mxu0 0.0
    %4605 = vmatpush1.msra.mxu0 0.0
    %4606 = vmatprep.subr.mxu0 0.0
    %4607 = vmatpush1.msra.mxu0 0.0
    %4608 = vmatprep.subr.mxu0 0.0
    %4609 = vmatpush1.msra.mxu0 0.0
    %4610 = vmatprep.subr.mxu0 0.0
    %4611 = vmatpush1.msra.mxu0 0.0
    %4612 = vmatprep.mubr.f32.mxu0 0.0
    %4613 = vmatmul.mubr.f32.gmra.mrb[0].mxu0 %v4547
    %v4614 = vpop.f32.mrb[0].mxu0
    %v4615 = vadd.f32 0.0, %v4614
    %v4616 = vpop.f32.mrb[0].mxu0
    %v4617 = vadd.f32 0.0, %v4616
    %4618 = vdwg.mxu0
    %4619 = vmatprep.subr.mxu0 %v4317
    %4620 = vmatpush1.msra.mxu0 %v4316
    %4621 = vmatprep.subr.mxu0 %v4321
    %4622 = vmatpush1.msra.mxu0 %v4320
    %4623 = vmatprep.subr.mxu0 %v4325
    %4624 = vmatpush1.msra.mxu0 %v4324
    %4625 = vmatprep.subr.mxu0 %v4329
    %4626 = vmatpush1.msra.mxu0 %v4328
    %4627 = vmatprep.subr.mxu0 %v4333
    %4628 = vmatpush1.msra.mxu0 %v4332
    %4629 = vmatprep.subr.mxu0 %v4337
    %4630 = vmatpush1.msra.mxu0 %v4336
    %4631 = vmatprep.subr.mxu0 %v4341
    %4632 = vmatpush1.msra.mxu0 %v4340
    %4633 = vmatprep.subr.mxu0 %v4345
    %4634 = vmatpush1.msra.mxu0 %v4344
    %4635 = vmatprep.subr.mxu0 %v4349
    %4636 = vmatpush1.msra.mxu0 %v4348
    %4637 = vmatprep.subr.mxu0 %v4353
    %4638 = vmatpush1.msra.mxu0 %v4352
    %4639 = vmatprep.subr.mxu0 %v4357
    %4640 = vmatpush1.msra.mxu0 %v4356
    %4641 = vmatprep.subr.mxu0 %v4361
    %4642 = vmatpush1.msra.mxu0 %v4360
    %4643 = vmatprep.subr.mxu0 %v4365
    %4644 = vmatpush1.msra.mxu0 %v4364
    %4645 = vmatprep.subr.mxu0 %v4369
    %4646 = vmatpush1.msra.mxu0 %v4368
    %4647 = vmatprep.subr.mxu0 %v4373
    %4648 = vmatpush1.msra.mxu0 %v4372
    %4649 = vmatprep.subr.mxu0 %v4377
    %4650 = vmatpush1.msra.mxu0 %v4376
    %4651 = vmatprep.subr.mxu0 0.0
    %4652 = vmatpush1.msra.mxu0 0.0
    %4653 = vmatprep.subr.mxu0 0.0
    %4654 = vmatpush1.msra.mxu0 0.0
    %4655 = vmatprep.subr.mxu0 0.0
    %4656 = vmatpush1.msra.mxu0 0.0
    %4657 = vmatprep.subr.mxu0 0.0
    %4658 = vmatpush1.msra.mxu0 0.0
    %4659 = vmatprep.subr.mxu0 0.0
    %4660 = vmatpush1.msra.mxu0 0.0
    %4661 = vmatprep.subr.mxu0 0.0
    %4662 = vmatpush1.msra.mxu0 0.0
    %4663 = vmatprep.subr.mxu0 0.0
    %4664 = vmatpush1.msra.mxu0 0.0
    %4665 = vmatprep.subr.mxu0 0.0
    %4666 = vmatpush1.msra.mxu0 0.0
    %4667 = vmatprep.subr.mxu0 0.0
    %4668 = vmatpush1.msra.mxu0 0.0
    %4669 = vmatprep.subr.mxu0 0.0
    %4670 = vmatpush1.msra.mxu0 0.0
    %4671 = vmatprep.subr.mxu0 0.0
    %4672 = vmatpush1.msra.mxu0 0.0
    %4673 = vmatprep.subr.mxu0 0.0
    %4674 = vmatpush1.msra.mxu0 0.0
    %4675 = vmatprep.subr.mxu0 0.0
    %4676 = vmatpush1.msra.mxu0 0.0
    %4677 = vmatprep.subr.mxu0 0.0
    %4678 = vmatpush1.msra.mxu0 0.0
    %4679 = vmatprep.subr.mxu0 0.0
    %4680 = vmatpush1.msra.mxu0 0.0
    %4681 = vmatprep.subr.mxu0 0.0
    %4682 = vmatpush1.msra.mxu0 0.0
    %4683 = vmatprep.mubr.f32.mxu0 0.0
    %4684 = vmatmul.mubr.f32.gmra.mrb[0].mxu0 %v4547
    %v4685 = vpop.f32.mrb[0].mxu0
    %v4686 = vadd.f32 0.0, %v4685
    %v4687 = vpop.f32.mrb[0].mxu0
    %v4688 = vadd.f32 0.0, %v4687
    %4689 = vdwg.mxu0
    %v4690 = vadd.f32 %v4208, %v4615
    %v4691 = vadd.f32 %v4210, %v4617
    %v4692 = vadd.f32 %v4297, %v4686
    %v4693 = vadd.f32 %v4299, %v4688
    %v4694 = vxor.u32 %v4690, 2147483648
    %v4695 = vmul.f32 %v4694, 1.442695
    %v4696 = vpow.pop %v4695
    %v4697 = vadd.f32 %v4696, 1.0
    %v4698 = vrcp.pop %v4697
    %v4699 = vmul.f32 1.0, %v4698
    %v4700 = vxor.u32 %v4691, 2147483648
    %v4701 = vmul.f32 %v4700, 1.442695
    %v4702 = vpow.pop %v4701
    %v4703 = vadd.f32 %v4702, 1.0
    %v4704 = vrcp.pop %v4703
    %v4705 = vmul.f32 1.0, %v4704
    %v4706 = vtanh.pop %v4692
    %v4707 = vxor.u32 %v4693, 2147483648
    %v4708 = vmul.f32 %v4707, 1.442695
    %v4709 = vpow.pop %v4708
    %v4710 = vadd.f32 %v4709, 1.0
    %v4711 = vrcp.pop %v4710
    %v4712 = vmul.f32 1.0, %v4711
    %v4713 = vmul.f32 %v4705, %v4545
    %v4714 = vmul.f32 %v4699, %v4706
    %v4715 = vadd.f32 %v4713, %v4714
    %v4716 = vtanh.pop %v4715
    %v4717 = vmul.f32 %v4712, %v4716
    %4718 = vmatprep.subr.mxu0 %v4315
    %4719 = vmatpush1.msra.mxu0 %v4314
    %4720 = vmatprep.subr.mxu0 %v4319
    %4721 = vmatpush1.msra.mxu0 %v4318
    %4722 = vmatprep.subr.mxu0 %v4323
    %4723 = vmatpush1.msra.mxu0 %v4322
    %4724 = vmatprep.subr.mxu0 %v4327
    %4725 = vmatpush1.msra.mxu0 %v4326
    %4726 = vmatprep.subr.mxu0 %v4331
    %4727 = vmatpush1.msra.mxu0 %v4330
    %4728 = vmatprep.subr.mxu0 %v4335
    %4729 = vmatpush1.msra.mxu0 %v4334
    %4730 = vmatprep.subr.mxu0 %v4339
    %4731 = vmatpush1.msra.mxu0 %v4338
    %4732 = vmatprep.subr.mxu0 %v4343
    %4733 = vmatpush1.msra.mxu0 %v4342
    %4734 = vmatprep.subr.mxu0 %v4347
    %4735 = vmatpush1.msra.mxu0 %v4346
    %4736 = vmatprep.subr.mxu0 %v4351
    %4737 = vmatpush1.msra.mxu0 %v4350
    %4738 = vmatprep.subr.mxu0 %v4355
    %4739 = vmatpush1.msra.mxu0 %v4354
    %4740 = vmatprep.subr.mxu0 %v4359
    %4741 = vmatpush1.msra.mxu0 %v4358
    %4742 = vmatprep.subr.mxu0 %v4363
    %4743 = vmatpush1.msra.mxu0 %v4362
    %4744 = vmatprep.subr.mxu0 %v4367
    %4745 = vmatpush1.msra.mxu0 %v4366
    %4746 = vmatprep.subr.mxu0 %v4371
    %4747 = vmatpush1.msra.mxu0 %v4370
    %4748 = vmatprep.subr.mxu0 %v4375
    %4749 = vmatpush1.msra.mxu0 %v4374
    %4750 = vmatprep.subr.mxu0 0.0
    %4751 = vmatpush1.msra.mxu0 0.0
    %4752 = vmatprep.subr.mxu0 0.0
    %4753 = vmatpush1.msra.mxu0 0.0
    %4754 = vmatprep.subr.mxu0 0.0
    %4755 = vmatpush1.msra.mxu0 0.0
    %4756 = vmatprep.subr.mxu0 0.0
    %4757 = vmatpush1.msra.mxu0 0.0
    %4758 = vmatprep.subr.mxu0 0.0
    %4759 = vmatpush1.msra.mxu0 0.0
    %4760 = vmatprep.subr.mxu0 0.0
    %4761 = vmatpush1.msra.mxu0 0.0
    %4762 = vmatprep.subr.mxu0 0.0
    %4763 = vmatpush1.msra.mxu0 0.0
    %4764 = vmatprep.subr.mxu0 0.0
    %4765 = vmatpush1.msra.mxu0 0.0
    %4766 = vmatprep.subr.mxu0 0.0
    %4767 = vmatpush1.msra.mxu0 0.0
    %4768 = vmatprep.subr.mxu0 0.0
    %4769 = vmatpush1.msra.mxu0 0.0
    %4770 = vmatprep.subr.mxu0 0.0
    %4771 = vmatpush1.msra.mxu0 0.0
    %4772 = vmatprep.subr.mxu0 0.0
    %4773 = vmatpush1.msra.mxu0 0.0
    %4774 = vmatprep.subr.mxu0 0.0
    %4775 = vmatpush1.msra.mxu0 0.0
    %4776 = vmatprep.subr.mxu0 0.0
    %4777 = vmatpush1.msra.mxu0 0.0
    %4778 = vmatprep.subr.mxu0 0.0
    %4779 = vmatpush1.msra.mxu0 0.0
    %4780 = vmatprep.subr.mxu0 0.0
    %4781 = vmatpush1.msra.mxu0 0.0
    %4782 = vmatprep.mubr.f32.mxu0 0.0
    %4783 = vmatmul.mubr.f32.gmra.mrb[0].mxu0 %v4717
    %v4784 = vpop.f32.mrb[0].mxu0
    %v4785 = vadd.f32 0.0, %v4784
    %v4786 = vpop.f32.mrb[0].mxu0
    %v4787 = vadd.f32 0.0, %v4786
    %4788 = vdwg.mxu0
    %4789 = vmatprep.subr.mxu0 %v4317
    %4790 = vmatpush1.msra.mxu0 %v4316
    %4791 = vmatprep.subr.mxu0 %v4321
    %4792 = vmatpush1.msra.mxu0 %v4320
    %4793 = vmatprep.subr.mxu0 %v4325
    %4794 = vmatpush1.msra.mxu0 %v4324
    %4795 = vmatprep.subr.mxu0 %v4329
    %4796 = vmatpush1.msra.mxu0 %v4328
    %4797 = vmatprep.subr.mxu0 %v4333
    %4798 = vmatpush1.msra.mxu0 %v4332
    %4799 = vmatprep.subr.mxu0 %v4337
    %4800 = vmatpush1.msra.mxu0 %v4336
    %4801 = vmatprep.subr.mxu0 %v4341
    %4802 = vmatpush1.msra.mxu0 %v4340
    %4803 = vmatprep.subr.mxu0 %v4345
    %4804 = vmatpush1.msra.mxu0 %v4344
    %4805 = vmatprep.subr.mxu0 %v4349
    %4806 = vmatpush1.msra.mxu0 %v4348
    %4807 = vmatprep.subr.mxu0 %v4353
    %4808 = vmatpush1.msra.mxu0 %v4352
    %4809 = vmatprep.subr.mxu0 %v4357
    %4810 = vmatpush1.msra.mxu0 %v4356
    %4811 = vmatprep.subr.mxu0 %v4361
    %4812 = vmatpush1.msra.mxu0 %v4360
    %4813 = vmatprep.subr.mxu0 %v4365
    %4814 = vmatpush1.msra.mxu0 %v4364
    %4815 = vmatprep.subr.mxu0 %v4369
    %4816 = vmatpush1.msra.mxu0 %v4368
    %4817 = vmatprep.subr.mxu0 %v4373
    %4818 = vmatpush1.msra.mxu0 %v4372
    %4819 = vmatprep.subr.mxu0 %v4377
    %4820 = vmatpush1.msra.mxu0 %v4376
    %4821 = vmatprep.subr.mxu0 0.0
    %4822 = vmatpush1.msra.mxu0 0.0
    %4823 = vmatprep.subr.mxu0 0.0
    %4824 = vmatpush1.msra.mxu0 0.0
    %4825 = vmatprep.subr.mxu0 0.0
    %4826 = vmatpush1.msra.mxu0 0.0
    %4827 = vmatprep.subr.mxu0 0.0
    %4828 = vmatpush1.msra.mxu0 0.0
    %4829 = vmatprep.subr.mxu0 0.0
    %4830 = vmatpush1.msra.mxu0 0.0
    %4831 = vmatprep.subr.mxu0 0.0
    %4832 = vmatpush1.msra.mxu0 0.0
    %4833 = vmatprep.subr.mxu0 0.0
    %4834 = vmatpush1.msra.mxu0 0.0
    %4835 = vmatprep.subr.mxu0 0.0
    %4836 = vmatpush1.msra.mxu0 0.0
    %4837 = vmatprep.subr.mxu0 0.0
    %4838 = vmatpush1.msra.mxu0 0.0
    %4839 = vmatprep.subr.mxu0 0.0
    %4840 = vmatpush1.msra.mxu0 0.0
    %4841 = vmatprep.subr.mxu0 0.0
    %4842 = vmatpush1.msra.mxu0 0.0
    %4843 = vmatprep.subr.mxu0 0.0
    %4844 = vmatpush1.msra.mxu0 0.0
    %4845 = vmatprep.subr.mxu0 0.0
    %4846 = vmatpush1.msra.mxu0 0.0
    %4847 = vmatprep.subr.mxu0 0.0
    %4848 = vmatpush1.msra.mxu0 0.0
    %4849 = vmatprep.subr.mxu0 0.0
    %4850 = vmatpush1.msra.mxu0 0.0
    %4851 = vmatprep.subr.mxu0 0.0
    %4852 = vmatpush1.msra.mxu0 0.0
    %4853 = vmatprep.mubr.f32.mxu0 0.0
    %4854 = vmatmul.mubr.f32.gmra.mrb[0].mxu0 %v4717
    %v4855 = vpop.f32.mrb[0].mxu0
    %v4856 = vadd.f32 0.0, %v4855
    %v4857 = vpop.f32.mrb[0].mxu0
    %v4858 = vadd.f32 0.0, %v4857
    %4859 = vdwg.mxu0
    %v4860 = vadd.f32 %v4214, %v4785
    %v4861 = vadd.f32 %v4216, %v4787
    %v4862 = vadd.f32 %v4303, %v4856
    %v4863 = vadd.f32 %v4305, %v4858
    %v4864 = vxor.u32 %v4860, 2147483648
    %v4865 = vmul.f32 %v4864, 1.442695
    %v4866 = vpow.pop %v4865
    %v4867 = vadd.f32 %v4866, 1.0
    %v4868 = vrcp.pop %v4867
    %v4869 = vmul.f32 1.0, %v4868
    %v4870 = vxor.u32 %v4861, 2147483648
    %v4871 = vmul.f32 %v4870, 1.442695
    %v4872 = vpow.pop %v4871
    %v4873 = vadd.f32 %v4872, 1.0
    %v4874 = vrcp.pop %v4873
    %v4875 = vmul.f32 1.0, %v4874
    %v4876 = vtanh.pop %v4862
    %v4877 = vxor.u32 %v4863, 2147483648
    %v4878 = vmul.f32 %v4877, 1.442695
    %v4879 = vpow.pop %v4878
    %v4880 = vadd.f32 %v4879, 1.0
    %v4881 = vrcp.pop %v4880
    %v4882 = vmul.f32 1.0, %v4881
    %v4883 = vmul.f32 %v4875, %v4715
    %v4884 = vmul.f32 %v4869, %v4876
    %v4885 = vadd.f32 %v4883, %v4884
    %v4886 = vtanh.pop %v4885
    %v4887 = vmul.f32 %v4882, %v4886
    %4888 = vmatprep.subr.mxu0 %v4315
    %4889 = vmatpush1.msra.mxu0 %v4314
    %4890 = vmatprep.subr.mxu0 %v4319
    %4891 = vmatpush1.msra.mxu0 %v4318
    %4892 = vmatprep.subr.mxu0 %v4323
    %4893 = vmatpush1.msra.mxu0 %v4322
    %4894 = vmatprep.subr.mxu0 %v4327
    %4895 = vmatpush1.msra.mxu0 %v4326
    %4896 = vmatprep.subr.mxu0 %v4331
    %4897 = vmatpush1.msra.mxu0 %v4330
    %4898 = vmatprep.subr.mxu0 %v4335
    %4899 = vmatpush1.msra.mxu0 %v4334
    %4900 = vmatprep.subr.mxu0 %v4339
    %4901 = vmatpush1.msra.mxu0 %v4338
    %4902 = vmatprep.subr.mxu0 %v4343
    %4903 = vmatpush1.msra.mxu0 %v4342
    %4904 = vmatprep.subr.mxu0 %v4347
    %4905 = vmatpush1.msra.mxu0 %v4346
    %4906 = vmatprep.subr.mxu0 %v4351
    %4907 = vmatpush1.msra.mxu0 %v4350
    %4908 = vmatprep.subr.mxu0 %v4355
    %4909 = vmatpush1.msra.mxu0 %v4354
    %4910 = vmatprep.subr.mxu0 %v4359
    %4911 = vmatpush1.msra.mxu0 %v4358
    %4912 = vmatprep.subr.mxu0 %v4363
    %4913 = vmatpush1.msra.mxu0 %v4362
    %4914 = vmatprep.subr.mxu0 %v4367
    %4915 = vmatpush1.msra.mxu0 %v4366
    %4916 = vmatprep.subr.mxu0 %v4371
    %4917 = vmatpush1.msra.mxu0 %v4370
    %4918 = vmatprep.subr.mxu0 %v4375
    %4919 = vmatpush1.msra.mxu0 %v4374
    %4920 = vmatprep.subr.mxu0 0.0
    %4921 = vmatpush1.msra.mxu0 0.0
    %4922 = vmatprep.subr.mxu0 0.0
    %4923 = vmatpush1.msra.mxu0 0.0
    %4924 = vmatprep.subr.mxu0 0.0
    %4925 = vmatpush1.msra.mxu0 0.0
    %4926 = vmatprep.subr.mxu0 0.0
    %4927 = vmatpush1.msra.mxu0 0.0
    %4928 = vmatprep.subr.mxu0 0.0
    %4929 = vmatpush1.msra.mxu0 0.0
    %4930 = vmatprep.subr.mxu0 0.0
    %4931 = vmatpush1.msra.mxu0 0.0
    %4932 = vmatprep.subr.mxu0 0.0
    %4933 = vmatpush1.msra.mxu0 0.0
    %4934 = vmatprep.subr.mxu0 0.0
    %4935 = vmatpush1.msra.mxu0 0.0
    %4936 = vmatprep.subr.mxu0 0.0
    %4937 = vmatpush1.msra.mxu0 0.0
    %4938 = vmatprep.subr.mxu0 0.0
    %4939 = vmatpush1.msra.mxu0 0.0
    %4940 = vmatprep.subr.mxu0 0.0
    %4941 = vmatpush1.msra.mxu0 0.0
    %4942 = vmatprep.subr.mxu0 0.0
    %4943 = vmatpush1.msra.mxu0 0.0
    %4944 = vmatprep.subr.mxu0 0.0
    %4945 = vmatpush1.msra.mxu0 0.0
    %4946 = vmatprep.subr.mxu0 0.0
    %4947 = vmatpush1.msra.mxu0 0.0
    %4948 = vmatprep.subr.mxu0 0.0
    %4949 = vmatpush1.msra.mxu0 0.0
    %4950 = vmatprep.subr.mxu0 0.0
    %4951 = vmatpush1.msra.mxu0 0.0
    %4952 = vmatprep.mubr.f32.mxu0 0.0
    %4953 = vmatmul.mubr.f32.gmra.mrb[0].mxu0 %v4887
    %v4954 = vpop.f32.mrb[0].mxu0
    %v4955 = vadd.f32 0.0, %v4954
    %v4956 = vpop.f32.mrb[0].mxu0
    %v4957 = vadd.f32 0.0, %v4956
    %4958 = vdwg.mxu0
    %4959 = vmatprep.subr.mxu0 %v4317
    %4960 = vmatpush1.msra.mxu0 %v4316
    %4961 = vmatprep.subr.mxu0 %v4321
    %4962 = vmatpush1.msra.mxu0 %v4320
    %4963 = vmatprep.subr.mxu0 %v4325
    %4964 = vmatpush1.msra.mxu0 %v4324
    %4965 = vmatprep.subr.mxu0 %v4329
    %4966 = vmatpush1.msra.mxu0 %v4328
    %4967 = vmatprep.subr.mxu0 %v4333
    %4968 = vmatpush1.msra.mxu0 %v4332
    %4969 = vmatprep.subr.mxu0 %v4337
    %4970 = vmatpush1.msra.mxu0 %v4336
    %4971 = vmatprep.subr.mxu0 %v4341
    %4972 = vmatpush1.msra.mxu0 %v4340
    %4973 = vmatprep.subr.mxu0 %v4345
    %4974 = vmatpush1.msra.mxu0 %v4344
    %4975 = vmatprep.subr.mxu0 %v4349
    %4976 = vmatpush1.msra.mxu0 %v4348
    %4977 = vmatprep.subr.mxu0 %v4353
    %4978 = vmatpush1.msra.mxu0 %v4352
    %4979 = vmatprep.subr.mxu0 %v4357
    %4980 = vmatpush1.msra.mxu0 %v4356
    %4981 = vmatprep.subr.mxu0 %v4361
    %4982 = vmatpush1.msra.mxu0 %v4360
    %4983 = vmatprep.subr.mxu0 %v4365
    %4984 = vmatpush1.msra.mxu0 %v4364
    %4985 = vmatprep.subr.mxu0 %v4369
    %4986 = vmatpush1.msra.mxu0 %v4368
    %4987 = vmatprep.subr.mxu0 %v4373
    %4988 = vmatpush1.msra.mxu0 %v4372
    %4989 = vmatprep.subr.mxu0 %v4377
    %4990 = vmatpush1.msra.mxu0 %v4376
    %4991 = vmatprep.subr.mxu0 0.0
    %4992 = vmatpush1.msra.mxu0 0.0
    %4993 = vmatprep.subr.mxu0 0.0
    %4994 = vmatpush1.msra.mxu0 0.0
    %4995 = vmatprep.subr.mxu0 0.0
    %4996 = vmatpush1.msra.mxu0 0.0
    %4997 = vmatprep.subr.mxu0 0.0
    %4998 = vmatpush1.msra.mxu0 0.0
    %4999 = vmatprep.subr.mxu0 0.0
    %5000 = vmatpush1.msra.mxu0 0.0
    %5001 = vmatprep.subr.mxu0 0.0
    %5002 = vmatpush1.msra.mxu0 0.0
    %5003 = vmatprep.subr.mxu0 0.0
    %5004 = vmatpush1.msra.mxu0 0.0
    %5005 = vmatprep.subr.mxu0 0.0
    %5006 = vmatpush1.msra.mxu0 0.0
    %5007 = vmatprep.subr.mxu0 0.0
    %5008 = vmatpush1.msra.mxu0 0.0
    %5009 = vmatprep.subr.mxu0 0.0
    %5010 = vmatpush1.msra.mxu0 0.0
    %5011 = vmatprep.subr.mxu0 0.0
    %5012 = vmatpush1.msra.mxu0 0.0
    %5013 = vmatprep.subr.mxu0 0.0
    %5014 = vmatpush1.msra.mxu0 0.0
    %5015 = vmatprep.subr.mxu0 0.0
    %5016 = vmatpush1.msra.mxu0 0.0
    %5017 = vmatprep.subr.mxu0 0.0
    %5018 = vmatpush1.msra.mxu0 0.0
    %5019 = vmatprep.subr.mxu0 0.0
    %5020 = vmatpush1.msra.mxu0 0.0
    %5021 = vmatprep.subr.mxu0 0.0
    %5022 = vmatpush1.msra.mxu0 0.0
    %5023 = vmatprep.mubr.f32.mxu0 0.0
    %5024 = vmatmul.mubr.f32.gmra.mrb[0].mxu0 %v4887
    %v5025 = vpop.f32.mrb[0].mxu0
    %v5026 = vadd.f32 0.0, %v5025
    %v5027 = vpop.f32.mrb[0].mxu0
    %v5028 = vadd.f32 0.0, %v5027
    %5029 = vdwg.mxu0
    %v5030 = vadd.f32 %v4220, %v4955
    %v5031 = vadd.f32 %v4222, %v4957
    %v5032 = vadd.f32 %v4309, %v5026
    %v5033 = vadd.f32 %v4311, %v5028
    %v5034 = vxor.u32 %v5030, 2147483648
    %v5035 = vmul.f32 %v5034, 1.442695
    %v5036 = vpow.pop %v5035
    %v5037 = vadd.f32 %v5036, 1.0
    %v5038 = vrcp.pop %v5037
    %v5039 = vmul.f32 1.0, %v5038
    %v5040 = vxor.u32 %v5031, 2147483648
    %v5041 = vmul.f32 %v5040, 1.442695
    %v5042 = vpow.pop %v5041
    %v5043 = vadd.f32 %v5042, 1.0
    %v5044 = vrcp.pop %v5043
    %v5045 = vmul.f32 1.0, %v5044
    %v5046 = vtanh.pop %v5032
    %v5047 = vxor.u32 %v5033, 2147483648
    %v5048 = vmul.f32 %v5047, 1.442695
    %v5049 = vpow.pop %v5048
    %v5050 = vadd.f32 %v5049, 1.0
    %v5051 = vrcp.pop %v5050
    %v5052 = vmul.f32 1.0, %v5051
    %v5053 = vmul.f32 %v5045, %v4885
    %v5054 = vmul.f32 %v5039, %v5046
    %v5055 = vadd.f32 %v5053, %v5054
    %v5056 = vtanh.pop %v5055
    %v5057 = vmul.f32 %v5052, %v5056
    %s5058 = scalar_lea.vmem [#allocation2], 2560
    %v5059 = vld [vmem:[%s5058] sm:$0xff]
    %v5060 = vld [vmem:[%s5058 + $0x8] sm:$0xff]
    %v5061 = vld [vmem:[%s5058 + $0x10] sm:$0xff]
    %v5062 = vld [vmem:[%s5058 + $0x18] sm:$0xff]
    %v5063 = vld [vmem:[%s5058 + $0x20] sm:$0xff]
    %v5064 = vld [vmem:[%s5058 + $0x28] sm:$0xff]
    %v5065 = vld [vmem:[%s5058 + $0x30] sm:$0xff]
    %v5066 = vld [vmem:[%s5058 + $0x38] sm:$0xff]
    %v5067 = vld [vmem:[%s5058 + $0x40] sm:$0xff]
    %v5068 = vld [vmem:[%s5058 + $0x48] sm:$0xff]
    %v5069 = vld [vmem:[%s5058 + $0x50] sm:$0xff]
    %v5070 = vld [vmem:[%s5058 + $0x58] sm:$0xff]
    %v5071 = vld [vmem:[%s5058 + $0x60] sm:$0xff]
    %v5072 = vld [vmem:[%s5058 + $0x68] sm:$0xff]
    %v5073 = vld [vmem:[%s5058 + $0x70] sm:$0xff]
    %v5074 = vld [vmem:[%s5058 + $0x78] sm:$0xff]
    %v5075 = vld [vmem:[%s5058 + $0x80] sm:$0xff]
    %v5076 = vld [vmem:[%s5058 + $0x88] sm:$0xff]
    %v5077 = vld [vmem:[%s5058 + $0x90] sm:$0xff]
    %v5078 = vld [vmem:[%s5058 + $0x98] sm:$0xff]
    %v5079 = vld [vmem:[%s5058 + $0xa0] sm:$0xff]
    %v5080 = vld [vmem:[%s5058 + $0xa8] sm:$0xff]
    %v5081 = vld [vmem:[%s5058 + $0xb0] sm:$0xff]
    %v5082 = vld [vmem:[%s5058 + $0xb8] sm:$0xff]
    %v5083 = vld [vmem:[%s5058 + $0xc0] sm:$0xff]
    %v5084 = vld [vmem:[%s5058 + $0xc8] sm:$0xff]
    %v5085 = vld [vmem:[%s5058 + $0xd0] sm:$0xff]
    %v5086 = vld [vmem:[%s5058 + $0xd8] sm:$0xff]
    %v5087 = vld [vmem:[%s5058 + $0xe0] sm:$0xff]
    %v5088 = vld [vmem:[%s5058 + $0xe8] sm:$0xff]
    %v5089 = vld [vmem:[%s5058 + $0xf0] sm:$0xff]
    %v5090 = vld [vmem:[%s5058 + $0xf8] sm:$0xff]
    %v5091 = vld [vmem:[%s5058 + $0x100] sm:$0xff]
    %v5092 = vld [vmem:[%s5058 + $0x108] sm:$0xff]
    %v5093 = vld [vmem:[%s5058 + $0x110] sm:$0xff]
    %v5094 = vld [vmem:[%s5058 + $0x118] sm:$0xff]
    %v5095 = vld [vmem:[%s5058 + $0x120] sm:$0xff]
    %v5096 = vld [vmem:[%s5058 + $0x128] sm:$0xff]
    %v5097 = vld [vmem:[%s5058 + $0x130] sm:$0xff]
    %v5098 = vld [vmem:[%s5058 + $0x138] sm:$0xff]
    %v5099 = vld [vmem:[%s5058 + $0x140] sm:$0xff]
    %v5100 = vld [vmem:[%s5058 + $0x148] sm:$0xff]
    %v5101 = vld [vmem:[%s5058 + $0x150] sm:$0xff]
    %v5102 = vld [vmem:[%s5058 + $0x158] sm:$0xff]
    %v5103 = vld [vmem:[%s5058 + $0x160] sm:$0xff]
    %v5104 = vld [vmem:[%s5058 + $0x168] sm:$0xff]
    %v5105 = vld [vmem:[%s5058 + $0x170] sm:$0xff]
    %v5106 = vld [vmem:[%s5058 + $0x178] sm:$0xff]
    %v5107 = vld [vmem:[%s5058 + $0x180] sm:$0xff]
    %v5108 = vld [vmem:[%s5058 + $0x188] sm:$0xff]
    %v5109 = vld [vmem:[%s5058 + $0x190] sm:$0xff]
    %v5110 = vld [vmem:[%s5058 + $0x198] sm:$0xff]
    %v5111 = vld [vmem:[%s5058 + $0x1a0] sm:$0xff]
    %v5112 = vld [vmem:[%s5058 + $0x1a8] sm:$0xff]
    %v5113 = vld [vmem:[%s5058 + $0x1b0] sm:$0xff]
    %v5114 = vld [vmem:[%s5058 + $0x1b8] sm:$0xff]
    %v5115 = vld [vmem:[%s5058 + $0x1c0] sm:$0xff]
    %v5116 = vld [vmem:[%s5058 + $0x1c8] sm:$0xff]
    %v5117 = vld [vmem:[%s5058 + $0x1d0] sm:$0xff]
    %v5118 = vld [vmem:[%s5058 + $0x1d8] sm:$0xff]
    %v5119 = vld [vmem:[%s5058 + $0x1e0] sm:$0xff]
    %v5120 = vld [vmem:[%s5058 + $0x1e8] sm:$0xff]
    %v5121 = vld [vmem:[%s5058 + $0x1f0] sm:$0xff]
    %v5122 = vld [vmem:[%s5058 + $0x1f8] sm:$0xff]
    %s5123 = scalar_lea.vmem [#allocation5], 2560
    %v5124 = vld [vmem:[%s5123] sm:$0xff]
    %v5125 = vld [vmem:[%s5123 + $0x8] sm:$0xff]
    %v5126 = vld [vmem:[%s5123 + $0x10] sm:$0xff]
    %v5127 = vld [vmem:[%s5123 + $0x18] sm:$0xff]
    %v5128 = vld [vmem:[%s5123 + $0x20] sm:$0xff]
    %v5129 = vld [vmem:[%s5123 + $0x28] sm:$0xff]
    %v5130 = vld [vmem:[%s5123 + $0x30] sm:$0xff]
    %v5131 = vld [vmem:[%s5123 + $0x38] sm:$0xff]
    %v5132 = vld [vmem:[%s5123 + $0x40] sm:$0xff]
    %v5133 = vld [vmem:[%s5123 + $0x48] sm:$0xff]
    %v5134 = vld [vmem:[%s5123 + $0x50] sm:$0xff]
    %v5135 = vld [vmem:[%s5123 + $0x58] sm:$0xff]
    %v5136 = vld [vmem:[%s5123 + $0x60] sm:$0xff]
    %v5137 = vld [vmem:[%s5123 + $0x68] sm:$0xff]
    %v5138 = vld [vmem:[%s5123 + $0x70] sm:$0xff]
    %v5139 = vld [vmem:[%s5123 + $0x78] sm:$0xff]
    %v5140 = vld [vmem:[%s5123 + $0x80] sm:$0xff]
    %v5141 = vld [vmem:[%s5123 + $0x88] sm:$0xff]
    %v5142 = vld [vmem:[%s5123 + $0x90] sm:$0xff]
    %v5143 = vld [vmem:[%s5123 + $0x98] sm:$0xff]
    %v5144 = vld [vmem:[%s5123 + $0xa0] sm:$0xff]
    %v5145 = vld [vmem:[%s5123 + $0xa8] sm:$0xff]
    %v5146 = vld [vmem:[%s5123 + $0xb0] sm:$0xff]
    %v5147 = vld [vmem:[%s5123 + $0xb8] sm:$0xff]
    %v5148 = vld [vmem:[%s5123 + $0xc0] sm:$0xff]
    %v5149 = vld [vmem:[%s5123 + $0xc8] sm:$0xff]
    %v5150 = vld [vmem:[%s5123 + $0xd0] sm:$0xff]
    %v5151 = vld [vmem:[%s5123 + $0xd8] sm:$0xff]
    %v5152 = vld [vmem:[%s5123 + $0xe0] sm:$0xff]
    %v5153 = vld [vmem:[%s5123 + $0xe8] sm:$0xff]
    %v5154 = vld [vmem:[%s5123 + $0xf0] sm:$0xff]
    %v5155 = vld [vmem:[%s5123 + $0xf8] sm:$0xff]
    %v5156 = vld [vmem:[%s5123 + $0x100] sm:$0xff]
    %v5157 = vld [vmem:[%s5123 + $0x108] sm:$0xff]
    %v5158 = vld [vmem:[%s5123 + $0x110] sm:$0xff]
    %v5159 = vld [vmem:[%s5123 + $0x118] sm:$0xff]
    %v5160 = vld [vmem:[%s5123 + $0x120] sm:$0xff]
    %v5161 = vld [vmem:[%s5123 + $0x128] sm:$0xff]
    %v5162 = vld [vmem:[%s5123 + $0x130] sm:$0xff]
    %v5163 = vld [vmem:[%s5123 + $0x138] sm:$0xff]
    %v5164 = vld [vmem:[%s5123 + $0x140] sm:$0xff]
    %v5165 = vld [vmem:[%s5123 + $0x148] sm:$0xff]
    %v5166 = vld [vmem:[%s5123 + $0x150] sm:$0xff]
    %v5167 = vld [vmem:[%s5123 + $0x158] sm:$0xff]
    %v5168 = vld [vmem:[%s5123 + $0x160] sm:$0xff]
    %v5169 = vld [vmem:[%s5123 + $0x168] sm:$0xff]
    %v5170 = vld [vmem:[%s5123 + $0x170] sm:$0xff]
    %v5171 = vld [vmem:[%s5123 + $0x178] sm:$0xff]
    %v5172 = vld [vmem:[%s5123 + $0x180] sm:$0xff]
    %v5173 = vld [vmem:[%s5123 + $0x188] sm:$0xff]
    %v5174 = vld [vmem:[%s5123 + $0x190] sm:$0xff]
    %v5175 = vld [vmem:[%s5123 + $0x198] sm:$0xff]
    %v5176 = vld [vmem:[%s5123 + $0x1a0] sm:$0xff]
    %v5177 = vld [vmem:[%s5123 + $0x1a8] sm:$0xff]
    %v5178 = vld [vmem:[%s5123 + $0x1b0] sm:$0xff]
    %v5179 = vld [vmem:[%s5123 + $0x1b8] sm:$0xff]
    %v5180 = vld [vmem:[%s5123 + $0x1c0] sm:$0xff]
    %v5181 = vld [vmem:[%s5123 + $0x1c8] sm:$0xff]
    %v5182 = vld [vmem:[%s5123 + $0x1d0] sm:$0xff]
    %v5183 = vld [vmem:[%s5123 + $0x1d8] sm:$0xff]
    %v5184 = vld [vmem:[%s5123 + $0x1e0] sm:$0xff]
    %v5185 = vld [vmem:[%s5123 + $0x1e8] sm:$0xff]
    %v5186 = vld [vmem:[%s5123 + $0x1f0] sm:$0xff]
    %v5187 = vld [vmem:[%s5123 + $0x1f8] sm:$0xff]
    %s5188 = scalar_lea.vmem [#allocation7], 20
    %v5189 = vld [vmem:[%s5188] sm:$0xf]
    %v5191 = vlaneseq
    %v5192 = vshrl.u32 %v5191, 7
    %v5193 = vsub.s32 0, %v5192
    %v5194 = vrot.slane %v5189, %v5193
    %v5195 = vlaneseq
    %v5196 = vshrl.u32 %v5195, 7
    %v5197 = vsub.s32 1, %v5196
    %v5198 = vrot.slane %v5189, %v5197
    %v5199 = vlaneseq
    %v5200 = vshrl.u32 %v5199, 7
    %v5201 = vsub.s32 2, %v5200
    %v5202 = vrot.slane %v5189, %v5201
    %v5203 = vlaneseq
    %v5204 = vshrl.u32 %v5203, 7
    %v5205 = vsub.s32 3, %v5204
    %v5206 = vrot.slane %v5189, %v5205
    %5211 = vmatprep.subr.mxu0 %v5125
    %5212 = vmatpush1.msra.mxu0 %v5124
    %5213 = vmatprep.subr.mxu0 %v5129
    %5214 = vmatpush1.msra.mxu0 %v5128
    %5215 = vmatprep.subr.mxu0 %v5133
    %5216 = vmatpush1.msra.mxu0 %v5132
    %5217 = vmatprep.subr.mxu0 %v5137
    %5218 = vmatpush1.msra.mxu0 %v5136
    %5219 = vmatprep.subr.mxu0 %v5141
    %5220 = vmatpush1.msra.mxu0 %v5140
    %5221 = vmatprep.subr.mxu0 %v5145
    %5222 = vmatpush1.msra.mxu0 %v5144
    %5223 = vmatprep.subr.mxu0 %v5149
    %5224 = vmatpush1.msra.mxu0 %v5148
    %5225 = vmatprep.subr.mxu0 %v5153
    %5226 = vmatpush1.msra.mxu0 %v5152
    %5227 = vmatprep.subr.mxu0 %v5157
    %5228 = vmatpush1.msra.mxu0 %v5156
    %5229 = vmatprep.subr.mxu0 %v5161
    %5230 = vmatpush1.msra.mxu0 %v5160
    %5231 = vmatprep.subr.mxu0 %v5165
    %5232 = vmatpush1.msra.mxu0 %v5164
    %5233 = vmatprep.subr.mxu0 %v5169
    %5234 = vmatpush1.msra.mxu0 %v5168
    %5235 = vmatprep.subr.mxu0 %v5173
    %5236 = vmatpush1.msra.mxu0 %v5172
    %5237 = vmatprep.subr.mxu0 %v5177
    %5238 = vmatpush1.msra.mxu0 %v5176
    %5239 = vmatprep.subr.mxu0 %v5181
    %5240 = vmatpush1.msra.mxu0 %v5180
    %5241 = vmatprep.subr.mxu0 %v5185
    %5242 = vmatpush1.msra.mxu0 %v5184
    %5243 = vmatprep.subr.mxu0 0.0
    %5244 = vmatpush1.msra.mxu0 0.0
    %5245 = vmatprep.subr.mxu0 0.0
    %5246 = vmatpush1.msra.mxu0 0.0
    %5247 = vmatprep.subr.mxu0 0.0
    %5248 = vmatpush1.msra.mxu0 0.0
    %5249 = vmatprep.subr.mxu0 0.0
    %5250 = vmatpush1.msra.mxu0 0.0
    %5251 = vmatprep.subr.mxu0 0.0
    %5252 = vmatpush1.msra.mxu0 0.0
    %5253 = vmatprep.subr.mxu0 0.0
    %5254 = vmatpush1.msra.mxu0 0.0
    %5255 = vmatprep.subr.mxu0 0.0
    %5256 = vmatpush1.msra.mxu0 0.0
    %5257 = vmatprep.subr.mxu0 0.0
    %5258 = vmatpush1.msra.mxu0 0.0
    %5259 = vmatprep.subr.mxu0 0.0
    %5260 = vmatpush1.msra.mxu0 0.0
    %5261 = vmatprep.subr.mxu0 0.0
    %5262 = vmatpush1.msra.mxu0 0.0
    %5263 = vmatprep.subr.mxu0 0.0
    %5264 = vmatpush1.msra.mxu0 0.0
    %5265 = vmatprep.subr.mxu0 0.0
    %5266 = vmatpush1.msra.mxu0 0.0
    %5267 = vmatprep.subr.mxu0 0.0
    %5268 = vmatpush1.msra.mxu0 0.0
    %5269 = vmatprep.subr.mxu0 0.0
    %5270 = vmatpush1.msra.mxu0 0.0
    %5271 = vmatprep.subr.mxu0 0.0
    %5272 = vmatpush1.msra.mxu0 0.0
    %5273 = vmatprep.subr.mxu0 0.0
    %5274 = vmatpush1.msra.mxu0 0.0
    %5275 = vmatprep.mubr.f32.mxu0 0.0
    %5276 = vmatmul.mubr.f32.gmra.mrb[0].mxu0 %v5057
    %v5277 = vpop.f32.mrb[0].mxu0
    %v5278 = vadd.f32 %v5194, %v5277
    %v5279 = vpop.f32.mrb[0].mxu0
    %v5280 = vadd.f32 %v5198, %v5279
    %5281 = vdwg.mxu0
    %5282 = vmatprep.subr.mxu0 %v5127
    %5283 = vmatpush1.msra.mxu0 %v5126
    %5284 = vmatprep.subr.mxu0 %v5131
    %5285 = vmatpush1.msra.mxu0 %v5130
    %5286 = vmatprep.subr.mxu0 %v5135
    %5287 = vmatpush1.msra.mxu0 %v5134
    %5288 = vmatprep.subr.mxu0 %v5139
    %5289 = vmatpush1.msra.mxu0 %v5138
    %5290 = vmatprep.subr.mxu0 %v5143
    %5291 = vmatpush1.msra.mxu0 %v5142
    %5292 = vmatprep.subr.mxu0 %v5147
    %5293 = vmatpush1.msra.mxu0 %v5146
    %5294 = vmatprep.subr.mxu0 %v5151
    %5295 = vmatpush1.msra.mxu0 %v5150
    %5296 = vmatprep.subr.mxu0 %v5155
    %5297 = vmatpush1.msra.mxu0 %v5154
    %5298 = vmatprep.subr.mxu0 %v5159
    %5299 = vmatpush1.msra.mxu0 %v5158
    %5300 = vmatprep.subr.mxu0 %v5163
    %5301 = vmatpush1.msra.mxu0 %v5162
    %5302 = vmatprep.subr.mxu0 %v5167
    %5303 = vmatpush1.msra.mxu0 %v5166
    %5304 = vmatprep.subr.mxu0 %v5171
    %5305 = vmatpush1.msra.mxu0 %v5170
    %5306 = vmatprep.subr.mxu0 %v5175
    %5307 = vmatpush1.msra.mxu0 %v5174
    %5308 = vmatprep.subr.mxu0 %v5179
    %5309 = vmatpush1.msra.mxu0 %v5178
    %5310 = vmatprep.subr.mxu0 %v5183
    %5311 = vmatpush1.msra.mxu0 %v5182
    %5312 = vmatprep.subr.mxu0 %v5187
    %5313 = vmatpush1.msra.mxu0 %v5186
    %5314 = vmatprep.subr.mxu0 0.0
    %5315 = vmatpush1.msra.mxu0 0.0
    %5316 = vmatprep.subr.mxu0 0.0
    %5317 = vmatpush1.msra.mxu0 0.0
    %5318 = vmatprep.subr.mxu0 0.0
    %5319 = vmatpush1.msra.mxu0 0.0
    %5320 = vmatprep.subr.mxu0 0.0
    %5321 = vmatpush1.msra.mxu0 0.0
    %5322 = vmatprep.subr.mxu0 0.0
    %5323 = vmatpush1.msra.mxu0 0.0
    %5324 = vmatprep.subr.mxu0 0.0
    %5325 = vmatpush1.msra.mxu0 0.0
    %5326 = vmatprep.subr.mxu0 0.0
    %5327 = vmatpush1.msra.mxu0 0.0
    %5328 = vmatprep.subr.mxu0 0.0
    %5329 = vmatpush1.msra.mxu0 0.0
    %5330 = vmatprep.subr.mxu0 0.0
    %5331 = vmatpush1.msra.mxu0 0.0
    %5332 = vmatprep.subr.mxu0 0.0
    %5333 = vmatpush1.msra.mxu0 0.0
    %5334 = vmatprep.subr.mxu0 0.0
    %5335 = vmatpush1.msra.mxu0 0.0
    %5336 = vmatprep.subr.mxu0 0.0
    %5337 = vmatpush1.msra.mxu0 0.0
    %5338 = vmatprep.subr.mxu0 0.0
    %5339 = vmatpush1.msra.mxu0 0.0
    %5340 = vmatprep.subr.mxu0 0.0
    %5341 = vmatpush1.msra.mxu0 0.0
    %5342 = vmatprep.subr.mxu0 0.0
    %5343 = vmatpush1.msra.mxu0 0.0
    %5344 = vmatprep.subr.mxu0 0.0
    %5345 = vmatpush1.msra.mxu0 0.0
    %5346 = vmatprep.mubr.f32.mxu0 0.0
    %5347 = vmatmul.mubr.f32.gmra.mrb[0].mxu0 %v5057
    %v5348 = vpop.f32.mrb[0].mxu0
    %v5349 = vadd.f32 %v5202, %v5348
    %v5350 = vpop.f32.mrb[0].mxu0
    %v5351 = vadd.f32 %v5206, %v5350
    %5352 = vdwg.mxu0
    %5353 = vmatprep.subr.mxu0 %v5060
    %5354 = vmatpush1.msra.mxu0 %v5059
    %5355 = vmatprep.subr.mxu0 %v5064
    %5356 = vmatpush1.msra.mxu0 %v5063
    %5357 = vmatprep.subr.mxu0 %v5068
    %5358 = vmatpush1.msra.mxu0 %v5067
    %5359 = vmatprep.subr.mxu0 %v5072
    %5360 = vmatpush1.msra.mxu0 %v5071
    %5361 = vmatprep.subr.mxu0 %v5076
    %5362 = vmatpush1.msra.mxu0 %v5075
    %5363 = vmatprep.subr.mxu0 %v5080
    %5364 = vmatpush1.msra.mxu0 %v5079
    %5365 = vmatprep.subr.mxu0 %v5084
    %5366 = vmatpush1.msra.mxu0 %v5083
    %5367 = vmatprep.subr.mxu0 %v5088
    %5368 = vmatpush1.msra.mxu0 %v5087
    %5369 = vmatprep.subr.mxu0 %v5092
    %5370 = vmatpush1.msra.mxu0 %v5091
    %5371 = vmatprep.subr.mxu0 %v5096
    %5372 = vmatpush1.msra.mxu0 %v5095
    %5373 = vmatprep.subr.mxu0 %v5100
    %5374 = vmatpush1.msra.mxu0 %v5099
    %5375 = vmatprep.subr.mxu0 %v5104
    %5376 = vmatpush1.msra.mxu0 %v5103
    %5377 = vmatprep.subr.mxu0 %v5108
    %5378 = vmatpush1.msra.mxu0 %v5107
    %5379 = vmatprep.subr.mxu0 %v5112
    %5380 = vmatpush1.msra.mxu0 %v5111
    %5381 = vmatprep.subr.mxu0 %v5116
    %5382 = vmatpush1.msra.mxu0 %v5115
    %5383 = vmatprep.subr.mxu0 %v5120
    %5384 = vmatpush1.msra.mxu0 %v5119
    %5385 = vmatprep.subr.mxu0 0.0
    %5386 = vmatpush1.msra.mxu0 0.0
    %5387 = vmatprep.subr.mxu0 0.0
    %5388 = vmatpush1.msra.mxu0 0.0
    %5389 = vmatprep.subr.mxu0 0.0
    %5390 = vmatpush1.msra.mxu0 0.0
    %5391 = vmatprep.subr.mxu0 0.0
    %5392 = vmatpush1.msra.mxu0 0.0
    %5393 = vmatprep.subr.mxu0 0.0
    %5394 = vmatpush1.msra.mxu0 0.0
    %5395 = vmatprep.subr.mxu0 0.0
    %5396 = vmatpush1.msra.mxu0 0.0
    %5397 = vmatprep.subr.mxu0 0.0
    %5398 = vmatpush1.msra.mxu0 0.0
    %5399 = vmatprep.subr.mxu0 0.0
    %5400 = vmatpush1.msra.mxu0 0.0
    %5401 = vmatprep.subr.mxu0 0.0
    %5402 = vmatpush1.msra.mxu0 0.0
    %5403 = vmatprep.subr.mxu0 0.0
    %5404 = vmatpush1.msra.mxu0 0.0
    %5405 = vmatprep.subr.mxu0 0.0
    %5406 = vmatpush1.msra.mxu0 0.0
    %5407 = vmatprep.subr.mxu0 0.0
    %5408 = vmatpush1.msra.mxu0 0.0
    %5409 = vmatprep.subr.mxu0 0.0
    %5410 = vmatpush1.msra.mxu0 0.0
    %5411 = vmatprep.subr.mxu0 0.0
    %5412 = vmatpush1.msra.mxu0 0.0
    %5413 = vmatprep.subr.mxu0 0.0
    %5414 = vmatpush1.msra.mxu0 0.0
    %5415 = vmatprep.subr.mxu0 0.0
    %5416 = vmatpush1.msra.mxu0 0.0
    %5417 = vmatprep.mubr.f32.mxu0 0.0
    %5418 = vmatmul.mubr.f32.gmra.mrb[0].mxu0 %v5057
    %v5419 = vpop.f32.mrb[0].mxu0
    %v5420 = vadd.f32 %v5278, %v5419
    %v5421 = vpop.f32.mrb[0].mxu0
    %v5422 = vadd.f32 %v5280, %v5421
    %5423 = vdwg.mxu0
    %5424 = vmatprep.subr.mxu0 %v5062
    %5425 = vmatpush1.msra.mxu0 %v5061
    %5426 = vmatprep.subr.mxu0 %v5066
    %5427 = vmatpush1.msra.mxu0 %v5065
    %5428 = vmatprep.subr.mxu0 %v5070
    %5429 = vmatpush1.msra.mxu0 %v5069
    %5430 = vmatprep.subr.mxu0 %v5074
    %5431 = vmatpush1.msra.mxu0 %v5073
    %5432 = vmatprep.subr.mxu0 %v5078
    %5433 = vmatpush1.msra.mxu0 %v5077
    %5434 = vmatprep.subr.mxu0 %v5082
    %5435 = vmatpush1.msra.mxu0 %v5081
    %5436 = vmatprep.subr.mxu0 %v5086
    %5437 = vmatpush1.msra.mxu0 %v5085
    %5438 = vmatprep.subr.mxu0 %v5090
    %5439 = vmatpush1.msra.mxu0 %v5089
    %5440 = vmatprep.subr.mxu0 %v5094
    %5441 = vmatpush1.msra.mxu0 %v5093
    %5442 = vmatprep.subr.mxu0 %v5098
    %5443 = vmatpush1.msra.mxu0 %v5097
    %5444 = vmatprep.subr.mxu0 %v5102
    %5445 = vmatpush1.msra.mxu0 %v5101
    %5446 = vmatprep.subr.mxu0 %v5106
    %5447 = vmatpush1.msra.mxu0 %v5105
    %5448 = vmatprep.subr.mxu0 %v5110
    %5449 = vmatpush1.msra.mxu0 %v5109
    %5450 = vmatprep.subr.mxu0 %v5114
    %5451 = vmatpush1.msra.mxu0 %v5113
    %5452 = vmatprep.subr.mxu0 %v5118
    %5453 = vmatpush1.msra.mxu0 %v5117
    %5454 = vmatprep.subr.mxu0 %v5122
    %5455 = vmatpush1.msra.mxu0 %v5121
    %5456 = vmatprep.subr.mxu0 0.0
    %5457 = vmatpush1.msra.mxu0 0.0
    %5458 = vmatprep.subr.mxu0 0.0
    %5459 = vmatpush1.msra.mxu0 0.0
    %5460 = vmatprep.subr.mxu0 0.0
    %5461 = vmatpush1.msra.mxu0 0.0
    %5462 = vmatprep.subr.mxu0 0.0
    %5463 = vmatpush1.msra.mxu0 0.0
    %5464 = vmatprep.subr.mxu0 0.0
    %5465 = vmatpush1.msra.mxu0 0.0
    %5466 = vmatprep.subr.mxu0 0.0
    %5467 = vmatpush1.msra.mxu0 0.0
    %5468 = vmatprep.subr.mxu0 0.0
    %5469 = vmatpush1.msra.mxu0 0.0
    %5470 = vmatprep.subr.mxu0 0.0
    %5471 = vmatpush1.msra.mxu0 0.0
    %5472 = vmatprep.subr.mxu0 0.0
    %5473 = vmatpush1.msra.mxu0 0.0
    %5474 = vmatprep.subr.mxu0 0.0
    %5475 = vmatpush1.msra.mxu0 0.0
    %5476 = vmatprep.subr.mxu0 0.0
    %5477 = vmatpush1.msra.mxu0 0.0
    %5478 = vmatprep.subr.mxu0 0.0
    %5479 = vmatpush1.msra.mxu0 0.0
    %5480 = vmatprep.subr.mxu0 0.0
    %5481 = vmatpush1.msra.mxu0 0.0
    %5482 = vmatprep.subr.mxu0 0.0
    %5483 = vmatpush1.msra.mxu0 0.0
    %5484 = vmatprep.subr.mxu0 0.0
    %5485 = vmatpush1.msra.mxu0 0.0
    %5486 = vmatprep.subr.mxu0 0.0
    %5487 = vmatpush1.msra.mxu0 0.0
    %5488 = vmatprep.mubr.f32.mxu0 0.0
    %5489 = vmatmul.mubr.f32.gmra.mrb[0].mxu0 %v5057
    %v5490 = vpop.f32.mrb[0].mxu0
    %v5491 = vadd.f32 %v5349, %v5490
    %v5492 = vpop.f32.mrb[0].mxu0
    %v5493 = vadd.f32 %v5351, %v5492
    %5494 = vdwg.mxu0
    %v5495 = vxor.u32 %v5420, 2147483648
    %v5496 = vmul.f32 %v5495, 1.442695
    %v5497 = vpow.pop %v5496
    %v5498 = vadd.f32 %v5497, 1.0
    %v5499 = vrcp.pop %v5498
    %v5500 = vmul.f32 1.0, %v5499
    %v5501 = vxor.u32 %v5422, 2147483648
    %v5502 = vmul.f32 %v5501, 1.442695
    %v5503 = vpow.pop %v5502
    %v5504 = vadd.f32 %v5503, 1.0
    %v5505 = vrcp.pop %v5504
    %v5506 = vmul.f32 1.0, %v5505
    %v5507 = vtanh.pop %v5491
    %v5508 = vxor.u32 %v5493, 2147483648
    %v5509 = vmul.f32 %v5508, 1.442695
    %v5510 = vpow.pop %v5509
    %v5511 = vadd.f32 %v5510, 1.0
    %v5512 = vrcp.pop %v5511
    %v5513 = vmul.f32 1.0, %v5512
    %v5514 = vmul.f32 %v5506, %v5055
    %v5515 = vmul.f32 %v5500, %v5507
    %v5516 = vadd.f32 %v5514, %v5515
    %v5517 = vtanh.pop %v5516
    %v5518 = vmul.f32 %v5513, %v5517
    %5519 = vmatprep.subr.mxu0 %v5060
    %5520 = vmatpush1.msra.mxu0 %v5059
    %5521 = vmatprep.subr.mxu0 %v5064
    %5522 = vmatpush1.msra.mxu0 %v5063
    %5523 = vmatprep.subr.mxu0 %v5068
    %5524 = vmatpush1.msra.mxu0 %v5067
    %5525 = vmatprep.subr.mxu0 %v5072
    %5526 = vmatpush1.msra.mxu0 %v5071
    %5527 = vmatprep.subr.mxu0 %v5076
    %5528 = vmatpush1.msra.mxu0 %v5075
    %5529 = vmatprep.subr.mxu0 %v5080
    %5530 = vmatpush1.msra.mxu0 %v5079
    %5531 = vmatprep.subr.mxu0 %v5084
    %5532 = vmatpush1.msra.mxu0 %v5083
    %5533 = vmatprep.subr.mxu0 %v5088
    %5534 = vmatpush1.msra.mxu0 %v5087
    %5535 = vmatprep.subr.mxu0 %v5092
    %5536 = vmatpush1.msra.mxu0 %v5091
    %5537 = vmatprep.subr.mxu0 %v5096
    %5538 = vmatpush1.msra.mxu0 %v5095
    %5539 = vmatprep.subr.mxu0 %v5100
    %5540 = vmatpush1.msra.mxu0 %v5099
    %5541 = vmatprep.subr.mxu0 %v5104
    %5542 = vmatpush1.msra.mxu0 %v5103
    %5543 = vmatprep.subr.mxu0 %v5108
    %5544 = vmatpush1.msra.mxu0 %v5107
    %5545 = vmatprep.subr.mxu0 %v5112
    %5546 = vmatpush1.msra.mxu0 %v5111
    %5547 = vmatprep.subr.mxu0 %v5116
    %5548 = vmatpush1.msra.mxu0 %v5115
    %5549 = vmatprep.subr.mxu0 %v5120
    %5550 = vmatpush1.msra.mxu0 %v5119
    %5551 = vmatprep.subr.mxu0 0.0
    %5552 = vmatpush1.msra.mxu0 0.0
    %5553 = vmatprep.subr.mxu0 0.0
    %5554 = vmatpush1.msra.mxu0 0.0
    %5555 = vmatprep.subr.mxu0 0.0
    %5556 = vmatpush1.msra.mxu0 0.0
    %5557 = vmatprep.subr.mxu0 0.0
    %5558 = vmatpush1.msra.mxu0 0.0
    %5559 = vmatprep.subr.mxu0 0.0
    %5560 = vmatpush1.msra.mxu0 0.0
    %5561 = vmatprep.subr.mxu0 0.0
    %5562 = vmatpush1.msra.mxu0 0.0
    %5563 = vmatprep.subr.mxu0 0.0
    %5564 = vmatpush1.msra.mxu0 0.0
    %5565 = vmatprep.subr.mxu0 0.0
    %5566 = vmatpush1.msra.mxu0 0.0
    %5567 = vmatprep.subr.mxu0 0.0
    %5568 = vmatpush1.msra.mxu0 0.0
    %5569 = vmatprep.subr.mxu0 0.0
    %5570 = vmatpush1.msra.mxu0 0.0
    %5571 = vmatprep.subr.mxu0 0.0
    %5572 = vmatpush1.msra.mxu0 0.0
    %5573 = vmatprep.subr.mxu0 0.0
    %5574 = vmatpush1.msra.mxu0 0.0
    %5575 = vmatprep.subr.mxu0 0.0
    %5576 = vmatpush1.msra.mxu0 0.0
    %5577 = vmatprep.subr.mxu0 0.0
    %5578 = vmatpush1.msra.mxu0 0.0
    %5579 = vmatprep.subr.mxu0 0.0
    %5580 = vmatpush1.msra.mxu0 0.0
    %5581 = vmatprep.subr.mxu0 0.0
    %5582 = vmatpush1.msra.mxu0 0.0
    %5583 = vmatprep.mubr.f32.mxu0 0.0
    %5584 = vmatmul.mubr.f32.gmra.mrb[0].mxu0 %v5518
    %v5585 = vpop.f32.mrb[0].mxu0
    %v5586 = vadd.f32 %v5278, %v5585
    %v5587 = vpop.f32.mrb[0].mxu0
    %v5588 = vadd.f32 %v5280, %v5587
    %5589 = vdwg.mxu0
    %5590 = vmatprep.subr.mxu0 %v5062
    %5591 = vmatpush1.msra.mxu0 %v5061
    %5592 = vmatprep.subr.mxu0 %v5066
    %5593 = vmatpush1.msra.mxu0 %v5065
    %5594 = vmatprep.subr.mxu0 %v5070
    %5595 = vmatpush1.msra.mxu0 %v5069
    %5596 = vmatprep.subr.mxu0 %v5074
    %5597 = vmatpush1.msra.mxu0 %v5073
    %5598 = vmatprep.subr.mxu0 %v5078
    %5599 = vmatpush1.msra.mxu0 %v5077
    %5600 = vmatprep.subr.mxu0 %v5082
    %5601 = vmatpush1.msra.mxu0 %v5081
    %5602 = vmatprep.subr.mxu0 %v5086
    %5603 = vmatpush1.msra.mxu0 %v5085
    %5604 = vmatprep.subr.mxu0 %v5090
    %5605 = vmatpush1.msra.mxu0 %v5089
    %5606 = vmatprep.subr.mxu0 %v5094
    %5607 = vmatpush1.msra.mxu0 %v5093
    %5608 = vmatprep.subr.mxu0 %v5098
    %5609 = vmatpush1.msra.mxu0 %v5097
    %5610 = vmatprep.subr.mxu0 %v5102
    %5611 = vmatpush1.msra.mxu0 %v5101
    %5612 = vmatprep.subr.mxu0 %v5106
    %5613 = vmatpush1.msra.mxu0 %v5105
    %5614 = vmatprep.subr.mxu0 %v5110
    %5615 = vmatpush1.msra.mxu0 %v5109
    %5616 = vmatprep.subr.mxu0 %v5114
    %5617 = vmatpush1.msra.mxu0 %v5113
    %5618 = vmatprep.subr.mxu0 %v5118
    %5619 = vmatpush1.msra.mxu0 %v5117
    %5620 = vmatprep.subr.mxu0 %v5122
    %5621 = vmatpush1.msra.mxu0 %v5121
    %5622 = vmatprep.subr.mxu0 0.0
    %5623 = vmatpush1.msra.mxu0 0.0
    %5624 = vmatprep.subr.mxu0 0.0
    %5625 = vmatpush1.msra.mxu0 0.0
    %5626 = vmatprep.subr.mxu0 0.0
    %5627 = vmatpush1.msra.mxu0 0.0
    %5628 = vmatprep.subr.mxu0 0.0
    %5629 = vmatpush1.msra.mxu0 0.0
    %5630 = vmatprep.subr.mxu0 0.0
    %5631 = vmatpush1.msra.mxu0 0.0
    %5632 = vmatprep.subr.mxu0 0.0
    %5633 = vmatpush1.msra.mxu0 0.0
    %5634 = vmatprep.subr.mxu0 0.0
    %5635 = vmatpush1.msra.mxu0 0.0
    %5636 = vmatprep.subr.mxu0 0.0
    %5637 = vmatpush1.msra.mxu0 0.0
    %5638 = vmatprep.subr.mxu0 0.0
    %5639 = vmatpush1.msra.mxu0 0.0
    %5640 = vmatprep.subr.mxu0 0.0
    %5641 = vmatpush1.msra.mxu0 0.0
    %5642 = vmatprep.subr.mxu0 0.0
    %5643 = vmatpush1.msra.mxu0 0.0
    %5644 = vmatprep.subr.mxu0 0.0
    %5645 = vmatpush1.msra.mxu0 0.0
    %5646 = vmatprep.subr.mxu0 0.0
    %5647 = vmatpush1.msra.mxu0 0.0
    %5648 = vmatprep.subr.mxu0 0.0
    %5649 = vmatpush1.msra.mxu0 0.0
    %5650 = vmatprep.subr.mxu0 0.0
    %5651 = vmatpush1.msra.mxu0 0.0
    %5652 = vmatprep.subr.mxu0 0.0
    %5653 = vmatpush1.msra.mxu0 0.0
    %5654 = vmatprep.mubr.f32.mxu0 0.0
    %5655 = vmatmul.mubr.f32.gmra.mrb[0].mxu0 %v5518
    %v5656 = vpop.f32.mrb[0].mxu0
    %v5657 = vadd.f32 %v5349, %v5656
    %v5658 = vpop.f32.mrb[0].mxu0
    %v5659 = vadd.f32 %v5351, %v5658
    %5660 = vdwg.mxu0
    %v5661 = vxor.u32 %v5586, 2147483648
    %v5662 = vmul.f32 %v5661, 1.442695
    %v5663 = vpow.pop %v5662
    %v5664 = vadd.f32 %v5663, 1.0
    %v5665 = vrcp.pop %v5664
    %v5666 = vmul.f32 1.0, %v5665
    %v5667 = vxor.u32 %v5588, 2147483648
    %v5668 = vmul.f32 %v5667, 1.442695
    %v5669 = vpow.pop %v5668
    %v5670 = vadd.f32 %v5669, 1.0
    %v5671 = vrcp.pop %v5670
    %v5672 = vmul.f32 1.0, %v5671
    %v5673 = vtanh.pop %v5657
    %v5674 = vxor.u32 %v5659, 2147483648
    %v5675 = vmul.f32 %v5674, 1.442695
    %v5676 = vpow.pop %v5675
    %v5677 = vadd.f32 %v5676, 1.0
    %v5678 = vrcp.pop %v5677
    %v5679 = vmul.f32 1.0, %v5678
    %v5680 = vmul.f32 %v5672, %v5055
    %v5681 = vmul.f32 %v5666, %v5673
    %v5682 = vadd.f32 %v5680, %v5681
    %v5683 = vtanh.pop %v5682
    %v5684 = vmul.f32 %v5679, %v5683
    %5685 = vmatprep.subr.mxu0 %v5060
    %5686 = vmatpush1.msra.mxu0 %v5059
    %5687 = vmatprep.subr.mxu0 %v5064
    %5688 = vmatpush1.msra.mxu0 %v5063
    %5689 = vmatprep.subr.mxu0 %v5068
    %5690 = vmatpush1.msra.mxu0 %v5067
    %5691 = vmatprep.subr.mxu0 %v5072
    %5692 = vmatpush1.msra.mxu0 %v5071
    %5693 = vmatprep.subr.mxu0 %v5076
    %5694 = vmatpush1.msra.mxu0 %v5075
    %5695 = vmatprep.subr.mxu0 %v5080
    %5696 = vmatpush1.msra.mxu0 %v5079
    %5697 = vmatprep.subr.mxu0 %v5084
    %5698 = vmatpush1.msra.mxu0 %v5083
    %5699 = vmatprep.subr.mxu0 %v5088
    %5700 = vmatpush1.msra.mxu0 %v5087
    %5701 = vmatprep.subr.mxu0 %v5092
    %5702 = vmatpush1.msra.mxu0 %v5091
    %5703 = vmatprep.subr.mxu0 %v5096
    %5704 = vmatpush1.msra.mxu0 %v5095
    %5705 = vmatprep.subr.mxu0 %v5100
    %5706 = vmatpush1.msra.mxu0 %v5099
    %5707 = vmatprep.subr.mxu0 %v5104
    %5708 = vmatpush1.msra.mxu0 %v5103
    %5709 = vmatprep.subr.mxu0 %v5108
    %5710 = vmatpush1.msra.mxu0 %v5107
    %5711 = vmatprep.subr.mxu0 %v5112
    %5712 = vmatpush1.msra.mxu0 %v5111
    %5713 = vmatprep.subr.mxu0 %v5116
    %5714 = vmatpush1.msra.mxu0 %v5115
    %5715 = vmatprep.subr.mxu0 %v5120
    %5716 = vmatpush1.msra.mxu0 %v5119
    %5717 = vmatprep.subr.mxu0 0.0
    %5718 = vmatpush1.msra.mxu0 0.0
    %5719 = vmatprep.subr.mxu0 0.0
    %5720 = vmatpush1.msra.mxu0 0.0
    %5721 = vmatprep.subr.mxu0 0.0
    %5722 = vmatpush1.msra.mxu0 0.0
    %5723 = vmatprep.subr.mxu0 0.0
    %5724 = vmatpush1.msra.mxu0 0.0
    %5725 = vmatprep.subr.mxu0 0.0
    %5726 = vmatpush1.msra.mxu0 0.0
    %5727 = vmatprep.subr.mxu0 0.0
    %5728 = vmatpush1.msra.mxu0 0.0
    %5729 = vmatprep.subr.mxu0 0.0
    %5730 = vmatpush1.msra.mxu0 0.0
    %5731 = vmatprep.subr.mxu0 0.0
    %5732 = vmatpush1.msra.mxu0 0.0
    %5733 = vmatprep.subr.mxu0 0.0
    %5734 = vmatpush1.msra.mxu0 0.0
    %5735 = vmatprep.subr.mxu0 0.0
    %5736 = vmatpush1.msra.mxu0 0.0
    %5737 = vmatprep.subr.mxu0 0.0
    %5738 = vmatpush1.msra.mxu0 0.0
    %5739 = vmatprep.subr.mxu0 0.0
    %5740 = vmatpush1.msra.mxu0 0.0
    %5741 = vmatprep.subr.mxu0 0.0
    %5742 = vmatpush1.msra.mxu0 0.0
    %5743 = vmatprep.subr.mxu0 0.0
    %5744 = vmatpush1.msra.mxu0 0.0
    %5745 = vmatprep.subr.mxu0 0.0
    %5746 = vmatpush1.msra.mxu0 0.0
    %5747 = vmatprep.subr.mxu0 0.0
    %5748 = vmatpush1.msra.mxu0 0.0
    %5749 = vmatprep.mubr.f32.mxu0 0.0
    %5750 = vmatmul.mubr.f32.gmra.mrb[0].mxu0 %v5684
    %v5751 = vpop.f32.mrb[0].mxu0
    %v5752 = vadd.f32 %v5278, %v5751
    %v5753 = vpop.f32.mrb[0].mxu0
    %v5754 = vadd.f32 %v5280, %v5753
    %5755 = vdwg.mxu0
    %5756 = vmatprep.subr.mxu0 %v5062
    %5757 = vmatpush1.msra.mxu0 %v5061
    %5758 = vmatprep.subr.mxu0 %v5066
    %5759 = vmatpush1.msra.mxu0 %v5065
    %5760 = vmatprep.subr.mxu0 %v5070
    %5761 = vmatpush1.msra.mxu0 %v5069
    %5762 = vmatprep.subr.mxu0 %v5074
    %5763 = vmatpush1.msra.mxu0 %v5073
    %5764 = vmatprep.subr.mxu0 %v5078
    %5765 = vmatpush1.msra.mxu0 %v5077
    %5766 = vmatprep.subr.mxu0 %v5082
    %5767 = vmatpush1.msra.mxu0 %v5081
    %5768 = vmatprep.subr.mxu0 %v5086
    %5769 = vmatpush1.msra.mxu0 %v5085
    %5770 = vmatprep.subr.mxu0 %v5090
    %5771 = vmatpush1.msra.mxu0 %v5089
    %5772 = vmatprep.subr.mxu0 %v5094
    %5773 = vmatpush1.msra.mxu0 %v5093
    %5774 = vmatprep.subr.mxu0 %v5098
    %5775 = vmatpush1.msra.mxu0 %v5097
    %5776 = vmatprep.subr.mxu0 %v5102
    %5777 = vmatpush1.msra.mxu0 %v5101
    %5778 = vmatprep.subr.mxu0 %v5106
    %5779 = vmatpush1.msra.mxu0 %v5105
    %5780 = vmatprep.subr.mxu0 %v5110
    %5781 = vmatpush1.msra.mxu0 %v5109
    %5782 = vmatprep.subr.mxu0 %v5114
    %5783 = vmatpush1.msra.mxu0 %v5113
    %5784 = vmatprep.subr.mxu0 %v5118
    %5785 = vmatpush1.msra.mxu0 %v5117
    %5786 = vmatprep.subr.mxu0 %v5122
    %5787 = vmatpush1.msra.mxu0 %v5121
    %5788 = vmatprep.subr.mxu0 0.0
    %5789 = vmatpush1.msra.mxu0 0.0
    %5790 = vmatprep.subr.mxu0 0.0
    %5791 = vmatpush1.msra.mxu0 0.0
    %5792 = vmatprep.subr.mxu0 0.0
    %5793 = vmatpush1.msra.mxu0 0.0
    %5794 = vmatprep.subr.mxu0 0.0
    %5795 = vmatpush1.msra.mxu0 0.0
    %5796 = vmatprep.subr.mxu0 0.0
    %5797 = vmatpush1.msra.mxu0 0.0
    %5798 = vmatprep.subr.mxu0 0.0
    %5799 = vmatpush1.msra.mxu0 0.0
    %5800 = vmatprep.subr.mxu0 0.0
    %5801 = vmatpush1.msra.mxu0 0.0
    %5802 = vmatprep.subr.mxu0 0.0
    %5803 = vmatpush1.msra.mxu0 0.0
    %5804 = vmatprep.subr.mxu0 0.0
    %5805 = vmatpush1.msra.mxu0 0.0
    %5806 = vmatprep.subr.mxu0 0.0
    %5807 = vmatpush1.msra.mxu0 0.0
    %5808 = vmatprep.subr.mxu0 0.0
    %5809 = vmatpush1.msra.mxu0 0.0
    %5810 = vmatprep.subr.mxu0 0.0
    %5811 = vmatpush1.msra.mxu0 0.0
    %5812 = vmatprep.subr.mxu0 0.0
    %5813 = vmatpush1.msra.mxu0 0.0
    %5814 = vmatprep.subr.mxu0 0.0
    %5815 = vmatpush1.msra.mxu0 0.0
    %5816 = vmatprep.subr.mxu0 0.0
    %5817 = vmatpush1.msra.mxu0 0.0
    %5818 = vmatprep.subr.mxu0 0.0
    %5819 = vmatpush1.msra.mxu0 0.0
    %5820 = vmatprep.mubr.f32.mxu0 0.0
    %5821 = vmatmul.mubr.f32.gmra.mrb[0].mxu0 %v5684
    %v5822 = vpop.f32.mrb[0].mxu0
    %v5823 = vadd.f32 %v5349, %v5822
    %v5824 = vpop.f32.mrb[0].mxu0
    %v5825 = vadd.f32 %v5351, %v5824
    %5826 = vdwg.mxu0
    %v5827 = vxor.u32 %v5752, 2147483648
    %v5828 = vmul.f32 %v5827, 1.442695
    %v5829 = vpow.pop %v5828
    %v5830 = vadd.f32 %v5829, 1.0
    %v5831 = vrcp.pop %v5830
    %v5832 = vmul.f32 1.0, %v5831
    %v5833 = vxor.u32 %v5754, 2147483648
    %v5834 = vmul.f32 %v5833, 1.442695
    %v5835 = vpow.pop %v5834
    %v5836 = vadd.f32 %v5835, 1.0
    %v5837 = vrcp.pop %v5836
    %v5838 = vmul.f32 1.0, %v5837
    %v5839 = vtanh.pop %v5823
    %v5840 = vxor.u32 %v5825, 2147483648
    %v5841 = vmul.f32 %v5840, 1.442695
    %v5842 = vpow.pop %v5841
    %v5843 = vadd.f32 %v5842, 1.0
    %v5844 = vrcp.pop %v5843
    %v5845 = vmul.f32 1.0, %v5844
    %v5846 = vmul.f32 %v5838, %v5055
    %v5847 = vmul.f32 %v5832, %v5839
    %v5848 = vadd.f32 %v5846, %v5847
    %v5849 = vtanh.pop %v5848
    %v5850 = vmul.f32 %v5845, %v5849
    %5851 = vmatprep.subr.mxu0 %v5060
    %5852 = vmatpush1.msra.mxu0 %v5059
    %5853 = vmatprep.subr.mxu0 %v5064
    %5854 = vmatpush1.msra.mxu0 %v5063
    %5855 = vmatprep.subr.mxu0 %v5068
    %5856 = vmatpush1.msra.mxu0 %v5067
    %5857 = vmatprep.subr.mxu0 %v5072
    %5858 = vmatpush1.msra.mxu0 %v5071
    %5859 = vmatprep.subr.mxu0 %v5076
    %5860 = vmatpush1.msra.mxu0 %v5075
    %5861 = vmatprep.subr.mxu0 %v5080
    %5862 = vmatpush1.msra.mxu0 %v5079
    %5863 = vmatprep.subr.mxu0 %v5084
    %5864 = vmatpush1.msra.mxu0 %v5083
    %5865 = vmatprep.subr.mxu0 %v5088
    %5866 = vmatpush1.msra.mxu0 %v5087
    %5867 = vmatprep.subr.mxu0 %v5092
    %5868 = vmatpush1.msra.mxu0 %v5091
    %5869 = vmatprep.subr.mxu0 %v5096
    %5870 = vmatpush1.msra.mxu0 %v5095
    %5871 = vmatprep.subr.mxu0 %v5100
    %5872 = vmatpush1.msra.mxu0 %v5099
    %5873 = vmatprep.subr.mxu0 %v5104
    %5874 = vmatpush1.msra.mxu0 %v5103
    %5875 = vmatprep.subr.mxu0 %v5108
    %5876 = vmatpush1.msra.mxu0 %v5107
    %5877 = vmatprep.subr.mxu0 %v5112
    %5878 = vmatpush1.msra.mxu0 %v5111
    %5879 = vmatprep.subr.mxu0 %v5116
    %5880 = vmatpush1.msra.mxu0 %v5115
    %5881 = vmatprep.subr.mxu0 %v5120
    %5882 = vmatpush1.msra.mxu0 %v5119
    %5883 = vmatprep.subr.mxu0 0.0
    %5884 = vmatpush1.msra.mxu0 0.0
    %5885 = vmatprep.subr.mxu0 0.0
    %5886 = vmatpush1.msra.mxu0 0.0
    %5887 = vmatprep.subr.mxu0 0.0
    %5888 = vmatpush1.msra.mxu0 0.0
    %5889 = vmatprep.subr.mxu0 0.0
    %5890 = vmatpush1.msra.mxu0 0.0
    %5891 = vmatprep.subr.mxu0 0.0
    %5892 = vmatpush1.msra.mxu0 0.0
    %5893 = vmatprep.subr.mxu0 0.0
    %5894 = vmatpush1.msra.mxu0 0.0
    %5895 = vmatprep.subr.mxu0 0.0
    %5896 = vmatpush1.msra.mxu0 0.0
    %5897 = vmatprep.subr.mxu0 0.0
    %5898 = vmatpush1.msra.mxu0 0.0
    %5899 = vmatprep.subr.mxu0 0.0
    %5900 = vmatpush1.msra.mxu0 0.0
    %5901 = vmatprep.subr.mxu0 0.0
    %5902 = vmatpush1.msra.mxu0 0.0
    %5903 = vmatprep.subr.mxu0 0.0
    %5904 = vmatpush1.msra.mxu0 0.0
    %5905 = vmatprep.subr.mxu0 0.0
    %5906 = vmatpush1.msra.mxu0 0.0
    %5907 = vmatprep.subr.mxu0 0.0
    %5908 = vmatpush1.msra.mxu0 0.0
    %5909 = vmatprep.subr.mxu0 0.0
    %5910 = vmatpush1.msra.mxu0 0.0
    %5911 = vmatprep.subr.mxu0 0.0
    %5912 = vmatpush1.msra.mxu0 0.0
    %5913 = vmatprep.subr.mxu0 0.0
    %5914 = vmatpush1.msra.mxu0 0.0
    %5915 = vmatprep.mubr.f32.mxu0 0.0
    %5916 = vmatmul.mubr.f32.gmra.mrb[0].mxu0 %v5850
    %v5917 = vpop.f32.mrb[0].mxu0
    %v5918 = vadd.f32 %v5278, %v5917
    %v5919 = vpop.f32.mrb[0].mxu0
    %v5920 = vadd.f32 %v5280, %v5919
    %5921 = vdwg.mxu0
    %5922 = vmatprep.subr.mxu0 %v5062
    %5923 = vmatpush1.msra.mxu0 %v5061
    %5924 = vmatprep.subr.mxu0 %v5066
    %5925 = vmatpush1.msra.mxu0 %v5065
    %5926 = vmatprep.subr.mxu0 %v5070
    %5927 = vmatpush1.msra.mxu0 %v5069
    %5928 = vmatprep.subr.mxu0 %v5074
    %5929 = vmatpush1.msra.mxu0 %v5073
    %5930 = vmatprep.subr.mxu0 %v5078
    %5931 = vmatpush1.msra.mxu0 %v5077
    %5932 = vmatprep.subr.mxu0 %v5082
    %5933 = vmatpush1.msra.mxu0 %v5081
    %5934 = vmatprep.subr.mxu0 %v5086
    %5935 = vmatpush1.msra.mxu0 %v5085
    %5936 = vmatprep.subr.mxu0 %v5090
    %5937 = vmatpush1.msra.mxu0 %v5089
    %5938 = vmatprep.subr.mxu0 %v5094
    %5939 = vmatpush1.msra.mxu0 %v5093
    %5940 = vmatprep.subr.mxu0 %v5098
    %5941 = vmatpush1.msra.mxu0 %v5097
    %5942 = vmatprep.subr.mxu0 %v5102
    %5943 = vmatpush1.msra.mxu0 %v5101
    %5944 = vmatprep.subr.mxu0 %v5106
    %5945 = vmatpush1.msra.mxu0 %v5105
    %5946 = vmatprep.subr.mxu0 %v5110
    %5947 = vmatpush1.msra.mxu0 %v5109
    %5948 = vmatprep.subr.mxu0 %v5114
    %5949 = vmatpush1.msra.mxu0 %v5113
    %5950 = vmatprep.subr.mxu0 %v5118
    %5951 = vmatpush1.msra.mxu0 %v5117
    %5952 = vmatprep.subr.mxu0 %v5122
    %5953 = vmatpush1.msra.mxu0 %v5121
    %5954 = vmatprep.subr.mxu0 0.0
    %5955 = vmatpush1.msra.mxu0 0.0
    %5956 = vmatprep.subr.mxu0 0.0
    %5957 = vmatpush1.msra.mxu0 0.0
    %5958 = vmatprep.subr.mxu0 0.0
    %5959 = vmatpush1.msra.mxu0 0.0
    %5960 = vmatprep.subr.mxu0 0.0
    %5961 = vmatpush1.msra.mxu0 0.0
    %5962 = vmatprep.subr.mxu0 0.0
    %5963 = vmatpush1.msra.mxu0 0.0
    %5964 = vmatprep.subr.mxu0 0.0
    %5965 = vmatpush1.msra.mxu0 0.0
    %5966 = vmatprep.subr.mxu0 0.0
    %5967 = vmatpush1.msra.mxu0 0.0
    %5968 = vmatprep.subr.mxu0 0.0
    %5969 = vmatpush1.msra.mxu0 0.0
    %5970 = vmatprep.subr.mxu0 0.0
    %5971 = vmatpush1.msra.mxu0 0.0
    %5972 = vmatprep.subr.mxu0 0.0
    %5973 = vmatpush1.msra.mxu0 0.0
    %5974 = vmatprep.subr.mxu0 0.0
    %5975 = vmatpush1.msra.mxu0 0.0
    %5976 = vmatprep.subr.mxu0 0.0
    %5977 = vmatpush1.msra.mxu0 0.0
    %5978 = vmatprep.subr.mxu0 0.0
    %5979 = vmatpush1.msra.mxu0 0.0
    %5980 = vmatprep.subr.mxu0 0.0
    %5981 = vmatpush1.msra.mxu0 0.0
    %5982 = vmatprep.subr.mxu0 0.0
    %5983 = vmatpush1.msra.mxu0 0.0
    %5984 = vmatprep.subr.mxu0 0.0
    %5985 = vmatpush1.msra.mxu0 0.0
    %5986 = vmatprep.mubr.f32.mxu0 0.0
    %5987 = vmatmul.mubr.f32.gmra.mrb[0].mxu0 %v5850
    %v5988 = vpop.f32.mrb[0].mxu0
    %v5989 = vadd.f32 %v5349, %v5988
    %v5990 = vpop.f32.mrb[0].mxu0
    %v5991 = vadd.f32 %v5351, %v5990
    %5992 = vdwg.mxu0
    %v5993 = vxor.u32 %v5918, 2147483648
    %v5994 = vmul.f32 %v5993, 1.442695
    %v5995 = vpow.pop %v5994
    %v5996 = vadd.f32 %v5995, 1.0
    %v5997 = vrcp.pop %v5996
    %v5998 = vmul.f32 1.0, %v5997
    %v5999 = vxor.u32 %v5920, 2147483648
    %v6000 = vmul.f32 %v5999, 1.442695
    %v6001 = vpow.pop %v6000
    %v6002 = vadd.f32 %v6001, 1.0
    %v6003 = vrcp.pop %v6002
    %v6004 = vmul.f32 1.0, %v6003
    %v6005 = vtanh.pop %v5989
    %v6006 = vxor.u32 %v5991, 2147483648
    %v6007 = vmul.f32 %v6006, 1.442695
    %v6008 = vpow.pop %v6007
    %v6009 = vadd.f32 %v6008, 1.0
    %v6010 = vrcp.pop %v6009
    %v6011 = vmul.f32 1.0, %v6010
    %v6012 = vmul.f32 %v6004, %v5055
    %v6013 = vmul.f32 %v5998, %v6005
    %v6014 = vadd.f32 %v6012, %v6013
    %v6015 = vtanh.pop %v6014
    %v6016 = vmul.f32 %v6011, %v6015
    %v6017 = vsub.f32 %v100, %v5518
    %v6018 = vmul.f32 %v6017, %v6017
    %6019 = vadd.xlane.f32.xlu0 %v6018
    %v6020 = vpop.xlane.xlu0 %6019
    %v6021 = vadd.f32 %v6020, 0.0
    %v6022 = vsub.f32 %v99, %v5684
    %v6023 = vmul.f32 %v6022, %v6022
    %6024 = vadd.xlane.f32.xlu0 %v6023
    %v6025 = vpop.xlane.xlu0 %6024
    %v6026 = vadd.f32 %v6021, %v6025
    %v6027 = vsub.f32 %v98, %v5850
    %v6028 = vmul.f32 %v6027, %v6027
    %6029 = vadd.xlane.f32.xlu0 %v6028
    %v6030 = vpop.xlane.xlu0 %6029
    %v6031 = vadd.f32 %v6026, %v6030
    %v6032 = vsub.f32 %v97, %v6016
    %v6033 = vmul.f32 %v6032, %v6032
    %6034 = vadd.xlane.f32.xlu0 %v6033
    %v6035 = vpop.xlane.xlu0 %6034
    %v6036 = vadd.f32 %v6031, %v6035
    %v6037 = vmul.f32 %v6036, %v96
    %v6038 = vrot.slane %v6037, 4
    %v6039 = vadd.f32 %v6037, %v6038
    %v6040 = vrot.slane %v6039, 2
    %v6041 = vadd.f32 %v6039, %v6040
    %v6042 = vrot.slane %v6041, 1
    %v6043 = vadd.f32 %v6041, %v6042
    %v6044 = vadd.f32 %v97, %v1613
    %v6045 = vadd.f32 %v6044, %v5057
    %v6046 = vadd.f32 %v98, %v1783
    %v6047 = vadd.f32 %v6046, %v4887
    %v6048 = vmax.f32 %v6045, %v6047
    %v6049 = vadd.f32 %v99, %v1953
    %v6050 = vadd.f32 %v6049, %v4717
    %v6051 = vmax.f32 %v6048, %v6050
    %v6052 = vadd.f32 %v100, %v2123
    %v6053 = vadd.f32 %v6052, %v4547
    %v6054 = vmax.f32 %v6051, %v6053
    %v6055 = vld [vmem:[#allocation8] sm:$0xff]
    %v6056 = vld [vmem:[#allocation8 + $0x8] sm:$0xff]
    %v6057 = vld [vmem:[#allocation8 + $0x10] sm:$0xff]
    %v6058 = vld [vmem:[#allocation8 + $0x18] sm:$0xff]
    %v6059 = vld [vmem:[#allocation8 + $0x20] sm:$0xff]
    %v6060 = vld [vmem:[#allocation8 + $0x28] sm:$0xff]
    %v6061 = vld [vmem:[#allocation8 + $0x30] sm:$0xff]
    %v6062 = vld [vmem:[#allocation8 + $0x38] sm:$0xff]
    %v6063 = vld [vmem:[#allocation8 + $0x40] sm:$0xff]
    %v6064 = vld [vmem:[#allocation8 + $0x48] sm:$0xff]
    %v6065 = vld [vmem:[#allocation8 + $0x50] sm:$0xff]
    %v6066 = vld [vmem:[#allocation8 + $0x58] sm:$0xff]
    %v6067 = vld [vmem:[#allocation8 + $0x60] sm:$0xff]
    %v6068 = vld [vmem:[#allocation8 + $0x68] sm:$0xff]
    %v6069 = vld [vmem:[#allocation8 + $0x70] sm:$0xff]
    %v6070 = vld [vmem:[#allocation8 + $0x78] sm:$0xff]
    %v6071 = vld [vmem:[#allocation10] sm:$0x1]
    %v6073 = vlaneseq
    %v6074 = vshrl.u32 %v6073, 7
    %v6075 = vsub.s32 0, %v6074
    %v6076 = vrot.slane %v6071, %v6075
    %6078 = vmatprep.subr.mxu0 0.0
    %6079 = vmatpush1.msra.mxu0 %v6055
    %6080 = vmatprep.subr.mxu0 0.0
    %6081 = vmatpush1.msra.mxu0 %v6056
    %6082 = vmatprep.subr.mxu0 0.0
    %6083 = vmatpush1.msra.mxu0 %v6057
    %6084 = vmatprep.subr.mxu0 0.0
    %6085 = vmatpush1.msra.mxu0 %v6058
    %6086 = vmatprep.subr.mxu0 0.0
    %6087 = vmatpush1.msra.mxu0 %v6059
    %6088 = vmatprep.subr.mxu0 0.0
    %6089 = vmatpush1.msra.mxu0 %v6060
    %6090 = vmatprep.subr.mxu0 0.0
    %6091 = vmatpush1.msra.mxu0 %v6061
    %6092 = vmatprep.subr.mxu0 0.0
    %6093 = vmatpush1.msra.mxu0 %v6062
    %6094 = vmatprep.subr.mxu0 0.0
    %6095 = vmatpush1.msra.mxu0 %v6063
    %6096 = vmatprep.subr.mxu0 0.0
    %6097 = vmatpush1.msra.mxu0 %v6064
    %6098 = vmatprep.subr.mxu0 0.0
    %6099 = vmatpush1.msra.mxu0 %v6065
    %6100 = vmatprep.subr.mxu0 0.0
    %6101 = vmatpush1.msra.mxu0 %v6066
    %6102 = vmatprep.subr.mxu0 0.0
    %6103 = vmatpush1.msra.mxu0 %v6067
    %6104 = vmatprep.subr.mxu0 0.0
    %6105 = vmatpush1.msra.mxu0 %v6068
    %6106 = vmatprep.subr.mxu0 0.0
    %6107 = vmatpush1.msra.mxu0 %v6069
    %6108 = vmatprep.subr.mxu0 0.0
    %6109 = vmatpush1.msra.mxu0 %v6070
    %6110 = vmatprep.subr.mxu0 0.0
    %6111 = vmatpush1.msra.mxu0 0.0
    %6112 = vmatprep.subr.mxu0 0.0
    %6113 = vmatpush1.msra.mxu0 0.0
    %6114 = vmatprep.subr.mxu0 0.0
    %6115 = vmatpush1.msra.mxu0 0.0
    %6116 = vmatprep.subr.mxu0 0.0
    %6117 = vmatpush1.msra.mxu0 0.0
    %6118 = vmatprep.subr.mxu0 0.0
    %6119 = vmatpush1.msra.mxu0 0.0
    %6120 = vmatprep.subr.mxu0 0.0
    %6121 = vmatpush1.msra.mxu0 0.0
    %6122 = vmatprep.subr.mxu0 0.0
    %6123 = vmatpush1.msra.mxu0 0.0
    %6124 = vmatprep.subr.mxu0 0.0
    %6125 = vmatpush1.msra.mxu0 0.0
    %6126 = vmatprep.subr.mxu0 0.0
    %6127 = vmatpush1.msra.mxu0 0.0
    %6128 = vmatprep.subr.mxu0 0.0
    %6129 = vmatpush1.msra.mxu0 0.0
    %6130 = vmatprep.subr.mxu0 0.0
    %6131 = vmatpush1.msra.mxu0 0.0
    %6132 = vmatprep.subr.mxu0 0.0
    %6133 = vmatpush1.msra.mxu0 0.0
    %6134 = vmatprep.subr.mxu0 0.0
    %6135 = vmatpush1.msra.mxu0 0.0
    %6136 = vmatprep.subr.mxu0 0.0
    %6137 = vmatpush1.msra.mxu0 0.0
    %6138 = vmatprep.subr.mxu0 0.0
    %6139 = vmatpush1.msra.mxu0 0.0
    %6140 = vmatprep.subr.mxu0 0.0
    %6141 = vmatpush1.msra.mxu0 0.0
    %6142 = vmatprep.mubr.f32.mxu0 0.0
    %6143 = vmatmul.mubr.f32.gmra.mrb[0].mxu0 %v6054
    %v6144 = vpop.f32.mrb[0].mxu0
    %v6145 = vadd.f32 %v6076, %v6144
    %v6146 = vpop.f32.mrb[0].mxu0
    %6147 = vdwg.mxu0
    %6148 = vst [vmem:[%s6] sm:$0xff] %v6145
    %v6149 = vadd.f32 %v3031, %v6043
    %v6150 = vmul.f32 %v6149, 0.0009765625
    %vm6151 = vcmask 0
    %6152 = vst.msk [vmem:[#allocation11] sm:$0x1] %vm6151, %v6150
    // Predicated region
    $region46: #{elmo_max_forward.1} parent=1 // pred_check
      _
    $region47: #{elmo_max_forward.1} parent=1 // pred_check_branch
      %6154 = sbr.rel (0) target = $region49
    $region48: #{elmo_max_forward.1} parent=1 // pred_region
      _
    $region49: #{elmo_max_forward.1} parent=1 // pred_fallthru
      _
    // Predicated region
    $region50: #{elmo_max_forward.1} parent=1 // pred_check
      _
    $region51: #{elmo_max_forward.1} parent=1 // pred_check_branch
      %6156 = sbr.rel (0) target = $region53
    $region52: #{elmo_max_forward.1} parent=1 // pred_region
      %s6158 = ssub.s32 16, 16
      %6159 = vsyncadd [#allocation4], %s6158
      %s6161 = sshll.u32 [#allocation11], 4
      %s6162 = int_to_ptr.vmem [resolvable:$true] %s6161
      %6164 = dma.vmem_to_hbm [thread:$0]  %s6162, 16, %s7, [#allocation4]
    $region53: #{elmo_max_forward.1} parent=1 // pred_fallthru
      _
    // Predicated region
    $region54: #{elmo_max_forward.1} parent=1 // pred_check
      _
    $region55: #{elmo_max_forward.1} parent=1 // pred_check_branch
      %6166 = sbr.rel (0) target = $region57
    $region56: #{elmo_max_forward.1} parent=1 // pred_region
      _
    $region57: #{elmo_max_forward.1} parent=1 // pred_fallthru
      _
    // Predicated region
    $region58: #{elmo_max_forward.1} parent=1 // pred_check
      _
    $region59: #{elmo_max_forward.1} parent=1 // pred_check_branch
      %6168 = sbr.rel (0) target = $region61
    $region60: #{elmo_max_forward.1} parent=1 // pred_region
      %6169 = dma.done [#allocation4], 16
    $region61: #{elmo_max_forward.1} parent=1 // pred_fallthru
      _
    %6170 = vsyncpa [#allocation3], 1
    %6171 = vsyncpa [#allocation6], 1
    %6172 = vsyncpa [#allocation9], 1
    %6173 = vsyncpa [#allocation4], 1

</llo_original>
